<compile_context>
chip_gen: v7x
topology: tpu7x:2x2x1
jax: 0.10.0
libtpu: 0.0.40
codegen_flags: <defaults>
</compile_context>

<pallas_src>
import math
import functools

import jax
import jax.numpy as jnp
from jax.experimental import pallas as pl
from jax.experimental.pallas import tpu as pltpu


VOCAB_PAD = 128  # lane-dense padding for the final projection


_WEIGHT_NAMES = (
    # constants
    'head_mask',
    # encoder (stacked over layers)
    'enc_wqkv', 'enc_bqkv', 'enc_wo', 'enc_bo',
    'enc_g1', 'enc_be1',
    'enc_w1', 'enc_b1', 'enc_w2', 'enc_b2',
    'enc_g2', 'enc_be2',
    'enc_norm_g', 'enc_norm_b',
    # decoder (stacked over layers)
    'dec_sa_wqkv', 'dec_sa_bqkv', 'dec_sa_wo', 'dec_sa_bo',
    'dec_g1', 'dec_be1',
    'dec_ca_wq', 'dec_ca_bq', 'dec_ca_wkv', 'dec_ca_bkv', 'dec_ca_wo', 'dec_ca_bo',
    'dec_g2', 'dec_be2',
    'dec_w1', 'dec_b1', 'dec_w2', 'dec_b2',
    'dec_g3', 'dec_be3',
    'dec_norm_g', 'dec_norm_b',
    # final vocab projection (lane-padded to VOCAB_PAD)
    'out_w', 'out_b',
)


# --------------------------- the single fused kernel ---------------------------

def _fused_transformer_kernel(*refs, names, batch, nhead):
    out_ref = refs[-1]
    src_ref, pes_ref, tgt_ref, pet_ref = refs[:4]
    w = dict(zip(names, refs[4:-1]))

    f32 = jnp.float32
    bf16 = jnp.bfloat16

    E = src_ref.shape[1]
    S = src_ref.shape[0] // batch
    T = tgt_ref.shape[0] // batch
    dk = E // nhead
    n_enc = w['enc_wqkv'].shape[0]
    n_dec = w['dec_sa_wqkv'].shape[0]
    scale_emb = math.sqrt(E)
    scale_attn = 1.0 / math.sqrt(dk)

    # head-selection masks, loaded once (hoisted out of all in-kernel loops)
    head_masks = [w['head_mask'][h] for h in range(nhead)]   # each (1, E) f32

    def mm(a, b):
        # bf16 operands on the MXU, f32 accumulation
        return jnp.dot(a.astype(bf16), b.astype(bf16), preferred_element_type=f32)

    def layer_norm(x, g, b):
        # fused residual-add happens at the call site:  layer_norm(x + a, ...)
        mu = jnp.mean(x, axis=-1, keepdims=True)
        var = jnp.mean(jnp.square(x - mu), axis=-1, keepdims=True)
        return (x - mu) * jax.lax.rsqrt(var + 1e-5) * g + b

    def softmax(s):
        m = jnp.max(s, axis=-1, keepdims=True)
        p = jnp.exp(s - m)
        return p * pl.reciprocal(jnp.sum(p, axis=-1, keepdims=True), approx=True)

    def mha(q, k, v, tq, tk):
        # q: (B*tq, E), k/v: (B*tk, E), batch-major rows -> per-batch blocks contiguous.
        outs = []
        for b in range(batch):                       # static, unrolled (B=2)
            qb = q[b * tq:(b + 1) * tq]              # (tq, E)
            kb = k[b * tk:(b + 1) * tk]              # (tk, E)
            vb = v[b * tk:(b + 1) * tk]              # (tk, E)
            # stack the heads along rows via masking -> one (H*tq, E)x(E, tk) matmul
            qs = jnp.concatenate([qb * head_masks[h] for h in range(nhead)], axis=0)
            scores = mm(qs, kb.T) * scale_attn       # (H*tq, tk)
            p = softmax(scores)
            o_full = mm(p, vb)                       # (H*tq, E)
            ob = o_full[0:tq] * head_masks[0]
            for h in range(1, nhead):
                ob = ob + o_full[h * tq:(h + 1) * tq] * head_masks[h]
            outs.append(ob)                          # (tq, E)
        return jnp.concatenate(outs, axis=0)         # (B*tq, E)

    # ------------------------------- encoder -------------------------------
    # fused positional encoding:  emb * sqrt(E) + pe
    x = src_ref[...] * scale_emb + pes_ref[...]
    for l in range(n_enc):                           # static, unrolled
        qkv = mm(x, w['enc_wqkv'][l]) + w['enc_bqkv'][l]
        q, k, v = qkv[:, 0:E], qkv[:, E:2 * E], qkv[:, 2 * E:3 * E]
        a = mm(mha(q, k, v, S, S), w['enc_wo'][l]) + w['enc_bo'][l]
        x = layer_norm(x + a, w['enc_g1'][l], w['enc_be1'][l])
        h1 = jnp.maximum(mm(x, w['enc_w1'][l]) + w['enc_b1'][l], 0.0)
        f = mm(h1, w['enc_w2'][l]) + w['enc_b2'][l]
        x = layer_norm(x + f, w['enc_g2'][l], w['enc_be2'][l])
    memory = layer_norm(x, w['enc_norm_g'][...], w['enc_norm_b'][...])

    # ------------------------------- decoder -------------------------------
    # TODO(synk): no causal / padding masks — matches forward(src, tgt) which passes none.
    y = tgt_ref[...] * scale_emb + pet_ref[...]
    for l in range(n_dec):                           # static, unrolled
        qkv = mm(y, w['dec_sa_wqkv'][l]) + w['dec_sa_bqkv'][l]
        q, k, v = qkv[:, 0:E], qkv[:, E:2 * E], qkv[:, 2 * E:3 * E]
        a = mm(mha(q, k, v, T, T), w['dec_sa_wo'][l]) + w['dec_sa_bo'][l]
        y = layer_norm(y + a, w['dec_g1'][l], w['dec_be1'][l])

        q = mm(y, w['dec_ca_wq'][l]) + w['dec_ca_bq'][l]
        kv = mm(memory, w['dec_ca_wkv'][l]) + w['dec_ca_bkv'][l]
        k, v = kv[:, 0:E], kv[:, E:2 * E]
        c = mm(mha(q, k, v, T, S), w['dec_ca_wo'][l]) + w['dec_ca_bo'][l]
        y = layer_norm(y + c, w['dec_g2'][l], w['dec_be2'][l])

        h1 = jnp.maximum(mm(y, w['dec_w1'][l]) + w['dec_b1'][l], 0.0)
        f = mm(h1, w['dec_w2'][l]) + w['dec_b2'][l]
        y = layer_norm(y + f, w['dec_g3'][l], w['dec_be3'][l])
    y = layer_norm(y, w['dec_norm_g'][...], w['dec_norm_b'][...])

    # -------------------- final vocab projection (128 lanes) --------------------
    out_ref[...] = mm(y, w['out_w'][...]) + w['out_b'][...]


# ------------------------------ wrapper / glue ------------------------------

def transformer_forward(params, src, tgt, pe, *, nhead, out_vocab):
    """Equivalent of TransformerModel.forward(src, tgt) in eval mode."""
    S, B = src.shape
    T = tgt.shape[0]
    E = params['in_emb'].shape[1]

    # TODO(synk): embedding-table gather and dropout stay outside the kernel
    # (gather is a tiny XLA op; dropout is identity in eval mode).
    src_e = jnp.transpose(jnp.take(params['in_emb'], src, axis=0), (1, 0, 2)).reshape(B * S, E)
    tgt_e = jnp.transpose(jnp.take(params['out_emb'], tgt, axis=0), (1, 0, 2)).reshape(B * T, E)
    pe_s = jnp.tile(pe[:S], (B, 1))   # batch-major replication of pe rows
    pe_t = jnp.tile(pe[:T], (B, 1))

    weights = [params[n] for n in _WEIGHT_NAMES]
    vpad = params['out_w'].shape[1]
    kern = functools.partial(_fused_transformer_kernel,
                             names=_WEIGHT_NAMES, batch=B, nhead=nhead)

    out = pl.pallas_call(
        kern,
        out_shape=jax.ShapeDtypeStruct((B * T, vpad), jnp.float32),
        in_specs=[pl.BlockSpec(memory_space=pltpu.MemorySpace.VMEM)] * (4 + len(weights)),
        out_specs=pl.BlockSpec(memory_space=pltpu.MemorySpace.VMEM),
    )(src_e, pe_s, tgt_e, pe_t, *weights)

    # slice the lane-padded logits to the logical vocab, back to (T, B, V) seq-first
    return jnp.transpose(out[:, :out_vocab].reshape(B, T, out_vocab), (1, 0, 2))


# ------------------------------ parameters / pe ------------------------------

def make_pe(max_len, dim):
    position = jnp.arange(max_len, dtype=jnp.float32)[:, None]
    div_term = jnp.exp(jnp.arange(0, dim, 2, dtype=jnp.float32)
                       * -(math.log(10000.0) / dim))
    pe = jnp.zeros((max_len, dim), jnp.float32)
    pe = pe.at[:, 0::2].set(jnp.sin(position * div_term))
    pe = pe.at[:, 1::2].set(jnp.cos(position * div_term))
    return pe  # (max_len, dim)


def init_params(key, in_vocab, out_vocab, emb, nhead, nenc, ndec, dff,
                vocab_pad=VOCAB_PAD):
    keys = iter(jax.random.split(key, 512))
    f32, bf16 = jnp.float32, jnp.bfloat16

    def W(*shape, scale=0.02, dtype=bf16):
        # matmul weights stored bf16 (halved weight DMA); accumulation stays f32
        return (jax.random.normal(next(keys), shape, f32) * scale).astype(dtype)

    def zeros(*shape):
        return jnp.zeros(shape, f32)

    def ones(*shape):
        return jnp.ones(shape, f32)

    dk = emb // nhead
    cols = jnp.arange(emb)
    head_mask = jnp.stack(
        [((cols >= h * dk) & (cols < (h + 1) * dk)).astype(f32) for h in range(nhead)]
    ).reshape(nhead, 1, emb)

    out_w_logical = jax.random.normal(next(keys), (emb, out_vocab), f32) * 0.02
    out_w = jnp.pad(out_w_logical, ((0, 0), (0, vocab_pad - out_vocab))).astype(bf16)
    out_b = jnp.zeros((1, vocab_pad), f32)

    return dict(
        in_emb=jax.random.normal(next(keys), (in_vocab, emb), f32),
        out_emb=jax.random.normal(next(keys), (out_vocab, emb), f32),
        head_mask=head_mask,
        # encoder (stacked over nenc layers); QKV fused into one (E, 3E) weight
        enc_wqkv=W(nenc, emb, 3 * emb), enc_bqkv=zeros(nenc, 1, 3 * emb),
        enc_wo=W(nenc, emb, emb), enc_bo=zeros(nenc, 1, emb),
        enc_g1=ones(nenc, 1, emb), enc_be1=zeros(nenc, 1, emb),
        enc_w1=W(nenc, emb, dff), enc_b1=zeros(nenc, 1, dff),
        enc_w2=W(nenc, dff, emb), enc_b2=zeros(nenc, 1, emb),
        enc_g2=ones(nenc, 1, emb), enc_be2=zeros(nenc, 1, emb),
        enc_norm_g=ones(1, emb), enc_norm_b=zeros(1, emb),
        # decoder (stacked over ndec layers)
        dec_sa_wqkv=W(ndec, emb, 3 * emb), dec_sa_bqkv=zeros(ndec, 1, 3 * emb),
        dec_sa_wo=W(ndec, emb, emb), dec_sa_bo=zeros(ndec, 1, emb),
        dec_g1=ones(ndec, 1, emb), dec_be1=zeros(ndec, 1, emb),
        dec_ca_wq=W(ndec, emb, emb), dec_ca_bq=zeros(ndec, 1, emb),
        dec_ca_wkv=W(ndec, emb, 2 * emb), dec_ca_bkv=zeros(ndec, 1, 2 * emb),
        dec_ca_wo=W(ndec, emb, emb), dec_ca_bo=zeros(ndec, 1, emb),
        dec_g2=ones(ndec, 1, emb), dec_be2=zeros(ndec, 1, emb),
        dec_w1=W(ndec, emb, dff), dec_b1=zeros(ndec, 1, dff),
        dec_w2=W(ndec, dff, emb), dec_b2=zeros(ndec, 1, emb),
        dec_g3=ones(ndec, 1, emb), dec_be3=zeros(ndec, 1, emb),
        dec_norm_g=ones(1, emb), dec_norm_b=zeros(1, emb),
        # final projection, lane-padded to vocab_pad
        out_w=out_w, out_b=out_b,
    )


# ----------------------------------- main -----------------------------------

if __name__ == "__main__":
    # Small config (TransformerModel(in_vocab, emb, out_vocab, nhead=4,
    # num_encoder_layers=2, num_decoder_layers=2, dim_feedforward=64), eval mode)
    IN_VOCAB, OUT_VOCAB = 50, 60
    EMB, NHEAD, NENC, NDEC, DFF = 32, 4, 2, 2, 64
    S, T, B = 8, 8, 2          # src_len, tgt_len, batch
    MAX_LEN = 64               # positional-encoding table length

    key = jax.random.PRNGKey(0)
    kp, ks, kt = jax.random.split(key, 3)
    params = init_params(kp, IN_VOCAB, OUT_VOCAB, EMB, NHEAD, NENC, NDEC, DFF)
    pe = make_pe(MAX_LEN, EMB)

    src = jax.random.randint(ks, (S, B), 0, IN_VOCAB, dtype=jnp.int32)
    tgt = jax.random.randint(kt, (T, B), 0, OUT_VOCAB, dtype=jnp.int32)

    fwd = jax.jit(functools.partial(transformer_forward,
                                    nhead=NHEAD, out_vocab=OUT_VOCAB))
    out = jax.block_until_ready(fwd(params, src, tgt, pe))

    assert out.shape == (T, B, OUT_VOCAB), out.shape
    assert out.dtype == jnp.float32
    assert bool(jnp.all(jnp.isfinite(out)))
    print("KERNEL_OK")
</pallas_src>

<mosaic_0001>
module attributes {stable_mosaic.version = 11 : i64} {
  func.func @_fused_transformer_kernel(%arg0: memref<16x32xf32, #tpu.memory_space<vmem>>, %arg1: memref<16x32xf32, #tpu.memory_space<vmem>>, %arg2: memref<16x32xf32, #tpu.memory_space<vmem>>, %arg3: memref<16x32xf32, #tpu.memory_space<vmem>>, %arg4: memref<4x1x32xf32, #tpu.memory_space<vmem>>, %arg5: memref<2x32x96xbf16, #tpu.memory_space<vmem>>, %arg6: memref<2x1x96xf32, #tpu.memory_space<vmem>>, %arg7: memref<2x32x32xbf16, #tpu.memory_space<vmem>>, %arg8: memref<2x1x32xf32, #tpu.memory_space<vmem>>, %arg9: memref<2x1x32xf32, #tpu.memory_space<vmem>>, %arg10: memref<2x1x32xf32, #tpu.memory_space<vmem>>, %arg11: memref<2x32x64xbf16, #tpu.memory_space<vmem>>, %arg12: memref<2x1x64xf32, #tpu.memory_space<vmem>>, %arg13: memref<2x64x32xbf16, #tpu.memory_space<vmem>>, %arg14: memref<2x1x32xf32, #tpu.memory_space<vmem>>, %arg15: memref<2x1x32xf32, #tpu.memory_space<vmem>>, %arg16: memref<2x1x32xf32, #tpu.memory_space<vmem>>, %arg17: memref<1x32xf32, #tpu.memory_space<vmem>>, %arg18: memref<1x32xf32, #tpu.memory_space<vmem>>, %arg19: memref<2x32x96xbf16, #tpu.memory_space<vmem>>, %arg20: memref<2x1x96xf32, #tpu.memory_space<vmem>>, %arg21: memref<2x32x32xbf16, #tpu.memory_space<vmem>>, %arg22: memref<2x1x32xf32, #tpu.memory_space<vmem>>, %arg23: memref<2x1x32xf32, #tpu.memory_space<vmem>>, %arg24: memref<2x1x32xf32, #tpu.memory_space<vmem>>, %arg25: memref<2x32x32xbf16, #tpu.memory_space<vmem>>, %arg26: memref<2x1x32xf32, #tpu.memory_space<vmem>>, %arg27: memref<2x32x64xbf16, #tpu.memory_space<vmem>>, %arg28: memref<2x1x64xf32, #tpu.memory_space<vmem>>, %arg29: memref<2x32x32xbf16, #tpu.memory_space<vmem>>, %arg30: memref<2x1x32xf32, #tpu.memory_space<vmem>>, %arg31: memref<2x1x32xf32, #tpu.memory_space<vmem>>, %arg32: memref<2x1x32xf32, #tpu.memory_space<vmem>>, %arg33: memref<2x32x64xbf16, #tpu.memory_space<vmem>>, %arg34: memref<2x1x64xf32, #tpu.memory_space<vmem>>, %arg35: memref<2x64x32xbf16, #tpu.memory_space<vmem>>, %arg36: memref<2x1x32xf32, #tpu.memory_space<vmem>>, %arg37: memref<2x1x32xf32, #tpu.memory_space<vmem>>, %arg38: memref<2x1x32xf32, #tpu.memory_space<vmem>>, %arg39: memref<1x32xf32, #tpu.memory_space<vmem>>, %arg40: memref<1x32xf32, #tpu.memory_space<vmem>>, %arg41: memref<32x128xbf16, #tpu.memory_space<vmem>>, %arg42: memref<1x128xf32, #tpu.memory_space<vmem>>, %arg43: memref<16x128xf32, #tpu.memory_space<vmem>>) attributes {dimension_semantics = [], scalar_prefetch = 0 : i64, scratch_operands = 0 : i64, tpu.core_type = #tpu.core_type<tc>} {
    %c0 = arith.constant 0 : index
    %c0_0 = arith.constant 0 : index
    %c0_1 = arith.constant 0 : index
    %0 = vector.load %arg4[%c0, %c0_0, %c0_1] : memref<4x1x32xf32, #tpu.memory_space<vmem>>, vector<1x1x32xf32>
    %1 = vector.shape_cast %0 : vector<1x1x32xf32> to vector<1x32xf32>
    %c1 = arith.constant 1 : index
    %c0_2 = arith.constant 0 : index
    %c0_3 = arith.constant 0 : index
    %2 = vector.load %arg4[%c1, %c0_2, %c0_3] : memref<4x1x32xf32, #tpu.memory_space<vmem>>, vector<1x1x32xf32>
    %3 = vector.shape_cast %2 : vector<1x1x32xf32> to vector<1x32xf32>
    %c2 = arith.constant 2 : index
    %c0_4 = arith.constant 0 : index
    %c0_5 = arith.constant 0 : index
    %4 = vector.load %arg4[%c2, %c0_4, %c0_5] : memref<4x1x32xf32, #tpu.memory_space<vmem>>, vector<1x1x32xf32>
    %5 = vector.shape_cast %4 : vector<1x1x32xf32> to vector<1x32xf32>
    %c3 = arith.constant 3 : index
    %c0_6 = arith.constant 0 : index
    %c0_7 = arith.constant 0 : index
    %6 = vector.load %arg4[%c3, %c0_6, %c0_7] : memref<4x1x32xf32, #tpu.memory_space<vmem>>, vector<1x1x32xf32>
    %7 = vector.shape_cast %6 : vector<1x1x32xf32> to vector<1x32xf32>
    %c0_8 = arith.constant 0 : index
    %c0_9 = arith.constant 0 : index
    %8 = vector.load %arg0[%c0_8, %c0_9] : memref<16x32xf32, #tpu.memory_space<vmem>>, vector<16x32xf32>
    %cst = arith.constant 5.65685415 : f32
    %9 = vector.broadcast %cst : f32 to vector<16x32xf32>
    %10 = arith.mulf %8, %9 : vector<16x32xf32>
    %c0_10 = arith.constant 0 : index
    %c0_11 = arith.constant 0 : index
    %11 = vector.load %arg1[%c0_10, %c0_11] : memref<16x32xf32, #tpu.memory_space<vmem>>, vector<16x32xf32>
    %12 = arith.addf %10, %11 : vector<16x32xf32>
    %c0_12 = arith.constant 0 : index
    %c0_13 = arith.constant 0 : index
    %c0_14 = arith.constant 0 : index
    %13 = vector.load %arg5[%c0_12, %c0_13, %c0_14] : memref<2x32x96xbf16, #tpu.memory_space<vmem>>, vector<1x32x96xbf16>
    %14 = vector.shape_cast %13 : vector<1x32x96xbf16> to vector<32x96xbf16>
    %15 = arith.truncf %12 : vector<16x32xf32> to vector<16x32xbf16>
    %cst_15 = arith.constant dense<0.000000e+00> : vector<16x96xf32>
    %16 = tpu.matmul %15, %14, %cst_15 {dimension_numbers = #tpu.dot_dimension_numbers<[1], [0], [0], [1], [0, 0, 1, 1], [], []>} : vector<16x32xbf16>, vector<32x96xbf16>, vector<16x96xf32> -> vector<16x96xf32>
    %c0_16 = arith.constant 0 : index
    %c0_17 = arith.constant 0 : index
    %c0_18 = arith.constant 0 : index
    %17 = vector.load %arg6[%c0_16, %c0_17, %c0_18] : memref<2x1x96xf32, #tpu.memory_space<vmem>>, vector<1x1x96xf32>
    %18 = vector.shape_cast %17 : vector<1x1x96xf32> to vector<1x96xf32>
    %19 = vector.broadcast %18 : vector<1x96xf32> to vector<16x96xf32>
    %20 = arith.addf %16, %19 : vector<16x96xf32>
    %21 = vector.extract_strided_slice %20 {offsets = [0, 0], sizes = [16, 32], strides = [1, 1]} : vector<16x96xf32> to vector<16x32xf32>
    %22 = vector.extract_strided_slice %20 {offsets = [0, 32], sizes = [16, 32], strides = [1, 1]} : vector<16x96xf32> to vector<16x32xf32>
    %23 = vector.extract_strided_slice %20 {offsets = [0, 64], sizes = [16, 32], strides = [1, 1]} : vector<16x96xf32> to vector<16x32xf32>
    %24 = vector.extract_strided_slice %21 {offsets = [0, 0], sizes = [8, 32], strides = [1, 1]} : vector<16x32xf32> to vector<8x32xf32>
    %25 = vector.extract_strided_slice %22 {offsets = [0, 0], sizes = [8, 32], strides = [1, 1]} : vector<16x32xf32> to vector<8x32xf32>
    %26 = vector.extract_strided_slice %23 {offsets = [0, 0], sizes = [8, 32], strides = [1, 1]} : vector<16x32xf32> to vector<8x32xf32>
    %27 = vector.broadcast %1 : vector<1x32xf32> to vector<8x32xf32>
    %28 = arith.mulf %24, %27 : vector<8x32xf32>
    %29 = vector.broadcast %3 : vector<1x32xf32> to vector<8x32xf32>
    %30 = arith.mulf %24, %29 : vector<8x32xf32>
    %31 = vector.broadcast %5 : vector<1x32xf32> to vector<8x32xf32>
    %32 = arith.mulf %24, %31 : vector<8x32xf32>
    %33 = vector.broadcast %7 : vector<1x32xf32> to vector<8x32xf32>
    %34 = arith.mulf %24, %33 : vector<8x32xf32>
    %35 = tpu.concatenate %28, %30, %32, %34 in 0 : vector<8x32xf32>, vector<8x32xf32>, vector<8x32xf32>, vector<8x32xf32> -> vector<32x32xf32>
    %36 = tpu.transpose %25, [1, 0] : vector<8x32xf32> -> vector<32x8xf32>
    %37 = arith.truncf %35 : vector<32x32xf32> to vector<32x32xbf16>
    %38 = arith.truncf %36 : vector<32x8xf32> to vector<32x8xbf16>
    %cst_19 = arith.constant dense<0.000000e+00> : vector<32x8xf32>
    %39 = tpu.matmul %37, %38, %cst_19 {dimension_numbers = #tpu.dot_dimension_numbers<[1], [0], [0], [1], [0, 0, 1, 1], [], []>} : vector<32x32xbf16>, vector<32x8xbf16>, vector<32x8xf32> -> vector<32x8xf32>
    %cst_20 = arith.constant 0.353553385 : f32
    %40 = vector.broadcast %cst_20 : f32 to vector<32x8xf32>
    %41 = arith.mulf %39, %40 : vector<32x8xf32>
    %cst_21 = arith.constant dense<0xFF800000> : vector<32xf32>
    %42 = vector.multi_reduction <maximumf>, %41, %cst_21 [1] : vector<32x8xf32> to vector<32xf32>
    %43 = vector.shape_cast %42 : vector<32xf32> to vector<32x1xf32>
    %44 = vector.broadcast %43 : vector<32x1xf32> to vector<32x8xf32>
    %45 = arith.subf %41, %44 : vector<32x8xf32>
    %46 = math.exp %45 : vector<32x8xf32>
    %cst_22 = arith.constant dense<0.000000e+00> : vector<32xf32>
    %47 = vector.multi_reduction <add>, %46, %cst_22 [1] : vector<32x8xf32> to vector<32xf32>
    %48 = vector.shape_cast %47 : vector<32xf32> to vector<32x1xf32>
    %49 = tpu.reciprocal %48 {approx = true} : vector<32x1xf32> -> vector<32x1xf32>
    %50 = vector.broadcast %49 : vector<32x1xf32> to vector<32x8xf32>
    %51 = arith.mulf %46, %50 : vector<32x8xf32>
    %52 = arith.truncf %51 : vector<32x8xf32> to vector<32x8xbf16>
    %53 = arith.truncf %26 : vector<8x32xf32> to vector<8x32xbf16>
    %cst_23 = arith.constant dense<0.000000e+00> : vector<32x32xf32>
    %54 = tpu.matmul %52, %53, %cst_23 {dimension_numbers = #tpu.dot_dimension_numbers<[1], [0], [0], [1], [0, 0, 1, 1], [], []>} : vector<32x8xbf16>, vector<8x32xbf16>, vector<32x32xf32> -> vector<32x32xf32>
    %55 = vector.extract_strided_slice %54 {offsets = [0, 0], sizes = [8, 32], strides = [1, 1]} : vector<32x32xf32> to vector<8x32xf32>
    %56 = vector.broadcast %1 : vector<1x32xf32> to vector<8x32xf32>
    %57 = arith.mulf %55, %56 : vector<8x32xf32>
    %58 = vector.extract_strided_slice %54 {offsets = [8, 0], sizes = [8, 32], strides = [1, 1]} : vector<32x32xf32> to vector<8x32xf32>
    %59 = vector.broadcast %3 : vector<1x32xf32> to vector<8x32xf32>
    %60 = arith.mulf %58, %59 : vector<8x32xf32>
    %61 = arith.addf %57, %60 : vector<8x32xf32>
    %62 = vector.extract_strided_slice %54 {offsets = [16, 0], sizes = [8, 32], strides = [1, 1]} : vector<32x32xf32> to vector<8x32xf32>
    %63 = vector.broadcast %5 : vector<1x32xf32> to vector<8x32xf32>
    %64 = arith.mulf %62, %63 : vector<8x32xf32>
    %65 = arith.addf %61, %64 : vector<8x32xf32>
    %66 = vector.extract_strided_slice %54 {offsets = [24, 0], sizes = [8, 32], strides = [1, 1]} : vector<32x32xf32> to vector<8x32xf32>
    %67 = vector.broadcast %7 : vector<1x32xf32> to vector<8x32xf32>
    %68 = arith.mulf %66, %67 : vector<8x32xf32>
    %69 = arith.addf %65, %68 : vector<8x32xf32>
    %70 = vector.extract_strided_slice %21 {offsets = [8, 0], sizes = [8, 32], strides = [1, 1]} : vector<16x32xf32> to vector<8x32xf32>
    %71 = vector.extract_strided_slice %22 {offsets = [8, 0], sizes = [8, 32], strides = [1, 1]} : vector<16x32xf32> to vector<8x32xf32>
    %72 = vector.extract_strided_slice %23 {offsets = [8, 0], sizes = [8, 32], strides = [1, 1]} : vector<16x32xf32> to vector<8x32xf32>
    %73 = vector.broadcast %1 : vector<1x32xf32> to vector<8x32xf32>
    %74 = arith.mulf %70, %73 : vector<8x32xf32>
    %75 = vector.broadcast %3 : vector<1x32xf32> to vector<8x32xf32>
    %76 = arith.mulf %70, %75 : vector<8x32xf32>
    %77 = vector.broadcast %5 : vector<1x32xf32> to vector<8x32xf32>
    %78 = arith.mulf %70, %77 : vector<8x32xf32>
    %79 = vector.broadcast %7 : vector<1x32xf32> to vector<8x32xf32>
    %80 = arith.mulf %70, %79 : vector<8x32xf32>
    %81 = tpu.concatenate %74, %76, %78, %80 in 0 : vector<8x32xf32>, vector<8x32xf32>, vector<8x32xf32>, vector<8x32xf32> -> vector<32x32xf32>
    %82 = tpu.transpose %71, [1, 0] : vector<8x32xf32> -> vector<32x8xf32>
    %83 = arith.truncf %81 : vector<32x32xf32> to vector<32x32xbf16>
    %84 = arith.truncf %82 : vector<32x8xf32> to vector<32x8xbf16>
    %cst_24 = arith.constant dense<0.000000e+00> : vector<32x8xf32>
    %85 = tpu.matmul %83, %84, %cst_24 {dimension_numbers = #tpu.dot_dimension_numbers<[1], [0], [0], [1], [0, 0, 1, 1], [], []>} : vector<32x32xbf16>, vector<32x8xbf16>, vector<32x8xf32> -> vector<32x8xf32>
    %cst_25 = arith.constant 0.353553385 : f32
    %86 = vector.broadcast %cst_25 : f32 to vector<32x8xf32>
    %87 = arith.mulf %85, %86 : vector<32x8xf32>
    %cst_26 = arith.constant dense<0xFF800000> : vector<32xf32>
    %88 = vector.multi_reduction <maximumf>, %87, %cst_26 [1] : vector<32x8xf32> to vector<32xf32>
    %89 = vector.shape_cast %88 : vector<32xf32> to vector<32x1xf32>
    %90 = vector.broadcast %89 : vector<32x1xf32> to vector<32x8xf32>
    %91 = arith.subf %87, %90 : vector<32x8xf32>
    %92 = math.exp %91 : vector<32x8xf32>
    %cst_27 = arith.constant dense<0.000000e+00> : vector<32xf32>
    %93 = vector.multi_reduction <add>, %92, %cst_27 [1] : vector<32x8xf32> to vector<32xf32>
    %94 = vector.shape_cast %93 : vector<32xf32> to vector<32x1xf32>
    %95 = tpu.reciprocal %94 {approx = true} : vector<32x1xf32> -> vector<32x1xf32>
    %96 = vector.broadcast %95 : vector<32x1xf32> to vector<32x8xf32>
    %97 = arith.mulf %92, %96 : vector<32x8xf32>
    %98 = arith.truncf %97 : vector<32x8xf32> to vector<32x8xbf16>
    %99 = arith.truncf %72 : vector<8x32xf32> to vector<8x32xbf16>
    %cst_28 = arith.constant dense<0.000000e+00> : vector<32x32xf32>
    %100 = tpu.matmul %98, %99, %cst_28 {dimension_numbers = #tpu.dot_dimension_numbers<[1], [0], [0], [1], [0, 0, 1, 1], [], []>} : vector<32x8xbf16>, vector<8x32xbf16>, vector<32x32xf32> -> vector<32x32xf32>
    %101 = vector.extract_strided_slice %100 {offsets = [0, 0], sizes = [8, 32], strides = [1, 1]} : vector<32x32xf32> to vector<8x32xf32>
    %102 = vector.broadcast %1 : vector<1x32xf32> to vector<8x32xf32>
    %103 = arith.mulf %101, %102 : vector<8x32xf32>
    %104 = vector.extract_strided_slice %100 {offsets = [8, 0], sizes = [8, 32], strides = [1, 1]} : vector<32x32xf32> to vector<8x32xf32>
    %105 = vector.broadcast %3 : vector<1x32xf32> to vector<8x32xf32>
    %106 = arith.mulf %104, %105 : vector<8x32xf32>
    %107 = arith.addf %103, %106 : vector<8x32xf32>
    %108 = vector.extract_strided_slice %100 {offsets = [16, 0], sizes = [8, 32], strides = [1, 1]} : vector<32x32xf32> to vector<8x32xf32>
    %109 = vector.broadcast %5 : vector<1x32xf32> to vector<8x32xf32>
    %110 = arith.mulf %108, %109 : vector<8x32xf32>
    %111 = arith.addf %107, %110 : vector<8x32xf32>
    %112 = vector.extract_strided_slice %100 {offsets = [24, 0], sizes = [8, 32], strides = [1, 1]} : vector<32x32xf32> to vector<8x32xf32>
    %113 = vector.broadcast %7 : vector<1x32xf32> to vector<8x32xf32>
    %114 = arith.mulf %112, %113 : vector<8x32xf32>
    %115 = arith.addf %111, %114 : vector<8x32xf32>
    %116 = tpu.concatenate %69, %115 in 0 : vector<8x32xf32>, vector<8x32xf32> -> vector<16x32xf32>
    %c0_29 = arith.constant 0 : index
    %c0_30 = arith.constant 0 : index
    %c0_31 = arith.constant 0 : index
    %117 = vector.load %arg7[%c0_29, %c0_30, %c0_31] : memref<2x32x32xbf16, #tpu.memory_space<vmem>>, vector<1x32x32xbf16>
    %118 = vector.shape_cast %117 : vector<1x32x32xbf16> to vector<32x32xbf16>
    %119 = arith.truncf %116 : vector<16x32xf32> to vector<16x32xbf16>
    %cst_32 = arith.constant dense<0.000000e+00> : vector<16x32xf32>
    %120 = tpu.matmul %119, %118, %cst_32 {dimension_numbers = #tpu.dot_dimension_numbers<[1], [0], [0], [1], [0, 0, 1, 1], [], []>} : vector<16x32xbf16>, vector<32x32xbf16>, vector<16x32xf32> -> vector<16x32xf32>
    %c0_33 = arith.constant 0 : index
    %c0_34 = arith.constant 0 : index
    %c0_35 = arith.constant 0 : index
    %121 = vector.load %arg8[%c0_33, %c0_34, %c0_35] : memref<2x1x32xf32, #tpu.memory_space<vmem>>, vector<1x1x32xf32>
    %122 = vector.shape_cast %121 : vector<1x1x32xf32> to vector<1x32xf32>
    %123 = vector.broadcast %122 : vector<1x32xf32> to vector<16x32xf32>
    %124 = arith.addf %120, %123 : vector<16x32xf32>
    %125 = arith.addf %12, %124 : vector<16x32xf32>
    %c0_36 = arith.constant 0 : index
    %c0_37 = arith.constant 0 : index
    %c0_38 = arith.constant 0 : index
    %126 = vector.load %arg9[%c0_36, %c0_37, %c0_38] : memref<2x1x32xf32, #tpu.memory_space<vmem>>, vector<1x1x32xf32>
    %127 = vector.shape_cast %126 : vector<1x1x32xf32> to vector<1x32xf32>
    %c0_39 = arith.constant 0 : index
    %c0_40 = arith.constant 0 : index
    %c0_41 = arith.constant 0 : index
    %128 = vector.load %arg10[%c0_39, %c0_40, %c0_41] : memref<2x1x32xf32, #tpu.memory_space<vmem>>, vector<1x1x32xf32>
    %129 = vector.shape_cast %128 : vector<1x1x32xf32> to vector<1x32xf32>
    %cst_42 = arith.constant dense<0.000000e+00> : vector<16xf32>
    %130 = vector.multi_reduction <add>, %125, %cst_42 [1] : vector<16x32xf32> to vector<16xf32>
    %131 = vector.shape_cast %130 : vector<16xf32> to vector<16x1xf32>
    %cst_43 = arith.constant 3.200000e+01 : f32
    %132 = vector.broadcast %cst_43 : f32 to vector<16x1xf32>
    %133 = arith.divf %131, %132 : vector<16x1xf32>
    %134 = vector.broadcast %133 : vector<16x1xf32> to vector<16x32xf32>
    %135 = arith.subf %125, %134 : vector<16x32xf32>
    %136 = arith.mulf %135, %135 : vector<16x32xf32>
    %cst_44 = arith.constant dense<0.000000e+00> : vector<16xf32>
    %137 = vector.multi_reduction <add>, %136, %cst_44 [1] : vector<16x32xf32> to vector<16xf32>
    %138 = vector.shape_cast %137 : vector<16xf32> to vector<16x1xf32>
    %cst_45 = arith.constant 3.200000e+01 : f32
    %139 = vector.broadcast %cst_45 : f32 to vector<16x1xf32>
    %140 = arith.divf %138, %139 : vector<16x1xf32>
    %141 = vector.broadcast %133 : vector<16x1xf32> to vector<16x32xf32>
    %142 = arith.subf %125, %141 : vector<16x32xf32>
    %cst_46 = arith.constant 9.99999974E-6 : f32
    %143 = vector.broadcast %cst_46 : f32 to vector<16x1xf32>
    %144 = arith.addf %140, %143 : vector<16x1xf32>
    %145 = math.rsqrt %144 : vector<16x1xf32>
    %146 = vector.broadcast %145 : vector<16x1xf32> to vector<16x32xf32>
    %147 = arith.mulf %142, %146 : vector<16x32xf32>
    %148 = vector.broadcast %127 : vector<1x32xf32> to vector<16x32xf32>
    %149 = arith.mulf %147, %148 : vector<16x32xf32>
    %150 = vector.broadcast %129 : vector<1x32xf32> to vector<16x32xf32>
    %151 = arith.addf %149, %150 : vector<16x32xf32>
    %c0_47 = arith.constant 0 : index
    %c0_48 = arith.constant 0 : index
    %c0_49 = arith.constant 0 : index
    %152 = vector.load %arg11[%c0_47, %c0_48, %c0_49] : memref<2x32x64xbf16, #tpu.memory_space<vmem>>, vector<1x32x64xbf16>
    %153 = vector.shape_cast %152 : vector<1x32x64xbf16> to vector<32x64xbf16>
    %154 = arith.truncf %151 : vector<16x32xf32> to vector<16x32xbf16>
    %cst_50 = arith.constant dense<0.000000e+00> : vector<16x64xf32>
    %155 = tpu.matmul %154, %153, %cst_50 {dimension_numbers = #tpu.dot_dimension_numbers<[1], [0], [0], [1], [0, 0, 1, 1], [], []>} : vector<16x32xbf16>, vector<32x64xbf16>, vector<16x64xf32> -> vector<16x64xf32>
    %c0_51 = arith.constant 0 : index
    %c0_52 = arith.constant 0 : index
    %c0_53 = arith.constant 0 : index
    %156 = vector.load %arg12[%c0_51, %c0_52, %c0_53] : memref<2x1x64xf32, #tpu.memory_space<vmem>>, vector<1x1x64xf32>
    %157 = vector.shape_cast %156 : vector<1x1x64xf32> to vector<1x64xf32>
    %158 = vector.broadcast %157 : vector<1x64xf32> to vector<16x64xf32>
    %159 = arith.addf %155, %158 : vector<16x64xf32>
    %cst_54 = arith.constant 0.000000e+00 : f32
    %160 = vector.broadcast %cst_54 : f32 to vector<16x64xf32>
    %161 = arith.maximumf %159, %160 : vector<16x64xf32>
    %c0_55 = arith.constant 0 : index
    %c0_56 = arith.constant 0 : index
    %c0_57 = arith.constant 0 : index
    %162 = vector.load %arg13[%c0_55, %c0_56, %c0_57] : memref<2x64x32xbf16, #tpu.memory_space<vmem>>, vector<1x64x32xbf16>
    %163 = vector.shape_cast %162 : vector<1x64x32xbf16> to vector<64x32xbf16>
    %164 = arith.truncf %161 : vector<16x64xf32> to vector<16x64xbf16>
    %cst_58 = arith.constant dense<0.000000e+00> : vector<16x32xf32>
    %165 = tpu.matmul %164, %163, %cst_58 {dimension_numbers = #tpu.dot_dimension_numbers<[1], [0], [0], [1], [0, 0, 1, 1], [], []>} : vector<16x64xbf16>, vector<64x32xbf16>, vector<16x32xf32> -> vector<16x32xf32>
    %c0_59 = arith.constant 0 : index
    %c0_60 = arith.constant 0 : index
    %c0_61 = arith.constant 0 : index
    %166 = vector.load %arg14[%c0_59, %c0_60, %c0_61] : memref<2x1x32xf32, #tpu.memory_space<vmem>>, vector<1x1x32xf32>
    %167 = vector.shape_cast %166 : vector<1x1x32xf32> to vector<1x32xf32>
    %168 = vector.broadcast %167 : vector<1x32xf32> to vector<16x32xf32>
    %169 = arith.addf %165, %168 : vector<16x32xf32>
    %170 = arith.addf %151, %169 : vector<16x32xf32>
    %c0_62 = arith.constant 0 : index
    %c0_63 = arith.constant 0 : index
    %c0_64 = arith.constant 0 : index
    %171 = vector.load %arg15[%c0_62, %c0_63, %c0_64] : memref<2x1x32xf32, #tpu.memory_space<vmem>>, vector<1x1x32xf32>
    %172 = vector.shape_cast %171 : vector<1x1x32xf32> to vector<1x32xf32>
    %c0_65 = arith.constant 0 : index
    %c0_66 = arith.constant 0 : index
    %c0_67 = arith.constant 0 : index
    %173 = vector.load %arg16[%c0_65, %c0_66, %c0_67] : memref<2x1x32xf32, #tpu.memory_space<vmem>>, vector<1x1x32xf32>
    %174 = vector.shape_cast %173 : vector<1x1x32xf32> to vector<1x32xf32>
    %cst_68 = arith.constant dense<0.000000e+00> : vector<16xf32>
    %175 = vector.multi_reduction <add>, %170, %cst_68 [1] : vector<16x32xf32> to vector<16xf32>
    %176 = vector.shape_cast %175 : vector<16xf32> to vector<16x1xf32>
    %cst_69 = arith.constant 3.200000e+01 : f32
    %177 = vector.broadcast %cst_69 : f32 to vector<16x1xf32>
    %178 = arith.divf %176, %177 : vector<16x1xf32>
    %179 = vector.broadcast %178 : vector<16x1xf32> to vector<16x32xf32>
    %180 = arith.subf %170, %179 : vector<16x32xf32>
    %181 = arith.mulf %180, %180 : vector<16x32xf32>
    %cst_70 = arith.constant dense<0.000000e+00> : vector<16xf32>
    %182 = vector.multi_reduction <add>, %181, %cst_70 [1] : vector<16x32xf32> to vector<16xf32>
    %183 = vector.shape_cast %182 : vector<16xf32> to vector<16x1xf32>
    %cst_71 = arith.constant 3.200000e+01 : f32
    %184 = vector.broadcast %cst_71 : f32 to vector<16x1xf32>
    %185 = arith.divf %183, %184 : vector<16x1xf32>
    %186 = vector.broadcast %178 : vector<16x1xf32> to vector<16x32xf32>
    %187 = arith.subf %170, %186 : vector<16x32xf32>
    %cst_72 = arith.constant 9.99999974E-6 : f32
    %188 = vector.broadcast %cst_72 : f32 to vector<16x1xf32>
    %189 = arith.addf %185, %188 : vector<16x1xf32>
    %190 = math.rsqrt %189 : vector<16x1xf32>
    %191 = vector.broadcast %190 : vector<16x1xf32> to vector<16x32xf32>
    %192 = arith.mulf %187, %191 : vector<16x32xf32>
    %193 = vector.broadcast %172 : vector<1x32xf32> to vector<16x32xf32>
    %194 = arith.mulf %192, %193 : vector<16x32xf32>
    %195 = vector.broadcast %174 : vector<1x32xf32> to vector<16x32xf32>
    %196 = arith.addf %194, %195 : vector<16x32xf32>
    %c1_73 = arith.constant 1 : index
    %c0_74 = arith.constant 0 : index
    %c0_75 = arith.constant 0 : index
    %197 = vector.load %arg5[%c1_73, %c0_74, %c0_75] : memref<2x32x96xbf16, #tpu.memory_space<vmem>>, vector<1x32x96xbf16>
    %198 = vector.shape_cast %197 : vector<1x32x96xbf16> to vector<32x96xbf16>
    %199 = arith.truncf %196 : vector<16x32xf32> to vector<16x32xbf16>
    %cst_76 = arith.constant dense<0.000000e+00> : vector<16x96xf32>
    %200 = tpu.matmul %199, %198, %cst_76 {dimension_numbers = #tpu.dot_dimension_numbers<[1], [0], [0], [1], [0, 0, 1, 1], [], []>} : vector<16x32xbf16>, vector<32x96xbf16>, vector<16x96xf32> -> vector<16x96xf32>
    %c1_77 = arith.constant 1 : index
    %c0_78 = arith.constant 0 : index
    %c0_79 = arith.constant 0 : index
    %201 = vector.load %arg6[%c1_77, %c0_78, %c0_79] : memref<2x1x96xf32, #tpu.memory_space<vmem>>, vector<1x1x96xf32>
    %202 = vector.shape_cast %201 : vector<1x1x96xf32> to vector<1x96xf32>
    %203 = vector.broadcast %202 : vector<1x96xf32> to vector<16x96xf32>
    %204 = arith.addf %200, %203 : vector<16x96xf32>
    %205 = vector.extract_strided_slice %204 {offsets = [0, 0], sizes = [16, 32], strides = [1, 1]} : vector<16x96xf32> to vector<16x32xf32>
    %206 = vector.extract_strided_slice %204 {offsets = [0, 32], sizes = [16, 32], strides = [1, 1]} : vector<16x96xf32> to vector<16x32xf32>
    %207 = vector.extract_strided_slice %204 {offsets = [0, 64], sizes = [16, 32], strides = [1, 1]} : vector<16x96xf32> to vector<16x32xf32>
    %208 = vector.extract_strided_slice %205 {offsets = [0, 0], sizes = [8, 32], strides = [1, 1]} : vector<16x32xf32> to vector<8x32xf32>
    %209 = vector.extract_strided_slice %206 {offsets = [0, 0], sizes = [8, 32], strides = [1, 1]} : vector<16x32xf32> to vector<8x32xf32>
    %210 = vector.extract_strided_slice %207 {offsets = [0, 0], sizes = [8, 32], strides = [1, 1]} : vector<16x32xf32> to vector<8x32xf32>
    %211 = vector.broadcast %1 : vector<1x32xf32> to vector<8x32xf32>
    %212 = arith.mulf %208, %211 : vector<8x32xf32>
    %213 = vector.broadcast %3 : vector<1x32xf32> to vector<8x32xf32>
    %214 = arith.mulf %208, %213 : vector<8x32xf32>
    %215 = vector.broadcast %5 : vector<1x32xf32> to vector<8x32xf32>
    %216 = arith.mulf %208, %215 : vector<8x32xf32>
    %217 = vector.broadcast %7 : vector<1x32xf32> to vector<8x32xf32>
    %218 = arith.mulf %208, %217 : vector<8x32xf32>
    %219 = tpu.concatenate %212, %214, %216, %218 in 0 : vector<8x32xf32>, vector<8x32xf32>, vector<8x32xf32>, vector<8x32xf32> -> vector<32x32xf32>
    %220 = tpu.transpose %209, [1, 0] : vector<8x32xf32> -> vector<32x8xf32>
    %221 = arith.truncf %219 : vector<32x32xf32> to vector<32x32xbf16>
    %222 = arith.truncf %220 : vector<32x8xf32> to vector<32x8xbf16>
    %cst_80 = arith.constant dense<0.000000e+00> : vector<32x8xf32>
    %223 = tpu.matmul %221, %222, %cst_80 {dimension_numbers = #tpu.dot_dimension_numbers<[1], [0], [0], [1], [0, 0, 1, 1], [], []>} : vector<32x32xbf16>, vector<32x8xbf16>, vector<32x8xf32> -> vector<32x8xf32>
    %cst_81 = arith.constant 0.353553385 : f32
    %224 = vector.broadcast %cst_81 : f32 to vector<32x8xf32>
    %225 = arith.mulf %223, %224 : vector<32x8xf32>
    %cst_82 = arith.constant dense<0xFF800000> : vector<32xf32>
    %226 = vector.multi_reduction <maximumf>, %225, %cst_82 [1] : vector<32x8xf32> to vector<32xf32>
    %227 = vector.shape_cast %226 : vector<32xf32> to vector<32x1xf32>
    %228 = vector.broadcast %227 : vector<32x1xf32> to vector<32x8xf32>
    %229 = arith.subf %225, %228 : vector<32x8xf32>
    %230 = math.exp %229 : vector<32x8xf32>
    %cst_83 = arith.constant dense<0.000000e+00> : vector<32xf32>
    %231 = vector.multi_reduction <add>, %230, %cst_83 [1] : vector<32x8xf32> to vector<32xf32>
    %232 = vector.shape_cast %231 : vector<32xf32> to vector<32x1xf32>
    %233 = tpu.reciprocal %232 {approx = true} : vector<32x1xf32> -> vector<32x1xf32>
    %234 = vector.broadcast %233 : vector<32x1xf32> to vector<32x8xf32>
    %235 = arith.mulf %230, %234 : vector<32x8xf32>
    %236 = arith.truncf %235 : vector<32x8xf32> to vector<32x8xbf16>
    %237 = arith.truncf %210 : vector<8x32xf32> to vector<8x32xbf16>
    %cst_84 = arith.constant dense<0.000000e+00> : vector<32x32xf32>
    %238 = tpu.matmul %236, %237, %cst_84 {dimension_numbers = #tpu.dot_dimension_numbers<[1], [0], [0], [1], [0, 0, 1, 1], [], []>} : vector<32x8xbf16>, vector<8x32xbf16>, vector<32x32xf32> -> vector<32x32xf32>
    %239 = vector.extract_strided_slice %238 {offsets = [0, 0], sizes = [8, 32], strides = [1, 1]} : vector<32x32xf32> to vector<8x32xf32>
    %240 = vector.broadcast %1 : vector<1x32xf32> to vector<8x32xf32>
    %241 = arith.mulf %239, %240 : vector<8x32xf32>
    %242 = vector.extract_strided_slice %238 {offsets = [8, 0], sizes = [8, 32], strides = [1, 1]} : vector<32x32xf32> to vector<8x32xf32>
    %243 = vector.broadcast %3 : vector<1x32xf32> to vector<8x32xf32>
    %244 = arith.mulf %242, %243 : vector<8x32xf32>
    %245 = arith.addf %241, %244 : vector<8x32xf32>
    %246 = vector.extract_strided_slice %238 {offsets = [16, 0], sizes = [8, 32], strides = [1, 1]} : vector<32x32xf32> to vector<8x32xf32>
    %247 = vector.broadcast %5 : vector<1x32xf32> to vector<8x32xf32>
    %248 = arith.mulf %246, %247 : vector<8x32xf32>
    %249 = arith.addf %245, %248 : vector<8x32xf32>
    %250 = vector.extract_strided_slice %238 {offsets = [24, 0], sizes = [8, 32], strides = [1, 1]} : vector<32x32xf32> to vector<8x32xf32>
    %251 = vector.broadcast %7 : vector<1x32xf32> to vector<8x32xf32>
    %252 = arith.mulf %250, %251 : vector<8x32xf32>
    %253 = arith.addf %249, %252 : vector<8x32xf32>
    %254 = vector.extract_strided_slice %205 {offsets = [8, 0], sizes = [8, 32], strides = [1, 1]} : vector<16x32xf32> to vector<8x32xf32>
    %255 = vector.extract_strided_slice %206 {offsets = [8, 0], sizes = [8, 32], strides = [1, 1]} : vector<16x32xf32> to vector<8x32xf32>
    %256 = vector.extract_strided_slice %207 {offsets = [8, 0], sizes = [8, 32], strides = [1, 1]} : vector<16x32xf32> to vector<8x32xf32>
    %257 = vector.broadcast %1 : vector<1x32xf32> to vector<8x32xf32>
    %258 = arith.mulf %254, %257 : vector<8x32xf32>
    %259 = vector.broadcast %3 : vector<1x32xf32> to vector<8x32xf32>
    %260 = arith.mulf %254, %259 : vector<8x32xf32>
    %261 = vector.broadcast %5 : vector<1x32xf32> to vector<8x32xf32>
    %262 = arith.mulf %254, %261 : vector<8x32xf32>
    %263 = vector.broadcast %7 : vector<1x32xf32> to vector<8x32xf32>
    %264 = arith.mulf %254, %263 : vector<8x32xf32>
    %265 = tpu.concatenate %258, %260, %262, %264 in 0 : vector<8x32xf32>, vector<8x32xf32>, vector<8x32xf32>, vector<8x32xf32> -> vector<32x32xf32>
    %266 = tpu.transpose %255, [1, 0] : vector<8x32xf32> -> vector<32x8xf32>
    %267 = arith.truncf %265 : vector<32x32xf32> to vector<32x32xbf16>
    %268 = arith.truncf %266 : vector<32x8xf32> to vector<32x8xbf16>
    %cst_85 = arith.constant dense<0.000000e+00> : vector<32x8xf32>
    %269 = tpu.matmul %267, %268, %cst_85 {dimension_numbers = #tpu.dot_dimension_numbers<[1], [0], [0], [1], [0, 0, 1, 1], [], []>} : vector<32x32xbf16>, vector<32x8xbf16>, vector<32x8xf32> -> vector<32x8xf32>
    %cst_86 = arith.constant 0.353553385 : f32
    %270 = vector.broadcast %cst_86 : f32 to vector<32x8xf32>
    %271 = arith.mulf %269, %270 : vector<32x8xf32>
    %cst_87 = arith.constant dense<0xFF800000> : vector<32xf32>
    %272 = vector.multi_reduction <maximumf>, %271, %cst_87 [1] : vector<32x8xf32> to vector<32xf32>
    %273 = vector.shape_cast %272 : vector<32xf32> to vector<32x1xf32>
    %274 = vector.broadcast %273 : vector<32x1xf32> to vector<32x8xf32>
    %275 = arith.subf %271, %274 : vector<32x8xf32>
    %276 = math.exp %275 : vector<32x8xf32>
    %cst_88 = arith.constant dense<0.000000e+00> : vector<32xf32>
    %277 = vector.multi_reduction <add>, %276, %cst_88 [1] : vector<32x8xf32> to vector<32xf32>
    %278 = vector.shape_cast %277 : vector<32xf32> to vector<32x1xf32>
    %279 = tpu.reciprocal %278 {approx = true} : vector<32x1xf32> -> vector<32x1xf32>
    %280 = vector.broadcast %279 : vector<32x1xf32> to vector<32x8xf32>
    %281 = arith.mulf %276, %280 : vector<32x8xf32>
    %282 = arith.truncf %281 : vector<32x8xf32> to vector<32x8xbf16>
    %283 = arith.truncf %256 : vector<8x32xf32> to vector<8x32xbf16>
    %cst_89 = arith.constant dense<0.000000e+00> : vector<32x32xf32>
    %284 = tpu.matmul %282, %283, %cst_89 {dimension_numbers = #tpu.dot_dimension_numbers<[1], [0], [0], [1], [0, 0, 1, 1], [], []>} : vector<32x8xbf16>, vector<8x32xbf16>, vector<32x32xf32> -> vector<32x32xf32>
    %285 = vector.extract_strided_slice %284 {offsets = [0, 0], sizes = [8, 32], strides = [1, 1]} : vector<32x32xf32> to vector<8x32xf32>
    %286 = vector.broadcast %1 : vector<1x32xf32> to vector<8x32xf32>
    %287 = arith.mulf %285, %286 : vector<8x32xf32>
    %288 = vector.extract_strided_slice %284 {offsets = [8, 0], sizes = [8, 32], strides = [1, 1]} : vector<32x32xf32> to vector<8x32xf32>
    %289 = vector.broadcast %3 : vector<1x32xf32> to vector<8x32xf32>
    %290 = arith.mulf %288, %289 : vector<8x32xf32>
    %291 = arith.addf %287, %290 : vector<8x32xf32>
    %292 = vector.extract_strided_slice %284 {offsets = [16, 0], sizes = [8, 32], strides = [1, 1]} : vector<32x32xf32> to vector<8x32xf32>
    %293 = vector.broadcast %5 : vector<1x32xf32> to vector<8x32xf32>
    %294 = arith.mulf %292, %293 : vector<8x32xf32>
    %295 = arith.addf %291, %294 : vector<8x32xf32>
    %296 = vector.extract_strided_slice %284 {offsets = [24, 0], sizes = [8, 32], strides = [1, 1]} : vector<32x32xf32> to vector<8x32xf32>
    %297 = vector.broadcast %7 : vector<1x32xf32> to vector<8x32xf32>
    %298 = arith.mulf %296, %297 : vector<8x32xf32>
    %299 = arith.addf %295, %298 : vector<8x32xf32>
    %300 = tpu.concatenate %253, %299 in 0 : vector<8x32xf32>, vector<8x32xf32> -> vector<16x32xf32>
    %c1_90 = arith.constant 1 : index
    %c0_91 = arith.constant 0 : index
    %c0_92 = arith.constant 0 : index
    %301 = vector.load %arg7[%c1_90, %c0_91, %c0_92] : memref<2x32x32xbf16, #tpu.memory_space<vmem>>, vector<1x32x32xbf16>
    %302 = vector.shape_cast %301 : vector<1x32x32xbf16> to vector<32x32xbf16>
    %303 = arith.truncf %300 : vector<16x32xf32> to vector<16x32xbf16>
    %cst_93 = arith.constant dense<0.000000e+00> : vector<16x32xf32>
    %304 = tpu.matmul %303, %302, %cst_93 {dimension_numbers = #tpu.dot_dimension_numbers<[1], [0], [0], [1], [0, 0, 1, 1], [], []>} : vector<16x32xbf16>, vector<32x32xbf16>, vector<16x32xf32> -> vector<16x32xf32>
    %c1_94 = arith.constant 1 : index
    %c0_95 = arith.constant 0 : index
    %c0_96 = arith.constant 0 : index
    %305 = vector.load %arg8[%c1_94, %c0_95, %c0_96] : memref<2x1x32xf32, #tpu.memory_space<vmem>>, vector<1x1x32xf32>
    %306 = vector.shape_cast %305 : vector<1x1x32xf32> to vector<1x32xf32>
    %307 = vector.broadcast %306 : vector<1x32xf32> to vector<16x32xf32>
    %308 = arith.addf %304, %307 : vector<16x32xf32>
    %309 = arith.addf %196, %308 : vector<16x32xf32>
    %c1_97 = arith.constant 1 : index
    %c0_98 = arith.constant 0 : index
    %c0_99 = arith.constant 0 : index
    %310 = vector.load %arg9[%c1_97, %c0_98, %c0_99] : memref<2x1x32xf32, #tpu.memory_space<vmem>>, vector<1x1x32xf32>
    %311 = vector.shape_cast %310 : vector<1x1x32xf32> to vector<1x32xf32>
    %c1_100 = arith.constant 1 : index
    %c0_101 = arith.constant 0 : index
    %c0_102 = arith.constant 0 : index
    %312 = vector.load %arg10[%c1_100, %c0_101, %c0_102] : memref<2x1x32xf32, #tpu.memory_space<vmem>>, vector<1x1x32xf32>
    %313 = vector.shape_cast %312 : vector<1x1x32xf32> to vector<1x32xf32>
    %cst_103 = arith.constant dense<0.000000e+00> : vector<16xf32>
    %314 = vector.multi_reduction <add>, %309, %cst_103 [1] : vector<16x32xf32> to vector<16xf32>
    %315 = vector.shape_cast %314 : vector<16xf32> to vector<16x1xf32>
    %cst_104 = arith.constant 3.200000e+01 : f32
    %316 = vector.broadcast %cst_104 : f32 to vector<16x1xf32>
    %317 = arith.divf %315, %316 : vector<16x1xf32>
    %318 = vector.broadcast %317 : vector<16x1xf32> to vector<16x32xf32>
    %319 = arith.subf %309, %318 : vector<16x32xf32>
    %320 = arith.mulf %319, %319 : vector<16x32xf32>
    %cst_105 = arith.constant dense<0.000000e+00> : vector<16xf32>
    %321 = vector.multi_reduction <add>, %320, %cst_105 [1] : vector<16x32xf32> to vector<16xf32>
    %322 = vector.shape_cast %321 : vector<16xf32> to vector<16x1xf32>
    %cst_106 = arith.constant 3.200000e+01 : f32
    %323 = vector.broadcast %cst_106 : f32 to vector<16x1xf32>
    %324 = arith.divf %322, %323 : vector<16x1xf32>
    %325 = vector.broadcast %317 : vector<16x1xf32> to vector<16x32xf32>
    %326 = arith.subf %309, %325 : vector<16x32xf32>
    %cst_107 = arith.constant 9.99999974E-6 : f32
    %327 = vector.broadcast %cst_107 : f32 to vector<16x1xf32>
    %328 = arith.addf %324, %327 : vector<16x1xf32>
    %329 = math.rsqrt %328 : vector<16x1xf32>
    %330 = vector.broadcast %329 : vector<16x1xf32> to vector<16x32xf32>
    %331 = arith.mulf %326, %330 : vector<16x32xf32>
    %332 = vector.broadcast %311 : vector<1x32xf32> to vector<16x32xf32>
    %333 = arith.mulf %331, %332 : vector<16x32xf32>
    %334 = vector.broadcast %313 : vector<1x32xf32> to vector<16x32xf32>
    %335 = arith.addf %333, %334 : vector<16x32xf32>
    %c1_108 = arith.constant 1 : index
    %c0_109 = arith.constant 0 : index
    %c0_110 = arith.constant 0 : index
    %336 = vector.load %arg11[%c1_108, %c0_109, %c0_110] : memref<2x32x64xbf16, #tpu.memory_space<vmem>>, vector<1x32x64xbf16>
    %337 = vector.shape_cast %336 : vector<1x32x64xbf16> to vector<32x64xbf16>
    %338 = arith.truncf %335 : vector<16x32xf32> to vector<16x32xbf16>
    %cst_111 = arith.constant dense<0.000000e+00> : vector<16x64xf32>
    %339 = tpu.matmul %338, %337, %cst_111 {dimension_numbers = #tpu.dot_dimension_numbers<[1], [0], [0], [1], [0, 0, 1, 1], [], []>} : vector<16x32xbf16>, vector<32x64xbf16>, vector<16x64xf32> -> vector<16x64xf32>
    %c1_112 = arith.constant 1 : index
    %c0_113 = arith.constant 0 : index
    %c0_114 = arith.constant 0 : index
    %340 = vector.load %arg12[%c1_112, %c0_113, %c0_114] : memref<2x1x64xf32, #tpu.memory_space<vmem>>, vector<1x1x64xf32>
    %341 = vector.shape_cast %340 : vector<1x1x64xf32> to vector<1x64xf32>
    %342 = vector.broadcast %341 : vector<1x64xf32> to vector<16x64xf32>
    %343 = arith.addf %339, %342 : vector<16x64xf32>
    %cst_115 = arith.constant 0.000000e+00 : f32
    %344 = vector.broadcast %cst_115 : f32 to vector<16x64xf32>
    %345 = arith.maximumf %343, %344 : vector<16x64xf32>
    %c1_116 = arith.constant 1 : index
    %c0_117 = arith.constant 0 : index
    %c0_118 = arith.constant 0 : index
    %346 = vector.load %arg13[%c1_116, %c0_117, %c0_118] : memref<2x64x32xbf16, #tpu.memory_space<vmem>>, vector<1x64x32xbf16>
    %347 = vector.shape_cast %346 : vector<1x64x32xbf16> to vector<64x32xbf16>
    %348 = arith.truncf %345 : vector<16x64xf32> to vector<16x64xbf16>
    %cst_119 = arith.constant dense<0.000000e+00> : vector<16x32xf32>
    %349 = tpu.matmul %348, %347, %cst_119 {dimension_numbers = #tpu.dot_dimension_numbers<[1], [0], [0], [1], [0, 0, 1, 1], [], []>} : vector<16x64xbf16>, vector<64x32xbf16>, vector<16x32xf32> -> vector<16x32xf32>
    %c1_120 = arith.constant 1 : index
    %c0_121 = arith.constant 0 : index
    %c0_122 = arith.constant 0 : index
    %350 = vector.load %arg14[%c1_120, %c0_121, %c0_122] : memref<2x1x32xf32, #tpu.memory_space<vmem>>, vector<1x1x32xf32>
    %351 = vector.shape_cast %350 : vector<1x1x32xf32> to vector<1x32xf32>
    %352 = vector.broadcast %351 : vector<1x32xf32> to vector<16x32xf32>
    %353 = arith.addf %349, %352 : vector<16x32xf32>
    %354 = arith.addf %335, %353 : vector<16x32xf32>
    %c1_123 = arith.constant 1 : index
    %c0_124 = arith.constant 0 : index
    %c0_125 = arith.constant 0 : index
    %355 = vector.load %arg15[%c1_123, %c0_124, %c0_125] : memref<2x1x32xf32, #tpu.memory_space<vmem>>, vector<1x1x32xf32>
    %356 = vector.shape_cast %355 : vector<1x1x32xf32> to vector<1x32xf32>
    %c1_126 = arith.constant 1 : index
    %c0_127 = arith.constant 0 : index
    %c0_128 = arith.constant 0 : index
    %357 = vector.load %arg16[%c1_126, %c0_127, %c0_128] : memref<2x1x32xf32, #tpu.memory_space<vmem>>, vector<1x1x32xf32>
    %358 = vector.shape_cast %357 : vector<1x1x32xf32> to vector<1x32xf32>
    %cst_129 = arith.constant dense<0.000000e+00> : vector<16xf32>
    %359 = vector.multi_reduction <add>, %354, %cst_129 [1] : vector<16x32xf32> to vector<16xf32>
    %360 = vector.shape_cast %359 : vector<16xf32> to vector<16x1xf32>
    %cst_130 = arith.constant 3.200000e+01 : f32
    %361 = vector.broadcast %cst_130 : f32 to vector<16x1xf32>
    %362 = arith.divf %360, %361 : vector<16x1xf32>
    %363 = vector.broadcast %362 : vector<16x1xf32> to vector<16x32xf32>
    %364 = arith.subf %354, %363 : vector<16x32xf32>
    %365 = arith.mulf %364, %364 : vector<16x32xf32>
    %cst_131 = arith.constant dense<0.000000e+00> : vector<16xf32>
    %366 = vector.multi_reduction <add>, %365, %cst_131 [1] : vector<16x32xf32> to vector<16xf32>
    %367 = vector.shape_cast %366 : vector<16xf32> to vector<16x1xf32>
    %cst_132 = arith.constant 3.200000e+01 : f32
    %368 = vector.broadcast %cst_132 : f32 to vector<16x1xf32>
    %369 = arith.divf %367, %368 : vector<16x1xf32>
    %370 = vector.broadcast %362 : vector<16x1xf32> to vector<16x32xf32>
    %371 = arith.subf %354, %370 : vector<16x32xf32>
    %cst_133 = arith.constant 9.99999974E-6 : f32
    %372 = vector.broadcast %cst_133 : f32 to vector<16x1xf32>
    %373 = arith.addf %369, %372 : vector<16x1xf32>
    %374 = math.rsqrt %373 : vector<16x1xf32>
    %375 = vector.broadcast %374 : vector<16x1xf32> to vector<16x32xf32>
    %376 = arith.mulf %371, %375 : vector<16x32xf32>
    %377 = vector.broadcast %356 : vector<1x32xf32> to vector<16x32xf32>
    %378 = arith.mulf %376, %377 : vector<16x32xf32>
    %379 = vector.broadcast %358 : vector<1x32xf32> to vector<16x32xf32>
    %380 = arith.addf %378, %379 : vector<16x32xf32>
    %c0_134 = arith.constant 0 : index
    %c0_135 = arith.constant 0 : index
    %381 = vector.load %arg17[%c0_134, %c0_135] : memref<1x32xf32, #tpu.memory_space<vmem>>, vector<1x32xf32>
    %c0_136 = arith.constant 0 : index
    %c0_137 = arith.constant 0 : index
    %382 = vector.load %arg18[%c0_136, %c0_137] : memref<1x32xf32, #tpu.memory_space<vmem>>, vector<1x32xf32>
    %cst_138 = arith.constant dense<0.000000e+00> : vector<16xf32>
    %383 = vector.multi_reduction <add>, %380, %cst_138 [1] : vector<16x32xf32> to vector<16xf32>
    %384 = vector.shape_cast %383 : vector<16xf32> to vector<16x1xf32>
    %cst_139 = arith.constant 3.200000e+01 : f32
    %385 = vector.broadcast %cst_139 : f32 to vector<16x1xf32>
    %386 = arith.divf %384, %385 : vector<16x1xf32>
    %387 = vector.broadcast %386 : vector<16x1xf32> to vector<16x32xf32>
    %388 = arith.subf %380, %387 : vector<16x32xf32>
    %389 = arith.mulf %388, %388 : vector<16x32xf32>
    %cst_140 = arith.constant dense<0.000000e+00> : vector<16xf32>
    %390 = vector.multi_reduction <add>, %389, %cst_140 [1] : vector<16x32xf32> to vector<16xf32>
    %391 = vector.shape_cast %390 : vector<16xf32> to vector<16x1xf32>
    %cst_141 = arith.constant 3.200000e+01 : f32
    %392 = vector.broadcast %cst_141 : f32 to vector<16x1xf32>
    %393 = arith.divf %391, %392 : vector<16x1xf32>
    %394 = vector.broadcast %386 : vector<16x1xf32> to vector<16x32xf32>
    %395 = arith.subf %380, %394 : vector<16x32xf32>
    %cst_142 = arith.constant 9.99999974E-6 : f32
    %396 = vector.broadcast %cst_142 : f32 to vector<16x1xf32>
    %397 = arith.addf %393, %396 : vector<16x1xf32>
    %398 = math.rsqrt %397 : vector<16x1xf32>
    %399 = vector.broadcast %398 : vector<16x1xf32> to vector<16x32xf32>
    %400 = arith.mulf %395, %399 : vector<16x32xf32>
    %401 = vector.broadcast %381 : vector<1x32xf32> to vector<16x32xf32>
    %402 = arith.mulf %400, %401 : vector<16x32xf32>
    %403 = vector.broadcast %382 : vector<1x32xf32> to vector<16x32xf32>
    %404 = arith.addf %402, %403 : vector<16x32xf32>
    %c0_143 = arith.constant 0 : index
    %c0_144 = arith.constant 0 : index
    %405 = vector.load %arg2[%c0_143, %c0_144] : memref<16x32xf32, #tpu.memory_space<vmem>>, vector<16x32xf32>
    %cst_145 = arith.constant 5.65685415 : f32
    %406 = vector.broadcast %cst_145 : f32 to vector<16x32xf32>
    %407 = arith.mulf %405, %406 : vector<16x32xf32>
    %c0_146 = arith.constant 0 : index
    %c0_147 = arith.constant 0 : index
    %408 = vector.load %arg3[%c0_146, %c0_147] : memref<16x32xf32, #tpu.memory_space<vmem>>, vector<16x32xf32>
    %409 = arith.addf %407, %408 : vector<16x32xf32>
    %c0_148 = arith.constant 0 : index
    %c0_149 = arith.constant 0 : index
    %c0_150 = arith.constant 0 : index
    %410 = vector.load %arg19[%c0_148, %c0_149, %c0_150] : memref<2x32x96xbf16, #tpu.memory_space<vmem>>, vector<1x32x96xbf16>
    %411 = vector.shape_cast %410 : vector<1x32x96xbf16> to vector<32x96xbf16>
    %412 = arith.truncf %409 : vector<16x32xf32> to vector<16x32xbf16>
    %cst_151 = arith.constant dense<0.000000e+00> : vector<16x96xf32>
    %413 = tpu.matmul %412, %411, %cst_151 {dimension_numbers = #tpu.dot_dimension_numbers<[1], [0], [0], [1], [0, 0, 1, 1], [], []>} : vector<16x32xbf16>, vector<32x96xbf16>, vector<16x96xf32> -> vector<16x96xf32>
    %c0_152 = arith.constant 0 : index
    %c0_153 = arith.constant 0 : index
    %c0_154 = arith.constant 0 : index
    %414 = vector.load %arg20[%c0_152, %c0_153, %c0_154] : memref<2x1x96xf32, #tpu.memory_space<vmem>>, vector<1x1x96xf32>
    %415 = vector.shape_cast %414 : vector<1x1x96xf32> to vector<1x96xf32>
    %416 = vector.broadcast %415 : vector<1x96xf32> to vector<16x96xf32>
    %417 = arith.addf %413, %416 : vector<16x96xf32>
    %418 = vector.extract_strided_slice %417 {offsets = [0, 0], sizes = [16, 32], strides = [1, 1]} : vector<16x96xf32> to vector<16x32xf32>
    %419 = vector.extract_strided_slice %417 {offsets = [0, 32], sizes = [16, 32], strides = [1, 1]} : vector<16x96xf32> to vector<16x32xf32>
    %420 = vector.extract_strided_slice %417 {offsets = [0, 64], sizes = [16, 32], strides = [1, 1]} : vector<16x96xf32> to vector<16x32xf32>
    %421 = vector.extract_strided_slice %418 {offsets = [0, 0], sizes = [8, 32], strides = [1, 1]} : vector<16x32xf32> to vector<8x32xf32>
    %422 = vector.extract_strided_slice %419 {offsets = [0, 0], sizes = [8, 32], strides = [1, 1]} : vector<16x32xf32> to vector<8x32xf32>
    %423 = vector.extract_strided_slice %420 {offsets = [0, 0], sizes = [8, 32], strides = [1, 1]} : vector<16x32xf32> to vector<8x32xf32>
    %424 = vector.broadcast %1 : vector<1x32xf32> to vector<8x32xf32>
    %425 = arith.mulf %421, %424 : vector<8x32xf32>
    %426 = vector.broadcast %3 : vector<1x32xf32> to vector<8x32xf32>
    %427 = arith.mulf %421, %426 : vector<8x32xf32>
    %428 = vector.broadcast %5 : vector<1x32xf32> to vector<8x32xf32>
    %429 = arith.mulf %421, %428 : vector<8x32xf32>
    %430 = vector.broadcast %7 : vector<1x32xf32> to vector<8x32xf32>
    %431 = arith.mulf %421, %430 : vector<8x32xf32>
    %432 = tpu.concatenate %425, %427, %429, %431 in 0 : vector<8x32xf32>, vector<8x32xf32>, vector<8x32xf32>, vector<8x32xf32> -> vector<32x32xf32>
    %433 = tpu.transpose %422, [1, 0] : vector<8x32xf32> -> vector<32x8xf32>
    %434 = arith.truncf %432 : vector<32x32xf32> to vector<32x32xbf16>
    %435 = arith.truncf %433 : vector<32x8xf32> to vector<32x8xbf16>
    %cst_155 = arith.constant dense<0.000000e+00> : vector<32x8xf32>
    %436 = tpu.matmul %434, %435, %cst_155 {dimension_numbers = #tpu.dot_dimension_numbers<[1], [0], [0], [1], [0, 0, 1, 1], [], []>} : vector<32x32xbf16>, vector<32x8xbf16>, vector<32x8xf32> -> vector<32x8xf32>
    %cst_156 = arith.constant 0.353553385 : f32
    %437 = vector.broadcast %cst_156 : f32 to vector<32x8xf32>
    %438 = arith.mulf %436, %437 : vector<32x8xf32>
    %cst_157 = arith.constant dense<0xFF800000> : vector<32xf32>
    %439 = vector.multi_reduction <maximumf>, %438, %cst_157 [1] : vector<32x8xf32> to vector<32xf32>
    %440 = vector.shape_cast %439 : vector<32xf32> to vector<32x1xf32>
    %441 = vector.broadcast %440 : vector<32x1xf32> to vector<32x8xf32>
    %442 = arith.subf %438, %441 : vector<32x8xf32>
    %443 = math.exp %442 : vector<32x8xf32>
    %cst_158 = arith.constant dense<0.000000e+00> : vector<32xf32>
    %444 = vector.multi_reduction <add>, %443, %cst_158 [1] : vector<32x8xf32> to vector<32xf32>
    %445 = vector.shape_cast %444 : vector<32xf32> to vector<32x1xf32>
    %446 = tpu.reciprocal %445 {approx = true} : vector<32x1xf32> -> vector<32x1xf32>
    %447 = vector.broadcast %446 : vector<32x1xf32> to vector<32x8xf32>
    %448 = arith.mulf %443, %447 : vector<32x8xf32>
    %449 = arith.truncf %448 : vector<32x8xf32> to vector<32x8xbf16>
    %450 = arith.truncf %423 : vector<8x32xf32> to vector<8x32xbf16>
    %cst_159 = arith.constant dense<0.000000e+00> : vector<32x32xf32>
    %451 = tpu.matmul %449, %450, %cst_159 {dimension_numbers = #tpu.dot_dimension_numbers<[1], [0], [0], [1], [0, 0, 1, 1], [], []>} : vector<32x8xbf16>, vector<8x32xbf16>, vector<32x32xf32> -> vector<32x32xf32>
    %452 = vector.extract_strided_slice %451 {offsets = [0, 0], sizes = [8, 32], strides = [1, 1]} : vector<32x32xf32> to vector<8x32xf32>
    %453 = vector.broadcast %1 : vector<1x32xf32> to vector<8x32xf32>
    %454 = arith.mulf %452, %453 : vector<8x32xf32>
    %455 = vector.extract_strided_slice %451 {offsets = [8, 0], sizes = [8, 32], strides = [1, 1]} : vector<32x32xf32> to vector<8x32xf32>
    %456 = vector.broadcast %3 : vector<1x32xf32> to vector<8x32xf32>
    %457 = arith.mulf %455, %456 : vector<8x32xf32>
    %458 = arith.addf %454, %457 : vector<8x32xf32>
    %459 = vector.extract_strided_slice %451 {offsets = [16, 0], sizes = [8, 32], strides = [1, 1]} : vector<32x32xf32> to vector<8x32xf32>
    %460 = vector.broadcast %5 : vector<1x32xf32> to vector<8x32xf32>
    %461 = arith.mulf %459, %460 : vector<8x32xf32>
    %462 = arith.addf %458, %461 : vector<8x32xf32>
    %463 = vector.extract_strided_slice %451 {offsets = [24, 0], sizes = [8, 32], strides = [1, 1]} : vector<32x32xf32> to vector<8x32xf32>
    %464 = vector.broadcast %7 : vector<1x32xf32> to vector<8x32xf32>
    %465 = arith.mulf %463, %464 : vector<8x32xf32>
    %466 = arith.addf %462, %465 : vector<8x32xf32>
    %467 = vector.extract_strided_slice %418 {offsets = [8, 0], sizes = [8, 32], strides = [1, 1]} : vector<16x32xf32> to vector<8x32xf32>
    %468 = vector.extract_strided_slice %419 {offsets = [8, 0], sizes = [8, 32], strides = [1, 1]} : vector<16x32xf32> to vector<8x32xf32>
    %469 = vector.extract_strided_slice %420 {offsets = [8, 0], sizes = [8, 32], strides = [1, 1]} : vector<16x32xf32> to vector<8x32xf32>
    %470 = vector.broadcast %1 : vector<1x32xf32> to vector<8x32xf32>
    %471 = arith.mulf %467, %470 : vector<8x32xf32>
    %472 = vector.broadcast %3 : vector<1x32xf32> to vector<8x32xf32>
    %473 = arith.mulf %467, %472 : vector<8x32xf32>
    %474 = vector.broadcast %5 : vector<1x32xf32> to vector<8x32xf32>
    %475 = arith.mulf %467, %474 : vector<8x32xf32>
    %476 = vector.broadcast %7 : vector<1x32xf32> to vector<8x32xf32>
    %477 = arith.mulf %467, %476 : vector<8x32xf32>
    %478 = tpu.concatenate %471, %473, %475, %477 in 0 : vector<8x32xf32>, vector<8x32xf32>, vector<8x32xf32>, vector<8x32xf32> -> vector<32x32xf32>
    %479 = tpu.transpose %468, [1, 0] : vector<8x32xf32> -> vector<32x8xf32>
    %480 = arith.truncf %478 : vector<32x32xf32> to vector<32x32xbf16>
    %481 = arith.truncf %479 : vector<32x8xf32> to vector<32x8xbf16>
    %cst_160 = arith.constant dense<0.000000e+00> : vector<32x8xf32>
    %482 = tpu.matmul %480, %481, %cst_160 {dimension_numbers = #tpu.dot_dimension_numbers<[1], [0], [0], [1], [0, 0, 1, 1], [], []>} : vector<32x32xbf16>, vector<32x8xbf16>, vector<32x8xf32> -> vector<32x8xf32>
    %cst_161 = arith.constant 0.353553385 : f32
    %483 = vector.broadcast %cst_161 : f32 to vector<32x8xf32>
    %484 = arith.mulf %482, %483 : vector<32x8xf32>
    %cst_162 = arith.constant dense<0xFF800000> : vector<32xf32>
    %485 = vector.multi_reduction <maximumf>, %484, %cst_162 [1] : vector<32x8xf32> to vector<32xf32>
    %486 = vector.shape_cast %485 : vector<32xf32> to vector<32x1xf32>
    %487 = vector.broadcast %486 : vector<32x1xf32> to vector<32x8xf32>
    %488 = arith.subf %484, %487 : vector<32x8xf32>
    %489 = math.exp %488 : vector<32x8xf32>
    %cst_163 = arith.constant dense<0.000000e+00> : vector<32xf32>
    %490 = vector.multi_reduction <add>, %489, %cst_163 [1] : vector<32x8xf32> to vector<32xf32>
    %491 = vector.shape_cast %490 : vector<32xf32> to vector<32x1xf32>
    %492 = tpu.reciprocal %491 {approx = true} : vector<32x1xf32> -> vector<32x1xf32>
    %493 = vector.broadcast %492 : vector<32x1xf32> to vector<32x8xf32>
    %494 = arith.mulf %489, %493 : vector<32x8xf32>
    %495 = arith.truncf %494 : vector<32x8xf32> to vector<32x8xbf16>
    %496 = arith.truncf %469 : vector<8x32xf32> to vector<8x32xbf16>
    %cst_164 = arith.constant dense<0.000000e+00> : vector<32x32xf32>
    %497 = tpu.matmul %495, %496, %cst_164 {dimension_numbers = #tpu.dot_dimension_numbers<[1], [0], [0], [1], [0, 0, 1, 1], [], []>} : vector<32x8xbf16>, vector<8x32xbf16>, vector<32x32xf32> -> vector<32x32xf32>
    %498 = vector.extract_strided_slice %497 {offsets = [0, 0], sizes = [8, 32], strides = [1, 1]} : vector<32x32xf32> to vector<8x32xf32>
    %499 = vector.broadcast %1 : vector<1x32xf32> to vector<8x32xf32>
    %500 = arith.mulf %498, %499 : vector<8x32xf32>
    %501 = vector.extract_strided_slice %497 {offsets = [8, 0], sizes = [8, 32], strides = [1, 1]} : vector<32x32xf32> to vector<8x32xf32>
    %502 = vector.broadcast %3 : vector<1x32xf32> to vector<8x32xf32>
    %503 = arith.mulf %501, %502 : vector<8x32xf32>
    %504 = arith.addf %500, %503 : vector<8x32xf32>
    %505 = vector.extract_strided_slice %497 {offsets = [16, 0], sizes = [8, 32], strides = [1, 1]} : vector<32x32xf32> to vector<8x32xf32>
    %506 = vector.broadcast %5 : vector<1x32xf32> to vector<8x32xf32>
    %507 = arith.mulf %505, %506 : vector<8x32xf32>
    %508 = arith.addf %504, %507 : vector<8x32xf32>
    %509 = vector.extract_strided_slice %497 {offsets = [24, 0], sizes = [8, 32], strides = [1, 1]} : vector<32x32xf32> to vector<8x32xf32>
    %510 = vector.broadcast %7 : vector<1x32xf32> to vector<8x32xf32>
    %511 = arith.mulf %509, %510 : vector<8x32xf32>
    %512 = arith.addf %508, %511 : vector<8x32xf32>
    %513 = tpu.concatenate %466, %512 in 0 : vector<8x32xf32>, vector<8x32xf32> -> vector<16x32xf32>
    %c0_165 = arith.constant 0 : index
    %c0_166 = arith.constant 0 : index
    %c0_167 = arith.constant 0 : index
    %514 = vector.load %arg21[%c0_165, %c0_166, %c0_167] : memref<2x32x32xbf16, #tpu.memory_space<vmem>>, vector<1x32x32xbf16>
    %515 = vector.shape_cast %514 : vector<1x32x32xbf16> to vector<32x32xbf16>
    %516 = arith.truncf %513 : vector<16x32xf32> to vector<16x32xbf16>
    %cst_168 = arith.constant dense<0.000000e+00> : vector<16x32xf32>
    %517 = tpu.matmul %516, %515, %cst_168 {dimension_numbers = #tpu.dot_dimension_numbers<[1], [0], [0], [1], [0, 0, 1, 1], [], []>} : vector<16x32xbf16>, vector<32x32xbf16>, vector<16x32xf32> -> vector<16x32xf32>
    %c0_169 = arith.constant 0 : index
    %c0_170 = arith.constant 0 : index
    %c0_171 = arith.constant 0 : index
    %518 = vector.load %arg22[%c0_169, %c0_170, %c0_171] : memref<2x1x32xf32, #tpu.memory_space<vmem>>, vector<1x1x32xf32>
    %519 = vector.shape_cast %518 : vector<1x1x32xf32> to vector<1x32xf32>
    %520 = vector.broadcast %519 : vector<1x32xf32> to vector<16x32xf32>
    %521 = arith.addf %517, %520 : vector<16x32xf32>
    %522 = arith.addf %409, %521 : vector<16x32xf32>
    %c0_172 = arith.constant 0 : index
    %c0_173 = arith.constant 0 : index
    %c0_174 = arith.constant 0 : index
    %523 = vector.load %arg23[%c0_172, %c0_173, %c0_174] : memref<2x1x32xf32, #tpu.memory_space<vmem>>, vector<1x1x32xf32>
    %524 = vector.shape_cast %523 : vector<1x1x32xf32> to vector<1x32xf32>
    %c0_175 = arith.constant 0 : index
    %c0_176 = arith.constant 0 : index
    %c0_177 = arith.constant 0 : index
    %525 = vector.load %arg24[%c0_175, %c0_176, %c0_177] : memref<2x1x32xf32, #tpu.memory_space<vmem>>, vector<1x1x32xf32>
    %526 = vector.shape_cast %525 : vector<1x1x32xf32> to vector<1x32xf32>
    %cst_178 = arith.constant dense<0.000000e+00> : vector<16xf32>
    %527 = vector.multi_reduction <add>, %522, %cst_178 [1] : vector<16x32xf32> to vector<16xf32>
    %528 = vector.shape_cast %527 : vector<16xf32> to vector<16x1xf32>
    %cst_179 = arith.constant 3.200000e+01 : f32
    %529 = vector.broadcast %cst_179 : f32 to vector<16x1xf32>
    %530 = arith.divf %528, %529 : vector<16x1xf32>
    %531 = vector.broadcast %530 : vector<16x1xf32> to vector<16x32xf32>
    %532 = arith.subf %522, %531 : vector<16x32xf32>
    %533 = arith.mulf %532, %532 : vector<16x32xf32>
    %cst_180 = arith.constant dense<0.000000e+00> : vector<16xf32>
    %534 = vector.multi_reduction <add>, %533, %cst_180 [1] : vector<16x32xf32> to vector<16xf32>
    %535 = vector.shape_cast %534 : vector<16xf32> to vector<16x1xf32>
    %cst_181 = arith.constant 3.200000e+01 : f32
    %536 = vector.broadcast %cst_181 : f32 to vector<16x1xf32>
    %537 = arith.divf %535, %536 : vector<16x1xf32>
    %538 = vector.broadcast %530 : vector<16x1xf32> to vector<16x32xf32>
    %539 = arith.subf %522, %538 : vector<16x32xf32>
    %cst_182 = arith.constant 9.99999974E-6 : f32
    %540 = vector.broadcast %cst_182 : f32 to vector<16x1xf32>
    %541 = arith.addf %537, %540 : vector<16x1xf32>
    %542 = math.rsqrt %541 : vector<16x1xf32>
    %543 = vector.broadcast %542 : vector<16x1xf32> to vector<16x32xf32>
    %544 = arith.mulf %539, %543 : vector<16x32xf32>
    %545 = vector.broadcast %524 : vector<1x32xf32> to vector<16x32xf32>
    %546 = arith.mulf %544, %545 : vector<16x32xf32>
    %547 = vector.broadcast %526 : vector<1x32xf32> to vector<16x32xf32>
    %548 = arith.addf %546, %547 : vector<16x32xf32>
    %c0_183 = arith.constant 0 : index
    %c0_184 = arith.constant 0 : index
    %c0_185 = arith.constant 0 : index
    %549 = vector.load %arg25[%c0_183, %c0_184, %c0_185] : memref<2x32x32xbf16, #tpu.memory_space<vmem>>, vector<1x32x32xbf16>
    %550 = vector.shape_cast %549 : vector<1x32x32xbf16> to vector<32x32xbf16>
    %551 = arith.truncf %548 : vector<16x32xf32> to vector<16x32xbf16>
    %cst_186 = arith.constant dense<0.000000e+00> : vector<16x32xf32>
    %552 = tpu.matmul %551, %550, %cst_186 {dimension_numbers = #tpu.dot_dimension_numbers<[1], [0], [0], [1], [0, 0, 1, 1], [], []>} : vector<16x32xbf16>, vector<32x32xbf16>, vector<16x32xf32> -> vector<16x32xf32>
    %c0_187 = arith.constant 0 : index
    %c0_188 = arith.constant 0 : index
    %c0_189 = arith.constant 0 : index
    %553 = vector.load %arg26[%c0_187, %c0_188, %c0_189] : memref<2x1x32xf32, #tpu.memory_space<vmem>>, vector<1x1x32xf32>
    %554 = vector.shape_cast %553 : vector<1x1x32xf32> to vector<1x32xf32>
    %555 = vector.broadcast %554 : vector<1x32xf32> to vector<16x32xf32>
    %556 = arith.addf %552, %555 : vector<16x32xf32>
    %c0_190 = arith.constant 0 : index
    %c0_191 = arith.constant 0 : index
    %c0_192 = arith.constant 0 : index
    %557 = vector.load %arg27[%c0_190, %c0_191, %c0_192] : memref<2x32x64xbf16, #tpu.memory_space<vmem>>, vector<1x32x64xbf16>
    %558 = vector.shape_cast %557 : vector<1x32x64xbf16> to vector<32x64xbf16>
    %559 = arith.truncf %404 : vector<16x32xf32> to vector<16x32xbf16>
    %cst_193 = arith.constant dense<0.000000e+00> : vector<16x64xf32>
    %560 = tpu.matmul %559, %558, %cst_193 {dimension_numbers = #tpu.dot_dimension_numbers<[1], [0], [0], [1], [0, 0, 1, 1], [], []>} : vector<16x32xbf16>, vector<32x64xbf16>, vector<16x64xf32> -> vector<16x64xf32>
    %c0_194 = arith.constant 0 : index
    %c0_195 = arith.constant 0 : index
    %c0_196 = arith.constant 0 : index
    %561 = vector.load %arg28[%c0_194, %c0_195, %c0_196] : memref<2x1x64xf32, #tpu.memory_space<vmem>>, vector<1x1x64xf32>
    %562 = vector.shape_cast %561 : vector<1x1x64xf32> to vector<1x64xf32>
    %563 = vector.broadcast %562 : vector<1x64xf32> to vector<16x64xf32>
    %564 = arith.addf %560, %563 : vector<16x64xf32>
    %565 = vector.extract_strided_slice %564 {offsets = [0, 0], sizes = [16, 32], strides = [1, 1]} : vector<16x64xf32> to vector<16x32xf32>
    %566 = vector.extract_strided_slice %564 {offsets = [0, 32], sizes = [16, 32], strides = [1, 1]} : vector<16x64xf32> to vector<16x32xf32>
    %567 = vector.extract_strided_slice %556 {offsets = [0, 0], sizes = [8, 32], strides = [1, 1]} : vector<16x32xf32> to vector<8x32xf32>
    %568 = vector.extract_strided_slice %565 {offsets = [0, 0], sizes = [8, 32], strides = [1, 1]} : vector<16x32xf32> to vector<8x32xf32>
    %569 = vector.extract_strided_slice %566 {offsets = [0, 0], sizes = [8, 32], strides = [1, 1]} : vector<16x32xf32> to vector<8x32xf32>
    %570 = vector.broadcast %1 : vector<1x32xf32> to vector<8x32xf32>
    %571 = arith.mulf %567, %570 : vector<8x32xf32>
    %572 = vector.broadcast %3 : vector<1x32xf32> to vector<8x32xf32>
    %573 = arith.mulf %567, %572 : vector<8x32xf32>
    %574 = vector.broadcast %5 : vector<1x32xf32> to vector<8x32xf32>
    %575 = arith.mulf %567, %574 : vector<8x32xf32>
    %576 = vector.broadcast %7 : vector<1x32xf32> to vector<8x32xf32>
    %577 = arith.mulf %567, %576 : vector<8x32xf32>
    %578 = tpu.concatenate %571, %573, %575, %577 in 0 : vector<8x32xf32>, vector<8x32xf32>, vector<8x32xf32>, vector<8x32xf32> -> vector<32x32xf32>
    %579 = tpu.transpose %568, [1, 0] : vector<8x32xf32> -> vector<32x8xf32>
    %580 = arith.truncf %578 : vector<32x32xf32> to vector<32x32xbf16>
    %581 = arith.truncf %579 : vector<32x8xf32> to vector<32x8xbf16>
    %cst_197 = arith.constant dense<0.000000e+00> : vector<32x8xf32>
    %582 = tpu.matmul %580, %581, %cst_197 {dimension_numbers = #tpu.dot_dimension_numbers<[1], [0], [0], [1], [0, 0, 1, 1], [], []>} : vector<32x32xbf16>, vector<32x8xbf16>, vector<32x8xf32> -> vector<32x8xf32>
    %cst_198 = arith.constant 0.353553385 : f32
    %583 = vector.broadcast %cst_198 : f32 to vector<32x8xf32>
    %584 = arith.mulf %582, %583 : vector<32x8xf32>
    %cst_199 = arith.constant dense<0xFF800000> : vector<32xf32>
    %585 = vector.multi_reduction <maximumf>, %584, %cst_199 [1] : vector<32x8xf32> to vector<32xf32>
    %586 = vector.shape_cast %585 : vector<32xf32> to vector<32x1xf32>
    %587 = vector.broadcast %586 : vector<32x1xf32> to vector<32x8xf32>
    %588 = arith.subf %584, %587 : vector<32x8xf32>
    %589 = math.exp %588 : vector<32x8xf32>
    %cst_200 = arith.constant dense<0.000000e+00> : vector<32xf32>
    %590 = vector.multi_reduction <add>, %589, %cst_200 [1] : vector<32x8xf32> to vector<32xf32>
    %591 = vector.shape_cast %590 : vector<32xf32> to vector<32x1xf32>
    %592 = tpu.reciprocal %591 {approx = true} : vector<32x1xf32> -> vector<32x1xf32>
    %593 = vector.broadcast %592 : vector<32x1xf32> to vector<32x8xf32>
    %594 = arith.mulf %589, %593 : vector<32x8xf32>
    %595 = arith.truncf %594 : vector<32x8xf32> to vector<32x8xbf16>
    %596 = arith.truncf %569 : vector<8x32xf32> to vector<8x32xbf16>
    %cst_201 = arith.constant dense<0.000000e+00> : vector<32x32xf32>
    %597 = tpu.matmul %595, %596, %cst_201 {dimension_numbers = #tpu.dot_dimension_numbers<[1], [0], [0], [1], [0, 0, 1, 1], [], []>} : vector<32x8xbf16>, vector<8x32xbf16>, vector<32x32xf32> -> vector<32x32xf32>
    %598 = vector.extract_strided_slice %597 {offsets = [0, 0], sizes = [8, 32], strides = [1, 1]} : vector<32x32xf32> to vector<8x32xf32>
    %599 = vector.broadcast %1 : vector<1x32xf32> to vector<8x32xf32>
    %600 = arith.mulf %598, %599 : vector<8x32xf32>
    %601 = vector.extract_strided_slice %597 {offsets = [8, 0], sizes = [8, 32], strides = [1, 1]} : vector<32x32xf32> to vector<8x32xf32>
    %602 = vector.broadcast %3 : vector<1x32xf32> to vector<8x32xf32>
    %603 = arith.mulf %601, %602 : vector<8x32xf32>
    %604 = arith.addf %600, %603 : vector<8x32xf32>
    %605 = vector.extract_strided_slice %597 {offsets = [16, 0], sizes = [8, 32], strides = [1, 1]} : vector<32x32xf32> to vector<8x32xf32>
    %606 = vector.broadcast %5 : vector<1x32xf32> to vector<8x32xf32>
    %607 = arith.mulf %605, %606 : vector<8x32xf32>
    %608 = arith.addf %604, %607 : vector<8x32xf32>
    %609 = vector.extract_strided_slice %597 {offsets = [24, 0], sizes = [8, 32], strides = [1, 1]} : vector<32x32xf32> to vector<8x32xf32>
    %610 = vector.broadcast %7 : vector<1x32xf32> to vector<8x32xf32>
    %611 = arith.mulf %609, %610 : vector<8x32xf32>
    %612 = arith.addf %608, %611 : vector<8x32xf32>
    %613 = vector.extract_strided_slice %556 {offsets = [8, 0], sizes = [8, 32], strides = [1, 1]} : vector<16x32xf32> to vector<8x32xf32>
    %614 = vector.extract_strided_slice %565 {offsets = [8, 0], sizes = [8, 32], strides = [1, 1]} : vector<16x32xf32> to vector<8x32xf32>
    %615 = vector.extract_strided_slice %566 {offsets = [8, 0], sizes = [8, 32], strides = [1, 1]} : vector<16x32xf32> to vector<8x32xf32>
    %616 = vector.broadcast %1 : vector<1x32xf32> to vector<8x32xf32>
    %617 = arith.mulf %613, %616 : vector<8x32xf32>
    %618 = vector.broadcast %3 : vector<1x32xf32> to vector<8x32xf32>
    %619 = arith.mulf %613, %618 : vector<8x32xf32>
    %620 = vector.broadcast %5 : vector<1x32xf32> to vector<8x32xf32>
    %621 = arith.mulf %613, %620 : vector<8x32xf32>
    %622 = vector.broadcast %7 : vector<1x32xf32> to vector<8x32xf32>
    %623 = arith.mulf %613, %622 : vector<8x32xf32>
    %624 = tpu.concatenate %617, %619, %621, %623 in 0 : vector<8x32xf32>, vector<8x32xf32>, vector<8x32xf32>, vector<8x32xf32> -> vector<32x32xf32>
    %625 = tpu.transpose %614, [1, 0] : vector<8x32xf32> -> vector<32x8xf32>
    %626 = arith.truncf %624 : vector<32x32xf32> to vector<32x32xbf16>
    %627 = arith.truncf %625 : vector<32x8xf32> to vector<32x8xbf16>
    %cst_202 = arith.constant dense<0.000000e+00> : vector<32x8xf32>
    %628 = tpu.matmul %626, %627, %cst_202 {dimension_numbers = #tpu.dot_dimension_numbers<[1], [0], [0], [1], [0, 0, 1, 1], [], []>} : vector<32x32xbf16>, vector<32x8xbf16>, vector<32x8xf32> -> vector<32x8xf32>
    %cst_203 = arith.constant 0.353553385 : f32
    %629 = vector.broadcast %cst_203 : f32 to vector<32x8xf32>
    %630 = arith.mulf %628, %629 : vector<32x8xf32>
    %cst_204 = arith.constant dense<0xFF800000> : vector<32xf32>
    %631 = vector.multi_reduction <maximumf>, %630, %cst_204 [1] : vector<32x8xf32> to vector<32xf32>
    %632 = vector.shape_cast %631 : vector<32xf32> to vector<32x1xf32>
    %633 = vector.broadcast %632 : vector<32x1xf32> to vector<32x8xf32>
    %634 = arith.subf %630, %633 : vector<32x8xf32>
    %635 = math.exp %634 : vector<32x8xf32>
    %cst_205 = arith.constant dense<0.000000e+00> : vector<32xf32>
    %636 = vector.multi_reduction <add>, %635, %cst_205 [1] : vector<32x8xf32> to vector<32xf32>
    %637 = vector.shape_cast %636 : vector<32xf32> to vector<32x1xf32>
    %638 = tpu.reciprocal %637 {approx = true} : vector<32x1xf32> -> vector<32x1xf32>
    %639 = vector.broadcast %638 : vector<32x1xf32> to vector<32x8xf32>
    %640 = arith.mulf %635, %639 : vector<32x8xf32>
    %641 = arith.truncf %640 : vector<32x8xf32> to vector<32x8xbf16>
    %642 = arith.truncf %615 : vector<8x32xf32> to vector<8x32xbf16>
    %cst_206 = arith.constant dense<0.000000e+00> : vector<32x32xf32>
    %643 = tpu.matmul %641, %642, %cst_206 {dimension_numbers = #tpu.dot_dimension_numbers<[1], [0], [0], [1], [0, 0, 1, 1], [], []>} : vector<32x8xbf16>, vector<8x32xbf16>, vector<32x32xf32> -> vector<32x32xf32>
    %644 = vector.extract_strided_slice %643 {offsets = [0, 0], sizes = [8, 32], strides = [1, 1]} : vector<32x32xf32> to vector<8x32xf32>
    %645 = vector.broadcast %1 : vector<1x32xf32> to vector<8x32xf32>
    %646 = arith.mulf %644, %645 : vector<8x32xf32>
    %647 = vector.extract_strided_slice %643 {offsets = [8, 0], sizes = [8, 32], strides = [1, 1]} : vector<32x32xf32> to vector<8x32xf32>
    %648 = vector.broadcast %3 : vector<1x32xf32> to vector<8x32xf32>
    %649 = arith.mulf %647, %648 : vector<8x32xf32>
    %650 = arith.addf %646, %649 : vector<8x32xf32>
    %651 = vector.extract_strided_slice %643 {offsets = [16, 0], sizes = [8, 32], strides = [1, 1]} : vector<32x32xf32> to vector<8x32xf32>
    %652 = vector.broadcast %5 : vector<1x32xf32> to vector<8x32xf32>
    %653 = arith.mulf %651, %652 : vector<8x32xf32>
    %654 = arith.addf %650, %653 : vector<8x32xf32>
    %655 = vector.extract_strided_slice %643 {offsets = [24, 0], sizes = [8, 32], strides = [1, 1]} : vector<32x32xf32> to vector<8x32xf32>
    %656 = vector.broadcast %7 : vector<1x32xf32> to vector<8x32xf32>
    %657 = arith.mulf %655, %656 : vector<8x32xf32>
    %658 = arith.addf %654, %657 : vector<8x32xf32>
    %659 = tpu.concatenate %612, %658 in 0 : vector<8x32xf32>, vector<8x32xf32> -> vector<16x32xf32>
    %c0_207 = arith.constant 0 : index
    %c0_208 = arith.constant 0 : index
    %c0_209 = arith.constant 0 : index
    %660 = vector.load %arg29[%c0_207, %c0_208, %c0_209] : memref<2x32x32xbf16, #tpu.memory_space<vmem>>, vector<1x32x32xbf16>
    %661 = vector.shape_cast %660 : vector<1x32x32xbf16> to vector<32x32xbf16>
    %662 = arith.truncf %659 : vector<16x32xf32> to vector<16x32xbf16>
    %cst_210 = arith.constant dense<0.000000e+00> : vector<16x32xf32>
    %663 = tpu.matmul %662, %661, %cst_210 {dimension_numbers = #tpu.dot_dimension_numbers<[1], [0], [0], [1], [0, 0, 1, 1], [], []>} : vector<16x32xbf16>, vector<32x32xbf16>, vector<16x32xf32> -> vector<16x32xf32>
    %c0_211 = arith.constant 0 : index
    %c0_212 = arith.constant 0 : index
    %c0_213 = arith.constant 0 : index
    %664 = vector.load %arg30[%c0_211, %c0_212, %c0_213] : memref<2x1x32xf32, #tpu.memory_space<vmem>>, vector<1x1x32xf32>
    %665 = vector.shape_cast %664 : vector<1x1x32xf32> to vector<1x32xf32>
    %666 = vector.broadcast %665 : vector<1x32xf32> to vector<16x32xf32>
    %667 = arith.addf %663, %666 : vector<16x32xf32>
    %668 = arith.addf %548, %667 : vector<16x32xf32>
    %c0_214 = arith.constant 0 : index
    %c0_215 = arith.constant 0 : index
    %c0_216 = arith.constant 0 : index
    %669 = vector.load %arg31[%c0_214, %c0_215, %c0_216] : memref<2x1x32xf32, #tpu.memory_space<vmem>>, vector<1x1x32xf32>
    %670 = vector.shape_cast %669 : vector<1x1x32xf32> to vector<1x32xf32>
    %c0_217 = arith.constant 0 : index
    %c0_218 = arith.constant 0 : index
    %c0_219 = arith.constant 0 : index
    %671 = vector.load %arg32[%c0_217, %c0_218, %c0_219] : memref<2x1x32xf32, #tpu.memory_space<vmem>>, vector<1x1x32xf32>
    %672 = vector.shape_cast %671 : vector<1x1x32xf32> to vector<1x32xf32>
    %cst_220 = arith.constant dense<0.000000e+00> : vector<16xf32>
    %673 = vector.multi_reduction <add>, %668, %cst_220 [1] : vector<16x32xf32> to vector<16xf32>
    %674 = vector.shape_cast %673 : vector<16xf32> to vector<16x1xf32>
    %cst_221 = arith.constant 3.200000e+01 : f32
    %675 = vector.broadcast %cst_221 : f32 to vector<16x1xf32>
    %676 = arith.divf %674, %675 : vector<16x1xf32>
    %677 = vector.broadcast %676 : vector<16x1xf32> to vector<16x32xf32>
    %678 = arith.subf %668, %677 : vector<16x32xf32>
    %679 = arith.mulf %678, %678 : vector<16x32xf32>
    %cst_222 = arith.constant dense<0.000000e+00> : vector<16xf32>
    %680 = vector.multi_reduction <add>, %679, %cst_222 [1] : vector<16x32xf32> to vector<16xf32>
    %681 = vector.shape_cast %680 : vector<16xf32> to vector<16x1xf32>
    %cst_223 = arith.constant 3.200000e+01 : f32
    %682 = vector.broadcast %cst_223 : f32 to vector<16x1xf32>
    %683 = arith.divf %681, %682 : vector<16x1xf32>
    %684 = vector.broadcast %676 : vector<16x1xf32> to vector<16x32xf32>
    %685 = arith.subf %668, %684 : vector<16x32xf32>
    %cst_224 = arith.constant 9.99999974E-6 : f32
    %686 = vector.broadcast %cst_224 : f32 to vector<16x1xf32>
    %687 = arith.addf %683, %686 : vector<16x1xf32>
    %688 = math.rsqrt %687 : vector<16x1xf32>
    %689 = vector.broadcast %688 : vector<16x1xf32> to vector<16x32xf32>
    %690 = arith.mulf %685, %689 : vector<16x32xf32>
    %691 = vector.broadcast %670 : vector<1x32xf32> to vector<16x32xf32>
    %692 = arith.mulf %690, %691 : vector<16x32xf32>
    %693 = vector.broadcast %672 : vector<1x32xf32> to vector<16x32xf32>
    %694 = arith.addf %692, %693 : vector<16x32xf32>
    %c0_225 = arith.constant 0 : index
    %c0_226 = arith.constant 0 : index
    %c0_227 = arith.constant 0 : index
    %695 = vector.load %arg33[%c0_225, %c0_226, %c0_227] : memref<2x32x64xbf16, #tpu.memory_space<vmem>>, vector<1x32x64xbf16>
    %696 = vector.shape_cast %695 : vector<1x32x64xbf16> to vector<32x64xbf16>
    %697 = arith.truncf %694 : vector<16x32xf32> to vector<16x32xbf16>
    %cst_228 = arith.constant dense<0.000000e+00> : vector<16x64xf32>
    %698 = tpu.matmul %697, %696, %cst_228 {dimension_numbers = #tpu.dot_dimension_numbers<[1], [0], [0], [1], [0, 0, 1, 1], [], []>} : vector<16x32xbf16>, vector<32x64xbf16>, vector<16x64xf32> -> vector<16x64xf32>
    %c0_229 = arith.constant 0 : index
    %c0_230 = arith.constant 0 : index
    %c0_231 = arith.constant 0 : index
    %699 = vector.load %arg34[%c0_229, %c0_230, %c0_231] : memref<2x1x64xf32, #tpu.memory_space<vmem>>, vector<1x1x64xf32>
    %700 = vector.shape_cast %699 : vector<1x1x64xf32> to vector<1x64xf32>
    %701 = vector.broadcast %700 : vector<1x64xf32> to vector<16x64xf32>
    %702 = arith.addf %698, %701 : vector<16x64xf32>
    %cst_232 = arith.constant 0.000000e+00 : f32
    %703 = vector.broadcast %cst_232 : f32 to vector<16x64xf32>
    %704 = arith.maximumf %702, %703 : vector<16x64xf32>
    %c0_233 = arith.constant 0 : index
    %c0_234 = arith.constant 0 : index
    %c0_235 = arith.constant 0 : index
    %705 = vector.load %arg35[%c0_233, %c0_234, %c0_235] : memref<2x64x32xbf16, #tpu.memory_space<vmem>>, vector<1x64x32xbf16>
    %706 = vector.shape_cast %705 : vector<1x64x32xbf16> to vector<64x32xbf16>
    %707 = arith.truncf %704 : vector<16x64xf32> to vector<16x64xbf16>
    %cst_236 = arith.constant dense<0.000000e+00> : vector<16x32xf32>
    %708 = tpu.matmul %707, %706, %cst_236 {dimension_numbers = #tpu.dot_dimension_numbers<[1], [0], [0], [1], [0, 0, 1, 1], [], []>} : vector<16x64xbf16>, vector<64x32xbf16>, vector<16x32xf32> -> vector<16x32xf32>
    %c0_237 = arith.constant 0 : index
    %c0_238 = arith.constant 0 : index
    %c0_239 = arith.constant 0 : index
    %709 = vector.load %arg36[%c0_237, %c0_238, %c0_239] : memref<2x1x32xf32, #tpu.memory_space<vmem>>, vector<1x1x32xf32>
    %710 = vector.shape_cast %709 : vector<1x1x32xf32> to vector<1x32xf32>
    %711 = vector.broadcast %710 : vector<1x32xf32> to vector<16x32xf32>
    %712 = arith.addf %708, %711 : vector<16x32xf32>
    %713 = arith.addf %694, %712 : vector<16x32xf32>
    %c0_240 = arith.constant 0 : index
    %c0_241 = arith.constant 0 : index
    %c0_242 = arith.constant 0 : index
    %714 = vector.load %arg37[%c0_240, %c0_241, %c0_242] : memref<2x1x32xf32, #tpu.memory_space<vmem>>, vector<1x1x32xf32>
    %715 = vector.shape_cast %714 : vector<1x1x32xf32> to vector<1x32xf32>
    %c0_243 = arith.constant 0 : index
    %c0_244 = arith.constant 0 : index
    %c0_245 = arith.constant 0 : index
    %716 = vector.load %arg38[%c0_243, %c0_244, %c0_245] : memref<2x1x32xf32, #tpu.memory_space<vmem>>, vector<1x1x32xf32>
    %717 = vector.shape_cast %716 : vector<1x1x32xf32> to vector<1x32xf32>
    %cst_246 = arith.constant dense<0.000000e+00> : vector<16xf32>
    %718 = vector.multi_reduction <add>, %713, %cst_246 [1] : vector<16x32xf32> to vector<16xf32>
    %719 = vector.shape_cast %718 : vector<16xf32> to vector<16x1xf32>
    %cst_247 = arith.constant 3.200000e+01 : f32
    %720 = vector.broadcast %cst_247 : f32 to vector<16x1xf32>
    %721 = arith.divf %719, %720 : vector<16x1xf32>
    %722 = vector.broadcast %721 : vector<16x1xf32> to vector<16x32xf32>
    %723 = arith.subf %713, %722 : vector<16x32xf32>
    %724 = arith.mulf %723, %723 : vector<16x32xf32>
    %cst_248 = arith.constant dense<0.000000e+00> : vector<16xf32>
    %725 = vector.multi_reduction <add>, %724, %cst_248 [1] : vector<16x32xf32> to vector<16xf32>
    %726 = vector.shape_cast %725 : vector<16xf32> to vector<16x1xf32>
    %cst_249 = arith.constant 3.200000e+01 : f32
    %727 = vector.broadcast %cst_249 : f32 to vector<16x1xf32>
    %728 = arith.divf %726, %727 : vector<16x1xf32>
    %729 = vector.broadcast %721 : vector<16x1xf32> to vector<16x32xf32>
    %730 = arith.subf %713, %729 : vector<16x32xf32>
    %cst_250 = arith.constant 9.99999974E-6 : f32
    %731 = vector.broadcast %cst_250 : f32 to vector<16x1xf32>
    %732 = arith.addf %728, %731 : vector<16x1xf32>
    %733 = math.rsqrt %732 : vector<16x1xf32>
    %734 = vector.broadcast %733 : vector<16x1xf32> to vector<16x32xf32>
    %735 = arith.mulf %730, %734 : vector<16x32xf32>
    %736 = vector.broadcast %715 : vector<1x32xf32> to vector<16x32xf32>
    %737 = arith.mulf %735, %736 : vector<16x32xf32>
    %738 = vector.broadcast %717 : vector<1x32xf32> to vector<16x32xf32>
    %739 = arith.addf %737, %738 : vector<16x32xf32>
    %c1_251 = arith.constant 1 : index
    %c0_252 = arith.constant 0 : index
    %c0_253 = arith.constant 0 : index
    %740 = vector.load %arg19[%c1_251, %c0_252, %c0_253] : memref<2x32x96xbf16, #tpu.memory_space<vmem>>, vector<1x32x96xbf16>
    %741 = vector.shape_cast %740 : vector<1x32x96xbf16> to vector<32x96xbf16>
    %742 = arith.truncf %739 : vector<16x32xf32> to vector<16x32xbf16>
    %cst_254 = arith.constant dense<0.000000e+00> : vector<16x96xf32>
    %743 = tpu.matmul %742, %741, %cst_254 {dimension_numbers = #tpu.dot_dimension_numbers<[1], [0], [0], [1], [0, 0, 1, 1], [], []>} : vector<16x32xbf16>, vector<32x96xbf16>, vector<16x96xf32> -> vector<16x96xf32>
    %c1_255 = arith.constant 1 : index
    %c0_256 = arith.constant 0 : index
    %c0_257 = arith.constant 0 : index
    %744 = vector.load %arg20[%c1_255, %c0_256, %c0_257] : memref<2x1x96xf32, #tpu.memory_space<vmem>>, vector<1x1x96xf32>
    %745 = vector.shape_cast %744 : vector<1x1x96xf32> to vector<1x96xf32>
    %746 = vector.broadcast %745 : vector<1x96xf32> to vector<16x96xf32>
    %747 = arith.addf %743, %746 : vector<16x96xf32>
    %748 = vector.extract_strided_slice %747 {offsets = [0, 0], sizes = [16, 32], strides = [1, 1]} : vector<16x96xf32> to vector<16x32xf32>
    %749 = vector.extract_strided_slice %747 {offsets = [0, 32], sizes = [16, 32], strides = [1, 1]} : vector<16x96xf32> to vector<16x32xf32>
    %750 = vector.extract_strided_slice %747 {offsets = [0, 64], sizes = [16, 32], strides = [1, 1]} : vector<16x96xf32> to vector<16x32xf32>
    %751 = vector.extract_strided_slice %748 {offsets = [0, 0], sizes = [8, 32], strides = [1, 1]} : vector<16x32xf32> to vector<8x32xf32>
    %752 = vector.extract_strided_slice %749 {offsets = [0, 0], sizes = [8, 32], strides = [1, 1]} : vector<16x32xf32> to vector<8x32xf32>
    %753 = vector.extract_strided_slice %750 {offsets = [0, 0], sizes = [8, 32], strides = [1, 1]} : vector<16x32xf32> to vector<8x32xf32>
    %754 = vector.broadcast %1 : vector<1x32xf32> to vector<8x32xf32>
    %755 = arith.mulf %751, %754 : vector<8x32xf32>
    %756 = vector.broadcast %3 : vector<1x32xf32> to vector<8x32xf32>
    %757 = arith.mulf %751, %756 : vector<8x32xf32>
    %758 = vector.broadcast %5 : vector<1x32xf32> to vector<8x32xf32>
    %759 = arith.mulf %751, %758 : vector<8x32xf32>
    %760 = vector.broadcast %7 : vector<1x32xf32> to vector<8x32xf32>
    %761 = arith.mulf %751, %760 : vector<8x32xf32>
    %762 = tpu.concatenate %755, %757, %759, %761 in 0 : vector<8x32xf32>, vector<8x32xf32>, vector<8x32xf32>, vector<8x32xf32> -> vector<32x32xf32>
    %763 = tpu.transpose %752, [1, 0] : vector<8x32xf32> -> vector<32x8xf32>
    %764 = arith.truncf %762 : vector<32x32xf32> to vector<32x32xbf16>
    %765 = arith.truncf %763 : vector<32x8xf32> to vector<32x8xbf16>
    %cst_258 = arith.constant dense<0.000000e+00> : vector<32x8xf32>
    %766 = tpu.matmul %764, %765, %cst_258 {dimension_numbers = #tpu.dot_dimension_numbers<[1], [0], [0], [1], [0, 0, 1, 1], [], []>} : vector<32x32xbf16>, vector<32x8xbf16>, vector<32x8xf32> -> vector<32x8xf32>
    %cst_259 = arith.constant 0.353553385 : f32
    %767 = vector.broadcast %cst_259 : f32 to vector<32x8xf32>
    %768 = arith.mulf %766, %767 : vector<32x8xf32>
    %cst_260 = arith.constant dense<0xFF800000> : vector<32xf32>
    %769 = vector.multi_reduction <maximumf>, %768, %cst_260 [1] : vector<32x8xf32> to vector<32xf32>
    %770 = vector.shape_cast %769 : vector<32xf32> to vector<32x1xf32>
    %771 = vector.broadcast %770 : vector<32x1xf32> to vector<32x8xf32>
    %772 = arith.subf %768, %771 : vector<32x8xf32>
    %773 = math.exp %772 : vector<32x8xf32>
    %cst_261 = arith.constant dense<0.000000e+00> : vector<32xf32>
    %774 = vector.multi_reduction <add>, %773, %cst_261 [1] : vector<32x8xf32> to vector<32xf32>
    %775 = vector.shape_cast %774 : vector<32xf32> to vector<32x1xf32>
    %776 = tpu.reciprocal %775 {approx = true} : vector<32x1xf32> -> vector<32x1xf32>
    %777 = vector.broadcast %776 : vector<32x1xf32> to vector<32x8xf32>
    %778 = arith.mulf %773, %777 : vector<32x8xf32>
    %779 = arith.truncf %778 : vector<32x8xf32> to vector<32x8xbf16>
    %780 = arith.truncf %753 : vector<8x32xf32> to vector<8x32xbf16>
    %cst_262 = arith.constant dense<0.000000e+00> : vector<32x32xf32>
    %781 = tpu.matmul %779, %780, %cst_262 {dimension_numbers = #tpu.dot_dimension_numbers<[1], [0], [0], [1], [0, 0, 1, 1], [], []>} : vector<32x8xbf16>, vector<8x32xbf16>, vector<32x32xf32> -> vector<32x32xf32>
    %782 = vector.extract_strided_slice %781 {offsets = [0, 0], sizes = [8, 32], strides = [1, 1]} : vector<32x32xf32> to vector<8x32xf32>
    %783 = vector.broadcast %1 : vector<1x32xf32> to vector<8x32xf32>
    %784 = arith.mulf %782, %783 : vector<8x32xf32>
    %785 = vector.extract_strided_slice %781 {offsets = [8, 0], sizes = [8, 32], strides = [1, 1]} : vector<32x32xf32> to vector<8x32xf32>
    %786 = vector.broadcast %3 : vector<1x32xf32> to vector<8x32xf32>
    %787 = arith.mulf %785, %786 : vector<8x32xf32>
    %788 = arith.addf %784, %787 : vector<8x32xf32>
    %789 = vector.extract_strided_slice %781 {offsets = [16, 0], sizes = [8, 32], strides = [1, 1]} : vector<32x32xf32> to vector<8x32xf32>
    %790 = vector.broadcast %5 : vector<1x32xf32> to vector<8x32xf32>
    %791 = arith.mulf %789, %790 : vector<8x32xf32>
    %792 = arith.addf %788, %791 : vector<8x32xf32>
    %793 = vector.extract_strided_slice %781 {offsets = [24, 0], sizes = [8, 32], strides = [1, 1]} : vector<32x32xf32> to vector<8x32xf32>
    %794 = vector.broadcast %7 : vector<1x32xf32> to vector<8x32xf32>
    %795 = arith.mulf %793, %794 : vector<8x32xf32>
    %796 = arith.addf %792, %795 : vector<8x32xf32>
    %797 = vector.extract_strided_slice %748 {offsets = [8, 0], sizes = [8, 32], strides = [1, 1]} : vector<16x32xf32> to vector<8x32xf32>
    %798 = vector.extract_strided_slice %749 {offsets = [8, 0], sizes = [8, 32], strides = [1, 1]} : vector<16x32xf32> to vector<8x32xf32>
    %799 = vector.extract_strided_slice %750 {offsets = [8, 0], sizes = [8, 32], strides = [1, 1]} : vector<16x32xf32> to vector<8x32xf32>
    %800 = vector.broadcast %1 : vector<1x32xf32> to vector<8x32xf32>
    %801 = arith.mulf %797, %800 : vector<8x32xf32>
    %802 = vector.broadcast %3 : vector<1x32xf32> to vector<8x32xf32>
    %803 = arith.mulf %797, %802 : vector<8x32xf32>
    %804 = vector.broadcast %5 : vector<1x32xf32> to vector<8x32xf32>
    %805 = arith.mulf %797, %804 : vector<8x32xf32>
    %806 = vector.broadcast %7 : vector<1x32xf32> to vector<8x32xf32>
    %807 = arith.mulf %797, %806 : vector<8x32xf32>
    %808 = tpu.concatenate %801, %803, %805, %807 in 0 : vector<8x32xf32>, vector<8x32xf32>, vector<8x32xf32>, vector<8x32xf32> -> vector<32x32xf32>
    %809 = tpu.transpose %798, [1, 0] : vector<8x32xf32> -> vector<32x8xf32>
    %810 = arith.truncf %808 : vector<32x32xf32> to vector<32x32xbf16>
    %811 = arith.truncf %809 : vector<32x8xf32> to vector<32x8xbf16>
    %cst_263 = arith.constant dense<0.000000e+00> : vector<32x8xf32>
    %812 = tpu.matmul %810, %811, %cst_263 {dimension_numbers = #tpu.dot_dimension_numbers<[1], [0], [0], [1], [0, 0, 1, 1], [], []>} : vector<32x32xbf16>, vector<32x8xbf16>, vector<32x8xf32> -> vector<32x8xf32>
    %cst_264 = arith.constant 0.353553385 : f32
    %813 = vector.broadcast %cst_264 : f32 to vector<32x8xf32>
    %814 = arith.mulf %812, %813 : vector<32x8xf32>
    %cst_265 = arith.constant dense<0xFF800000> : vector<32xf32>
    %815 = vector.multi_reduction <maximumf>, %814, %cst_265 [1] : vector<32x8xf32> to vector<32xf32>
    %816 = vector.shape_cast %815 : vector<32xf32> to vector<32x1xf32>
    %817 = vector.broadcast %816 : vector<32x1xf32> to vector<32x8xf32>
    %818 = arith.subf %814, %817 : vector<32x8xf32>
    %819 = math.exp %818 : vector<32x8xf32>
    %cst_266 = arith.constant dense<0.000000e+00> : vector<32xf32>
    %820 = vector.multi_reduction <add>, %819, %cst_266 [1] : vector<32x8xf32> to vector<32xf32>
    %821 = vector.shape_cast %820 : vector<32xf32> to vector<32x1xf32>
    %822 = tpu.reciprocal %821 {approx = true} : vector<32x1xf32> -> vector<32x1xf32>
    %823 = vector.broadcast %822 : vector<32x1xf32> to vector<32x8xf32>
    %824 = arith.mulf %819, %823 : vector<32x8xf32>
    %825 = arith.truncf %824 : vector<32x8xf32> to vector<32x8xbf16>
    %826 = arith.truncf %799 : vector<8x32xf32> to vector<8x32xbf16>
    %cst_267 = arith.constant dense<0.000000e+00> : vector<32x32xf32>
    %827 = tpu.matmul %825, %826, %cst_267 {dimension_numbers = #tpu.dot_dimension_numbers<[1], [0], [0], [1], [0, 0, 1, 1], [], []>} : vector<32x8xbf16>, vector<8x32xbf16>, vector<32x32xf32> -> vector<32x32xf32>
    %828 = vector.extract_strided_slice %827 {offsets = [0, 0], sizes = [8, 32], strides = [1, 1]} : vector<32x32xf32> to vector<8x32xf32>
    %829 = vector.broadcast %1 : vector<1x32xf32> to vector<8x32xf32>
    %830 = arith.mulf %828, %829 : vector<8x32xf32>
    %831 = vector.extract_strided_slice %827 {offsets = [8, 0], sizes = [8, 32], strides = [1, 1]} : vector<32x32xf32> to vector<8x32xf32>
    %832 = vector.broadcast %3 : vector<1x32xf32> to vector<8x32xf32>
    %833 = arith.mulf %831, %832 : vector<8x32xf32>
    %834 = arith.addf %830, %833 : vector<8x32xf32>
    %835 = vector.extract_strided_slice %827 {offsets = [16, 0], sizes = [8, 32], strides = [1, 1]} : vector<32x32xf32> to vector<8x32xf32>
    %836 = vector.broadcast %5 : vector<1x32xf32> to vector<8x32xf32>
    %837 = arith.mulf %835, %836 : vector<8x32xf32>
    %838 = arith.addf %834, %837 : vector<8x32xf32>
    %839 = vector.extract_strided_slice %827 {offsets = [24, 0], sizes = [8, 32], strides = [1, 1]} : vector<32x32xf32> to vector<8x32xf32>
    %840 = vector.broadcast %7 : vector<1x32xf32> to vector<8x32xf32>
    %841 = arith.mulf %839, %840 : vector<8x32xf32>
    %842 = arith.addf %838, %841 : vector<8x32xf32>
    %843 = tpu.concatenate %796, %842 in 0 : vector<8x32xf32>, vector<8x32xf32> -> vector<16x32xf32>
    %c1_268 = arith.constant 1 : index
    %c0_269 = arith.constant 0 : index
    %c0_270 = arith.constant 0 : index
    %844 = vector.load %arg21[%c1_268, %c0_269, %c0_270] : memref<2x32x32xbf16, #tpu.memory_space<vmem>>, vector<1x32x32xbf16>
    %845 = vector.shape_cast %844 : vector<1x32x32xbf16> to vector<32x32xbf16>
    %846 = arith.truncf %843 : vector<16x32xf32> to vector<16x32xbf16>
    %cst_271 = arith.constant dense<0.000000e+00> : vector<16x32xf32>
    %847 = tpu.matmul %846, %845, %cst_271 {dimension_numbers = #tpu.dot_dimension_numbers<[1], [0], [0], [1], [0, 0, 1, 1], [], []>} : vector<16x32xbf16>, vector<32x32xbf16>, vector<16x32xf32> -> vector<16x32xf32>
    %c1_272 = arith.constant 1 : index
    %c0_273 = arith.constant 0 : index
    %c0_274 = arith.constant 0 : index
    %848 = vector.load %arg22[%c1_272, %c0_273, %c0_274] : memref<2x1x32xf32, #tpu.memory_space<vmem>>, vector<1x1x32xf32>
    %849 = vector.shape_cast %848 : vector<1x1x32xf32> to vector<1x32xf32>
    %850 = vector.broadcast %849 : vector<1x32xf32> to vector<16x32xf32>
    %851 = arith.addf %847, %850 : vector<16x32xf32>
    %852 = arith.addf %739, %851 : vector<16x32xf32>
    %c1_275 = arith.constant 1 : index
    %c0_276 = arith.constant 0 : index
    %c0_277 = arith.constant 0 : index
    %853 = vector.load %arg23[%c1_275, %c0_276, %c0_277] : memref<2x1x32xf32, #tpu.memory_space<vmem>>, vector<1x1x32xf32>
    %854 = vector.shape_cast %853 : vector<1x1x32xf32> to vector<1x32xf32>
    %c1_278 = arith.constant 1 : index
    %c0_279 = arith.constant 0 : index
    %c0_280 = arith.constant 0 : index
    %855 = vector.load %arg24[%c1_278, %c0_279, %c0_280] : memref<2x1x32xf32, #tpu.memory_space<vmem>>, vector<1x1x32xf32>
    %856 = vector.shape_cast %855 : vector<1x1x32xf32> to vector<1x32xf32>
    %cst_281 = arith.constant dense<0.000000e+00> : vector<16xf32>
    %857 = vector.multi_reduction <add>, %852, %cst_281 [1] : vector<16x32xf32> to vector<16xf32>
    %858 = vector.shape_cast %857 : vector<16xf32> to vector<16x1xf32>
    %cst_282 = arith.constant 3.200000e+01 : f32
    %859 = vector.broadcast %cst_282 : f32 to vector<16x1xf32>
    %860 = arith.divf %858, %859 : vector<16x1xf32>
    %861 = vector.broadcast %860 : vector<16x1xf32> to vector<16x32xf32>
    %862 = arith.subf %852, %861 : vector<16x32xf32>
    %863 = arith.mulf %862, %862 : vector<16x32xf32>
    %cst_283 = arith.constant dense<0.000000e+00> : vector<16xf32>
    %864 = vector.multi_reduction <add>, %863, %cst_283 [1] : vector<16x32xf32> to vector<16xf32>
    %865 = vector.shape_cast %864 : vector<16xf32> to vector<16x1xf32>
    %cst_284 = arith.constant 3.200000e+01 : f32
    %866 = vector.broadcast %cst_284 : f32 to vector<16x1xf32>
    %867 = arith.divf %865, %866 : vector<16x1xf32>
    %868 = vector.broadcast %860 : vector<16x1xf32> to vector<16x32xf32>
    %869 = arith.subf %852, %868 : vector<16x32xf32>
    %cst_285 = arith.constant 9.99999974E-6 : f32
    %870 = vector.broadcast %cst_285 : f32 to vector<16x1xf32>
    %871 = arith.addf %867, %870 : vector<16x1xf32>
    %872 = math.rsqrt %871 : vector<16x1xf32>
    %873 = vector.broadcast %872 : vector<16x1xf32> to vector<16x32xf32>
    %874 = arith.mulf %869, %873 : vector<16x32xf32>
    %875 = vector.broadcast %854 : vector<1x32xf32> to vector<16x32xf32>
    %876 = arith.mulf %874, %875 : vector<16x32xf32>
    %877 = vector.broadcast %856 : vector<1x32xf32> to vector<16x32xf32>
    %878 = arith.addf %876, %877 : vector<16x32xf32>
    %c1_286 = arith.constant 1 : index
    %c0_287 = arith.constant 0 : index
    %c0_288 = arith.constant 0 : index
    %879 = vector.load %arg25[%c1_286, %c0_287, %c0_288] : memref<2x32x32xbf16, #tpu.memory_space<vmem>>, vector<1x32x32xbf16>
    %880 = vector.shape_cast %879 : vector<1x32x32xbf16> to vector<32x32xbf16>
    %881 = arith.truncf %878 : vector<16x32xf32> to vector<16x32xbf16>
    %cst_289 = arith.constant dense<0.000000e+00> : vector<16x32xf32>
    %882 = tpu.matmul %881, %880, %cst_289 {dimension_numbers = #tpu.dot_dimension_numbers<[1], [0], [0], [1], [0, 0, 1, 1], [], []>} : vector<16x32xbf16>, vector<32x32xbf16>, vector<16x32xf32> -> vector<16x32xf32>
    %c1_290 = arith.constant 1 : index
    %c0_291 = arith.constant 0 : index
    %c0_292 = arith.constant 0 : index
    %883 = vector.load %arg26[%c1_290, %c0_291, %c0_292] : memref<2x1x32xf32, #tpu.memory_space<vmem>>, vector<1x1x32xf32>
    %884 = vector.shape_cast %883 : vector<1x1x32xf32> to vector<1x32xf32>
    %885 = vector.broadcast %884 : vector<1x32xf32> to vector<16x32xf32>
    %886 = arith.addf %882, %885 : vector<16x32xf32>
    %c1_293 = arith.constant 1 : index
    %c0_294 = arith.constant 0 : index
    %c0_295 = arith.constant 0 : index
    %887 = vector.load %arg27[%c1_293, %c0_294, %c0_295] : memref<2x32x64xbf16, #tpu.memory_space<vmem>>, vector<1x32x64xbf16>
    %888 = vector.shape_cast %887 : vector<1x32x64xbf16> to vector<32x64xbf16>
    %889 = arith.truncf %404 : vector<16x32xf32> to vector<16x32xbf16>
    %cst_296 = arith.constant dense<0.000000e+00> : vector<16x64xf32>
    %890 = tpu.matmul %889, %888, %cst_296 {dimension_numbers = #tpu.dot_dimension_numbers<[1], [0], [0], [1], [0, 0, 1, 1], [], []>} : vector<16x32xbf16>, vector<32x64xbf16>, vector<16x64xf32> -> vector<16x64xf32>
    %c1_297 = arith.constant 1 : index
    %c0_298 = arith.constant 0 : index
    %c0_299 = arith.constant 0 : index
    %891 = vector.load %arg28[%c1_297, %c0_298, %c0_299] : memref<2x1x64xf32, #tpu.memory_space<vmem>>, vector<1x1x64xf32>
    %892 = vector.shape_cast %891 : vector<1x1x64xf32> to vector<1x64xf32>
    %893 = vector.broadcast %892 : vector<1x64xf32> to vector<16x64xf32>
    %894 = arith.addf %890, %893 : vector<16x64xf32>
    %895 = vector.extract_strided_slice %894 {offsets = [0, 0], sizes = [16, 32], strides = [1, 1]} : vector<16x64xf32> to vector<16x32xf32>
    %896 = vector.extract_strided_slice %894 {offsets = [0, 32], sizes = [16, 32], strides = [1, 1]} : vector<16x64xf32> to vector<16x32xf32>
    %897 = vector.extract_strided_slice %886 {offsets = [0, 0], sizes = [8, 32], strides = [1, 1]} : vector<16x32xf32> to vector<8x32xf32>
    %898 = vector.extract_strided_slice %895 {offsets = [0, 0], sizes = [8, 32], strides = [1, 1]} : vector<16x32xf32> to vector<8x32xf32>
    %899 = vector.extract_strided_slice %896 {offsets = [0, 0], sizes = [8, 32], strides = [1, 1]} : vector<16x32xf32> to vector<8x32xf32>
    %900 = vector.broadcast %1 : vector<1x32xf32> to vector<8x32xf32>
    %901 = arith.mulf %897, %900 : vector<8x32xf32>
    %902 = vector.broadcast %3 : vector<1x32xf32> to vector<8x32xf32>
    %903 = arith.mulf %897, %902 : vector<8x32xf32>
    %904 = vector.broadcast %5 : vector<1x32xf32> to vector<8x32xf32>
    %905 = arith.mulf %897, %904 : vector<8x32xf32>
    %906 = vector.broadcast %7 : vector<1x32xf32> to vector<8x32xf32>
    %907 = arith.mulf %897, %906 : vector<8x32xf32>
    %908 = tpu.concatenate %901, %903, %905, %907 in 0 : vector<8x32xf32>, vector<8x32xf32>, vector<8x32xf32>, vector<8x32xf32> -> vector<32x32xf32>
    %909 = tpu.transpose %898, [1, 0] : vector<8x32xf32> -> vector<32x8xf32>
    %910 = arith.truncf %908 : vector<32x32xf32> to vector<32x32xbf16>
    %911 = arith.truncf %909 : vector<32x8xf32> to vector<32x8xbf16>
    %cst_300 = arith.constant dense<0.000000e+00> : vector<32x8xf32>
    %912 = tpu.matmul %910, %911, %cst_300 {dimension_numbers = #tpu.dot_dimension_numbers<[1], [0], [0], [1], [0, 0, 1, 1], [], []>} : vector<32x32xbf16>, vector<32x8xbf16>, vector<32x8xf32> -> vector<32x8xf32>
    %cst_301 = arith.constant 0.353553385 : f32
    %913 = vector.broadcast %cst_301 : f32 to vector<32x8xf32>
    %914 = arith.mulf %912, %913 : vector<32x8xf32>
    %cst_302 = arith.constant dense<0xFF800000> : vector<32xf32>
    %915 = vector.multi_reduction <maximumf>, %914, %cst_302 [1] : vector<32x8xf32> to vector<32xf32>
    %916 = vector.shape_cast %915 : vector<32xf32> to vector<32x1xf32>
    %917 = vector.broadcast %916 : vector<32x1xf32> to vector<32x8xf32>
    %918 = arith.subf %914, %917 : vector<32x8xf32>
    %919 = math.exp %918 : vector<32x8xf32>
    %cst_303 = arith.constant dense<0.000000e+00> : vector<32xf32>
    %920 = vector.multi_reduction <add>, %919, %cst_303 [1] : vector<32x8xf32> to vector<32xf32>
    %921 = vector.shape_cast %920 : vector<32xf32> to vector<32x1xf32>
    %922 = tpu.reciprocal %921 {approx = true} : vector<32x1xf32> -> vector<32x1xf32>
    %923 = vector.broadcast %922 : vector<32x1xf32> to vector<32x8xf32>
    %924 = arith.mulf %919, %923 : vector<32x8xf32>
    %925 = arith.truncf %924 : vector<32x8xf32> to vector<32x8xbf16>
    %926 = arith.truncf %899 : vector<8x32xf32> to vector<8x32xbf16>
    %cst_304 = arith.constant dense<0.000000e+00> : vector<32x32xf32>
    %927 = tpu.matmul %925, %926, %cst_304 {dimension_numbers = #tpu.dot_dimension_numbers<[1], [0], [0], [1], [0, 0, 1, 1], [], []>} : vector<32x8xbf16>, vector<8x32xbf16>, vector<32x32xf32> -> vector<32x32xf32>
    %928 = vector.extract_strided_slice %927 {offsets = [0, 0], sizes = [8, 32], strides = [1, 1]} : vector<32x32xf32> to vector<8x32xf32>
    %929 = vector.broadcast %1 : vector<1x32xf32> to vector<8x32xf32>
    %930 = arith.mulf %928, %929 : vector<8x32xf32>
    %931 = vector.extract_strided_slice %927 {offsets = [8, 0], sizes = [8, 32], strides = [1, 1]} : vector<32x32xf32> to vector<8x32xf32>
    %932 = vector.broadcast %3 : vector<1x32xf32> to vector<8x32xf32>
    %933 = arith.mulf %931, %932 : vector<8x32xf32>
    %934 = arith.addf %930, %933 : vector<8x32xf32>
    %935 = vector.extract_strided_slice %927 {offsets = [16, 0], sizes = [8, 32], strides = [1, 1]} : vector<32x32xf32> to vector<8x32xf32>
    %936 = vector.broadcast %5 : vector<1x32xf32> to vector<8x32xf32>
    %937 = arith.mulf %935, %936 : vector<8x32xf32>
    %938 = arith.addf %934, %937 : vector<8x32xf32>
    %939 = vector.extract_strided_slice %927 {offsets = [24, 0], sizes = [8, 32], strides = [1, 1]} : vector<32x32xf32> to vector<8x32xf32>
    %940 = vector.broadcast %7 : vector<1x32xf32> to vector<8x32xf32>
    %941 = arith.mulf %939, %940 : vector<8x32xf32>
    %942 = arith.addf %938, %941 : vector<8x32xf32>
    %943 = vector.extract_strided_slice %886 {offsets = [8, 0], sizes = [8, 32], strides = [1, 1]} : vector<16x32xf32> to vector<8x32xf32>
    %944 = vector.extract_strided_slice %895 {offsets = [8, 0], sizes = [8, 32], strides = [1, 1]} : vector<16x32xf32> to vector<8x32xf32>
    %945 = vector.extract_strided_slice %896 {offsets = [8, 0], sizes = [8, 32], strides = [1, 1]} : vector<16x32xf32> to vector<8x32xf32>
    %946 = vector.broadcast %1 : vector<1x32xf32> to vector<8x32xf32>
    %947 = arith.mulf %943, %946 : vector<8x32xf32>
    %948 = vector.broadcast %3 : vector<1x32xf32> to vector<8x32xf32>
    %949 = arith.mulf %943, %948 : vector<8x32xf32>
    %950 = vector.broadcast %5 : vector<1x32xf32> to vector<8x32xf32>
    %951 = arith.mulf %943, %950 : vector<8x32xf32>
    %952 = vector.broadcast %7 : vector<1x32xf32> to vector<8x32xf32>
    %953 = arith.mulf %943, %952 : vector<8x32xf32>
    %954 = tpu.concatenate %947, %949, %951, %953 in 0 : vector<8x32xf32>, vector<8x32xf32>, vector<8x32xf32>, vector<8x32xf32> -> vector<32x32xf32>
    %955 = tpu.transpose %944, [1, 0] : vector<8x32xf32> -> vector<32x8xf32>
    %956 = arith.truncf %954 : vector<32x32xf32> to vector<32x32xbf16>
    %957 = arith.truncf %955 : vector<32x8xf32> to vector<32x8xbf16>
    %cst_305 = arith.constant dense<0.000000e+00> : vector<32x8xf32>
    %958 = tpu.matmul %956, %957, %cst_305 {dimension_numbers = #tpu.dot_dimension_numbers<[1], [0], [0], [1], [0, 0, 1, 1], [], []>} : vector<32x32xbf16>, vector<32x8xbf16>, vector<32x8xf32> -> vector<32x8xf32>
    %cst_306 = arith.constant 0.353553385 : f32
    %959 = vector.broadcast %cst_306 : f32 to vector<32x8xf32>
    %960 = arith.mulf %958, %959 : vector<32x8xf32>
    %cst_307 = arith.constant dense<0xFF800000> : vector<32xf32>
    %961 = vector.multi_reduction <maximumf>, %960, %cst_307 [1] : vector<32x8xf32> to vector<32xf32>
    %962 = vector.shape_cast %961 : vector<32xf32> to vector<32x1xf32>
    %963 = vector.broadcast %962 : vector<32x1xf32> to vector<32x8xf32>
    %964 = arith.subf %960, %963 : vector<32x8xf32>
    %965 = math.exp %964 : vector<32x8xf32>
    %cst_308 = arith.constant dense<0.000000e+00> : vector<32xf32>
    %966 = vector.multi_reduction <add>, %965, %cst_308 [1] : vector<32x8xf32> to vector<32xf32>
    %967 = vector.shape_cast %966 : vector<32xf32> to vector<32x1xf32>
    %968 = tpu.reciprocal %967 {approx = true} : vector<32x1xf32> -> vector<32x1xf32>
    %969 = vector.broadcast %968 : vector<32x1xf32> to vector<32x8xf32>
    %970 = arith.mulf %965, %969 : vector<32x8xf32>
    %971 = arith.truncf %970 : vector<32x8xf32> to vector<32x8xbf16>
    %972 = arith.truncf %945 : vector<8x32xf32> to vector<8x32xbf16>
    %cst_309 = arith.constant dense<0.000000e+00> : vector<32x32xf32>
    %973 = tpu.matmul %971, %972, %cst_309 {dimension_numbers = #tpu.dot_dimension_numbers<[1], [0], [0], [1], [0, 0, 1, 1], [], []>} : vector<32x8xbf16>, vector<8x32xbf16>, vector<32x32xf32> -> vector<32x32xf32>
    %974 = vector.extract_strided_slice %973 {offsets = [0, 0], sizes = [8, 32], strides = [1, 1]} : vector<32x32xf32> to vector<8x32xf32>
    %975 = vector.broadcast %1 : vector<1x32xf32> to vector<8x32xf32>
    %976 = arith.mulf %974, %975 : vector<8x32xf32>
    %977 = vector.extract_strided_slice %973 {offsets = [8, 0], sizes = [8, 32], strides = [1, 1]} : vector<32x32xf32> to vector<8x32xf32>
    %978 = vector.broadcast %3 : vector<1x32xf32> to vector<8x32xf32>
    %979 = arith.mulf %977, %978 : vector<8x32xf32>
    %980 = arith.addf %976, %979 : vector<8x32xf32>
    %981 = vector.extract_strided_slice %973 {offsets = [16, 0], sizes = [8, 32], strides = [1, 1]} : vector<32x32xf32> to vector<8x32xf32>
    %982 = vector.broadcast %5 : vector<1x32xf32> to vector<8x32xf32>
    %983 = arith.mulf %981, %982 : vector<8x32xf32>
    %984 = arith.addf %980, %983 : vector<8x32xf32>
    %985 = vector.extract_strided_slice %973 {offsets = [24, 0], sizes = [8, 32], strides = [1, 1]} : vector<32x32xf32> to vector<8x32xf32>
    %986 = vector.broadcast %7 : vector<1x32xf32> to vector<8x32xf32>
    %987 = arith.mulf %985, %986 : vector<8x32xf32>
    %988 = arith.addf %984, %987 : vector<8x32xf32>
    %989 = tpu.concatenate %942, %988 in 0 : vector<8x32xf32>, vector<8x32xf32> -> vector<16x32xf32>
    %c1_310 = arith.constant 1 : index
    %c0_311 = arith.constant 0 : index
    %c0_312 = arith.constant 0 : index
    %990 = vector.load %arg29[%c1_310, %c0_311, %c0_312] : memref<2x32x32xbf16, #tpu.memory_space<vmem>>, vector<1x32x32xbf16>
    %991 = vector.shape_cast %990 : vector<1x32x32xbf16> to vector<32x32xbf16>
    %992 = arith.truncf %989 : vector<16x32xf32> to vector<16x32xbf16>
    %cst_313 = arith.constant dense<0.000000e+00> : vector<16x32xf32>
    %993 = tpu.matmul %992, %991, %cst_313 {dimension_numbers = #tpu.dot_dimension_numbers<[1], [0], [0], [1], [0, 0, 1, 1], [], []>} : vector<16x32xbf16>, vector<32x32xbf16>, vector<16x32xf32> -> vector<16x32xf32>
    %c1_314 = arith.constant 1 : index
    %c0_315 = arith.constant 0 : index
    %c0_316 = arith.constant 0 : index
    %994 = vector.load %arg30[%c1_314, %c0_315, %c0_316] : memref<2x1x32xf32, #tpu.memory_space<vmem>>, vector<1x1x32xf32>
    %995 = vector.shape_cast %994 : vector<1x1x32xf32> to vector<1x32xf32>
    %996 = vector.broadcast %995 : vector<1x32xf32> to vector<16x32xf32>
    %997 = arith.addf %993, %996 : vector<16x32xf32>
    %998 = arith.addf %878, %997 : vector<16x32xf32>
    %c1_317 = arith.constant 1 : index
    %c0_318 = arith.constant 0 : index
    %c0_319 = arith.constant 0 : index
    %999 = vector.load %arg31[%c1_317, %c0_318, %c0_319] : memref<2x1x32xf32, #tpu.memory_space<vmem>>, vector<1x1x32xf32>
    %1000 = vector.shape_cast %999 : vector<1x1x32xf32> to vector<1x32xf32>
    %c1_320 = arith.constant 1 : index
    %c0_321 = arith.constant 0 : index
    %c0_322 = arith.constant 0 : index
    %1001 = vector.load %arg32[%c1_320, %c0_321, %c0_322] : memref<2x1x32xf32, #tpu.memory_space<vmem>>, vector<1x1x32xf32>
    %1002 = vector.shape_cast %1001 : vector<1x1x32xf32> to vector<1x32xf32>
    %cst_323 = arith.constant dense<0.000000e+00> : vector<16xf32>
    %1003 = vector.multi_reduction <add>, %998, %cst_323 [1] : vector<16x32xf32> to vector<16xf32>
    %1004 = vector.shape_cast %1003 : vector<16xf32> to vector<16x1xf32>
    %cst_324 = arith.constant 3.200000e+01 : f32
    %1005 = vector.broadcast %cst_324 : f32 to vector<16x1xf32>
    %1006 = arith.divf %1004, %1005 : vector<16x1xf32>
    %1007 = vector.broadcast %1006 : vector<16x1xf32> to vector<16x32xf32>
    %1008 = arith.subf %998, %1007 : vector<16x32xf32>
    %1009 = arith.mulf %1008, %1008 : vector<16x32xf32>
    %cst_325 = arith.constant dense<0.000000e+00> : vector<16xf32>
    %1010 = vector.multi_reduction <add>, %1009, %cst_325 [1] : vector<16x32xf32> to vector<16xf32>
    %1011 = vector.shape_cast %1010 : vector<16xf32> to vector<16x1xf32>
    %cst_326 = arith.constant 3.200000e+01 : f32
    %1012 = vector.broadcast %cst_326 : f32 to vector<16x1xf32>
    %1013 = arith.divf %1011, %1012 : vector<16x1xf32>
    %1014 = vector.broadcast %1006 : vector<16x1xf32> to vector<16x32xf32>
    %1015 = arith.subf %998, %1014 : vector<16x32xf32>
    %cst_327 = arith.constant 9.99999974E-6 : f32
    %1016 = vector.broadcast %cst_327 : f32 to vector<16x1xf32>
    %1017 = arith.addf %1013, %1016 : vector<16x1xf32>
    %1018 = math.rsqrt %1017 : vector<16x1xf32>
    %1019 = vector.broadcast %1018 : vector<16x1xf32> to vector<16x32xf32>
    %1020 = arith.mulf %1015, %1019 : vector<16x32xf32>
    %1021 = vector.broadcast %1000 : vector<1x32xf32> to vector<16x32xf32>
    %1022 = arith.mulf %1020, %1021 : vector<16x32xf32>
    %1023 = vector.broadcast %1002 : vector<1x32xf32> to vector<16x32xf32>
    %1024 = arith.addf %1022, %1023 : vector<16x32xf32>
    %c1_328 = arith.constant 1 : index
    %c0_329 = arith.constant 0 : index
    %c0_330 = arith.constant 0 : index
    %1025 = vector.load %arg33[%c1_328, %c0_329, %c0_330] : memref<2x32x64xbf16, #tpu.memory_space<vmem>>, vector<1x32x64xbf16>
    %1026 = vector.shape_cast %1025 : vector<1x32x64xbf16> to vector<32x64xbf16>
    %1027 = arith.truncf %1024 : vector<16x32xf32> to vector<16x32xbf16>
    %cst_331 = arith.constant dense<0.000000e+00> : vector<16x64xf32>
    %1028 = tpu.matmul %1027, %1026, %cst_331 {dimension_numbers = #tpu.dot_dimension_numbers<[1], [0], [0], [1], [0, 0, 1, 1], [], []>} : vector<16x32xbf16>, vector<32x64xbf16>, vector<16x64xf32> -> vector<16x64xf32>
    %c1_332 = arith.constant 1 : index
    %c0_333 = arith.constant 0 : index
    %c0_334 = arith.constant 0 : index
    %1029 = vector.load %arg34[%c1_332, %c0_333, %c0_334] : memref<2x1x64xf32, #tpu.memory_space<vmem>>, vector<1x1x64xf32>
    %1030 = vector.shape_cast %1029 : vector<1x1x64xf32> to vector<1x64xf32>
    %1031 = vector.broadcast %1030 : vector<1x64xf32> to vector<16x64xf32>
    %1032 = arith.addf %1028, %1031 : vector<16x64xf32>
    %cst_335 = arith.constant 0.000000e+00 : f32
    %1033 = vector.broadcast %cst_335 : f32 to vector<16x64xf32>
    %1034 = arith.maximumf %1032, %1033 : vector<16x64xf32>
    %c1_336 = arith.constant 1 : index
    %c0_337 = arith.constant 0 : index
    %c0_338 = arith.constant 0 : index
    %1035 = vector.load %arg35[%c1_336, %c0_337, %c0_338] : memref<2x64x32xbf16, #tpu.memory_space<vmem>>, vector<1x64x32xbf16>
    %1036 = vector.shape_cast %1035 : vector<1x64x32xbf16> to vector<64x32xbf16>
    %1037 = arith.truncf %1034 : vector<16x64xf32> to vector<16x64xbf16>
    %cst_339 = arith.constant dense<0.000000e+00> : vector<16x32xf32>
    %1038 = tpu.matmul %1037, %1036, %cst_339 {dimension_numbers = #tpu.dot_dimension_numbers<[1], [0], [0], [1], [0, 0, 1, 1], [], []>} : vector<16x64xbf16>, vector<64x32xbf16>, vector<16x32xf32> -> vector<16x32xf32>
    %c1_340 = arith.constant 1 : index
    %c0_341 = arith.constant 0 : index
    %c0_342 = arith.constant 0 : index
    %1039 = vector.load %arg36[%c1_340, %c0_341, %c0_342] : memref<2x1x32xf32, #tpu.memory_space<vmem>>, vector<1x1x32xf32>
    %1040 = vector.shape_cast %1039 : vector<1x1x32xf32> to vector<1x32xf32>
    %1041 = vector.broadcast %1040 : vector<1x32xf32> to vector<16x32xf32>
    %1042 = arith.addf %1038, %1041 : vector<16x32xf32>
    %1043 = arith.addf %1024, %1042 : vector<16x32xf32>
    %c1_343 = arith.constant 1 : index
    %c0_344 = arith.constant 0 : index
    %c0_345 = arith.constant 0 : index
    %1044 = vector.load %arg37[%c1_343, %c0_344, %c0_345] : memref<2x1x32xf32, #tpu.memory_space<vmem>>, vector<1x1x32xf32>
    %1045 = vector.shape_cast %1044 : vector<1x1x32xf32> to vector<1x32xf32>
    %c1_346 = arith.constant 1 : index
    %c0_347 = arith.constant 0 : index
    %c0_348 = arith.constant 0 : index
    %1046 = vector.load %arg38[%c1_346, %c0_347, %c0_348] : memref<2x1x32xf32, #tpu.memory_space<vmem>>, vector<1x1x32xf32>
    %1047 = vector.shape_cast %1046 : vector<1x1x32xf32> to vector<1x32xf32>
    %cst_349 = arith.constant dense<0.000000e+00> : vector<16xf32>
    %1048 = vector.multi_reduction <add>, %1043, %cst_349 [1] : vector<16x32xf32> to vector<16xf32>
    %1049 = vector.shape_cast %1048 : vector<16xf32> to vector<16x1xf32>
    %cst_350 = arith.constant 3.200000e+01 : f32
    %1050 = vector.broadcast %cst_350 : f32 to vector<16x1xf32>
    %1051 = arith.divf %1049, %1050 : vector<16x1xf32>
    %1052 = vector.broadcast %1051 : vector<16x1xf32> to vector<16x32xf32>
    %1053 = arith.subf %1043, %1052 : vector<16x32xf32>
    %1054 = arith.mulf %1053, %1053 : vector<16x32xf32>
    %cst_351 = arith.constant dense<0.000000e+00> : vector<16xf32>
    %1055 = vector.multi_reduction <add>, %1054, %cst_351 [1] : vector<16x32xf32> to vector<16xf32>
    %1056 = vector.shape_cast %1055 : vector<16xf32> to vector<16x1xf32>
    %cst_352 = arith.constant 3.200000e+01 : f32
    %1057 = vector.broadcast %cst_352 : f32 to vector<16x1xf32>
    %1058 = arith.divf %1056, %1057 : vector<16x1xf32>
    %1059 = vector.broadcast %1051 : vector<16x1xf32> to vector<16x32xf32>
    %1060 = arith.subf %1043, %1059 : vector<16x32xf32>
    %cst_353 = arith.constant 9.99999974E-6 : f32
    %1061 = vector.broadcast %cst_353 : f32 to vector<16x1xf32>
    %1062 = arith.addf %1058, %1061 : vector<16x1xf32>
    %1063 = math.rsqrt %1062 : vector<16x1xf32>
    %1064 = vector.broadcast %1063 : vector<16x1xf32> to vector<16x32xf32>
    %1065 = arith.mulf %1060, %1064 : vector<16x32xf32>
    %1066 = vector.broadcast %1045 : vector<1x32xf32> to vector<16x32xf32>
    %1067 = arith.mulf %1065, %1066 : vector<16x32xf32>
    %1068 = vector.broadcast %1047 : vector<1x32xf32> to vector<16x32xf32>
    %1069 = arith.addf %1067, %1068 : vector<16x32xf32>
    %c0_354 = arith.constant 0 : index
    %c0_355 = arith.constant 0 : index
    %1070 = vector.load %arg39[%c0_354, %c0_355] : memref<1x32xf32, #tpu.memory_space<vmem>>, vector<1x32xf32>
    %c0_356 = arith.constant 0 : index
    %c0_357 = arith.constant 0 : index
    %1071 = vector.load %arg40[%c0_356, %c0_357] : memref<1x32xf32, #tpu.memory_space<vmem>>, vector<1x32xf32>
    %cst_358 = arith.constant dense<0.000000e+00> : vector<16xf32>
    %1072 = vector.multi_reduction <add>, %1069, %cst_358 [1] : vector<16x32xf32> to vector<16xf32>
    %1073 = vector.shape_cast %1072 : vector<16xf32> to vector<16x1xf32>
    %cst_359 = arith.constant 3.200000e+01 : f32
    %1074 = vector.broadcast %cst_359 : f32 to vector<16x1xf32>
    %1075 = arith.divf %1073, %1074 : vector<16x1xf32>
    %1076 = vector.broadcast %1075 : vector<16x1xf32> to vector<16x32xf32>
    %1077 = arith.subf %1069, %1076 : vector<16x32xf32>
    %1078 = arith.mulf %1077, %1077 : vector<16x32xf32>
    %cst_360 = arith.constant dense<0.000000e+00> : vector<16xf32>
    %1079 = vector.multi_reduction <add>, %1078, %cst_360 [1] : vector<16x32xf32> to vector<16xf32>
    %1080 = vector.shape_cast %1079 : vector<16xf32> to vector<16x1xf32>
    %cst_361 = arith.constant 3.200000e+01 : f32
    %1081 = vector.broadcast %cst_361 : f32 to vector<16x1xf32>
    %1082 = arith.divf %1080, %1081 : vector<16x1xf32>
    %1083 = vector.broadcast %1075 : vector<16x1xf32> to vector<16x32xf32>
    %1084 = arith.subf %1069, %1083 : vector<16x32xf32>
    %cst_362 = arith.constant 9.99999974E-6 : f32
    %1085 = vector.broadcast %cst_362 : f32 to vector<16x1xf32>
    %1086 = arith.addf %1082, %1085 : vector<16x1xf32>
    %1087 = math.rsqrt %1086 : vector<16x1xf32>
    %1088 = vector.broadcast %1087 : vector<16x1xf32> to vector<16x32xf32>
    %1089 = arith.mulf %1084, %1088 : vector<16x32xf32>
    %1090 = vector.broadcast %1070 : vector<1x32xf32> to vector<16x32xf32>
    %1091 = arith.mulf %1089, %1090 : vector<16x32xf32>
    %1092 = vector.broadcast %1071 : vector<1x32xf32> to vector<16x32xf32>
    %1093 = arith.addf %1091, %1092 : vector<16x32xf32>
    %c0_363 = arith.constant 0 : index
    %c0_364 = arith.constant 0 : index
    %1094 = vector.load %arg41[%c0_363, %c0_364] : memref<32x128xbf16, #tpu.memory_space<vmem>>, vector<32x128xbf16>
    %1095 = arith.truncf %1093 : vector<16x32xf32> to vector<16x32xbf16>
    %cst_365 = arith.constant dense<0.000000e+00> : vector<16x128xf32>
    %1096 = tpu.matmul %1095, %1094, %cst_365 {dimension_numbers = #tpu.dot_dimension_numbers<[1], [0], [0], [1], [0, 0, 1, 1], [], []>} : vector<16x32xbf16>, vector<32x128xbf16>, vector<16x128xf32> -> vector<16x128xf32>
    %c0_366 = arith.constant 0 : index
    %c0_367 = arith.constant 0 : index
    %1097 = vector.load %arg42[%c0_366, %c0_367] : memref<1x128xf32, #tpu.memory_space<vmem>>, vector<1x128xf32>
    %1098 = vector.broadcast %1097 : vector<1x128xf32> to vector<16x128xf32>
    %1099 = arith.addf %1096, %1098 : vector<16x128xf32>
    %c0_368 = arith.constant 0 : index
    %c0_369 = arith.constant 0 : index
    %1100 = vector.load %arg43[%c0_368, %c0_369] : memref<16x128xf32, #tpu.memory_space<vmem>>, vector<16x128xf32>
    tpu.vector_store %arg43[%c0_368, %c0_369], %1099 {strides = array<i32>} : memref<16x128xf32, #tpu.memory_space<vmem>>, vector<16x128xf32>,
    return
  }
}

</mosaic_0001>

<llo_original>
// kernel: transformer_forward.1
$region0: #{transformer_forward.1}
  #allocation0 [shape = 'u32[]', space=smem, size = 0x4, offset = 0x4, fixed_abs, tag = 'smem constant byte address 0x4 - core index']
  #allocation1 [shape = 'u32[144,128]{1,0:T(1,128)}', space=vmem, size = 0x12000, scoped, tag = 'internal scratch']
  %s0 = inlined_call_operand.smem [shape: u32[44], index: -1, kind: input, shape index: {}]
  %s1 = sld [smem:[%s0]]
  %s2 = scalar_lea.smem %s0, 1
  %s3 = sld [smem:[%s2]]
  %s4 = scalar_lea.smem %s0, 2
  %s5 = sld [smem:[%s4]]
  %s6 = scalar_lea.smem %s0, 3
  %s7 = sld [smem:[%s6]]
  %s8 = scalar_lea.smem %s0, 4
  %s9 = sld [smem:[%s8]]
  %s10 = scalar_lea.smem %s0, 5
  %s11 = sld [smem:[%s10]]
  %s12 = scalar_lea.smem %s0, 6
  %s13 = sld [smem:[%s12]]
  %s14 = scalar_lea.smem %s0, 7
  %s15 = sld [smem:[%s14]]
  %s16 = scalar_lea.smem %s0, 8
  %s17 = sld [smem:[%s16]]
  %s18 = scalar_lea.smem %s0, 9
  %s19 = sld [smem:[%s18]]
  %s20 = scalar_lea.smem %s0, 10
  %s21 = sld [smem:[%s20]]
  %s22 = scalar_lea.smem %s0, 11
  %s23 = sld [smem:[%s22]]
  %s24 = scalar_lea.smem %s0, 12
  %s25 = sld [smem:[%s24]]
  %s26 = scalar_lea.smem %s0, 13
  %s27 = sld [smem:[%s26]]
  %s28 = scalar_lea.smem %s0, 14
  %s29 = sld [smem:[%s28]]
  %s30 = scalar_lea.smem %s0, 15
  %s31 = sld [smem:[%s30]]
  %s32 = scalar_lea.smem %s0, 16
  %s33 = sld [smem:[%s32]]
  %s34 = scalar_lea.smem %s0, 17
  %s35 = sld [smem:[%s34]]
  %s36 = scalar_lea.smem %s0, 18
  %s37 = sld [smem:[%s36]]
  %s38 = scalar_lea.smem %s0, 19
  %s39 = sld [smem:[%s38]]
  %s40 = scalar_lea.smem %s0, 20
  %s41 = sld [smem:[%s40]]
  %s42 = scalar_lea.smem %s0, 21
  %s43 = sld [smem:[%s42]]
  %s44 = scalar_lea.smem %s0, 22
  %s45 = sld [smem:[%s44]]
  %s46 = scalar_lea.smem %s0, 23
  %s47 = sld [smem:[%s46]]
  %s48 = scalar_lea.smem %s0, 24
  %s49 = sld [smem:[%s48]]
  %s50 = scalar_lea.smem %s0, 25
  %s51 = sld [smem:[%s50]]
  %s52 = scalar_lea.smem %s0, 26
  %s53 = sld [smem:[%s52]]
  %s54 = scalar_lea.smem %s0, 27
  %s55 = sld [smem:[%s54]]
  %s56 = scalar_lea.smem %s0, 28
  %s57 = sld [smem:[%s56]]
  %s58 = scalar_lea.smem %s0, 29
  %s59 = sld [smem:[%s58]]
  %s60 = scalar_lea.smem %s0, 30
  %s61 = sld [smem:[%s60]]
  %s62 = scalar_lea.smem %s0, 31
  %s63 = sld [smem:[%s62]]
  %s64 = scalar_lea.smem %s0, 32
  %s65 = sld [smem:[%s64]]
  %s66 = scalar_lea.smem %s0, 33
  %s67 = sld [smem:[%s66]]
  %s68 = scalar_lea.smem %s0, 34
  %s69 = sld [smem:[%s68]]
  %s70 = scalar_lea.smem %s0, 35
  %s71 = sld [smem:[%s70]]
  %s72 = scalar_lea.smem %s0, 36
  %s73 = sld [smem:[%s72]]
  %s74 = scalar_lea.smem %s0, 37
  %s75 = sld [smem:[%s74]]
  %s76 = scalar_lea.smem %s0, 38
  %s77 = sld [smem:[%s76]]
  %s78 = scalar_lea.smem %s0, 39
  %s79 = sld [smem:[%s78]]
  %s80 = scalar_lea.smem %s0, 40
  %s81 = sld [smem:[%s80]]
  %s82 = scalar_lea.smem %s0, 41
  %s83 = sld [smem:[%s82]]
  %s84 = scalar_lea.smem %s0, 42
  %s85 = sld [smem:[%s84]]
  %s86 = scalar_lea.smem %s0, 43
  %s87 = sld [smem:[%s86]]
  %s88 = sld [smem:[#allocation0]]
  $region182: #{transformer_forward.1} parent=0
    _
  %s90 = ssub.s32 1, %s88
  %s91 = scalar_select 0, %s90, %s88
  // Predicated region
  $region2: #{transformer_forward.1} parent=0 // pred_check
    _
  $region3: #{transformer_forward.1} parent=0 // pred_check_branch
    %93 = sbr.rel (0) target = $region5
  $region4: #{transformer_forward.1} parent=0 // pred_region
    _
  $region5: #{transformer_forward.1} parent=0 // pred_fallthru
    _
  // Predicated region
  $region6: #{transformer_forward.1} parent=0 // pred_check
    _
  $region7: #{transformer_forward.1} parent=0 // pred_check_branch
    %95 = sbr.rel (0) target = $region9
  $region8: #{transformer_forward.1} parent=0 // pred_region
    _
  $region9: #{transformer_forward.1} parent=0 // pred_fallthru
    _
  // Predicated region
  $region10: #{transformer_forward.1} parent=0 // pred_check
    _
  $region11: #{transformer_forward.1} parent=0 // pred_check_branch
    %97 = sbr.rel (0) target = $region13
  $region12: #{transformer_forward.1} parent=0 // pred_region
    _
  $region13: #{transformer_forward.1} parent=0 // pred_fallthru
    _
  // Predicated region
  $region14: #{transformer_forward.1} parent=0 // pred_check
    _
  $region15: #{transformer_forward.1} parent=0 // pred_check_branch
    %99 = sbr.rel (0) target = $region17
  $region16: #{transformer_forward.1} parent=0 // pred_region
    _
  $region17: #{transformer_forward.1} parent=0 // pred_fallthru
    _
  // Predicated region
  $region18: #{transformer_forward.1} parent=0 // pred_check
    _
  $region19: #{transformer_forward.1} parent=0 // pred_check_branch
    %101 = sbr.rel (0) target = $region21
  $region20: #{transformer_forward.1} parent=0 // pred_region
    _
  $region21: #{transformer_forward.1} parent=0 // pred_fallthru
    _
  // Predicated region
  $region22: #{transformer_forward.1} parent=0 // pred_check
    _
  $region23: #{transformer_forward.1} parent=0 // pred_check_branch
    %103 = sbr.rel (0) target = $region25
  $region24: #{transformer_forward.1} parent=0 // pred_region
    _
  $region25: #{transformer_forward.1} parent=0 // pred_fallthru
    _
  // Predicated region
  $region26: #{transformer_forward.1} parent=0 // pred_check
    _
  $region27: #{transformer_forward.1} parent=0 // pred_check_branch
    %105 = sbr.rel (0) target = $region29
  $region28: #{transformer_forward.1} parent=0 // pred_region
    _
  $region29: #{transformer_forward.1} parent=0 // pred_fallthru
    _
  // Predicated region
  $region30: #{transformer_forward.1} parent=0 // pred_check
    _
  $region31: #{transformer_forward.1} parent=0 // pred_check_branch
    %107 = sbr.rel (0) target = $region33
  $region32: #{transformer_forward.1} parent=0 // pred_region
    _
  $region33: #{transformer_forward.1} parent=0 // pred_fallthru
    _
  // Predicated region
  $region34: #{transformer_forward.1} parent=0 // pred_check
    _
  $region35: #{transformer_forward.1} parent=0 // pred_check_branch
    %109 = sbr.rel (0) target = $region37
  $region36: #{transformer_forward.1} parent=0 // pred_region
    _
  $region37: #{transformer_forward.1} parent=0 // pred_fallthru
    _
  // Predicated region
  $region38: #{transformer_forward.1} parent=0 // pred_check
    _
  $region39: #{transformer_forward.1} parent=0 // pred_check_branch
    %111 = sbr.rel (0) target = $region41
  $region40: #{transformer_forward.1} parent=0 // pred_region
    _
  $region41: #{transformer_forward.1} parent=0 // pred_fallthru
    _
  // Predicated region
  $region42: #{transformer_forward.1} parent=0 // pred_check
    _
  $region43: #{transformer_forward.1} parent=0 // pred_check_branch
    %113 = sbr.rel (0) target = $region45
  $region44: #{transformer_forward.1} parent=0 // pred_region
    _
  $region45: #{transformer_forward.1} parent=0 // pred_fallthru
    _
  // Predicated region
  $region46: #{transformer_forward.1} parent=0 // pred_check
    _
  $region47: #{transformer_forward.1} parent=0 // pred_check_branch
    %115 = sbr.rel (0) target = $region49
  $region48: #{transformer_forward.1} parent=0 // pred_region
    _
  $region49: #{transformer_forward.1} parent=0 // pred_fallthru
    _
  // Predicated region
  $region50: #{transformer_forward.1} parent=0 // pred_check
    _
  $region51: #{transformer_forward.1} parent=0 // pred_check_branch
    %117 = sbr.rel (0) target = $region53
  $region52: #{transformer_forward.1} parent=0 // pred_region
    _
  $region53: #{transformer_forward.1} parent=0 // pred_fallthru
    _
  // Predicated region
  $region54: #{transformer_forward.1} parent=0 // pred_check
    _
  $region55: #{transformer_forward.1} parent=0 // pred_check_branch
    %119 = sbr.rel (0) target = $region57
  $region56: #{transformer_forward.1} parent=0 // pred_region
    _
  $region57: #{transformer_forward.1} parent=0 // pred_fallthru
    _
  // Predicated region
  $region58: #{transformer_forward.1} parent=0 // pred_check
    _
  $region59: #{transformer_forward.1} parent=0 // pred_check_branch
    %121 = sbr.rel (0) target = $region61
  $region60: #{transformer_forward.1} parent=0 // pred_region
    _
  $region61: #{transformer_forward.1} parent=0 // pred_fallthru
    _
  // Predicated region
  $region62: #{transformer_forward.1} parent=0 // pred_check
    _
  $region63: #{transformer_forward.1} parent=0 // pred_check_branch
    %123 = sbr.rel (0) target = $region65
  $region64: #{transformer_forward.1} parent=0 // pred_region
    _
  $region65: #{transformer_forward.1} parent=0 // pred_fallthru
    _
  // Predicated region
  $region66: #{transformer_forward.1} parent=0 // pred_check
    _
  $region67: #{transformer_forward.1} parent=0 // pred_check_branch
    %125 = sbr.rel (0) target = $region69
  $region68: #{transformer_forward.1} parent=0 // pred_region
    _
  $region69: #{transformer_forward.1} parent=0 // pred_fallthru
    _
  // Predicated region
  $region70: #{transformer_forward.1} parent=0 // pred_check
    _
  $region71: #{transformer_forward.1} parent=0 // pred_check_branch
    %127 = sbr.rel (0) target = $region73
  $region72: #{transformer_forward.1} parent=0 // pred_region
    _
  $region73: #{transformer_forward.1} parent=0 // pred_fallthru
    _
  // Predicated region
  $region74: #{transformer_forward.1} parent=0 // pred_check
    _
  $region75: #{transformer_forward.1} parent=0 // pred_check_branch
    %129 = sbr.rel (0) target = $region77
  $region76: #{transformer_forward.1} parent=0 // pred_region
    _
  $region77: #{transformer_forward.1} parent=0 // pred_fallthru
    _
  // Predicated region
  $region78: #{transformer_forward.1} parent=0 // pred_check
    _
  $region79: #{transformer_forward.1} parent=0 // pred_check_branch
    %131 = sbr.rel (0) target = $region81
  $region80: #{transformer_forward.1} parent=0 // pred_region
    _
  $region81: #{transformer_forward.1} parent=0 // pred_fallthru
    _
  // Predicated region
  $region82: #{transformer_forward.1} parent=0 // pred_check
    _
  $region83: #{transformer_forward.1} parent=0 // pred_check_branch
    %133 = sbr.rel (0) target = $region85
  $region84: #{transformer_forward.1} parent=0 // pred_region
    _
  $region85: #{transformer_forward.1} parent=0 // pred_fallthru
    _
  // Predicated region
  $region86: #{transformer_forward.1} parent=0 // pred_check
    _
  $region87: #{transformer_forward.1} parent=0 // pred_check_branch
    %135 = sbr.rel (0) target = $region89
  $region88: #{transformer_forward.1} parent=0 // pred_region
    _
  $region89: #{transformer_forward.1} parent=0 // pred_fallthru
    _
  // Predicated region
  $region90: #{transformer_forward.1} parent=0 // pred_check
    _
  $region91: #{transformer_forward.1} parent=0 // pred_check_branch
    %137 = sbr.rel (0) target = $region93
  $region92: #{transformer_forward.1} parent=0 // pred_region
    _
  $region93: #{transformer_forward.1} parent=0 // pred_fallthru
    _
  // Predicated region
  $region94: #{transformer_forward.1} parent=0 // pred_check
    _
  $region95: #{transformer_forward.1} parent=0 // pred_check_branch
    %139 = sbr.rel (0) target = $region97
  $region96: #{transformer_forward.1} parent=0 // pred_region
    _
  $region97: #{transformer_forward.1} parent=0 // pred_fallthru
    _
  // Predicated region
  $region98: #{transformer_forward.1} parent=0 // pred_check
    _
  $region99: #{transformer_forward.1} parent=0 // pred_check_branch
    %141 = sbr.rel (0) target = $region101
  $region100: #{transformer_forward.1} parent=0 // pred_region
    _
  $region101: #{transformer_forward.1} parent=0 // pred_fallthru
    _
  // Predicated region
  $region102: #{transformer_forward.1} parent=0 // pred_check
    _
  $region103: #{transformer_forward.1} parent=0 // pred_check_branch
    %143 = sbr.rel (0) target = $region105
  $region104: #{transformer_forward.1} parent=0 // pred_region
    _
  $region105: #{transformer_forward.1} parent=0 // pred_fallthru
    _
  // Predicated region
  $region106: #{transformer_forward.1} parent=0 // pred_check
    _
  $region107: #{transformer_forward.1} parent=0 // pred_check_branch
    %145 = sbr.rel (0) target = $region109
  $region108: #{transformer_forward.1} parent=0 // pred_region
    _
  $region109: #{transformer_forward.1} parent=0 // pred_fallthru
    _
  // Predicated region
  $region110: #{transformer_forward.1} parent=0 // pred_check
    _
  $region111: #{transformer_forward.1} parent=0 // pred_check_branch
    %147 = sbr.rel (0) target = $region113
  $region112: #{transformer_forward.1} parent=0 // pred_region
    _
  $region113: #{transformer_forward.1} parent=0 // pred_fallthru
    _
  // Predicated region
  $region114: #{transformer_forward.1} parent=0 // pred_check
    _
  $region115: #{transformer_forward.1} parent=0 // pred_check_branch
    %149 = sbr.rel (0) target = $region117
  $region116: #{transformer_forward.1} parent=0 // pred_region
    _
  $region117: #{transformer_forward.1} parent=0 // pred_fallthru
    _
  // Predicated region
  $region118: #{transformer_forward.1} parent=0 // pred_check
    _
  $region119: #{transformer_forward.1} parent=0 // pred_check_branch
    %151 = sbr.rel (0) target = $region121
  $region120: #{transformer_forward.1} parent=0 // pred_region
    _
  $region121: #{transformer_forward.1} parent=0 // pred_fallthru
    _
  // Predicated region
  $region122: #{transformer_forward.1} parent=0 // pred_check
    _
  $region123: #{transformer_forward.1} parent=0 // pred_check_branch
    %153 = sbr.rel (0) target = $region125
  $region124: #{transformer_forward.1} parent=0 // pred_region
    _
  $region125: #{transformer_forward.1} parent=0 // pred_fallthru
    _
  // Predicated region
  $region126: #{transformer_forward.1} parent=0 // pred_check
    _
  $region127: #{transformer_forward.1} parent=0 // pred_check_branch
    %155 = sbr.rel (0) target = $region129
  $region128: #{transformer_forward.1} parent=0 // pred_region
    _
  $region129: #{transformer_forward.1} parent=0 // pred_fallthru
    _
  // Predicated region
  $region130: #{transformer_forward.1} parent=0 // pred_check
    _
  $region131: #{transformer_forward.1} parent=0 // pred_check_branch
    %157 = sbr.rel (0) target = $region133
  $region132: #{transformer_forward.1} parent=0 // pred_region
    _
  $region133: #{transformer_forward.1} parent=0 // pred_fallthru
    _
  // Predicated region
  $region134: #{transformer_forward.1} parent=0 // pred_check
    _
  $region135: #{transformer_forward.1} parent=0 // pred_check_branch
    %159 = sbr.rel (0) target = $region137
  $region136: #{transformer_forward.1} parent=0 // pred_region
    _
  $region137: #{transformer_forward.1} parent=0 // pred_fallthru
    _
  // Predicated region
  $region138: #{transformer_forward.1} parent=0 // pred_check
    _
  $region139: #{transformer_forward.1} parent=0 // pred_check_branch
    %161 = sbr.rel (0) target = $region141
  $region140: #{transformer_forward.1} parent=0 // pred_region
    _
  $region141: #{transformer_forward.1} parent=0 // pred_fallthru
    _
  // Predicated region
  $region142: #{transformer_forward.1} parent=0 // pred_check
    _
  $region143: #{transformer_forward.1} parent=0 // pred_check_branch
    %163 = sbr.rel (0) target = $region145
  $region144: #{transformer_forward.1} parent=0 // pred_region
    _
  $region145: #{transformer_forward.1} parent=0 // pred_fallthru
    _
  // Predicated region
  $region146: #{transformer_forward.1} parent=0 // pred_check
    _
  $region147: #{transformer_forward.1} parent=0 // pred_check_branch
    %165 = sbr.rel (0) target = $region149
  $region148: #{transformer_forward.1} parent=0 // pred_region
    _
  $region149: #{transformer_forward.1} parent=0 // pred_fallthru
    _
  // Predicated region
  $region150: #{transformer_forward.1} parent=0 // pred_check
    _
  $region151: #{transformer_forward.1} parent=0 // pred_check_branch
    %167 = sbr.rel (0) target = $region153
  $region152: #{transformer_forward.1} parent=0 // pred_region
    _
  $region153: #{transformer_forward.1} parent=0 // pred_fallthru
    _
  // Predicated region
  $region154: #{transformer_forward.1} parent=0 // pred_check
    _
  $region155: #{transformer_forward.1} parent=0 // pred_check_branch
    %169 = sbr.rel (0) target = $region157
  $region156: #{transformer_forward.1} parent=0 // pred_region
    _
  $region157: #{transformer_forward.1} parent=0 // pred_fallthru
    _
  // Predicated region
  $region158: #{transformer_forward.1} parent=0 // pred_check
    _
  $region159: #{transformer_forward.1} parent=0 // pred_check_branch
    %171 = sbr.rel (0) target = $region161
  $region160: #{transformer_forward.1} parent=0 // pred_region
    _
  $region161: #{transformer_forward.1} parent=0 // pred_fallthru
    _
  // Predicated region
  $region162: #{transformer_forward.1} parent=0 // pred_check
    _
  $region163: #{transformer_forward.1} parent=0 // pred_check_branch
    %173 = sbr.rel (0) target = $region165
  $region164: #{transformer_forward.1} parent=0 // pred_region
    _
  $region165: #{transformer_forward.1} parent=0 // pred_fallthru
    _
  // Predicated region
  $region166: #{transformer_forward.1} parent=0 // pred_check
    _
  $region167: #{transformer_forward.1} parent=0 // pred_check_branch
    %175 = sbr.rel (0) target = $region169
  $region168: #{transformer_forward.1} parent=0 // pred_region
    _
  $region169: #{transformer_forward.1} parent=0 // pred_fallthru
    _
  // Predicated region
  $region170: #{transformer_forward.1} parent=0 // pred_check
    _
  $region171: #{transformer_forward.1} parent=0 // pred_check_branch
    %177 = sbr.rel (0) target = $region173
  $region172: #{transformer_forward.1} parent=0 // pred_region
    _
  $region173: #{transformer_forward.1} parent=0 // pred_fallthru
    _
  %v179 = vld [vmem:[%s9] sm:$0x1]
  %s180 = scalar_lea.vmem %s9, 1
  %v181 = vld [vmem:[%s180] sm:$0x1]
  %s182 = scalar_lea.vmem %s9, 2
  %v183 = vld [vmem:[%s182] sm:$0x1]
  %s184 = scalar_lea.vmem %s9, 3
  %v185 = vld [vmem:[%s184] sm:$0x1]
  %v186 = vld [vmem:[%s1] sm:$0xff]
  %v187 = vld [vmem:[%s1 + $0x8] sm:$0xff]
  %v188 = vmul.f32 %v186, 5.656854
  %v189 = vmul.f32 %v187, 5.656854
  %v190 = vld [vmem:[%s3] sm:$0xff]
  %v191 = vld [vmem:[%s3 + $0x8] sm:$0xff]
  %v192 = vadd.f32 %v188, %v190
  %v193 = vadd.f32 %v189, %v191
  %v194 = vld [vmem:[%s11] sm:$0xf]
  %v195 = vld [vmem:[%s11 + $0x4] sm:$0xf]
  %v196 = vld [vmem:[%s11 + $0x8] sm:$0xf]
  %v197 = vld [vmem:[%s11 + $0xc] sm:$0xf]
  %v198 = vpack.c.bf16 %v193, %v192
  %v199 = vld [vmem:[%s13] sm:$0x1]
  %v201 = vlaneseq
  %v202 = vshrl.u32 %v201, 7
  %v203 = vsub.s32 0, %v202
  %v204 = vrot.slane %v199, %v203
  %v210 = vunpack.c.l.b16 %v194
  %v211 = vunpack.c.l.b16 %v195
  %v212 = vunpack.c.l.b16 %v196
  %v213 = vunpack.c.l.b16 %v197
  %v214 = vpack.c.b16 %v211, %v210
  %v215 = vpack.c.b16 %v213, %v212
  %vm218 = vcmask 261120
  %v220 = vsel %vm218, %v198, 0
  %222 = vmatprep.subr.bf16.mxu0 0
  %223 = vmatpush1.bf16.msra.mxu0 %v214
  %224 = vmatprep.subr.bf16.mxu0 0
  %225 = vmatpush1.bf16.msra.mxu0 %v215
  %226 = vmatprep.subr.bf16.mxu0 0
  %227 = vmatpush1.bf16.msra.mxu0 0
  %228 = vmatprep.subr.bf16.mxu0 0
  %229 = vmatpush1.bf16.msra.mxu0 0
  %230 = vmatprep.subr.bf16.mxu0 0
  %231 = vmatpush1.bf16.msra.mxu0 0
  %232 = vmatprep.subr.bf16.mxu0 0
  %233 = vmatpush1.bf16.msra.mxu0 0
  %234 = vmatprep.subr.bf16.mxu0 0
  %235 = vmatpush1.bf16.msra.mxu0 0
  %236 = vmatprep.subr.bf16.mxu0 0
  %237 = vmatpush1.bf16.msra.mxu0 0
  %238 = vmatprep.subr.bf16.mxu0 0
  %239 = vmatpush1.bf16.msra.mxu0 0
  %240 = vmatprep.subr.bf16.mxu0 0
  %241 = vmatpush1.bf16.msra.mxu0 0
  %242 = vmatprep.subr.bf16.mxu0 0
  %243 = vmatpush1.bf16.msra.mxu0 0
  %244 = vmatprep.subr.bf16.mxu0 0
  %245 = vmatpush1.bf16.msra.mxu0 0
  %246 = vmatprep.subr.bf16.mxu0 0
  %247 = vmatpush1.bf16.msra.mxu0 0
  %248 = vmatprep.subr.bf16.mxu0 0
  %249 = vmatpush1.bf16.msra.mxu0 0
  %250 = vmatprep.subr.bf16.mxu0 0
  %251 = vmatpush1.bf16.msra.mxu0 0
  %252 = vmatprep.subr.bf16.mxu0 0
  %253 = vmatpush1.bf16.msra.mxu0 0
  %254 = vmatprep.mubr.bf16.mxu0 0
  %255 = vmatmul.mubr.bf16.gmra.mrb[0].mxu0 %v220
  %v256 = vpop.f32.mrb[0].mxu0
  %v257 = vadd.f32 %v204, %v256
  %v258 = vpop.f32.mrb[0].mxu0
  %v259 = vpop.f32.mrb[0].mxu0
  %v260 = vadd.f32 %v204, %v259
  %v261 = vpop.f32.mrb[0].mxu0
  %262 = vdwg.mxu0
  %v264 = vlaneseq
  %v265 = vshrl.u32 %v264, 7
  %v266 = vsub.s32 0, %v265
  %v267 = vrot.slane %v179, %v266
  %v269 = vmul.f32 %v257, %v267
  %v271 = vlaneseq
  %v272 = vshrl.u32 %v271, 7
  %v273 = vsub.s32 0, %v272
  %v274 = vrot.slane %v181, %v273
  %v276 = vmul.f32 %v257, %v274
  %v278 = vlaneseq
  %v279 = vshrl.u32 %v278, 7
  %v280 = vsub.s32 0, %v279
  %v281 = vrot.slane %v183, %v280
  %v283 = vmul.f32 %v257, %v281
  %v285 = vlaneseq
  %v286 = vshrl.u32 %v285, 7
  %v287 = vsub.s32 0, %v286
  %v288 = vrot.slane %v185, %v287
  %v290 = vmul.f32 %v257, %v288
  %292 = vrot.lane.b32.xlu0 %v257, 96
  %v293 = vpop.permute.xlu0 %292
  %295 = vxpose.xlu0.b32.start [1/16] %v293, 128
  %296 = vxpose.xlu0.b32.cont [2/16] 0.0, 128
  %297 = vxpose.xlu0.b32.cont [3/16] 0.0, 128
  %298 = vxpose.xlu0.b32.cont [4/16] 0.0, 128
  %299 = vxpose.xlu0.b32.cont [5/16] 0.0, 128
  %300 = vxpose.xlu0.b32.cont [6/16] 0.0, 128
  %301 = vxpose.xlu0.b32.cont [7/16] 0.0, 128
  %302 = vxpose.xlu0.b32.cont [8/16] 0.0, 128
  %303 = vxpose.xlu0.b32.cont [9/16] 0.0, 128
  %304 = vxpose.xlu0.b32.cont [10/16] 0.0, 128
  %305 = vxpose.xlu0.b32.cont [11/16] 0.0, 128
  %306 = vxpose.xlu0.b32.cont [12/16] 0.0, 128
  %307 = vxpose.xlu0.b32.cont [13/16] 0.0, 128
  %308 = vxpose.xlu0.b32.cont [14/16] 0.0, 128
  %309 = vxpose.xlu0.b32.cont [15/16] 0.0, 128
  %310 = vxpose.xlu0.b32.end [16/16] 0.0, 128
  %v311 = vpop.trf.xlu0
  %v312 = vpop.trf.xlu0
  %v313 = vpop.trf.xlu0
  %v314 = vpop.trf.xlu0
  %v315 = vpop.trf.xlu0
  %v316 = vpop.trf.xlu0
  %v317 = vpop.trf.xlu0
  %v318 = vpop.trf.xlu0
  %v319 = vpop.trf.xlu0
  %v320 = vpop.trf.xlu0
  %v321 = vpop.trf.xlu0
  %v322 = vpop.trf.xlu0
  %v323 = vpop.trf.xlu0
  %v324 = vpop.trf.xlu0
  %v325 = vpop.trf.xlu0
  %v326 = vpop.trf.xlu0
  %v327 = vpack.c.bf16 %v276, %v269
  %v328 = vpack.c.bf16 %v290, %v283
  %v329 = vpack.c.bf16 %v312, %v311
  %v330 = vpack.c.bf16 %v314, %v313
  %v332 = vsel %vm218, %v327, 0
  %v335 = vsel %vm218, %v328, 0
  %337 = vmatprep.subr.bf16.mxu0 0
  %338 = vmatpush1.bf16.msra.mxu0 %v329
  %339 = vmatprep.subr.bf16.mxu0 0
  %340 = vmatpush1.bf16.msra.mxu0 %v330
  %341 = vmatprep.subr.bf16.mxu0 0
  %342 = vmatpush1.bf16.msra.mxu0 0
  %343 = vmatprep.subr.bf16.mxu0 0
  %344 = vmatpush1.bf16.msra.mxu0 0
  %345 = vmatprep.subr.bf16.mxu0 0
  %346 = vmatpush1.bf16.msra.mxu0 0
  %347 = vmatprep.subr.bf16.mxu0 0
  %348 = vmatpush1.bf16.msra.mxu0 0
  %349 = vmatprep.subr.bf16.mxu0 0
  %350 = vmatpush1.bf16.msra.mxu0 0
  %351 = vmatprep.subr.bf16.mxu0 0
  %352 = vmatpush1.bf16.msra.mxu0 0
  %353 = vmatprep.subr.bf16.mxu0 0
  %354 = vmatpush1.bf16.msra.mxu0 0
  %355 = vmatprep.subr.bf16.mxu0 0
  %356 = vmatpush1.bf16.msra.mxu0 0
  %357 = vmatprep.subr.bf16.mxu0 0
  %358 = vmatpush1.bf16.msra.mxu0 0
  %359 = vmatprep.subr.bf16.mxu0 0
  %360 = vmatpush1.bf16.msra.mxu0 0
  %361 = vmatprep.subr.bf16.mxu0 0
  %362 = vmatpush1.bf16.msra.mxu0 0
  %363 = vmatprep.subr.bf16.mxu0 0
  %364 = vmatpush1.bf16.msra.mxu0 0
  %365 = vmatprep.subr.bf16.mxu0 0
  %366 = vmatpush1.bf16.msra.mxu0 0
  %367 = vmatprep.subr.bf16.mxu0 0
  %368 = vmatpush1.bf16.msra.mxu0 0
  %369 = vmatprep.mubr.bf16.mxu0 0
  %370 = vmatmul.mubr.bf16.gmra.mrb[0].mxu0 %v332
  %v371 = vpop.f32.mrb[0].mxu0
  %v372 = vadd.f32 0.0, %v371
  %v373 = vpop.f32.mrb[0].mxu0
  %v374 = vpop.f32.mrb[0].mxu0
  %v375 = vadd.f32 0.0, %v374
  %v376 = vpop.f32.mrb[0].mxu0
  %377 = vmatprep.mubr.bf16.mxu0 0
  %378 = vmatmul.mubr.bf16.gmra.mrb[0].mxu0 %v335
  %v379 = vpop.f32.mrb[0].mxu0
  %v380 = vadd.f32 0.0, %v379
  %v381 = vpop.f32.mrb[0].mxu0
  %v382 = vpop.f32.mrb[0].mxu0
  %v383 = vadd.f32 0.0, %v382
  %v384 = vpop.f32.mrb[0].mxu0
  %385 = vdwg.mxu0
  %v386 = vmul.f32 %v372, 0.35355338
  %v387 = vmul.f32 %v375, 0.35355338
  %v388 = vmul.f32 %v380, 0.35355338
  %v389 = vmul.f32 %v383, 0.35355338
  %vm390 = vcmask 64512
  %v391 = vsel %vm390, %v386, -inf
  %392 = vmax.xlane.f32.xlu0 %v391
  %v393 = vpop.xlane.xlu0 %392
  %v394 = vsel %vm390, %v387, -inf
  %395 = vmax.xlane.f32.xlu0 %v394
  %v396 = vpop.xlane.xlu0 %395
  %v397 = vsel %vm390, %v388, -inf
  %398 = vmax.xlane.f32.xlu0 %v397
  %v399 = vpop.xlane.xlu0 %398
  %v400 = vsel %vm390, %v389, -inf
  %401 = vmax.xlane.f32.xlu0 %v400
  %v402 = vpop.xlane.xlu0 %401
  %v403 = vsub.f32 %v386, %v393
  %v404 = vsub.f32 %v387, %v396
  %v405 = vsub.f32 %v388, %v399
  %v406 = vsub.f32 %v389, %v402
  %v407 = vmul.f32 %v403, 1.442695
  %v408 = vpow.pop %v407
  %v409 = vmul.f32 %v404, 1.442695
  %v410 = vpow.pop %v409
  %v411 = vmul.f32 %v405, 1.442695
  %v412 = vpow.pop %v411
  %v413 = vmul.f32 %v406, 1.442695
  %v414 = vpow.pop %v413
  %v415 = vsel %vm390, %v408, 0.0
  %416 = vadd.xlane.f32.xlu0 %v415
  %v417 = vpop.xlane.xlu0 %416
  %v418 = vsel %vm390, %v410, 0.0
  %419 = vadd.xlane.f32.xlu0 %v418
  %v420 = vpop.xlane.xlu0 %419
  %v421 = vsel %vm390, %v412, 0.0
  %422 = vadd.xlane.f32.xlu0 %v421
  %v423 = vpop.xlane.xlu0 %422
  %v424 = vsel %vm390, %v414, 0.0
  %425 = vadd.xlane.f32.xlu0 %v424
  %v426 = vpop.xlane.xlu0 %425
  %v427 = vrcp.pop %v417
  %v428 = vrcp.pop %v420
  %v429 = vrcp.pop %v423
  %v430 = vrcp.pop %v426
  %v431 = vmul.f32 %v408, %v427
  %v432 = vmul.f32 %v410, %v428
  %v433 = vmul.f32 %v412, %v429
  %v434 = vmul.f32 %v414, %v430
  %v435 = vpack.c.bf16 %v432, %v431
  %v436 = vpack.c.bf16 %v434, %v433
  %v437 = vpack.c.bf16 %v257, %v257
  %439 = vrot.lane.b32.xlu0 %v437, 64
  %v440 = vpop.permute.xlu0 %439
  %v442 = vsel %vm390, %v435, 0
  %v445 = vsel %vm390, %v436, 0
  %vm447 = vcmask 1043456
  %v449 = vsel %vm447, %v440, 0
  %451 = vmatprep.subr.bf16.mxu0 0
  %452 = vmatpush1.bf16.msra.mxu0 %v449
  %453 = vmatprep.subr.bf16.mxu0 0
  %454 = vmatpush1.bf16.msra.mxu0 0
  %455 = vmatprep.subr.bf16.mxu0 0
  %456 = vmatpush1.bf16.msra.mxu0 0
  %457 = vmatprep.subr.bf16.mxu0 0
  %458 = vmatpush1.bf16.msra.mxu0 0
  %459 = vmatprep.subr.bf16.mxu0 0
  %460 = vmatpush1.bf16.msra.mxu0 0
  %461 = vmatprep.subr.bf16.mxu0 0
  %462 = vmatpush1.bf16.msra.mxu0 0
  %463 = vmatprep.subr.bf16.mxu0 0
  %464 = vmatpush1.bf16.msra.mxu0 0
  %465 = vmatprep.subr.bf16.mxu0 0
  %466 = vmatpush1.bf16.msra.mxu0 0
  %467 = vmatprep.subr.bf16.mxu0 0
  %468 = vmatpush1.bf16.msra.mxu0 0
  %469 = vmatprep.subr.bf16.mxu0 0
  %470 = vmatpush1.bf16.msra.mxu0 0
  %471 = vmatprep.subr.bf16.mxu0 0
  %472 = vmatpush1.bf16.msra.mxu0 0
  %473 = vmatprep.subr.bf16.mxu0 0
  %474 = vmatpush1.bf16.msra.mxu0 0
  %475 = vmatprep.subr.bf16.mxu0 0
  %476 = vmatpush1.bf16.msra.mxu0 0
  %477 = vmatprep.subr.bf16.mxu0 0
  %478 = vmatpush1.bf16.msra.mxu0 0
  %479 = vmatprep.subr.bf16.mxu0 0
  %480 = vmatpush1.bf16.msra.mxu0 0
  %481 = vmatprep.subr.bf16.mxu0 0
  %482 = vmatpush1.bf16.msra.mxu0 0
  %483 = vmatprep.mubr.bf16.mxu0 0
  %484 = vmatmul.mubr.bf16.gmra.mrb[0].mxu0 %v442
  %v485 = vpop.f32.mrb[0].mxu0
  %v486 = vadd.f32 0.0, %v485
  %v487 = vpop.f32.mrb[0].mxu0
  %v488 = vpop.f32.mrb[0].mxu0
  %v489 = vadd.f32 0.0, %v488
  %v490 = vpop.f32.mrb[0].mxu0
  %491 = vmatprep.mubr.bf16.mxu0 0
  %492 = vmatmul.mubr.bf16.gmra.mrb[0].mxu0 %v445
  %v493 = vpop.f32.mrb[0].mxu0
  %v494 = vadd.f32 0.0, %v493
  %v495 = vpop.f32.mrb[0].mxu0
  %v496 = vpop.f32.mrb[0].mxu0
  %v497 = vadd.f32 0.0, %v496
  %v498 = vpop.f32.mrb[0].mxu0
  %499 = vdwg.mxu0
  %v500 = vmul.f32 %v486, %v267
  %v501 = vmul.f32 %v489, %v274
  %v502 = vadd.f32 %v500, %v501
  %v503 = vmul.f32 %v494, %v281
  %v504 = vadd.f32 %v502, %v503
  %v505 = vmul.f32 %v497, %v288
  %v506 = vadd.f32 %v504, %v505
  %v507 = vmul.f32 %v260, %v267
  %v508 = vmul.f32 %v260, %v274
  %v509 = vmul.f32 %v260, %v281
  %v510 = vmul.f32 %v260, %v288
  %512 = vrot.lane.b32.xlu0 %v260, 96
  %v513 = vpop.permute.xlu0 %512
  %515 = vxpose.xlu0.b32.start [1/16] %v513, 128
  %516 = vxpose.xlu0.b32.cont [2/16] 0.0, 128
  %517 = vxpose.xlu0.b32.cont [3/16] 0.0, 128
  %518 = vxpose.xlu0.b32.cont [4/16] 0.0, 128
  %519 = vxpose.xlu0.b32.cont [5/16] 0.0, 128
  %520 = vxpose.xlu0.b32.cont [6/16] 0.0, 128
  %521 = vxpose.xlu0.b32.cont [7/16] 0.0, 128
  %522 = vxpose.xlu0.b32.cont [8/16] 0.0, 128
  %523 = vxpose.xlu0.b32.cont [9/16] 0.0, 128
  %524 = vxpose.xlu0.b32.cont [10/16] 0.0, 128
  %525 = vxpose.xlu0.b32.cont [11/16] 0.0, 128
  %526 = vxpose.xlu0.b32.cont [12/16] 0.0, 128
  %527 = vxpose.xlu0.b32.cont [13/16] 0.0, 128
  %528 = vxpose.xlu0.b32.cont [14/16] 0.0, 128
  %529 = vxpose.xlu0.b32.cont [15/16] 0.0, 128
  %530 = vxpose.xlu0.b32.end [16/16] 0.0, 128
  %v531 = vpop.trf.xlu0
  %v532 = vpop.trf.xlu0
  %v533 = vpop.trf.xlu0
  %v534 = vpop.trf.xlu0
  %v535 = vpop.trf.xlu0
  %v536 = vpop.trf.xlu0
  %v537 = vpop.trf.xlu0
  %v538 = vpop.trf.xlu0
  %v539 = vpop.trf.xlu0
  %v540 = vpop.trf.xlu0
  %v541 = vpop.trf.xlu0
  %v542 = vpop.trf.xlu0
  %v543 = vpop.trf.xlu0
  %v544 = vpop.trf.xlu0
  %v545 = vpop.trf.xlu0
  %v546 = vpop.trf.xlu0
  %v547 = vpack.c.bf16 %v508, %v507
  %v548 = vpack.c.bf16 %v510, %v509
  %v549 = vpack.c.bf16 %v532, %v531
  %v550 = vpack.c.bf16 %v534, %v533
  %v552 = vsel %vm218, %v547, 0
  %v555 = vsel %vm218, %v548, 0
  %557 = vmatprep.subr.bf16.mxu0 0
  %558 = vmatpush1.bf16.msra.mxu0 %v549
  %559 = vmatprep.subr.bf16.mxu0 0
  %560 = vmatpush1.bf16.msra.mxu0 %v550
  %561 = vmatprep.subr.bf16.mxu0 0
  %562 = vmatpush1.bf16.msra.mxu0 0
  %563 = vmatprep.subr.bf16.mxu0 0
  %564 = vmatpush1.bf16.msra.mxu0 0
  %565 = vmatprep.subr.bf16.mxu0 0
  %566 = vmatpush1.bf16.msra.mxu0 0
  %567 = vmatprep.subr.bf16.mxu0 0
  %568 = vmatpush1.bf16.msra.mxu0 0
  %569 = vmatprep.subr.bf16.mxu0 0
  %570 = vmatpush1.bf16.msra.mxu0 0
  %571 = vmatprep.subr.bf16.mxu0 0
  %572 = vmatpush1.bf16.msra.mxu0 0
  %573 = vmatprep.subr.bf16.mxu0 0
  %574 = vmatpush1.bf16.msra.mxu0 0
  %575 = vmatprep.subr.bf16.mxu0 0
  %576 = vmatpush1.bf16.msra.mxu0 0
  %577 = vmatprep.subr.bf16.mxu0 0
  %578 = vmatpush1.bf16.msra.mxu0 0
  %579 = vmatprep.subr.bf16.mxu0 0
  %580 = vmatpush1.bf16.msra.mxu0 0
  %581 = vmatprep.subr.bf16.mxu0 0
  %582 = vmatpush1.bf16.msra.mxu0 0
  %583 = vmatprep.subr.bf16.mxu0 0
  %584 = vmatpush1.bf16.msra.mxu0 0
  %585 = vmatprep.subr.bf16.mxu0 0
  %586 = vmatpush1.bf16.msra.mxu0 0
  %587 = vmatprep.subr.bf16.mxu0 0
  %588 = vmatpush1.bf16.msra.mxu0 0
  %589 = vmatprep.mubr.bf16.mxu0 0
  %590 = vmatmul.mubr.bf16.gmra.mrb[0].mxu0 %v552
  %v591 = vpop.f32.mrb[0].mxu0
  %v592 = vadd.f32 0.0, %v591
  %v593 = vpop.f32.mrb[0].mxu0
  %v594 = vpop.f32.mrb[0].mxu0
  %v595 = vadd.f32 0.0, %v594
  %v596 = vpop.f32.mrb[0].mxu0
  %597 = vmatprep.mubr.bf16.mxu0 0
  %598 = vmatmul.mubr.bf16.gmra.mrb[0].mxu0 %v555
  %v599 = vpop.f32.mrb[0].mxu0
  %v600 = vadd.f32 0.0, %v599
  %v601 = vpop.f32.mrb[0].mxu0
  %v602 = vpop.f32.mrb[0].mxu0
  %v603 = vadd.f32 0.0, %v602
  %v604 = vpop.f32.mrb[0].mxu0
  %605 = vdwg.mxu0
  %v606 = vmul.f32 %v592, 0.35355338
  %v607 = vmul.f32 %v595, 0.35355338
  %v608 = vmul.f32 %v600, 0.35355338
  %v609 = vmul.f32 %v603, 0.35355338
  %v610 = vsel %vm390, %v606, -inf
  %611 = vmax.xlane.f32.xlu0 %v610
  %v612 = vpop.xlane.xlu0 %611
  %v613 = vsel %vm390, %v607, -inf
  %614 = vmax.xlane.f32.xlu0 %v613
  %v615 = vpop.xlane.xlu0 %614
  %v616 = vsel %vm390, %v608, -inf
  %617 = vmax.xlane.f32.xlu0 %v616
  %v618 = vpop.xlane.xlu0 %617
  %v619 = vsel %vm390, %v609, -inf
  %620 = vmax.xlane.f32.xlu0 %v619
  %v621 = vpop.xlane.xlu0 %620
  %v622 = vsub.f32 %v606, %v612
  %v623 = vsub.f32 %v607, %v615
  %v624 = vsub.f32 %v608, %v618
  %v625 = vsub.f32 %v609, %v621
  %v626 = vmul.f32 %v622, 1.442695
  %v627 = vpow.pop %v626
  %v628 = vmul.f32 %v623, 1.442695
  %v629 = vpow.pop %v628
  %v630 = vmul.f32 %v624, 1.442695
  %v631 = vpow.pop %v630
  %v632 = vmul.f32 %v625, 1.442695
  %v633 = vpow.pop %v632
  %v634 = vsel %vm390, %v627, 0.0
  %635 = vadd.xlane.f32.xlu0 %v634
  %v636 = vpop.xlane.xlu0 %635
  %v637 = vsel %vm390, %v629, 0.0
  %638 = vadd.xlane.f32.xlu0 %v637
  %v639 = vpop.xlane.xlu0 %638
  %v640 = vsel %vm390, %v631, 0.0
  %641 = vadd.xlane.f32.xlu0 %v640
  %v642 = vpop.xlane.xlu0 %641
  %v643 = vsel %vm390, %v633, 0.0
  %644 = vadd.xlane.f32.xlu0 %v643
  %v645 = vpop.xlane.xlu0 %644
  %v646 = vrcp.pop %v636
  %v647 = vrcp.pop %v639
  %v648 = vrcp.pop %v642
  %v649 = vrcp.pop %v645
  %v650 = vmul.f32 %v627, %v646
  %v651 = vmul.f32 %v629, %v647
  %v652 = vmul.f32 %v631, %v648
  %v653 = vmul.f32 %v633, %v649
  %v654 = vpack.c.bf16 %v651, %v650
  %v655 = vpack.c.bf16 %v653, %v652
  %v656 = vpack.c.bf16 %v260, %v260
  %658 = vrot.lane.b32.xlu0 %v656, 64
  %v659 = vpop.permute.xlu0 %658
  %v661 = vsel %vm390, %v654, 0
  %v664 = vsel %vm390, %v655, 0
  %v667 = vsel %vm447, %v659, 0
  %669 = vmatprep.subr.bf16.mxu0 0
  %670 = vmatpush1.bf16.msra.mxu0 %v667
  %671 = vmatprep.subr.bf16.mxu0 0
  %672 = vmatpush1.bf16.msra.mxu0 0
  %673 = vmatprep.subr.bf16.mxu0 0
  %674 = vmatpush1.bf16.msra.mxu0 0
  %675 = vmatprep.subr.bf16.mxu0 0
  %676 = vmatpush1.bf16.msra.mxu0 0
  %677 = vmatprep.subr.bf16.mxu0 0
  %678 = vmatpush1.bf16.msra.mxu0 0
  %679 = vmatprep.subr.bf16.mxu0 0
  %680 = vmatpush1.bf16.msra.mxu0 0
  %681 = vmatprep.subr.bf16.mxu0 0
  %682 = vmatpush1.bf16.msra.mxu0 0
  %683 = vmatprep.subr.bf16.mxu0 0
  %684 = vmatpush1.bf16.msra.mxu0 0
  %685 = vmatprep.subr.bf16.mxu0 0
  %686 = vmatpush1.bf16.msra.mxu0 0
  %687 = vmatprep.subr.bf16.mxu0 0
  %688 = vmatpush1.bf16.msra.mxu0 0
  %689 = vmatprep.subr.bf16.mxu0 0
  %690 = vmatpush1.bf16.msra.mxu0 0
  %691 = vmatprep.subr.bf16.mxu0 0
  %692 = vmatpush1.bf16.msra.mxu0 0
  %693 = vmatprep.subr.bf16.mxu0 0
  %694 = vmatpush1.bf16.msra.mxu0 0
  %695 = vmatprep.subr.bf16.mxu0 0
  %696 = vmatpush1.bf16.msra.mxu0 0
  %697 = vmatprep.subr.bf16.mxu0 0
  %698 = vmatpush1.bf16.msra.mxu0 0
  %699 = vmatprep.subr.bf16.mxu0 0
  %700 = vmatpush1.bf16.msra.mxu0 0
  %701 = vmatprep.mubr.bf16.mxu0 0
  %702 = vmatmul.mubr.bf16.gmra.mrb[0].mxu0 %v661
  %v703 = vpop.f32.mrb[0].mxu0
  %v704 = vadd.f32 0.0, %v703
  %v705 = vpop.f32.mrb[0].mxu0
  %v706 = vpop.f32.mrb[0].mxu0
  %v707 = vadd.f32 0.0, %v706
  %v708 = vpop.f32.mrb[0].mxu0
  %709 = vmatprep.mubr.bf16.mxu0 0
  %710 = vmatmul.mubr.bf16.gmra.mrb[0].mxu0 %v664
  %v711 = vpop.f32.mrb[0].mxu0
  %v712 = vadd.f32 0.0, %v711
  %v713 = vpop.f32.mrb[0].mxu0
  %v714 = vpop.f32.mrb[0].mxu0
  %v715 = vadd.f32 0.0, %v714
  %v716 = vpop.f32.mrb[0].mxu0
  %717 = vdwg.mxu0
  %v718 = vmul.f32 %v704, %v267
  %v719 = vmul.f32 %v707, %v274
  %v720 = vadd.f32 %v718, %v719
  %v721 = vmul.f32 %v712, %v281
  %v722 = vadd.f32 %v720, %v721
  %v723 = vmul.f32 %v715, %v288
  %v724 = vadd.f32 %v722, %v723
  %v725 = vld [vmem:[%s15] sm:$0xf]
  %v726 = vld [vmem:[%s15 + $0x4] sm:$0xf]
  %v727 = vld [vmem:[%s15 + $0x8] sm:$0xf]
  %v728 = vld [vmem:[%s15 + $0xc] sm:$0xf]
  %v729 = vpack.c.bf16 %v724, %v506
  %v730 = vld [vmem:[%s17] sm:$0x1]
  %v732 = vlaneseq
  %v733 = vshrl.u32 %v732, 7
  %v734 = vsub.s32 0, %v733
  %v735 = vrot.slane %v730, %v734
  %v741 = vunpack.c.l.b16 %v725
  %v742 = vunpack.c.l.b16 %v726
  %v743 = vunpack.c.l.b16 %v727
  %v744 = vunpack.c.l.b16 %v728
  %v745 = vpack.c.b16 %v742, %v741
  %v746 = vpack.c.b16 %v744, %v743
  %v750 = vsel %vm218, %v729, 0
  %752 = vmatprep.subr.bf16.mxu0 0
  %753 = vmatpush1.bf16.msra.mxu0 %v745
  %754 = vmatprep.subr.bf16.mxu0 0
  %755 = vmatpush1.bf16.msra.mxu0 %v746
  %756 = vmatprep.subr.bf16.mxu0 0
  %757 = vmatpush1.bf16.msra.mxu0 0
  %758 = vmatprep.subr.bf16.mxu0 0
  %759 = vmatpush1.bf16.msra.mxu0 0
  %760 = vmatprep.subr.bf16.mxu0 0
  %761 = vmatpush1.bf16.msra.mxu0 0
  %762 = vmatprep.subr.bf16.mxu0 0
  %763 = vmatpush1.bf16.msra.mxu0 0
  %764 = vmatprep.subr.bf16.mxu0 0
  %765 = vmatpush1.bf16.msra.mxu0 0
  %766 = vmatprep.subr.bf16.mxu0 0
  %767 = vmatpush1.bf16.msra.mxu0 0
  %768 = vmatprep.subr.bf16.mxu0 0
  %769 = vmatpush1.bf16.msra.mxu0 0
  %770 = vmatprep.subr.bf16.mxu0 0
  %771 = vmatpush1.bf16.msra.mxu0 0
  %772 = vmatprep.subr.bf16.mxu0 0
  %773 = vmatpush1.bf16.msra.mxu0 0
  %774 = vmatprep.subr.bf16.mxu0 0
  %775 = vmatpush1.bf16.msra.mxu0 0
  %776 = vmatprep.subr.bf16.mxu0 0
  %777 = vmatpush1.bf16.msra.mxu0 0
  %778 = vmatprep.subr.bf16.mxu0 0
  %779 = vmatpush1.bf16.msra.mxu0 0
  %780 = vmatprep.subr.bf16.mxu0 0
  %781 = vmatpush1.bf16.msra.mxu0 0
  %782 = vmatprep.subr.bf16.mxu0 0
  %783 = vmatpush1.bf16.msra.mxu0 0
  %784 = vmatprep.mubr.bf16.mxu0 0
  %785 = vmatmul.mubr.bf16.gmra.mrb[0].mxu0 %v750
  %v786 = vpop.f32.mrb[0].mxu0
  %v787 = vadd.f32 %v735, %v786
  %v788 = vpop.f32.mrb[0].mxu0
  %v789 = vpop.f32.mrb[0].mxu0
  %v790 = vadd.f32 %v735, %v789
  %v791 = vpop.f32.mrb[0].mxu0
  %792 = vdwg.mxu0
  %v793 = vadd.f32 %v192, %v787
  %v794 = vadd.f32 %v193, %v790
  %v795 = vld [vmem:[%s19] sm:$0x1]
  %v796 = vld [vmem:[%s21] sm:$0x1]
  %v797 = vsel %vm218, %v793, 0.0
  %798 = vadd.xlane.f32.xlu0 %v797
  %v799 = vpop.xlane.xlu0 %798
  %v800 = vsel %vm218, %v794, 0.0
  %801 = vadd.xlane.f32.xlu0 %v800
  %v802 = vpop.xlane.xlu0 %801
  %v803 = vrcp.pop 32.0
  %v804 = vmul.f32 %v799, %v803
  %v805 = vmul.f32 %v802, %v803
  %v806 = vsub.f32 %v793, %v804
  %v807 = vsub.f32 %v794, %v805
  %v808 = vmul.f32 %v806, %v806
  %v809 = vmul.f32 %v807, %v807
  %v810 = vsel %vm218, %v808, 0.0
  %811 = vadd.xlane.f32.xlu0 %v810
  %v812 = vpop.xlane.xlu0 %811
  %v813 = vsel %vm218, %v809, 0.0
  %814 = vadd.xlane.f32.xlu0 %v813
  %v815 = vpop.xlane.xlu0 %814
  %v816 = vmul.f32 %v812, %v803
  %v817 = vmul.f32 %v815, %v803
  %v818 = vadd.f32 %v816, 1e-05
  %v819 = vadd.f32 %v817, 1e-05
  %v820 = vrsqrt.pop %v818
  %v821 = vrsqrt.pop %v819
  %v822 = vmul.f32 %v806, %v820
  %v823 = vmul.f32 %v807, %v821
  %v825 = vlaneseq
  %v826 = vshrl.u32 %v825, 7
  %v827 = vsub.s32 0, %v826
  %v828 = vrot.slane %v795, %v827
  %v830 = vmul.f32 %v822, %v828
  %v831 = vmul.f32 %v823, %v828
  %v833 = vlaneseq
  %v834 = vshrl.u32 %v833, 7
  %v835 = vsub.s32 0, %v834
  %v836 = vrot.slane %v796, %v835
  %v838 = vadd.f32 %v830, %v836
  %v839 = vadd.f32 %v831, %v836
  %v840 = vld [vmem:[%s23] sm:$0xf]
  %v841 = vld [vmem:[%s23 + $0x4] sm:$0xf]
  %v842 = vld [vmem:[%s23 + $0x8] sm:$0xf]
  %v843 = vld [vmem:[%s23 + $0xc] sm:$0xf]
  %v844 = vpack.c.bf16 %v839, %v838
  %v845 = vld [vmem:[%s25] sm:$0x1]
  %v847 = vlaneseq
  %v848 = vshrl.u32 %v847, 7
  %v849 = vsub.s32 0, %v848
  %v850 = vrot.slane %v845, %v849
  %v856 = vunpack.c.l.b16 %v840
  %v857 = vunpack.c.l.b16 %v841
  %v858 = vunpack.c.l.b16 %v842
  %v859 = vunpack.c.l.b16 %v843
  %v860 = vpack.c.b16 %v857, %v856
  %v861 = vpack.c.b16 %v859, %v858
  %v865 = vsel %vm218, %v844, 0
  %867 = vmatprep.subr.bf16.mxu0 0
  %868 = vmatpush1.bf16.msra.mxu0 %v860
  %869 = vmatprep.subr.bf16.mxu0 0
  %870 = vmatpush1.bf16.msra.mxu0 %v861
  %871 = vmatprep.subr.bf16.mxu0 0
  %872 = vmatpush1.bf16.msra.mxu0 0
  %873 = vmatprep.subr.bf16.mxu0 0
  %874 = vmatpush1.bf16.msra.mxu0 0
  %875 = vmatprep.subr.bf16.mxu0 0
  %876 = vmatpush1.bf16.msra.mxu0 0
  %877 = vmatprep.subr.bf16.mxu0 0
  %878 = vmatpush1.bf16.msra.mxu0 0
  %879 = vmatprep.subr.bf16.mxu0 0
  %880 = vmatpush1.bf16.msra.mxu0 0
  %881 = vmatprep.subr.bf16.mxu0 0
  %882 = vmatpush1.bf16.msra.mxu0 0
  %883 = vmatprep.subr.bf16.mxu0 0
  %884 = vmatpush1.bf16.msra.mxu0 0
  %885 = vmatprep.subr.bf16.mxu0 0
  %886 = vmatpush1.bf16.msra.mxu0 0
  %887 = vmatprep.subr.bf16.mxu0 0
  %888 = vmatpush1.bf16.msra.mxu0 0
  %889 = vmatprep.subr.bf16.mxu0 0
  %890 = vmatpush1.bf16.msra.mxu0 0
  %891 = vmatprep.subr.bf16.mxu0 0
  %892 = vmatpush1.bf16.msra.mxu0 0
  %893 = vmatprep.subr.bf16.mxu0 0
  %894 = vmatpush1.bf16.msra.mxu0 0
  %895 = vmatprep.subr.bf16.mxu0 0
  %896 = vmatpush1.bf16.msra.mxu0 0
  %897 = vmatprep.subr.bf16.mxu0 0
  %898 = vmatpush1.bf16.msra.mxu0 0
  %899 = vmatprep.mubr.bf16.mxu0 0
  %900 = vmatmul.mubr.bf16.gmra.mrb[0].mxu0 %v865
  %v901 = vpop.f32.mrb[0].mxu0
  %v902 = vadd.f32 %v850, %v901
  %v903 = vpop.f32.mrb[0].mxu0
  %v904 = vpop.f32.mrb[0].mxu0
  %v905 = vadd.f32 %v850, %v904
  %v906 = vpop.f32.mrb[0].mxu0
  %907 = vdwg.mxu0
  %v908 = vmax.f32 %v902, 0.0
  %v909 = vmax.f32 %v905, 0.0
  %v910 = vld [vmem:[%s27] sm:$0xf]
  %v911 = vld [vmem:[%s27 + $0x4] sm:$0xf]
  %v912 = vld [vmem:[%s27 + $0x8] sm:$0xf]
  %v913 = vld [vmem:[%s27 + $0xc] sm:$0xf]
  %v914 = vld [vmem:[%s27 + $0x10] sm:$0xf]
  %v915 = vld [vmem:[%s27 + $0x14] sm:$0xf]
  %v916 = vld [vmem:[%s27 + $0x18] sm:$0xf]
  %v917 = vld [vmem:[%s27 + $0x1c] sm:$0xf]
  %v918 = vpack.c.bf16 %v909, %v908
  %v919 = vld [vmem:[%s29] sm:$0x1]
  %v921 = vlaneseq
  %v922 = vshrl.u32 %v921, 7
  %v923 = vsub.s32 0, %v922
  %v924 = vrot.slane %v919, %v923
  %v934 = vunpack.c.l.b16 %v910
  %v935 = vunpack.c.l.b16 %v911
  %v936 = vunpack.c.l.b16 %v912
  %v937 = vunpack.c.l.b16 %v913
  %v938 = vunpack.c.l.b16 %v914
  %v939 = vunpack.c.l.b16 %v915
  %v940 = vunpack.c.l.b16 %v916
  %v941 = vunpack.c.l.b16 %v917
  %v942 = vpack.c.b16 %v935, %v934
  %v943 = vpack.c.b16 %v937, %v936
  %v944 = vpack.c.b16 %v939, %v938
  %v945 = vpack.c.b16 %v941, %v940
  %vm950 = vcmask 523264
  %v952 = vsel %vm950, %v918, 0
  %954 = vmatprep.subr.bf16.mxu0 0
  %955 = vmatpush1.bf16.msra.mxu0 %v942
  %956 = vmatprep.subr.bf16.mxu0 0
  %957 = vmatpush1.bf16.msra.mxu0 %v943
  %958 = vmatprep.subr.bf16.mxu0 0
  %959 = vmatpush1.bf16.msra.mxu0 %v944
  %960 = vmatprep.subr.bf16.mxu0 0
  %961 = vmatpush1.bf16.msra.mxu0 %v945
  %962 = vmatprep.subr.bf16.mxu0 0
  %963 = vmatpush1.bf16.msra.mxu0 0
  %964 = vmatprep.subr.bf16.mxu0 0
  %965 = vmatpush1.bf16.msra.mxu0 0
  %966 = vmatprep.subr.bf16.mxu0 0
  %967 = vmatpush1.bf16.msra.mxu0 0
  %968 = vmatprep.subr.bf16.mxu0 0
  %969 = vmatpush1.bf16.msra.mxu0 0
  %970 = vmatprep.subr.bf16.mxu0 0
  %971 = vmatpush1.bf16.msra.mxu0 0
  %972 = vmatprep.subr.bf16.mxu0 0
  %973 = vmatpush1.bf16.msra.mxu0 0
  %974 = vmatprep.subr.bf16.mxu0 0
  %975 = vmatpush1.bf16.msra.mxu0 0
  %976 = vmatprep.subr.bf16.mxu0 0
  %977 = vmatpush1.bf16.msra.mxu0 0
  %978 = vmatprep.subr.bf16.mxu0 0
  %979 = vmatpush1.bf16.msra.mxu0 0
  %980 = vmatprep.subr.bf16.mxu0 0
  %981 = vmatpush1.bf16.msra.mxu0 0
  %982 = vmatprep.subr.bf16.mxu0 0
  %983 = vmatpush1.bf16.msra.mxu0 0
  %984 = vmatprep.subr.bf16.mxu0 0
  %985 = vmatpush1.bf16.msra.mxu0 0
  %986 = vmatprep.mubr.bf16.mxu0 0
  %987 = vmatmul.mubr.bf16.gmra.mrb[0].mxu0 %v952
  %v988 = vpop.f32.mrb[0].mxu0
  %v989 = vadd.f32 %v924, %v988
  %v990 = vpop.f32.mrb[0].mxu0
  %v991 = vpop.f32.mrb[0].mxu0
  %v992 = vadd.f32 %v924, %v991
  %v993 = vpop.f32.mrb[0].mxu0
  %994 = vdwg.mxu0
  %v995 = vadd.f32 %v838, %v989
  %v996 = vadd.f32 %v839, %v992
  %v997 = vld [vmem:[%s31] sm:$0x1]
  %v998 = vld [vmem:[%s33] sm:$0x1]
  %v999 = vsel %vm218, %v995, 0.0
  %1000 = vadd.xlane.f32.xlu0 %v999
  %v1001 = vpop.xlane.xlu0 %1000
  %v1002 = vsel %vm218, %v996, 0.0
  %1003 = vadd.xlane.f32.xlu0 %v1002
  %v1004 = vpop.xlane.xlu0 %1003
  %v1005 = vmul.f32 %v1001, %v803
  %v1006 = vmul.f32 %v1004, %v803
  %v1007 = vsub.f32 %v995, %v1005
  %v1008 = vsub.f32 %v996, %v1006
  %v1009 = vmul.f32 %v1007, %v1007
  %v1010 = vmul.f32 %v1008, %v1008
  %v1011 = vsel %vm218, %v1009, 0.0
  %1012 = vadd.xlane.f32.xlu0 %v1011
  %v1013 = vpop.xlane.xlu0 %1012
  %v1014 = vsel %vm218, %v1010, 0.0
  %1015 = vadd.xlane.f32.xlu0 %v1014
  %v1016 = vpop.xlane.xlu0 %1015
  %v1017 = vmul.f32 %v1013, %v803
  %v1018 = vmul.f32 %v1016, %v803
  %v1019 = vadd.f32 %v1017, 1e-05
  %v1020 = vadd.f32 %v1018, 1e-05
  %v1021 = vrsqrt.pop %v1019
  %v1022 = vrsqrt.pop %v1020
  %v1023 = vmul.f32 %v1007, %v1021
  %v1024 = vmul.f32 %v1008, %v1022
  %v1026 = vlaneseq
  %v1027 = vshrl.u32 %v1026, 7
  %v1028 = vsub.s32 0, %v1027
  %v1029 = vrot.slane %v997, %v1028
  %v1031 = vmul.f32 %v1023, %v1029
  %v1032 = vmul.f32 %v1024, %v1029
  %v1034 = vlaneseq
  %v1035 = vshrl.u32 %v1034, 7
  %v1036 = vsub.s32 0, %v1035
  %v1037 = vrot.slane %v998, %v1036
  %v1039 = vadd.f32 %v1031, %v1037
  %v1040 = vadd.f32 %v1032, %v1037
  %s1041 = scalar_lea.vmem %s11, 16
  %v1042 = vld [vmem:[%s1041] sm:$0xf]
  %v1043 = vld [vmem:[%s1041 + $0x4] sm:$0xf]
  %v1044 = vld [vmem:[%s1041 + $0x8] sm:$0xf]
  %v1045 = vld [vmem:[%s1041 + $0xc] sm:$0xf]
  %v1046 = vpack.c.bf16 %v1040, %v1039
  %s1047 = scalar_lea.vmem %s13, 1
  %v1048 = vld [vmem:[%s1047] sm:$0x1]
  %v1050 = vlaneseq
  %v1051 = vshrl.u32 %v1050, 7
  %v1052 = vsub.s32 0, %v1051
  %v1053 = vrot.slane %v1048, %v1052
  %v1059 = vunpack.c.l.b16 %v1042
  %v1060 = vunpack.c.l.b16 %v1043
  %v1061 = vunpack.c.l.b16 %v1044
  %v1062 = vunpack.c.l.b16 %v1045
  %v1063 = vpack.c.b16 %v1060, %v1059
  %v1064 = vpack.c.b16 %v1062, %v1061
  %v1068 = vsel %vm218, %v1046, 0
  %1070 = vmatprep.subr.bf16.mxu0 0
  %1071 = vmatpush1.bf16.msra.mxu0 %v1063
  %1072 = vmatprep.subr.bf16.mxu0 0
  %1073 = vmatpush1.bf16.msra.mxu0 %v1064
  %1074 = vmatprep.subr.bf16.mxu0 0
  %1075 = vmatpush1.bf16.msra.mxu0 0
  %1076 = vmatprep.subr.bf16.mxu0 0
  %1077 = vmatpush1.bf16.msra.mxu0 0
  %1078 = vmatprep.subr.bf16.mxu0 0
  %1079 = vmatpush1.bf16.msra.mxu0 0
  %1080 = vmatprep.subr.bf16.mxu0 0
  %1081 = vmatpush1.bf16.msra.mxu0 0
  %1082 = vmatprep.subr.bf16.mxu0 0
  %1083 = vmatpush1.bf16.msra.mxu0 0
  %1084 = vmatprep.subr.bf16.mxu0 0
  %1085 = vmatpush1.bf16.msra.mxu0 0
  %1086 = vmatprep.subr.bf16.mxu0 0
  %1087 = vmatpush1.bf16.msra.mxu0 0
  %1088 = vmatprep.subr.bf16.mxu0 0
  %1089 = vmatpush1.bf16.msra.mxu0 0
  %1090 = vmatprep.subr.bf16.mxu0 0
  %1091 = vmatpush1.bf16.msra.mxu0 0
  %1092 = vmatprep.subr.bf16.mxu0 0
  %1093 = vmatpush1.bf16.msra.mxu0 0
  %1094 = vmatprep.subr.bf16.mxu0 0
  %1095 = vmatpush1.bf16.msra.mxu0 0
  %1096 = vmatprep.subr.bf16.mxu0 0
  %1097 = vmatpush1.bf16.msra.mxu0 0
  %1098 = vmatprep.subr.bf16.mxu0 0
  %1099 = vmatpush1.bf16.msra.mxu0 0
  %1100 = vmatprep.subr.bf16.mxu0 0
  %1101 = vmatpush1.bf16.msra.mxu0 0
  %1102 = vmatprep.mubr.bf16.mxu0 0
  %1103 = vmatmul.mubr.bf16.gmra.mrb[0].mxu0 %v1068
  %v1104 = vpop.f32.mrb[0].mxu0
  %v1105 = vadd.f32 %v1053, %v1104
  %v1106 = vpop.f32.mrb[0].mxu0
  %v1107 = vpop.f32.mrb[0].mxu0
  %v1108 = vadd.f32 %v1053, %v1107
  %v1109 = vpop.f32.mrb[0].mxu0
  %1110 = vdwg.mxu0
  %v1111 = vmul.f32 %v1105, %v267
  %v1112 = vmul.f32 %v1105, %v274
  %v1113 = vmul.f32 %v1105, %v281
  %v1114 = vmul.f32 %v1105, %v288
  %1116 = vrot.lane.b32.xlu0 %v1105, 96
  %v1117 = vpop.permute.xlu0 %1116
  %1119 = vxpose.xlu0.b32.start [1/16] %v1117, 128
  %1120 = vxpose.xlu0.b32.cont [2/16] 0.0, 128
  %1121 = vxpose.xlu0.b32.cont [3/16] 0.0, 128
  %1122 = vxpose.xlu0.b32.cont [4/16] 0.0, 128
  %1123 = vxpose.xlu0.b32.cont [5/16] 0.0, 128
  %1124 = vxpose.xlu0.b32.cont [6/16] 0.0, 128
  %1125 = vxpose.xlu0.b32.cont [7/16] 0.0, 128
  %1126 = vxpose.xlu0.b32.cont [8/16] 0.0, 128
  %1127 = vxpose.xlu0.b32.cont [9/16] 0.0, 128
  %1128 = vxpose.xlu0.b32.cont [10/16] 0.0, 128
  %1129 = vxpose.xlu0.b32.cont [11/16] 0.0, 128
  %1130 = vxpose.xlu0.b32.cont [12/16] 0.0, 128
  %1131 = vxpose.xlu0.b32.cont [13/16] 0.0, 128
  %1132 = vxpose.xlu0.b32.cont [14/16] 0.0, 128
  %1133 = vxpose.xlu0.b32.cont [15/16] 0.0, 128
  %1134 = vxpose.xlu0.b32.end [16/16] 0.0, 128
  %v1135 = vpop.trf.xlu0
  %v1136 = vpop.trf.xlu0
  %v1137 = vpop.trf.xlu0
  %v1138 = vpop.trf.xlu0
  %v1139 = vpop.trf.xlu0
  %v1140 = vpop.trf.xlu0
  %v1141 = vpop.trf.xlu0
  %v1142 = vpop.trf.xlu0
  %v1143 = vpop.trf.xlu0
  %v1144 = vpop.trf.xlu0
  %v1145 = vpop.trf.xlu0
  %v1146 = vpop.trf.xlu0
  %v1147 = vpop.trf.xlu0
  %v1148 = vpop.trf.xlu0
  %v1149 = vpop.trf.xlu0
  %v1150 = vpop.trf.xlu0
  %v1151 = vpack.c.bf16 %v1112, %v1111
  %v1152 = vpack.c.bf16 %v1114, %v1113
  %v1153 = vpack.c.bf16 %v1136, %v1135
  %v1154 = vpack.c.bf16 %v1138, %v1137
  %v1156 = vsel %vm218, %v1151, 0
  %v1159 = vsel %vm218, %v1152, 0
  %1161 = vmatprep.subr.bf16.mxu0 0
  %1162 = vmatpush1.bf16.msra.mxu0 %v1153
  %1163 = vmatprep.subr.bf16.mxu0 0
  %1164 = vmatpush1.bf16.msra.mxu0 %v1154
  %1165 = vmatprep.subr.bf16.mxu0 0
  %1166 = vmatpush1.bf16.msra.mxu0 0
  %1167 = vmatprep.subr.bf16.mxu0 0
  %1168 = vmatpush1.bf16.msra.mxu0 0
  %1169 = vmatprep.subr.bf16.mxu0 0
  %1170 = vmatpush1.bf16.msra.mxu0 0
  %1171 = vmatprep.subr.bf16.mxu0 0
  %1172 = vmatpush1.bf16.msra.mxu0 0
  %1173 = vmatprep.subr.bf16.mxu0 0
  %1174 = vmatpush1.bf16.msra.mxu0 0
  %1175 = vmatprep.subr.bf16.mxu0 0
  %1176 = vmatpush1.bf16.msra.mxu0 0
  %1177 = vmatprep.subr.bf16.mxu0 0
  %1178 = vmatpush1.bf16.msra.mxu0 0
  %1179 = vmatprep.subr.bf16.mxu0 0
  %1180 = vmatpush1.bf16.msra.mxu0 0
  %1181 = vmatprep.subr.bf16.mxu0 0
  %1182 = vmatpush1.bf16.msra.mxu0 0
  %1183 = vmatprep.subr.bf16.mxu0 0
  %1184 = vmatpush1.bf16.msra.mxu0 0
  %1185 = vmatprep.subr.bf16.mxu0 0
  %1186 = vmatpush1.bf16.msra.mxu0 0
  %1187 = vmatprep.subr.bf16.mxu0 0
  %1188 = vmatpush1.bf16.msra.mxu0 0
  %1189 = vmatprep.subr.bf16.mxu0 0
  %1190 = vmatpush1.bf16.msra.mxu0 0
  %1191 = vmatprep.subr.bf16.mxu0 0
  %1192 = vmatpush1.bf16.msra.mxu0 0
  %1193 = vmatprep.mubr.bf16.mxu0 0
  %1194 = vmatmul.mubr.bf16.gmra.mrb[0].mxu0 %v1156
  %v1195 = vpop.f32.mrb[0].mxu0
  %v1196 = vadd.f32 0.0, %v1195
  %v1197 = vpop.f32.mrb[0].mxu0
  %v1198 = vpop.f32.mrb[0].mxu0
  %v1199 = vadd.f32 0.0, %v1198
  %v1200 = vpop.f32.mrb[0].mxu0
  %1201 = vmatprep.mubr.bf16.mxu0 0
  %1202 = vmatmul.mubr.bf16.gmra.mrb[0].mxu0 %v1159
  %v1203 = vpop.f32.mrb[0].mxu0
  %v1204 = vadd.f32 0.0, %v1203
  %v1205 = vpop.f32.mrb[0].mxu0
  %v1206 = vpop.f32.mrb[0].mxu0
  %v1207 = vadd.f32 0.0, %v1206
  %v1208 = vpop.f32.mrb[0].mxu0
  %1209 = vdwg.mxu0
  %v1210 = vmul.f32 %v1196, 0.35355338
  %v1211 = vmul.f32 %v1199, 0.35355338
  %v1212 = vmul.f32 %v1204, 0.35355338
  %v1213 = vmul.f32 %v1207, 0.35355338
  %v1214 = vsel %vm390, %v1210, -inf
  %1215 = vmax.xlane.f32.xlu0 %v1214
  %v1216 = vpop.xlane.xlu0 %1215
  %v1217 = vsel %vm390, %v1211, -inf
  %1218 = vmax.xlane.f32.xlu0 %v1217
  %v1219 = vpop.xlane.xlu0 %1218
  %v1220 = vsel %vm390, %v1212, -inf
  %1221 = vmax.xlane.f32.xlu0 %v1220
  %v1222 = vpop.xlane.xlu0 %1221
  %v1223 = vsel %vm390, %v1213, -inf
  %1224 = vmax.xlane.f32.xlu0 %v1223
  %v1225 = vpop.xlane.xlu0 %1224
  %v1226 = vsub.f32 %v1210, %v1216
  %v1227 = vsub.f32 %v1211, %v1219
  %v1228 = vsub.f32 %v1212, %v1222
  %v1229 = vsub.f32 %v1213, %v1225
  %v1230 = vmul.f32 %v1226, 1.442695
  %v1231 = vpow.pop %v1230
  %v1232 = vmul.f32 %v1227, 1.442695
  %v1233 = vpow.pop %v1232
  %v1234 = vmul.f32 %v1228, 1.442695
  %v1235 = vpow.pop %v1234
  %v1236 = vmul.f32 %v1229, 1.442695
  %v1237 = vpow.pop %v1236
  %v1238 = vsel %vm390, %v1231, 0.0
  %1239 = vadd.xlane.f32.xlu0 %v1238
  %v1240 = vpop.xlane.xlu0 %1239
  %v1241 = vsel %vm390, %v1233, 0.0
  %1242 = vadd.xlane.f32.xlu0 %v1241
  %v1243 = vpop.xlane.xlu0 %1242
  %v1244 = vsel %vm390, %v1235, 0.0
  %1245 = vadd.xlane.f32.xlu0 %v1244
  %v1246 = vpop.xlane.xlu0 %1245
  %v1247 = vsel %vm390, %v1237, 0.0
  %1248 = vadd.xlane.f32.xlu0 %v1247
  %v1249 = vpop.xlane.xlu0 %1248
  %v1250 = vrcp.pop %v1240
  %v1251 = vrcp.pop %v1243
  %v1252 = vrcp.pop %v1246
  %v1253 = vrcp.pop %v1249
  %v1254 = vmul.f32 %v1231, %v1250
  %v1255 = vmul.f32 %v1233, %v1251
  %v1256 = vmul.f32 %v1235, %v1252
  %v1257 = vmul.f32 %v1237, %v1253
  %v1258 = vpack.c.bf16 %v1255, %v1254
  %v1259 = vpack.c.bf16 %v1257, %v1256
  %v1260 = vpack.c.bf16 %v1105, %v1105
  %1262 = vrot.lane.b32.xlu0 %v1260, 64
  %v1263 = vpop.permute.xlu0 %1262
  %v1265 = vsel %vm390, %v1258, 0
  %v1268 = vsel %vm390, %v1259, 0
  %v1271 = vsel %vm447, %v1263, 0
  %1273 = vmatprep.subr.bf16.mxu0 0
  %1274 = vmatpush1.bf16.msra.mxu0 %v1271
  %1275 = vmatprep.subr.bf16.mxu0 0
  %1276 = vmatpush1.bf16.msra.mxu0 0
  %1277 = vmatprep.subr.bf16.mxu0 0
  %1278 = vmatpush1.bf16.msra.mxu0 0
  %1279 = vmatprep.subr.bf16.mxu0 0
  %1280 = vmatpush1.bf16.msra.mxu0 0
  %1281 = vmatprep.subr.bf16.mxu0 0
  %1282 = vmatpush1.bf16.msra.mxu0 0
  %1283 = vmatprep.subr.bf16.mxu0 0
  %1284 = vmatpush1.bf16.msra.mxu0 0
  %1285 = vmatprep.subr.bf16.mxu0 0
  %1286 = vmatpush1.bf16.msra.mxu0 0
  %1287 = vmatprep.subr.bf16.mxu0 0
  %1288 = vmatpush1.bf16.msra.mxu0 0
  %1289 = vmatprep.subr.bf16.mxu0 0
  %1290 = vmatpush1.bf16.msra.mxu0 0
  %1291 = vmatprep.subr.bf16.mxu0 0
  %1292 = vmatpush1.bf16.msra.mxu0 0
  %1293 = vmatprep.subr.bf16.mxu0 0
  %1294 = vmatpush1.bf16.msra.mxu0 0
  %1295 = vmatprep.subr.bf16.mxu0 0
  %1296 = vmatpush1.bf16.msra.mxu0 0
  %1297 = vmatprep.subr.bf16.mxu0 0
  %1298 = vmatpush1.bf16.msra.mxu0 0
  %1299 = vmatprep.subr.bf16.mxu0 0
  %1300 = vmatpush1.bf16.msra.mxu0 0
  %1301 = vmatprep.subr.bf16.mxu0 0
  %1302 = vmatpush1.bf16.msra.mxu0 0
  %1303 = vmatprep.subr.bf16.mxu0 0
  %1304 = vmatpush1.bf16.msra.mxu0 0
  %1305 = vmatprep.mubr.bf16.mxu0 0
  %1306 = vmatmul.mubr.bf16.gmra.mrb[0].mxu0 %v1265
  %v1307 = vpop.f32.mrb[0].mxu0
  %v1308 = vadd.f32 0.0, %v1307
  %v1309 = vpop.f32.mrb[0].mxu0
  %v1310 = vpop.f32.mrb[0].mxu0
  %v1311 = vadd.f32 0.0, %v1310
  %v1312 = vpop.f32.mrb[0].mxu0
  %1313 = vmatprep.mubr.bf16.mxu0 0
  %1314 = vmatmul.mubr.bf16.gmra.mrb[0].mxu0 %v1268
  %v1315 = vpop.f32.mrb[0].mxu0
  %v1316 = vadd.f32 0.0, %v1315
  %v1317 = vpop.f32.mrb[0].mxu0
  %v1318 = vpop.f32.mrb[0].mxu0
  %v1319 = vadd.f32 0.0, %v1318
  %v1320 = vpop.f32.mrb[0].mxu0
  %1321 = vdwg.mxu0
  %v1322 = vmul.f32 %v1308, %v267
  %v1323 = vmul.f32 %v1311, %v274
  %v1324 = vadd.f32 %v1322, %v1323
  %v1325 = vmul.f32 %v1316, %v281
  %v1326 = vadd.f32 %v1324, %v1325
  %v1327 = vmul.f32 %v1319, %v288
  %v1328 = vadd.f32 %v1326, %v1327
  %v1329 = vmul.f32 %v1108, %v267
  %v1330 = vmul.f32 %v1108, %v274
  %v1331 = vmul.f32 %v1108, %v281
  %v1332 = vmul.f32 %v1108, %v288
  %1334 = vrot.lane.b32.xlu0 %v1108, 96
  %v1335 = vpop.permute.xlu0 %1334
  %1337 = vxpose.xlu0.b32.start [1/16] %v1335, 128
  %1338 = vxpose.xlu0.b32.cont [2/16] 0.0, 128
  %1339 = vxpose.xlu0.b32.cont [3/16] 0.0, 128
  %1340 = vxpose.xlu0.b32.cont [4/16] 0.0, 128
  %1341 = vxpose.xlu0.b32.cont [5/16] 0.0, 128
  %1342 = vxpose.xlu0.b32.cont [6/16] 0.0, 128
  %1343 = vxpose.xlu0.b32.cont [7/16] 0.0, 128
  %1344 = vxpose.xlu0.b32.cont [8/16] 0.0, 128
  %1345 = vxpose.xlu0.b32.cont [9/16] 0.0, 128
  %1346 = vxpose.xlu0.b32.cont [10/16] 0.0, 128
  %1347 = vxpose.xlu0.b32.cont [11/16] 0.0, 128
  %1348 = vxpose.xlu0.b32.cont [12/16] 0.0, 128
  %1349 = vxpose.xlu0.b32.cont [13/16] 0.0, 128
  %1350 = vxpose.xlu0.b32.cont [14/16] 0.0, 128
  %1351 = vxpose.xlu0.b32.cont [15/16] 0.0, 128
  %1352 = vxpose.xlu0.b32.end [16/16] 0.0, 128
  %v1353 = vpop.trf.xlu0
  %v1354 = vpop.trf.xlu0
  %v1355 = vpop.trf.xlu0
  %v1356 = vpop.trf.xlu0
  %v1357 = vpop.trf.xlu0
  %v1358 = vpop.trf.xlu0
  %v1359 = vpop.trf.xlu0
  %v1360 = vpop.trf.xlu0
  %v1361 = vpop.trf.xlu0
  %v1362 = vpop.trf.xlu0
  %v1363 = vpop.trf.xlu0
  %v1364 = vpop.trf.xlu0
  %v1365 = vpop.trf.xlu0
  %v1366 = vpop.trf.xlu0
  %v1367 = vpop.trf.xlu0
  %v1368 = vpop.trf.xlu0
  %v1369 = vpack.c.bf16 %v1330, %v1329
  %v1370 = vpack.c.bf16 %v1332, %v1331
  %v1371 = vpack.c.bf16 %v1354, %v1353
  %v1372 = vpack.c.bf16 %v1356, %v1355
  %v1374 = vsel %vm218, %v1369, 0
  %v1377 = vsel %vm218, %v1370, 0
  %1379 = vmatprep.subr.bf16.mxu0 0
  %1380 = vmatpush1.bf16.msra.mxu0 %v1371
  %1381 = vmatprep.subr.bf16.mxu0 0
  %1382 = vmatpush1.bf16.msra.mxu0 %v1372
  %1383 = vmatprep.subr.bf16.mxu0 0
  %1384 = vmatpush1.bf16.msra.mxu0 0
  %1385 = vmatprep.subr.bf16.mxu0 0
  %1386 = vmatpush1.bf16.msra.mxu0 0
  %1387 = vmatprep.subr.bf16.mxu0 0
  %1388 = vmatpush1.bf16.msra.mxu0 0
  %1389 = vmatprep.subr.bf16.mxu0 0
  %1390 = vmatpush1.bf16.msra.mxu0 0
  %1391 = vmatprep.subr.bf16.mxu0 0
  %1392 = vmatpush1.bf16.msra.mxu0 0
  %1393 = vmatprep.subr.bf16.mxu0 0
  %1394 = vmatpush1.bf16.msra.mxu0 0
  %1395 = vmatprep.subr.bf16.mxu0 0
  %1396 = vmatpush1.bf16.msra.mxu0 0
  %1397 = vmatprep.subr.bf16.mxu0 0
  %1398 = vmatpush1.bf16.msra.mxu0 0
  %1399 = vmatprep.subr.bf16.mxu0 0
  %1400 = vmatpush1.bf16.msra.mxu0 0
  %1401 = vmatprep.subr.bf16.mxu0 0
  %1402 = vmatpush1.bf16.msra.mxu0 0
  %1403 = vmatprep.subr.bf16.mxu0 0
  %1404 = vmatpush1.bf16.msra.mxu0 0
  %1405 = vmatprep.subr.bf16.mxu0 0
  %1406 = vmatpush1.bf16.msra.mxu0 0
  %1407 = vmatprep.subr.bf16.mxu0 0
  %1408 = vmatpush1.bf16.msra.mxu0 0
  %1409 = vmatprep.subr.bf16.mxu0 0
  %1410 = vmatpush1.bf16.msra.mxu0 0
  %1411 = vmatprep.mubr.bf16.mxu0 0
  %1412 = vmatmul.mubr.bf16.gmra.mrb[0].mxu0 %v1374
  %v1413 = vpop.f32.mrb[0].mxu0
  %v1414 = vadd.f32 0.0, %v1413
  %v1415 = vpop.f32.mrb[0].mxu0
  %v1416 = vpop.f32.mrb[0].mxu0
  %v1417 = vadd.f32 0.0, %v1416
  %v1418 = vpop.f32.mrb[0].mxu0
  %1419 = vmatprep.mubr.bf16.mxu0 0
  %1420 = vmatmul.mubr.bf16.gmra.mrb[0].mxu0 %v1377
  %v1421 = vpop.f32.mrb[0].mxu0
  %v1422 = vadd.f32 0.0, %v1421
  %v1423 = vpop.f32.mrb[0].mxu0
  %v1424 = vpop.f32.mrb[0].mxu0
  %v1425 = vadd.f32 0.0, %v1424
  %v1426 = vpop.f32.mrb[0].mxu0
  %1427 = vdwg.mxu0
  %v1428 = vmul.f32 %v1414, 0.35355338
  %v1429 = vmul.f32 %v1417, 0.35355338
  %v1430 = vmul.f32 %v1422, 0.35355338
  %v1431 = vmul.f32 %v1425, 0.35355338
  %v1432 = vsel %vm390, %v1428, -inf
  %1433 = vmax.xlane.f32.xlu0 %v1432
  %v1434 = vpop.xlane.xlu0 %1433
  %v1435 = vsel %vm390, %v1429, -inf
  %1436 = vmax.xlane.f32.xlu0 %v1435
  %v1437 = vpop.xlane.xlu0 %1436
  %v1438 = vsel %vm390, %v1430, -inf
  %1439 = vmax.xlane.f32.xlu0 %v1438
  %v1440 = vpop.xlane.xlu0 %1439
  %v1441 = vsel %vm390, %v1431, -inf
  %1442 = vmax.xlane.f32.xlu0 %v1441
  %v1443 = vpop.xlane.xlu0 %1442
  %v1444 = vsub.f32 %v1428, %v1434
  %v1445 = vsub.f32 %v1429, %v1437
  %v1446 = vsub.f32 %v1430, %v1440
  %v1447 = vsub.f32 %v1431, %v1443
  %v1448 = vmul.f32 %v1444, 1.442695
  %v1449 = vpow.pop %v1448
  %v1450 = vmul.f32 %v1445, 1.442695
  %v1451 = vpow.pop %v1450
  %v1452 = vmul.f32 %v1446, 1.442695
  %v1453 = vpow.pop %v1452
  %v1454 = vmul.f32 %v1447, 1.442695
  %v1455 = vpow.pop %v1454
  %v1456 = vsel %vm390, %v1449, 0.0
  %1457 = vadd.xlane.f32.xlu0 %v1456
  %v1458 = vpop.xlane.xlu0 %1457
  %v1459 = vsel %vm390, %v1451, 0.0
  %1460 = vadd.xlane.f32.xlu0 %v1459
  %v1461 = vpop.xlane.xlu0 %1460
  %v1462 = vsel %vm390, %v1453, 0.0
  %1463 = vadd.xlane.f32.xlu0 %v1462
  %v1464 = vpop.xlane.xlu0 %1463
  %v1465 = vsel %vm390, %v1455, 0.0
  %1466 = vadd.xlane.f32.xlu0 %v1465
  %v1467 = vpop.xlane.xlu0 %1466
  %v1468 = vrcp.pop %v1458
  %v1469 = vrcp.pop %v1461
  %v1470 = vrcp.pop %v1464
  %v1471 = vrcp.pop %v1467
  %v1472 = vmul.f32 %v1449, %v1468
  %v1473 = vmul.f32 %v1451, %v1469
  %v1474 = vmul.f32 %v1453, %v1470
  %v1475 = vmul.f32 %v1455, %v1471
  %v1476 = vpack.c.bf16 %v1473, %v1472
  %v1477 = vpack.c.bf16 %v1475, %v1474
  %v1478 = vpack.c.bf16 %v1108, %v1108
  %1480 = vrot.lane.b32.xlu0 %v1478, 64
  %v1481 = vpop.permute.xlu0 %1480
  %v1483 = vsel %vm390, %v1476, 0
  %v1486 = vsel %vm390, %v1477, 0
  %v1489 = vsel %vm447, %v1481, 0
  %1491 = vmatprep.subr.bf16.mxu0 0
  %1492 = vmatpush1.bf16.msra.mxu0 %v1489
  %1493 = vmatprep.subr.bf16.mxu0 0
  %1494 = vmatpush1.bf16.msra.mxu0 0
  %1495 = vmatprep.subr.bf16.mxu0 0
  %1496 = vmatpush1.bf16.msra.mxu0 0
  %1497 = vmatprep.subr.bf16.mxu0 0
  %1498 = vmatpush1.bf16.msra.mxu0 0
  %1499 = vmatprep.subr.bf16.mxu0 0
  %1500 = vmatpush1.bf16.msra.mxu0 0
  %1501 = vmatprep.subr.bf16.mxu0 0
  %1502 = vmatpush1.bf16.msra.mxu0 0
  %1503 = vmatprep.subr.bf16.mxu0 0
  %1504 = vmatpush1.bf16.msra.mxu0 0
  %1505 = vmatprep.subr.bf16.mxu0 0
  %1506 = vmatpush1.bf16.msra.mxu0 0
  %1507 = vmatprep.subr.bf16.mxu0 0
  %1508 = vmatpush1.bf16.msra.mxu0 0
  %1509 = vmatprep.subr.bf16.mxu0 0
  %1510 = vmatpush1.bf16.msra.mxu0 0
  %1511 = vmatprep.subr.bf16.mxu0 0
  %1512 = vmatpush1.bf16.msra.mxu0 0
  %1513 = vmatprep.subr.bf16.mxu0 0
  %1514 = vmatpush1.bf16.msra.mxu0 0
  %1515 = vmatprep.subr.bf16.mxu0 0
  %1516 = vmatpush1.bf16.msra.mxu0 0
  %1517 = vmatprep.subr.bf16.mxu0 0
  %1518 = vmatpush1.bf16.msra.mxu0 0
  %1519 = vmatprep.subr.bf16.mxu0 0
  %1520 = vmatpush1.bf16.msra.mxu0 0
  %1521 = vmatprep.subr.bf16.mxu0 0
  %1522 = vmatpush1.bf16.msra.mxu0 0
  %1523 = vmatprep.mubr.bf16.mxu0 0
  %1524 = vmatmul.mubr.bf16.gmra.mrb[0].mxu0 %v1483
  %v1525 = vpop.f32.mrb[0].mxu0
  %v1526 = vadd.f32 0.0, %v1525
  %v1527 = vpop.f32.mrb[0].mxu0
  %v1528 = vpop.f32.mrb[0].mxu0
  %v1529 = vadd.f32 0.0, %v1528
  %v1530 = vpop.f32.mrb[0].mxu0
  %1531 = vmatprep.mubr.bf16.mxu0 0
  %1532 = vmatmul.mubr.bf16.gmra.mrb[0].mxu0 %v1486
  %v1533 = vpop.f32.mrb[0].mxu0
  %v1534 = vadd.f32 0.0, %v1533
  %v1535 = vpop.f32.mrb[0].mxu0
  %v1536 = vpop.f32.mrb[0].mxu0
  %v1537 = vadd.f32 0.0, %v1536
  %v1538 = vpop.f32.mrb[0].mxu0
  %1539 = vdwg.mxu0
  %v1540 = vmul.f32 %v1526, %v267
  %v1541 = vmul.f32 %v1529, %v274
  %v1542 = vadd.f32 %v1540, %v1541
  %v1543 = vmul.f32 %v1534, %v281
  %v1544 = vadd.f32 %v1542, %v1543
  %v1545 = vmul.f32 %v1537, %v288
  %v1546 = vadd.f32 %v1544, %v1545
  %s1547 = scalar_lea.vmem %s15, 16
  %v1548 = vld [vmem:[%s1547] sm:$0xf]
  %v1549 = vld [vmem:[%s1547 + $0x4] sm:$0xf]
  %v1550 = vld [vmem:[%s1547 + $0x8] sm:$0xf]
  %v1551 = vld [vmem:[%s1547 + $0xc] sm:$0xf]
  %v1552 = vpack.c.bf16 %v1546, %v1328
  %s1553 = scalar_lea.vmem %s17, 1
  %v1554 = vld [vmem:[%s1553] sm:$0x1]
  %v1556 = vlaneseq
  %v1557 = vshrl.u32 %v1556, 7
  %v1558 = vsub.s32 0, %v1557
  %v1559 = vrot.slane %v1554, %v1558
  %v1565 = vunpack.c.l.b16 %v1548
  %v1566 = vunpack.c.l.b16 %v1549
  %v1567 = vunpack.c.l.b16 %v1550
  %v1568 = vunpack.c.l.b16 %v1551
  %v1569 = vpack.c.b16 %v1566, %v1565
  %v1570 = vpack.c.b16 %v1568, %v1567
  %v1574 = vsel %vm218, %v1552, 0
  %1576 = vmatprep.subr.bf16.mxu0 0
  %1577 = vmatpush1.bf16.msra.mxu0 %v1569
  %1578 = vmatprep.subr.bf16.mxu0 0
  %1579 = vmatpush1.bf16.msra.mxu0 %v1570
  %1580 = vmatprep.subr.bf16.mxu0 0
  %1581 = vmatpush1.bf16.msra.mxu0 0
  %1582 = vmatprep.subr.bf16.mxu0 0
  %1583 = vmatpush1.bf16.msra.mxu0 0
  %1584 = vmatprep.subr.bf16.mxu0 0
  %1585 = vmatpush1.bf16.msra.mxu0 0
  %1586 = vmatprep.subr.bf16.mxu0 0
  %1587 = vmatpush1.bf16.msra.mxu0 0
  %1588 = vmatprep.subr.bf16.mxu0 0
  %1589 = vmatpush1.bf16.msra.mxu0 0
  %1590 = vmatprep.subr.bf16.mxu0 0
  %1591 = vmatpush1.bf16.msra.mxu0 0
  %1592 = vmatprep.subr.bf16.mxu0 0
  %1593 = vmatpush1.bf16.msra.mxu0 0
  %1594 = vmatprep.subr.bf16.mxu0 0
  %1595 = vmatpush1.bf16.msra.mxu0 0
  %1596 = vmatprep.subr.bf16.mxu0 0
  %1597 = vmatpush1.bf16.msra.mxu0 0
  %1598 = vmatprep.subr.bf16.mxu0 0
  %1599 = vmatpush1.bf16.msra.mxu0 0
  %1600 = vmatprep.subr.bf16.mxu0 0
  %1601 = vmatpush1.bf16.msra.mxu0 0
  %1602 = vmatprep.subr.bf16.mxu0 0
  %1603 = vmatpush1.bf16.msra.mxu0 0
  %1604 = vmatprep.subr.bf16.mxu0 0
  %1605 = vmatpush1.bf16.msra.mxu0 0
  %1606 = vmatprep.subr.bf16.mxu0 0
  %1607 = vmatpush1.bf16.msra.mxu0 0
  %1608 = vmatprep.mubr.bf16.mxu0 0
  %1609 = vmatmul.mubr.bf16.gmra.mrb[0].mxu0 %v1574
  %v1610 = vpop.f32.mrb[0].mxu0
  %v1611 = vadd.f32 %v1559, %v1610
  %v1612 = vpop.f32.mrb[0].mxu0
  %v1613 = vpop.f32.mrb[0].mxu0
  %v1614 = vadd.f32 %v1559, %v1613
  %v1615 = vpop.f32.mrb[0].mxu0
  %1616 = vdwg.mxu0
  %v1617 = vadd.f32 %v1039, %v1611
  %v1618 = vadd.f32 %v1040, %v1614
  %s1619 = scalar_lea.vmem %s19, 1
  %v1620 = vld [vmem:[%s1619] sm:$0x1]
  %s1621 = scalar_lea.vmem %s21, 1
  %v1622 = vld [vmem:[%s1621] sm:$0x1]
  %v1623 = vsel %vm218, %v1617, 0.0
  %1624 = vadd.xlane.f32.xlu0 %v1623
  %v1625 = vpop.xlane.xlu0 %1624
  %v1626 = vsel %vm218, %v1618, 0.0
  %1627 = vadd.xlane.f32.xlu0 %v1626
  %v1628 = vpop.xlane.xlu0 %1627
  %v1629 = vmul.f32 %v1625, %v803
  %v1630 = vmul.f32 %v1628, %v803
  %v1631 = vsub.f32 %v1617, %v1629
  %v1632 = vsub.f32 %v1618, %v1630
  %v1633 = vmul.f32 %v1631, %v1631
  %v1634 = vmul.f32 %v1632, %v1632
  %v1635 = vsel %vm218, %v1633, 0.0
  %1636 = vadd.xlane.f32.xlu0 %v1635
  %v1637 = vpop.xlane.xlu0 %1636
  %v1638 = vsel %vm218, %v1634, 0.0
  %1639 = vadd.xlane.f32.xlu0 %v1638
  %v1640 = vpop.xlane.xlu0 %1639
  %v1641 = vmul.f32 %v1637, %v803
  %v1642 = vmul.f32 %v1640, %v803
  %v1643 = vadd.f32 %v1641, 1e-05
  %v1644 = vadd.f32 %v1642, 1e-05
  %v1645 = vrsqrt.pop %v1643
  %v1646 = vrsqrt.pop %v1644
  %v1647 = vmul.f32 %v1631, %v1645
  %v1648 = vmul.f32 %v1632, %v1646
  %v1650 = vlaneseq
  %v1651 = vshrl.u32 %v1650, 7
  %v1652 = vsub.s32 0, %v1651
  %v1653 = vrot.slane %v1620, %v1652
  %v1655 = vmul.f32 %v1647, %v1653
  %v1656 = vmul.f32 %v1648, %v1653
  %v1658 = vlaneseq
  %v1659 = vshrl.u32 %v1658, 7
  %v1660 = vsub.s32 0, %v1659
  %v1661 = vrot.slane %v1622, %v1660
  %v1663 = vadd.f32 %v1655, %v1661
  %v1664 = vadd.f32 %v1656, %v1661
  %s1665 = scalar_lea.vmem %s23, 16
  %v1666 = vld [vmem:[%s1665] sm:$0xf]
  %v1667 = vld [vmem:[%s1665 + $0x4] sm:$0xf]
  %v1668 = vld [vmem:[%s1665 + $0x8] sm:$0xf]
  %v1669 = vld [vmem:[%s1665 + $0xc] sm:$0xf]
  %v1670 = vpack.c.bf16 %v1664, %v1663
  %s1671 = scalar_lea.vmem %s25, 1
  %v1672 = vld [vmem:[%s1671] sm:$0x1]
  %v1674 = vlaneseq
  %v1675 = vshrl.u32 %v1674, 7
  %v1676 = vsub.s32 0, %v1675
  %v1677 = vrot.slane %v1672, %v1676
  %v1683 = vunpack.c.l.b16 %v1666
  %v1684 = vunpack.c.l.b16 %v1667
  %v1685 = vunpack.c.l.b16 %v1668
  %v1686 = vunpack.c.l.b16 %v1669
  %v1687 = vpack.c.b16 %v1684, %v1683
  %v1688 = vpack.c.b16 %v1686, %v1685
  %v1692 = vsel %vm218, %v1670, 0
  %1694 = vmatprep.subr.bf16.mxu0 0
  %1695 = vmatpush1.bf16.msra.mxu0 %v1687
  %1696 = vmatprep.subr.bf16.mxu0 0
  %1697 = vmatpush1.bf16.msra.mxu0 %v1688
  %1698 = vmatprep.subr.bf16.mxu0 0
  %1699 = vmatpush1.bf16.msra.mxu0 0
  %1700 = vmatprep.subr.bf16.mxu0 0
  %1701 = vmatpush1.bf16.msra.mxu0 0
  %1702 = vmatprep.subr.bf16.mxu0 0
  %1703 = vmatpush1.bf16.msra.mxu0 0
  %1704 = vmatprep.subr.bf16.mxu0 0
  %1705 = vmatpush1.bf16.msra.mxu0 0
  %1706 = vmatprep.subr.bf16.mxu0 0
  %1707 = vmatpush1.bf16.msra.mxu0 0
  %1708 = vmatprep.subr.bf16.mxu0 0
  %1709 = vmatpush1.bf16.msra.mxu0 0
  %1710 = vmatprep.subr.bf16.mxu0 0
  %1711 = vmatpush1.bf16.msra.mxu0 0
  %1712 = vmatprep.subr.bf16.mxu0 0
  %1713 = vmatpush1.bf16.msra.mxu0 0
  %1714 = vmatprep.subr.bf16.mxu0 0
  %1715 = vmatpush1.bf16.msra.mxu0 0
  %1716 = vmatprep.subr.bf16.mxu0 0
  %1717 = vmatpush1.bf16.msra.mxu0 0
  %1718 = vmatprep.subr.bf16.mxu0 0
  %1719 = vmatpush1.bf16.msra.mxu0 0
  %1720 = vmatprep.subr.bf16.mxu0 0
  %1721 = vmatpush1.bf16.msra.mxu0 0
  %1722 = vmatprep.subr.bf16.mxu0 0
  %1723 = vmatpush1.bf16.msra.mxu0 0
  %1724 = vmatprep.subr.bf16.mxu0 0
  %1725 = vmatpush1.bf16.msra.mxu0 0
  %1726 = vmatprep.mubr.bf16.mxu0 0
  %1727 = vmatmul.mubr.bf16.gmra.mrb[0].mxu0 %v1692
  %v1728 = vpop.f32.mrb[0].mxu0
  %v1729 = vadd.f32 %v1677, %v1728
  %v1730 = vpop.f32.mrb[0].mxu0
  %v1731 = vpop.f32.mrb[0].mxu0
  %v1732 = vadd.f32 %v1677, %v1731
  %v1733 = vpop.f32.mrb[0].mxu0
  %1734 = vdwg.mxu0
  %v1735 = vmax.f32 %v1729, 0.0
  %v1736 = vmax.f32 %v1732, 0.0
  %s1737 = scalar_lea.vmem %s27, 32
  %v1738 = vld [vmem:[%s1737] sm:$0xf]
  %v1739 = vld [vmem:[%s1737 + $0x4] sm:$0xf]
  %v1740 = vld [vmem:[%s1737 + $0x8] sm:$0xf]
  %v1741 = vld [vmem:[%s1737 + $0xc] sm:$0xf]
  %v1742 = vld [vmem:[%s1737 + $0x10] sm:$0xf]
  %v1743 = vld [vmem:[%s1737 + $0x14] sm:$0xf]
  %v1744 = vld [vmem:[%s1737 + $0x18] sm:$0xf]
  %v1745 = vld [vmem:[%s1737 + $0x1c] sm:$0xf]
  %v1746 = vpack.c.bf16 %v1736, %v1735
  %s1747 = scalar_lea.vmem %s29, 1
  %v1748 = vld [vmem:[%s1747] sm:$0x1]
  %v1750 = vlaneseq
  %v1751 = vshrl.u32 %v1750, 7
  %v1752 = vsub.s32 0, %v1751
  %v1753 = vrot.slane %v1748, %v1752
  %v1763 = vunpack.c.l.b16 %v1738
  %v1764 = vunpack.c.l.b16 %v1739
  %v1765 = vunpack.c.l.b16 %v1740
  %v1766 = vunpack.c.l.b16 %v1741
  %v1767 = vunpack.c.l.b16 %v1742
  %v1768 = vunpack.c.l.b16 %v1743
  %v1769 = vunpack.c.l.b16 %v1744
  %v1770 = vunpack.c.l.b16 %v1745
  %v1771 = vpack.c.b16 %v1764, %v1763
  %v1772 = vpack.c.b16 %v1766, %v1765
  %v1773 = vpack.c.b16 %v1768, %v1767
  %v1774 = vpack.c.b16 %v1770, %v1769
  %v1780 = vsel %vm950, %v1746, 0
  %1782 = vmatprep.subr.bf16.mxu0 0
  %1783 = vmatpush1.bf16.msra.mxu0 %v1771
  %1784 = vmatprep.subr.bf16.mxu0 0
  %1785 = vmatpush1.bf16.msra.mxu0 %v1772
  %1786 = vmatprep.subr.bf16.mxu0 0
  %1787 = vmatpush1.bf16.msra.mxu0 %v1773
  %1788 = vmatprep.subr.bf16.mxu0 0
  %1789 = vmatpush1.bf16.msra.mxu0 %v1774
  %1790 = vmatprep.subr.bf16.mxu0 0
  %1791 = vmatpush1.bf16.msra.mxu0 0
  %1792 = vmatprep.subr.bf16.mxu0 0
  %1793 = vmatpush1.bf16.msra.mxu0 0
  %1794 = vmatprep.subr.bf16.mxu0 0
  %1795 = vmatpush1.bf16.msra.mxu0 0
  %1796 = vmatprep.subr.bf16.mxu0 0
  %1797 = vmatpush1.bf16.msra.mxu0 0
  %1798 = vmatprep.subr.bf16.mxu0 0
  %1799 = vmatpush1.bf16.msra.mxu0 0
  %1800 = vmatprep.subr.bf16.mxu0 0
  %1801 = vmatpush1.bf16.msra.mxu0 0
  %1802 = vmatprep.subr.bf16.mxu0 0
  %1803 = vmatpush1.bf16.msra.mxu0 0
  %1804 = vmatprep.subr.bf16.mxu0 0
  %1805 = vmatpush1.bf16.msra.mxu0 0
  %1806 = vmatprep.subr.bf16.mxu0 0
  %1807 = vmatpush1.bf16.msra.mxu0 0
  %1808 = vmatprep.subr.bf16.mxu0 0
  %1809 = vmatpush1.bf16.msra.mxu0 0
  %1810 = vmatprep.subr.bf16.mxu0 0
  %1811 = vmatpush1.bf16.msra.mxu0 0
  %1812 = vmatprep.subr.bf16.mxu0 0
  %1813 = vmatpush1.bf16.msra.mxu0 0
  %1814 = vmatprep.mubr.bf16.mxu0 0
  %1815 = vmatmul.mubr.bf16.gmra.mrb[0].mxu0 %v1780
  %v1816 = vpop.f32.mrb[0].mxu0
  %v1817 = vadd.f32 %v1753, %v1816
  %v1818 = vpop.f32.mrb[0].mxu0
  %v1819 = vpop.f32.mrb[0].mxu0
  %v1820 = vadd.f32 %v1753, %v1819
  %v1821 = vpop.f32.mrb[0].mxu0
  %1822 = vdwg.mxu0
  %v1823 = vadd.f32 %v1663, %v1817
  %v1824 = vadd.f32 %v1664, %v1820
  %s1825 = scalar_lea.vmem %s31, 1
  %v1826 = vld [vmem:[%s1825] sm:$0x1]
  %s1827 = scalar_lea.vmem %s33, 1
  %v1828 = vld [vmem:[%s1827] sm:$0x1]
  %v1829 = vsel %vm218, %v1823, 0.0
  %1830 = vadd.xlane.f32.xlu0 %v1829
  %v1831 = vpop.xlane.xlu0 %1830
  %v1832 = vsel %vm218, %v1824, 0.0
  %1833 = vadd.xlane.f32.xlu0 %v1832
  %v1834 = vpop.xlane.xlu0 %1833
  %v1835 = vmul.f32 %v1831, %v803
  %v1836 = vmul.f32 %v1834, %v803
  %v1837 = vsub.f32 %v1823, %v1835
  %v1838 = vsub.f32 %v1824, %v1836
  %v1839 = vmul.f32 %v1837, %v1837
  %v1840 = vmul.f32 %v1838, %v1838
  %v1841 = vsel %vm218, %v1839, 0.0
  %1842 = vadd.xlane.f32.xlu0 %v1841
  %v1843 = vpop.xlane.xlu0 %1842
  %v1844 = vsel %vm218, %v1840, 0.0
  %1845 = vadd.xlane.f32.xlu0 %v1844
  %v1846 = vpop.xlane.xlu0 %1845
  %v1847 = vmul.f32 %v1843, %v803
  %v1848 = vmul.f32 %v1846, %v803
  %v1849 = vadd.f32 %v1847, 1e-05
  %v1850 = vadd.f32 %v1848, 1e-05
  %v1851 = vrsqrt.pop %v1849
  %v1852 = vrsqrt.pop %v1850
  %v1853 = vmul.f32 %v1837, %v1851
  %v1854 = vmul.f32 %v1838, %v1852
  %v1856 = vlaneseq
  %v1857 = vshrl.u32 %v1856, 7
  %v1858 = vsub.s32 0, %v1857
  %v1859 = vrot.slane %v1826, %v1858
  %v1861 = vmul.f32 %v1853, %v1859
  %v1862 = vmul.f32 %v1854, %v1859
  %v1864 = vlaneseq
  %v1865 = vshrl.u32 %v1864, 7
  %v1866 = vsub.s32 0, %v1865
  %v1867 = vrot.slane %v1828, %v1866
  %v1869 = vadd.f32 %v1861, %v1867
  %v1870 = vadd.f32 %v1862, %v1867
  %v1871 = vld [vmem:[%s35] sm:$0x1]
  %v1872 = vld [vmem:[%s37] sm:$0x1]
  %v1873 = vsel %vm218, %v1869, 0.0
  %1874 = vadd.xlane.f32.xlu0 %v1873
  %v1875 = vpop.xlane.xlu0 %1874
  %v1876 = vsel %vm218, %v1870, 0.0
  %1877 = vadd.xlane.f32.xlu0 %v1876
  %v1878 = vpop.xlane.xlu0 %1877
  %v1879 = vmul.f32 %v1875, %v803
  %v1880 = vmul.f32 %v1878, %v803
  %v1881 = vsub.f32 %v1869, %v1879
  %v1882 = vsub.f32 %v1870, %v1880
  %v1883 = vmul.f32 %v1881, %v1881
  %v1884 = vmul.f32 %v1882, %v1882
  %v1885 = vsel %vm218, %v1883, 0.0
  %1886 = vadd.xlane.f32.xlu0 %v1885
  %v1887 = vpop.xlane.xlu0 %1886
  %v1888 = vsel %vm218, %v1884, 0.0
  %1889 = vadd.xlane.f32.xlu0 %v1888
  %v1890 = vpop.xlane.xlu0 %1889
  %v1891 = vmul.f32 %v1887, %v803
  %v1892 = vmul.f32 %v1890, %v803
  %v1893 = vadd.f32 %v1891, 1e-05
  %v1894 = vadd.f32 %v1892, 1e-05
  %v1895 = vrsqrt.pop %v1893
  %v1896 = vrsqrt.pop %v1894
  %v1897 = vmul.f32 %v1881, %v1895
  %v1898 = vmul.f32 %v1882, %v1896
  %v1900 = vlaneseq
  %v1901 = vshrl.u32 %v1900, 7
  %v1902 = vsub.s32 0, %v1901
  %v1903 = vrot.slane %v1871, %v1902
  %v1905 = vmul.f32 %v1897, %v1903
  %v1906 = vmul.f32 %v1898, %v1903
  %v1908 = vlaneseq
  %v1909 = vshrl.u32 %v1908, 7
  %v1910 = vsub.s32 0, %v1909
  %v1911 = vrot.slane %v1872, %v1910
  %v1913 = vadd.f32 %v1905, %v1911
  %v1914 = vadd.f32 %v1906, %v1911
  %v1915 = vld [vmem:[%s5] sm:$0xff]
  %v1916 = vld [vmem:[%s5 + $0x8] sm:$0xff]
  %v1917 = vmul.f32 %v1915, 5.656854
  %v1918 = vmul.f32 %v1916, 5.656854
  %v1919 = vld [vmem:[%s7] sm:$0xff]
  %v1920 = vld [vmem:[%s7 + $0x8] sm:$0xff]
  %v1921 = vadd.f32 %v1917, %v1919
  %v1922 = vadd.f32 %v1918, %v1920
  %v1923 = vld [vmem:[%s39] sm:$0xf]
  %v1924 = vld [vmem:[%s39 + $0x4] sm:$0xf]
  %v1925 = vld [vmem:[%s39 + $0x8] sm:$0xf]
  %v1926 = vld [vmem:[%s39 + $0xc] sm:$0xf]
  %v1927 = vpack.c.bf16 %v1922, %v1921
  %v1928 = vld [vmem:[%s41] sm:$0x1]
  %v1930 = vlaneseq
  %v1931 = vshrl.u32 %v1930, 7
  %v1932 = vsub.s32 0, %v1931
  %v1933 = vrot.slane %v1928, %v1932
  %v1939 = vunpack.c.l.b16 %v1923
  %v1940 = vunpack.c.l.b16 %v1924
  %v1941 = vunpack.c.l.b16 %v1925
  %v1942 = vunpack.c.l.b16 %v1926
  %v1943 = vpack.c.b16 %v1940, %v1939
  %v1944 = vpack.c.b16 %v1942, %v1941
  %v1948 = vsel %vm218, %v1927, 0
  %1950 = vmatprep.subr.bf16.mxu0 0
  %1951 = vmatpush1.bf16.msra.mxu0 %v1943
  %1952 = vmatprep.subr.bf16.mxu0 0
  %1953 = vmatpush1.bf16.msra.mxu0 %v1944
  %1954 = vmatprep.subr.bf16.mxu0 0
  %1955 = vmatpush1.bf16.msra.mxu0 0
  %1956 = vmatprep.subr.bf16.mxu0 0
  %1957 = vmatpush1.bf16.msra.mxu0 0
  %1958 = vmatprep.subr.bf16.mxu0 0
  %1959 = vmatpush1.bf16.msra.mxu0 0
  %1960 = vmatprep.subr.bf16.mxu0 0
  %1961 = vmatpush1.bf16.msra.mxu0 0
  %1962 = vmatprep.subr.bf16.mxu0 0
  %1963 = vmatpush1.bf16.msra.mxu0 0
  %1964 = vmatprep.subr.bf16.mxu0 0
  %1965 = vmatpush1.bf16.msra.mxu0 0
  %1966 = vmatprep.subr.bf16.mxu0 0
  %1967 = vmatpush1.bf16.msra.mxu0 0
  %1968 = vmatprep.subr.bf16.mxu0 0
  %1969 = vmatpush1.bf16.msra.mxu0 0
  %1970 = vmatprep.subr.bf16.mxu0 0
  %1971 = vmatpush1.bf16.msra.mxu0 0
  %1972 = vmatprep.subr.bf16.mxu0 0
  %1973 = vmatpush1.bf16.msra.mxu0 0
  %1974 = vmatprep.subr.bf16.mxu0 0
  %1975 = vmatpush1.bf16.msra.mxu0 0
  %1976 = vmatprep.subr.bf16.mxu0 0
  %1977 = vmatpush1.bf16.msra.mxu0 0
  %1978 = vmatprep.subr.bf16.mxu0 0
  %1979 = vmatpush1.bf16.msra.mxu0 0
  %1980 = vmatprep.subr.bf16.mxu0 0
  %1981 = vmatpush1.bf16.msra.mxu0 0
  %1982 = vmatprep.mubr.bf16.mxu0 0
  %1983 = vmatmul.mubr.bf16.gmra.mrb[0].mxu0 %v1948
  %v1984 = vpop.f32.mrb[0].mxu0
  %v1985 = vadd.f32 %v1933, %v1984
  %v1986 = vpop.f32.mrb[0].mxu0
  %v1987 = vpop.f32.mrb[0].mxu0
  %v1988 = vadd.f32 %v1933, %v1987
  %v1989 = vpop.f32.mrb[0].mxu0
  %1990 = vdwg.mxu0
  %v1991 = vmul.f32 %v1985, %v267
  %v1992 = vmul.f32 %v1985, %v274
  %v1993 = vmul.f32 %v1985, %v281
  %v1994 = vmul.f32 %v1985, %v288
  %1996 = vrot.lane.b32.xlu0 %v1985, 96
  %v1997 = vpop.permute.xlu0 %1996
  %1999 = vxpose.xlu0.b32.start [1/16] %v1997, 128
  %2000 = vxpose.xlu0.b32.cont [2/16] 0.0, 128
  %2001 = vxpose.xlu0.b32.cont [3/16] 0.0, 128
  %2002 = vxpose.xlu0.b32.cont [4/16] 0.0, 128
  %2003 = vxpose.xlu0.b32.cont [5/16] 0.0, 128
  %2004 = vxpose.xlu0.b32.cont [6/16] 0.0, 128
  %2005 = vxpose.xlu0.b32.cont [7/16] 0.0, 128
  %2006 = vxpose.xlu0.b32.cont [8/16] 0.0, 128
  %2007 = vxpose.xlu0.b32.cont [9/16] 0.0, 128
  %2008 = vxpose.xlu0.b32.cont [10/16] 0.0, 128
  %2009 = vxpose.xlu0.b32.cont [11/16] 0.0, 128
  %2010 = vxpose.xlu0.b32.cont [12/16] 0.0, 128
  %2011 = vxpose.xlu0.b32.cont [13/16] 0.0, 128
  %2012 = vxpose.xlu0.b32.cont [14/16] 0.0, 128
  %2013 = vxpose.xlu0.b32.cont [15/16] 0.0, 128
  %2014 = vxpose.xlu0.b32.end [16/16] 0.0, 128
  %v2015 = vpop.trf.xlu0
  %v2016 = vpop.trf.xlu0
  %v2017 = vpop.trf.xlu0
  %v2018 = vpop.trf.xlu0
  %v2019 = vpop.trf.xlu0
  %v2020 = vpop.trf.xlu0
  %v2021 = vpop.trf.xlu0
  %v2022 = vpop.trf.xlu0
  %v2023 = vpop.trf.xlu0
  %v2024 = vpop.trf.xlu0
  %v2025 = vpop.trf.xlu0
  %v2026 = vpop.trf.xlu0
  %v2027 = vpop.trf.xlu0
  %v2028 = vpop.trf.xlu0
  %v2029 = vpop.trf.xlu0
  %v2030 = vpop.trf.xlu0
  %v2031 = vpack.c.bf16 %v1992, %v1991
  %v2032 = vpack.c.bf16 %v1994, %v1993
  %v2033 = vpack.c.bf16 %v2016, %v2015
  %v2034 = vpack.c.bf16 %v2018, %v2017
  %v2036 = vsel %vm218, %v2031, 0
  %v2039 = vsel %vm218, %v2032, 0
  %2041 = vmatprep.subr.bf16.mxu0 0
  %2042 = vmatpush1.bf16.msra.mxu0 %v2033
  %2043 = vmatprep.subr.bf16.mxu0 0
  %2044 = vmatpush1.bf16.msra.mxu0 %v2034
  %2045 = vmatprep.subr.bf16.mxu0 0
  %2046 = vmatpush1.bf16.msra.mxu0 0
  %2047 = vmatprep.subr.bf16.mxu0 0
  %2048 = vmatpush1.bf16.msra.mxu0 0
  %2049 = vmatprep.subr.bf16.mxu0 0
  %2050 = vmatpush1.bf16.msra.mxu0 0
  %2051 = vmatprep.subr.bf16.mxu0 0
  %2052 = vmatpush1.bf16.msra.mxu0 0
  %2053 = vmatprep.subr.bf16.mxu0 0
  %2054 = vmatpush1.bf16.msra.mxu0 0
  %2055 = vmatprep.subr.bf16.mxu0 0
  %2056 = vmatpush1.bf16.msra.mxu0 0
  %2057 = vmatprep.subr.bf16.mxu0 0
  %2058 = vmatpush1.bf16.msra.mxu0 0
  %2059 = vmatprep.subr.bf16.mxu0 0
  %2060 = vmatpush1.bf16.msra.mxu0 0
  %2061 = vmatprep.subr.bf16.mxu0 0
  %2062 = vmatpush1.bf16.msra.mxu0 0
  %2063 = vmatprep.subr.bf16.mxu0 0
  %2064 = vmatpush1.bf16.msra.mxu0 0
  %2065 = vmatprep.subr.bf16.mxu0 0
  %2066 = vmatpush1.bf16.msra.mxu0 0
  %2067 = vmatprep.subr.bf16.mxu0 0
  %2068 = vmatpush1.bf16.msra.mxu0 0
  %2069 = vmatprep.subr.bf16.mxu0 0
  %2070 = vmatpush1.bf16.msra.mxu0 0
  %2071 = vmatprep.subr.bf16.mxu0 0
  %2072 = vmatpush1.bf16.msra.mxu0 0
  %2073 = vmatprep.mubr.bf16.mxu0 0
  %2074 = vmatmul.mubr.bf16.gmra.mrb[0].mxu0 %v2036
  %v2075 = vpop.f32.mrb[0].mxu0
  %v2076 = vadd.f32 0.0, %v2075
  %v2077 = vpop.f32.mrb[0].mxu0
  %v2078 = vpop.f32.mrb[0].mxu0
  %v2079 = vadd.f32 0.0, %v2078
  %v2080 = vpop.f32.mrb[0].mxu0
  %2081 = vmatprep.mubr.bf16.mxu0 0
  %2082 = vmatmul.mubr.bf16.gmra.mrb[0].mxu0 %v2039
  %v2083 = vpop.f32.mrb[0].mxu0
  %v2084 = vadd.f32 0.0, %v2083
  %v2085 = vpop.f32.mrb[0].mxu0
  %v2086 = vpop.f32.mrb[0].mxu0
  %v2087 = vadd.f32 0.0, %v2086
  %v2088 = vpop.f32.mrb[0].mxu0
  %2089 = vdwg.mxu0
  %v2090 = vmul.f32 %v2076, 0.35355338
  %v2091 = vmul.f32 %v2079, 0.35355338
  %v2092 = vmul.f32 %v2084, 0.35355338
  %v2093 = vmul.f32 %v2087, 0.35355338
  %v2094 = vsel %vm390, %v2090, -inf
  %2095 = vmax.xlane.f32.xlu0 %v2094
  %v2096 = vpop.xlane.xlu0 %2095
  %v2097 = vsel %vm390, %v2091, -inf
  %2098 = vmax.xlane.f32.xlu0 %v2097
  %v2099 = vpop.xlane.xlu0 %2098
  %v2100 = vsel %vm390, %v2092, -inf
  %2101 = vmax.xlane.f32.xlu0 %v2100
  %v2102 = vpop.xlane.xlu0 %2101
  %v2103 = vsel %vm390, %v2093, -inf
  %2104 = vmax.xlane.f32.xlu0 %v2103
  %v2105 = vpop.xlane.xlu0 %2104
  %v2106 = vsub.f32 %v2090, %v2096
  %v2107 = vsub.f32 %v2091, %v2099
  %v2108 = vsub.f32 %v2092, %v2102
  %v2109 = vsub.f32 %v2093, %v2105
  %v2110 = vmul.f32 %v2106, 1.442695
  %v2111 = vpow.pop %v2110
  %v2112 = vmul.f32 %v2107, 1.442695
  %v2113 = vpow.pop %v2112
  %v2114 = vmul.f32 %v2108, 1.442695
  %v2115 = vpow.pop %v2114
  %v2116 = vmul.f32 %v2109, 1.442695
  %v2117 = vpow.pop %v2116
  %v2118 = vsel %vm390, %v2111, 0.0
  %2119 = vadd.xlane.f32.xlu0 %v2118
  %v2120 = vpop.xlane.xlu0 %2119
  %v2121 = vsel %vm390, %v2113, 0.0
  %2122 = vadd.xlane.f32.xlu0 %v2121
  %v2123 = vpop.xlane.xlu0 %2122
  %v2124 = vsel %vm390, %v2115, 0.0
  %2125 = vadd.xlane.f32.xlu0 %v2124
  %v2126 = vpop.xlane.xlu0 %2125
  %v2127 = vsel %vm390, %v2117, 0.0
  %2128 = vadd.xlane.f32.xlu0 %v2127
  %v2129 = vpop.xlane.xlu0 %2128
  %v2130 = vrcp.pop %v2120
  %v2131 = vrcp.pop %v2123
  %v2132 = vrcp.pop %v2126
  %v2133 = vrcp.pop %v2129
  %v2134 = vmul.f32 %v2111, %v2130
  %v2135 = vmul.f32 %v2113, %v2131
  %v2136 = vmul.f32 %v2115, %v2132
  %v2137 = vmul.f32 %v2117, %v2133
  %v2138 = vpack.c.bf16 %v2135, %v2134
  %v2139 = vpack.c.bf16 %v2137, %v2136
  %v2140 = vpack.c.bf16 %v1985, %v1985
  %2142 = vrot.lane.b32.xlu0 %v2140, 64
  %v2143 = vpop.permute.xlu0 %2142
  %v2145 = vsel %vm390, %v2138, 0
  %v2148 = vsel %vm390, %v2139, 0
  %v2151 = vsel %vm447, %v2143, 0
  %2153 = vmatprep.subr.bf16.mxu0 0
  %2154 = vmatpush1.bf16.msra.mxu0 %v2151
  %2155 = vmatprep.subr.bf16.mxu0 0
  %2156 = vmatpush1.bf16.msra.mxu0 0
  %2157 = vmatprep.subr.bf16.mxu0 0
  %2158 = vmatpush1.bf16.msra.mxu0 0
  %2159 = vmatprep.subr.bf16.mxu0 0
  %2160 = vmatpush1.bf16.msra.mxu0 0
  %2161 = vmatprep.subr.bf16.mxu0 0
  %2162 = vmatpush1.bf16.msra.mxu0 0
  %2163 = vmatprep.subr.bf16.mxu0 0
  %2164 = vmatpush1.bf16.msra.mxu0 0
  %2165 = vmatprep.subr.bf16.mxu0 0
  %2166 = vmatpush1.bf16.msra.mxu0 0
  %2167 = vmatprep.subr.bf16.mxu0 0
  %2168 = vmatpush1.bf16.msra.mxu0 0
  %2169 = vmatprep.subr.bf16.mxu0 0
  %2170 = vmatpush1.bf16.msra.mxu0 0
  %2171 = vmatprep.subr.bf16.mxu0 0
  %2172 = vmatpush1.bf16.msra.mxu0 0
  %2173 = vmatprep.subr.bf16.mxu0 0
  %2174 = vmatpush1.bf16.msra.mxu0 0
  %2175 = vmatprep.subr.bf16.mxu0 0
  %2176 = vmatpush1.bf16.msra.mxu0 0
  %2177 = vmatprep.subr.bf16.mxu0 0
  %2178 = vmatpush1.bf16.msra.mxu0 0
  %2179 = vmatprep.subr.bf16.mxu0 0
  %2180 = vmatpush1.bf16.msra.mxu0 0
  %2181 = vmatprep.subr.bf16.mxu0 0
  %2182 = vmatpush1.bf16.msra.mxu0 0
  %2183 = vmatprep.subr.bf16.mxu0 0
  %2184 = vmatpush1.bf16.msra.mxu0 0
  %2185 = vmatprep.mubr.bf16.mxu0 0
  %2186 = vmatmul.mubr.bf16.gmra.mrb[0].mxu0 %v2145
  %v2187 = vpop.f32.mrb[0].mxu0
  %v2188 = vadd.f32 0.0, %v2187
  %v2189 = vpop.f32.mrb[0].mxu0
  %v2190 = vpop.f32.mrb[0].mxu0
  %v2191 = vadd.f32 0.0, %v2190
  %v2192 = vpop.f32.mrb[0].mxu0
  %2193 = vmatprep.mubr.bf16.mxu0 0
  %2194 = vmatmul.mubr.bf16.gmra.mrb[0].mxu0 %v2148
  %v2195 = vpop.f32.mrb[0].mxu0
  %v2196 = vadd.f32 0.0, %v2195
  %v2197 = vpop.f32.mrb[0].mxu0
  %v2198 = vpop.f32.mrb[0].mxu0
  %v2199 = vadd.f32 0.0, %v2198
  %v2200 = vpop.f32.mrb[0].mxu0
  %2201 = vdwg.mxu0
  %v2202 = vmul.f32 %v2188, %v267
  %v2203 = vmul.f32 %v2191, %v274
  %v2204 = vadd.f32 %v2202, %v2203
  %v2205 = vmul.f32 %v2196, %v281
  %v2206 = vadd.f32 %v2204, %v2205
  %v2207 = vmul.f32 %v2199, %v288
  %v2208 = vadd.f32 %v2206, %v2207
  %v2209 = vmul.f32 %v1988, %v267
  %v2210 = vmul.f32 %v1988, %v274
  %v2211 = vmul.f32 %v1988, %v281
  %v2212 = vmul.f32 %v1988, %v288
  %2214 = vrot.lane.b32.xlu0 %v1988, 96
  %v2215 = vpop.permute.xlu0 %2214
  %2217 = vxpose.xlu0.b32.start [1/16] %v2215, 128
  %2218 = vxpose.xlu0.b32.cont [2/16] 0.0, 128
  %2219 = vxpose.xlu0.b32.cont [3/16] 0.0, 128
  %2220 = vxpose.xlu0.b32.cont [4/16] 0.0, 128
  %2221 = vxpose.xlu0.b32.cont [5/16] 0.0, 128
  %2222 = vxpose.xlu0.b32.cont [6/16] 0.0, 128
  %2223 = vxpose.xlu0.b32.cont [7/16] 0.0, 128
  %2224 = vxpose.xlu0.b32.cont [8/16] 0.0, 128
  %2225 = vxpose.xlu0.b32.cont [9/16] 0.0, 128
  %2226 = vxpose.xlu0.b32.cont [10/16] 0.0, 128
  %2227 = vxpose.xlu0.b32.cont [11/16] 0.0, 128
  %2228 = vxpose.xlu0.b32.cont [12/16] 0.0, 128
  %2229 = vxpose.xlu0.b32.cont [13/16] 0.0, 128
  %2230 = vxpose.xlu0.b32.cont [14/16] 0.0, 128
  %2231 = vxpose.xlu0.b32.cont [15/16] 0.0, 128
  %2232 = vxpose.xlu0.b32.end [16/16] 0.0, 128
  %v2233 = vpop.trf.xlu0
  %v2234 = vpop.trf.xlu0
  %v2235 = vpop.trf.xlu0
  %v2236 = vpop.trf.xlu0
  %v2237 = vpop.trf.xlu0
  %v2238 = vpop.trf.xlu0
  %v2239 = vpop.trf.xlu0
  %v2240 = vpop.trf.xlu0
  %v2241 = vpop.trf.xlu0
  %v2242 = vpop.trf.xlu0
  %v2243 = vpop.trf.xlu0
  %v2244 = vpop.trf.xlu0
  %v2245 = vpop.trf.xlu0
  %v2246 = vpop.trf.xlu0
  %v2247 = vpop.trf.xlu0
  %v2248 = vpop.trf.xlu0
  %v2249 = vpack.c.bf16 %v2210, %v2209
  %v2250 = vpack.c.bf16 %v2212, %v2211
  %v2251 = vpack.c.bf16 %v2234, %v2233
  %v2252 = vpack.c.bf16 %v2236, %v2235
  %v2254 = vsel %vm218, %v2249, 0
  %v2257 = vsel %vm218, %v2250, 0
  %2259 = vmatprep.subr.bf16.mxu0 0
  %2260 = vmatpush1.bf16.msra.mxu0 %v2251
  %2261 = vmatprep.subr.bf16.mxu0 0
  %2262 = vmatpush1.bf16.msra.mxu0 %v2252
  %2263 = vmatprep.subr.bf16.mxu0 0
  %2264 = vmatpush1.bf16.msra.mxu0 0
  %2265 = vmatprep.subr.bf16.mxu0 0
  %2266 = vmatpush1.bf16.msra.mxu0 0
  %2267 = vmatprep.subr.bf16.mxu0 0
  %2268 = vmatpush1.bf16.msra.mxu0 0
  %2269 = vmatprep.subr.bf16.mxu0 0
  %2270 = vmatpush1.bf16.msra.mxu0 0
  %2271 = vmatprep.subr.bf16.mxu0 0
  %2272 = vmatpush1.bf16.msra.mxu0 0
  %2273 = vmatprep.subr.bf16.mxu0 0
  %2274 = vmatpush1.bf16.msra.mxu0 0
  %2275 = vmatprep.subr.bf16.mxu0 0
  %2276 = vmatpush1.bf16.msra.mxu0 0
  %2277 = vmatprep.subr.bf16.mxu0 0
  %2278 = vmatpush1.bf16.msra.mxu0 0
  %2279 = vmatprep.subr.bf16.mxu0 0
  %2280 = vmatpush1.bf16.msra.mxu0 0
  %2281 = vmatprep.subr.bf16.mxu0 0
  %2282 = vmatpush1.bf16.msra.mxu0 0
  %2283 = vmatprep.subr.bf16.mxu0 0
  %2284 = vmatpush1.bf16.msra.mxu0 0
  %2285 = vmatprep.subr.bf16.mxu0 0
  %2286 = vmatpush1.bf16.msra.mxu0 0
  %2287 = vmatprep.subr.bf16.mxu0 0
  %2288 = vmatpush1.bf16.msra.mxu0 0
  %2289 = vmatprep.subr.bf16.mxu0 0
  %2290 = vmatpush1.bf16.msra.mxu0 0
  %2291 = vmatprep.mubr.bf16.mxu0 0
  %2292 = vmatmul.mubr.bf16.gmra.mrb[0].mxu0 %v2254
  %v2293 = vpop.f32.mrb[0].mxu0
  %v2294 = vadd.f32 0.0, %v2293
  %v2295 = vpop.f32.mrb[0].mxu0
  %v2296 = vpop.f32.mrb[0].mxu0
  %v2297 = vadd.f32 0.0, %v2296
  %v2298 = vpop.f32.mrb[0].mxu0
  %2299 = vmatprep.mubr.bf16.mxu0 0
  %2300 = vmatmul.mubr.bf16.gmra.mrb[0].mxu0 %v2257
  %v2301 = vpop.f32.mrb[0].mxu0
  %v2302 = vadd.f32 0.0, %v2301
  %v2303 = vpop.f32.mrb[0].mxu0
  %v2304 = vpop.f32.mrb[0].mxu0
  %v2305 = vadd.f32 0.0, %v2304
  %v2306 = vpop.f32.mrb[0].mxu0
  %2307 = vdwg.mxu0
  %v2308 = vmul.f32 %v2294, 0.35355338
  %v2309 = vmul.f32 %v2297, 0.35355338
  %v2310 = vmul.f32 %v2302, 0.35355338
  %v2311 = vmul.f32 %v2305, 0.35355338
  %v2312 = vsel %vm390, %v2308, -inf
  %2313 = vmax.xlane.f32.xlu0 %v2312
  %v2314 = vpop.xlane.xlu0 %2313
  %v2315 = vsel %vm390, %v2309, -inf
  %2316 = vmax.xlane.f32.xlu0 %v2315
  %v2317 = vpop.xlane.xlu0 %2316
  %v2318 = vsel %vm390, %v2310, -inf
  %2319 = vmax.xlane.f32.xlu0 %v2318
  %v2320 = vpop.xlane.xlu0 %2319
  %v2321 = vsel %vm390, %v2311, -inf
  %2322 = vmax.xlane.f32.xlu0 %v2321
  %v2323 = vpop.xlane.xlu0 %2322
  %v2324 = vsub.f32 %v2308, %v2314
  %v2325 = vsub.f32 %v2309, %v2317
  %v2326 = vsub.f32 %v2310, %v2320
  %v2327 = vsub.f32 %v2311, %v2323
  %v2328 = vmul.f32 %v2324, 1.442695
  %v2329 = vpow.pop %v2328
  %v2330 = vmul.f32 %v2325, 1.442695
  %v2331 = vpow.pop %v2330
  %v2332 = vmul.f32 %v2326, 1.442695
  %v2333 = vpow.pop %v2332
  %v2334 = vmul.f32 %v2327, 1.442695
  %v2335 = vpow.pop %v2334
  %v2336 = vsel %vm390, %v2329, 0.0
  %2337 = vadd.xlane.f32.xlu0 %v2336
  %v2338 = vpop.xlane.xlu0 %2337
  %v2339 = vsel %vm390, %v2331, 0.0
  %2340 = vadd.xlane.f32.xlu0 %v2339
  %v2341 = vpop.xlane.xlu0 %2340
  %v2342 = vsel %vm390, %v2333, 0.0
  %2343 = vadd.xlane.f32.xlu0 %v2342
  %v2344 = vpop.xlane.xlu0 %2343
  %v2345 = vsel %vm390, %v2335, 0.0
  %2346 = vadd.xlane.f32.xlu0 %v2345
  %v2347 = vpop.xlane.xlu0 %2346
  %v2348 = vrcp.pop %v2338
  %v2349 = vrcp.pop %v2341
  %v2350 = vrcp.pop %v2344
  %v2351 = vrcp.pop %v2347
  %v2352 = vmul.f32 %v2329, %v2348
  %v2353 = vmul.f32 %v2331, %v2349
  %v2354 = vmul.f32 %v2333, %v2350
  %v2355 = vmul.f32 %v2335, %v2351
  %v2356 = vpack.c.bf16 %v2353, %v2352
  %v2357 = vpack.c.bf16 %v2355, %v2354
  %v2358 = vpack.c.bf16 %v1988, %v1988
  %2360 = vrot.lane.b32.xlu0 %v2358, 64
  %v2361 = vpop.permute.xlu0 %2360
  %v2363 = vsel %vm390, %v2356, 0
  %v2366 = vsel %vm390, %v2357, 0
  %v2369 = vsel %vm447, %v2361, 0
  %2371 = vmatprep.subr.bf16.mxu0 0
  %2372 = vmatpush1.bf16.msra.mxu0 %v2369
  %2373 = vmatprep.subr.bf16.mxu0 0
  %2374 = vmatpush1.bf16.msra.mxu0 0
  %2375 = vmatprep.subr.bf16.mxu0 0
  %2376 = vmatpush1.bf16.msra.mxu0 0
  %2377 = vmatprep.subr.bf16.mxu0 0
  %2378 = vmatpush1.bf16.msra.mxu0 0
  %2379 = vmatprep.subr.bf16.mxu0 0
  %2380 = vmatpush1.bf16.msra.mxu0 0
  %2381 = vmatprep.subr.bf16.mxu0 0
  %2382 = vmatpush1.bf16.msra.mxu0 0
  %2383 = vmatprep.subr.bf16.mxu0 0
  %2384 = vmatpush1.bf16.msra.mxu0 0
  %2385 = vmatprep.subr.bf16.mxu0 0
  %2386 = vmatpush1.bf16.msra.mxu0 0
  %2387 = vmatprep.subr.bf16.mxu0 0
  %2388 = vmatpush1.bf16.msra.mxu0 0
  %2389 = vmatprep.subr.bf16.mxu0 0
  %2390 = vmatpush1.bf16.msra.mxu0 0
  %2391 = vmatprep.subr.bf16.mxu0 0
  %2392 = vmatpush1.bf16.msra.mxu0 0
  %2393 = vmatprep.subr.bf16.mxu0 0
  %2394 = vmatpush1.bf16.msra.mxu0 0
  %2395 = vmatprep.subr.bf16.mxu0 0
  %2396 = vmatpush1.bf16.msra.mxu0 0
  %2397 = vmatprep.subr.bf16.mxu0 0
  %2398 = vmatpush1.bf16.msra.mxu0 0
  %2399 = vmatprep.subr.bf16.mxu0 0
  %2400 = vmatpush1.bf16.msra.mxu0 0
  %2401 = vmatprep.subr.bf16.mxu0 0
  %2402 = vmatpush1.bf16.msra.mxu0 0
  %2403 = vmatprep.mubr.bf16.mxu0 0
  %2404 = vmatmul.mubr.bf16.gmra.mrb[0].mxu0 %v2363
  %v2405 = vpop.f32.mrb[0].mxu0
  %v2406 = vadd.f32 0.0, %v2405
  %v2407 = vpop.f32.mrb[0].mxu0
  %v2408 = vpop.f32.mrb[0].mxu0
  %v2409 = vadd.f32 0.0, %v2408
  %v2410 = vpop.f32.mrb[0].mxu0
  %2411 = vmatprep.mubr.bf16.mxu0 0
  %2412 = vmatmul.mubr.bf16.gmra.mrb[0].mxu0 %v2366
  %v2413 = vpop.f32.mrb[0].mxu0
  %v2414 = vadd.f32 0.0, %v2413
  %v2415 = vpop.f32.mrb[0].mxu0
  %v2416 = vpop.f32.mrb[0].mxu0
  %v2417 = vadd.f32 0.0, %v2416
  %v2418 = vpop.f32.mrb[0].mxu0
  %2419 = vdwg.mxu0
  %v2420 = vmul.f32 %v2406, %v267
  %v2421 = vmul.f32 %v2409, %v274
  %v2422 = vadd.f32 %v2420, %v2421
  %v2423 = vmul.f32 %v2414, %v281
  %v2424 = vadd.f32 %v2422, %v2423
  %v2425 = vmul.f32 %v2417, %v288
  %v2426 = vadd.f32 %v2424, %v2425
  %v2427 = vld [vmem:[%s43] sm:$0xf]
  %v2428 = vld [vmem:[%s43 + $0x4] sm:$0xf]
  %v2429 = vld [vmem:[%s43 + $0x8] sm:$0xf]
  %v2430 = vld [vmem:[%s43 + $0xc] sm:$0xf]
  %v2431 = vpack.c.bf16 %v2426, %v2208
  %v2432 = vld [vmem:[%s45] sm:$0x1]
  %v2434 = vlaneseq
  %v2435 = vshrl.u32 %v2434, 7
  %v2436 = vsub.s32 0, %v2435
  %v2437 = vrot.slane %v2432, %v2436
  %v2443 = vunpack.c.l.b16 %v2427
  %v2444 = vunpack.c.l.b16 %v2428
  %v2445 = vunpack.c.l.b16 %v2429
  %v2446 = vunpack.c.l.b16 %v2430
  %v2447 = vpack.c.b16 %v2444, %v2443
  %v2448 = vpack.c.b16 %v2446, %v2445
  %v2452 = vsel %vm218, %v2431, 0
  %2454 = vmatprep.subr.bf16.mxu0 0
  %2455 = vmatpush1.bf16.msra.mxu0 %v2447
  %2456 = vmatprep.subr.bf16.mxu0 0
  %2457 = vmatpush1.bf16.msra.mxu0 %v2448
  %2458 = vmatprep.subr.bf16.mxu0 0
  %2459 = vmatpush1.bf16.msra.mxu0 0
  %2460 = vmatprep.subr.bf16.mxu0 0
  %2461 = vmatpush1.bf16.msra.mxu0 0
  %2462 = vmatprep.subr.bf16.mxu0 0
  %2463 = vmatpush1.bf16.msra.mxu0 0
  %2464 = vmatprep.subr.bf16.mxu0 0
  %2465 = vmatpush1.bf16.msra.mxu0 0
  %2466 = vmatprep.subr.bf16.mxu0 0
  %2467 = vmatpush1.bf16.msra.mxu0 0
  %2468 = vmatprep.subr.bf16.mxu0 0
  %2469 = vmatpush1.bf16.msra.mxu0 0
  %2470 = vmatprep.subr.bf16.mxu0 0
  %2471 = vmatpush1.bf16.msra.mxu0 0
  %2472 = vmatprep.subr.bf16.mxu0 0
  %2473 = vmatpush1.bf16.msra.mxu0 0
  %2474 = vmatprep.subr.bf16.mxu0 0
  %2475 = vmatpush1.bf16.msra.mxu0 0
  %2476 = vmatprep.subr.bf16.mxu0 0
  %2477 = vmatpush1.bf16.msra.mxu0 0
  %2478 = vmatprep.subr.bf16.mxu0 0
  %2479 = vmatpush1.bf16.msra.mxu0 0
  %2480 = vmatprep.subr.bf16.mxu0 0
  %2481 = vmatpush1.bf16.msra.mxu0 0
  %2482 = vmatprep.subr.bf16.mxu0 0
  %2483 = vmatpush1.bf16.msra.mxu0 0
  %2484 = vmatprep.subr.bf16.mxu0 0
  %2485 = vmatpush1.bf16.msra.mxu0 0
  %2486 = vmatprep.mubr.bf16.mxu0 0
  %2487 = vmatmul.mubr.bf16.gmra.mrb[0].mxu0 %v2452
  %v2488 = vpop.f32.mrb[0].mxu0
  %v2489 = vadd.f32 %v2437, %v2488
  %v2490 = vpop.f32.mrb[0].mxu0
  %v2491 = vpop.f32.mrb[0].mxu0
  %v2492 = vadd.f32 %v2437, %v2491
  %v2493 = vpop.f32.mrb[0].mxu0
  %2494 = vdwg.mxu0
  %v2495 = vadd.f32 %v1921, %v2489
  %v2496 = vadd.f32 %v1922, %v2492
  %v2497 = vld [vmem:[%s47] sm:$0x1]
  %v2498 = vld [vmem:[%s49] sm:$0x1]
  %v2499 = vsel %vm218, %v2495, 0.0
  %2500 = vadd.xlane.f32.xlu0 %v2499
  %v2501 = vpop.xlane.xlu0 %2500
  %v2502 = vsel %vm218, %v2496, 0.0
  %2503 = vadd.xlane.f32.xlu0 %v2502
  %v2504 = vpop.xlane.xlu0 %2503
  %v2505 = vmul.f32 %v2501, %v803
  %v2506 = vmul.f32 %v2504, %v803
  %v2507 = vsub.f32 %v2495, %v2505
  %v2508 = vsub.f32 %v2496, %v2506
  %v2509 = vmul.f32 %v2507, %v2507
  %v2510 = vmul.f32 %v2508, %v2508
  %v2511 = vsel %vm218, %v2509, 0.0
  %2512 = vadd.xlane.f32.xlu0 %v2511
  %v2513 = vpop.xlane.xlu0 %2512
  %v2514 = vsel %vm218, %v2510, 0.0
  %2515 = vadd.xlane.f32.xlu0 %v2514
  %v2516 = vpop.xlane.xlu0 %2515
  %v2517 = vmul.f32 %v2513, %v803
  %v2518 = vmul.f32 %v2516, %v803
  %v2519 = vadd.f32 %v2517, 1e-05
  %v2520 = vadd.f32 %v2518, 1e-05
  %v2521 = vrsqrt.pop %v2519
  %v2522 = vrsqrt.pop %v2520
  %v2523 = vmul.f32 %v2507, %v2521
  %v2524 = vmul.f32 %v2508, %v2522
  %v2526 = vlaneseq
  %v2527 = vshrl.u32 %v2526, 7
  %v2528 = vsub.s32 0, %v2527
  %v2529 = vrot.slane %v2497, %v2528
  %v2531 = vmul.f32 %v2523, %v2529
  %v2532 = vmul.f32 %v2524, %v2529
  %v2534 = vlaneseq
  %v2535 = vshrl.u32 %v2534, 7
  %v2536 = vsub.s32 0, %v2535
  %v2537 = vrot.slane %v2498, %v2536
  %v2539 = vadd.f32 %v2531, %v2537
  %v2540 = vadd.f32 %v2532, %v2537
  %v2541 = vld [vmem:[%s51] sm:$0xf]
  %v2542 = vld [vmem:[%s51 + $0x4] sm:$0xf]
  %v2543 = vld [vmem:[%s51 + $0x8] sm:$0xf]
  %v2544 = vld [vmem:[%s51 + $0xc] sm:$0xf]
  %v2545 = vpack.c.bf16 %v2540, %v2539
  %v2546 = vld [vmem:[%s53] sm:$0x1]
  %v2548 = vlaneseq
  %v2549 = vshrl.u32 %v2548, 7
  %v2550 = vsub.s32 0, %v2549
  %v2551 = vrot.slane %v2546, %v2550
  %v2557 = vunpack.c.l.b16 %v2541
  %v2558 = vunpack.c.l.b16 %v2542
  %v2559 = vunpack.c.l.b16 %v2543
  %v2560 = vunpack.c.l.b16 %v2544
  %v2561 = vpack.c.b16 %v2558, %v2557
  %v2562 = vpack.c.b16 %v2560, %v2559
  %v2566 = vsel %vm218, %v2545, 0
  %2568 = vmatprep.subr.bf16.mxu0 0
  %2569 = vmatpush1.bf16.msra.mxu0 %v2561
  %2570 = vmatprep.subr.bf16.mxu0 0
  %2571 = vmatpush1.bf16.msra.mxu0 %v2562
  %2572 = vmatprep.subr.bf16.mxu0 0
  %2573 = vmatpush1.bf16.msra.mxu0 0
  %2574 = vmatprep.subr.bf16.mxu0 0
  %2575 = vmatpush1.bf16.msra.mxu0 0
  %2576 = vmatprep.subr.bf16.mxu0 0
  %2577 = vmatpush1.bf16.msra.mxu0 0
  %2578 = vmatprep.subr.bf16.mxu0 0
  %2579 = vmatpush1.bf16.msra.mxu0 0
  %2580 = vmatprep.subr.bf16.mxu0 0
  %2581 = vmatpush1.bf16.msra.mxu0 0
  %2582 = vmatprep.subr.bf16.mxu0 0
  %2583 = vmatpush1.bf16.msra.mxu0 0
  %2584 = vmatprep.subr.bf16.mxu0 0
  %2585 = vmatpush1.bf16.msra.mxu0 0
  %2586 = vmatprep.subr.bf16.mxu0 0
  %2587 = vmatpush1.bf16.msra.mxu0 0
  %2588 = vmatprep.subr.bf16.mxu0 0
  %2589 = vmatpush1.bf16.msra.mxu0 0
  %2590 = vmatprep.subr.bf16.mxu0 0
  %2591 = vmatpush1.bf16.msra.mxu0 0
  %2592 = vmatprep.subr.bf16.mxu0 0
  %2593 = vmatpush1.bf16.msra.mxu0 0
  %2594 = vmatprep.subr.bf16.mxu0 0
  %2595 = vmatpush1.bf16.msra.mxu0 0
  %2596 = vmatprep.subr.bf16.mxu0 0
  %2597 = vmatpush1.bf16.msra.mxu0 0
  %2598 = vmatprep.subr.bf16.mxu0 0
  %2599 = vmatpush1.bf16.msra.mxu0 0
  %2600 = vmatprep.mubr.bf16.mxu0 0
  %2601 = vmatmul.mubr.bf16.gmra.mrb[0].mxu0 %v2566
  %v2602 = vpop.f32.mrb[0].mxu0
  %v2603 = vadd.f32 %v2551, %v2602
  %v2604 = vpop.f32.mrb[0].mxu0
  %v2605 = vpop.f32.mrb[0].mxu0
  %v2606 = vadd.f32 %v2551, %v2605
  %v2607 = vpop.f32.mrb[0].mxu0
  %2608 = vdwg.mxu0
  %v2609 = vld [vmem:[%s55] sm:$0xf]
  %v2610 = vld [vmem:[%s55 + $0x4] sm:$0xf]
  %v2611 = vld [vmem:[%s55 + $0x8] sm:$0xf]
  %v2612 = vld [vmem:[%s55 + $0xc] sm:$0xf]
  %v2613 = vpack.c.bf16 %v1914, %v1913
  %v2614 = vld [vmem:[%s57] sm:$0x1]
  %v2616 = vlaneseq
  %v2617 = vshrl.u32 %v2616, 7
  %v2618 = vsub.s32 0, %v2617
  %v2619 = vrot.slane %v2614, %v2618
  %v2625 = vunpack.c.l.b16 %v2609
  %v2626 = vunpack.c.l.b16 %v2610
  %v2627 = vunpack.c.l.b16 %v2611
  %v2628 = vunpack.c.l.b16 %v2612
  %v2629 = vpack.c.b16 %v2626, %v2625
  %v2630 = vpack.c.b16 %v2628, %v2627
  %v2634 = vsel %vm218, %v2613, 0
  %2636 = vmatprep.subr.bf16.mxu0 0
  %2637 = vmatpush1.bf16.msra.mxu0 %v2629
  %2638 = vmatprep.subr.bf16.mxu0 0
  %2639 = vmatpush1.bf16.msra.mxu0 %v2630
  %2640 = vmatprep.subr.bf16.mxu0 0
  %2641 = vmatpush1.bf16.msra.mxu0 0
  %2642 = vmatprep.subr.bf16.mxu0 0
  %2643 = vmatpush1.bf16.msra.mxu0 0
  %2644 = vmatprep.subr.bf16.mxu0 0
  %2645 = vmatpush1.bf16.msra.mxu0 0
  %2646 = vmatprep.subr.bf16.mxu0 0
  %2647 = vmatpush1.bf16.msra.mxu0 0
  %2648 = vmatprep.subr.bf16.mxu0 0
  %2649 = vmatpush1.bf16.msra.mxu0 0
  %2650 = vmatprep.subr.bf16.mxu0 0
  %2651 = vmatpush1.bf16.msra.mxu0 0
  %2652 = vmatprep.subr.bf16.mxu0 0
  %2653 = vmatpush1.bf16.msra.mxu0 0
  %2654 = vmatprep.subr.bf16.mxu0 0
  %2655 = vmatpush1.bf16.msra.mxu0 0
  %2656 = vmatprep.subr.bf16.mxu0 0
  %2657 = vmatpush1.bf16.msra.mxu0 0
  %2658 = vmatprep.subr.bf16.mxu0 0
  %2659 = vmatpush1.bf16.msra.mxu0 0
  %2660 = vmatprep.subr.bf16.mxu0 0
  %2661 = vmatpush1.bf16.msra.mxu0 0
  %2662 = vmatprep.subr.bf16.mxu0 0
  %2663 = vmatpush1.bf16.msra.mxu0 0
  %2664 = vmatprep.subr.bf16.mxu0 0
  %2665 = vmatpush1.bf16.msra.mxu0 0
  %2666 = vmatprep.subr.bf16.mxu0 0
  %2667 = vmatpush1.bf16.msra.mxu0 0
  %2668 = vmatprep.mubr.bf16.mxu0 0
  %2669 = vmatmul.mubr.bf16.gmra.mrb[0].mxu0 %v2634
  %v2670 = vpop.f32.mrb[0].mxu0
  %v2671 = vadd.f32 %v2619, %v2670
  %v2672 = vpop.f32.mrb[0].mxu0
  %v2673 = vpop.f32.mrb[0].mxu0
  %v2674 = vadd.f32 %v2619, %v2673
  %v2675 = vpop.f32.mrb[0].mxu0
  %2676 = vdwg.mxu0
  %v2677 = vmul.f32 %v2603, %v267
  %v2678 = vmul.f32 %v2603, %v274
  %v2679 = vmul.f32 %v2603, %v281
  %v2680 = vmul.f32 %v2603, %v288
  %2681 = vxpose.xlu0.b32.start [1/16] %v2671, 128
  %2682 = vxpose.xlu0.b32.cont [2/16] 0.0, 128
  %2683 = vxpose.xlu0.b32.cont [3/16] 0.0, 128
  %2684 = vxpose.xlu0.b32.cont [4/16] 0.0, 128
  %2685 = vxpose.xlu0.b32.cont [5/16] 0.0, 128
  %2686 = vxpose.xlu0.b32.cont [6/16] 0.0, 128
  %2687 = vxpose.xlu0.b32.cont [7/16] 0.0, 128
  %2688 = vxpose.xlu0.b32.cont [8/16] 0.0, 128
  %2689 = vxpose.xlu0.b32.cont [9/16] 0.0, 128
  %2690 = vxpose.xlu0.b32.cont [10/16] 0.0, 128
  %2691 = vxpose.xlu0.b32.cont [11/16] 0.0, 128
  %2692 = vxpose.xlu0.b32.cont [12/16] 0.0, 128
  %2693 = vxpose.xlu0.b32.cont [13/16] 0.0, 128
  %2694 = vxpose.xlu0.b32.cont [14/16] 0.0, 128
  %2695 = vxpose.xlu0.b32.cont [15/16] 0.0, 128
  %2696 = vxpose.xlu0.b32.end [16/16] 0.0, 128
  %v2697 = vpop.trf.xlu0
  %v2698 = vpop.trf.xlu0
  %v2699 = vpop.trf.xlu0
  %v2700 = vpop.trf.xlu0
  %v2701 = vpop.trf.xlu0
  %v2702 = vpop.trf.xlu0
  %v2703 = vpop.trf.xlu0
  %v2704 = vpop.trf.xlu0
  %v2705 = vpop.trf.xlu0
  %v2706 = vpop.trf.xlu0
  %v2707 = vpop.trf.xlu0
  %v2708 = vpop.trf.xlu0
  %v2709 = vpop.trf.xlu0
  %v2710 = vpop.trf.xlu0
  %v2711 = vpop.trf.xlu0
  %v2712 = vpop.trf.xlu0
  %v2713 = vpack.c.bf16 %v2678, %v2677
  %v2714 = vpack.c.bf16 %v2680, %v2679
  %v2715 = vpack.c.bf16 %v2698, %v2697
  %v2716 = vpack.c.bf16 %v2700, %v2699
  %v2718 = vsel %vm218, %v2713, 0
  %v2721 = vsel %vm218, %v2714, 0
  %2723 = vmatprep.subr.bf16.mxu0 0
  %2724 = vmatpush1.bf16.msra.mxu0 %v2715
  %2725 = vmatprep.subr.bf16.mxu0 0
  %2726 = vmatpush1.bf16.msra.mxu0 %v2716
  %2727 = vmatprep.subr.bf16.mxu0 0
  %2728 = vmatpush1.bf16.msra.mxu0 0
  %2729 = vmatprep.subr.bf16.mxu0 0
  %2730 = vmatpush1.bf16.msra.mxu0 0
  %2731 = vmatprep.subr.bf16.mxu0 0
  %2732 = vmatpush1.bf16.msra.mxu0 0
  %2733 = vmatprep.subr.bf16.mxu0 0
  %2734 = vmatpush1.bf16.msra.mxu0 0
  %2735 = vmatprep.subr.bf16.mxu0 0
  %2736 = vmatpush1.bf16.msra.mxu0 0
  %2737 = vmatprep.subr.bf16.mxu0 0
  %2738 = vmatpush1.bf16.msra.mxu0 0
  %2739 = vmatprep.subr.bf16.mxu0 0
  %2740 = vmatpush1.bf16.msra.mxu0 0
  %2741 = vmatprep.subr.bf16.mxu0 0
  %2742 = vmatpush1.bf16.msra.mxu0 0
  %2743 = vmatprep.subr.bf16.mxu0 0
  %2744 = vmatpush1.bf16.msra.mxu0 0
  %2745 = vmatprep.subr.bf16.mxu0 0
  %2746 = vmatpush1.bf16.msra.mxu0 0
  %2747 = vmatprep.subr.bf16.mxu0 0
  %2748 = vmatpush1.bf16.msra.mxu0 0
  %2749 = vmatprep.subr.bf16.mxu0 0
  %2750 = vmatpush1.bf16.msra.mxu0 0
  %2751 = vmatprep.subr.bf16.mxu0 0
  %2752 = vmatpush1.bf16.msra.mxu0 0
  %2753 = vmatprep.subr.bf16.mxu0 0
  %2754 = vmatpush1.bf16.msra.mxu0 0
  %2755 = vmatprep.mubr.bf16.mxu0 0
  %2756 = vmatmul.mubr.bf16.gmra.mrb[0].mxu0 %v2718
  %v2757 = vpop.f32.mrb[0].mxu0
  %v2758 = vadd.f32 0.0, %v2757
  %v2759 = vpop.f32.mrb[0].mxu0
  %v2760 = vpop.f32.mrb[0].mxu0
  %v2761 = vadd.f32 0.0, %v2760
  %v2762 = vpop.f32.mrb[0].mxu0
  %2763 = vmatprep.mubr.bf16.mxu0 0
  %2764 = vmatmul.mubr.bf16.gmra.mrb[0].mxu0 %v2721
  %v2765 = vpop.f32.mrb[0].mxu0
  %v2766 = vadd.f32 0.0, %v2765
  %v2767 = vpop.f32.mrb[0].mxu0
  %v2768 = vpop.f32.mrb[0].mxu0
  %v2769 = vadd.f32 0.0, %v2768
  %v2770 = vpop.f32.mrb[0].mxu0
  %2771 = vdwg.mxu0
  %v2772 = vmul.f32 %v2758, 0.35355338
  %v2773 = vmul.f32 %v2761, 0.35355338
  %v2774 = vmul.f32 %v2766, 0.35355338
  %v2775 = vmul.f32 %v2769, 0.35355338
  %v2776 = vsel %vm390, %v2772, -inf
  %2777 = vmax.xlane.f32.xlu0 %v2776
  %v2778 = vpop.xlane.xlu0 %2777
  %v2779 = vsel %vm390, %v2773, -inf
  %2780 = vmax.xlane.f32.xlu0 %v2779
  %v2781 = vpop.xlane.xlu0 %2780
  %v2782 = vsel %vm390, %v2774, -inf
  %2783 = vmax.xlane.f32.xlu0 %v2782
  %v2784 = vpop.xlane.xlu0 %2783
  %v2785 = vsel %vm390, %v2775, -inf
  %2786 = vmax.xlane.f32.xlu0 %v2785
  %v2787 = vpop.xlane.xlu0 %2786
  %v2788 = vsub.f32 %v2772, %v2778
  %v2789 = vsub.f32 %v2773, %v2781
  %v2790 = vsub.f32 %v2774, %v2784
  %v2791 = vsub.f32 %v2775, %v2787
  %v2792 = vmul.f32 %v2788, 1.442695
  %v2793 = vpow.pop %v2792
  %v2794 = vmul.f32 %v2789, 1.442695
  %v2795 = vpow.pop %v2794
  %v2796 = vmul.f32 %v2790, 1.442695
  %v2797 = vpow.pop %v2796
  %v2798 = vmul.f32 %v2791, 1.442695
  %v2799 = vpow.pop %v2798
  %v2800 = vsel %vm390, %v2793, 0.0
  %2801 = vadd.xlane.f32.xlu0 %v2800
  %v2802 = vpop.xlane.xlu0 %2801
  %v2803 = vsel %vm390, %v2795, 0.0
  %2804 = vadd.xlane.f32.xlu0 %v2803
  %v2805 = vpop.xlane.xlu0 %2804
  %v2806 = vsel %vm390, %v2797, 0.0
  %2807 = vadd.xlane.f32.xlu0 %v2806
  %v2808 = vpop.xlane.xlu0 %2807
  %v2809 = vsel %vm390, %v2799, 0.0
  %2810 = vadd.xlane.f32.xlu0 %v2809
  %v2811 = vpop.xlane.xlu0 %2810
  %v2812 = vrcp.pop %v2802
  %v2813 = vrcp.pop %v2805
  %v2814 = vrcp.pop %v2808
  %v2815 = vrcp.pop %v2811
  %v2816 = vmul.f32 %v2793, %v2812
  %v2817 = vmul.f32 %v2795, %v2813
  %v2818 = vmul.f32 %v2797, %v2814
  %v2819 = vmul.f32 %v2799, %v2815
  %v2820 = vpack.c.bf16 %v2817, %v2816
  %v2821 = vpack.c.bf16 %v2819, %v2818
  %v2822 = vpack.c.bf16 %v2671, %v2671
  %2824 = vrot.lane.b32.xlu0 %v2822, 96
  %v2825 = vpop.permute.xlu0 %2824
  %v2827 = vsel %vm390, %v2820, 0
  %v2830 = vsel %vm390, %v2821, 0
  %v2833 = vsel %vm447, %v2825, 0
  %2835 = vmatprep.subr.bf16.mxu0 0
  %2836 = vmatpush1.bf16.msra.mxu0 %v2833
  %2837 = vmatprep.subr.bf16.mxu0 0
  %2838 = vmatpush1.bf16.msra.mxu0 0
  %2839 = vmatprep.subr.bf16.mxu0 0
  %2840 = vmatpush1.bf16.msra.mxu0 0
  %2841 = vmatprep.subr.bf16.mxu0 0
  %2842 = vmatpush1.bf16.msra.mxu0 0
  %2843 = vmatprep.subr.bf16.mxu0 0
  %2844 = vmatpush1.bf16.msra.mxu0 0
  %2845 = vmatprep.subr.bf16.mxu0 0
  %2846 = vmatpush1.bf16.msra.mxu0 0
  %2847 = vmatprep.subr.bf16.mxu0 0
  %2848 = vmatpush1.bf16.msra.mxu0 0
  %2849 = vmatprep.subr.bf16.mxu0 0
  %2850 = vmatpush1.bf16.msra.mxu0 0
  %2851 = vmatprep.subr.bf16.mxu0 0
  %2852 = vmatpush1.bf16.msra.mxu0 0
  %2853 = vmatprep.subr.bf16.mxu0 0
  %2854 = vmatpush1.bf16.msra.mxu0 0
  %2855 = vmatprep.subr.bf16.mxu0 0
  %2856 = vmatpush1.bf16.msra.mxu0 0
  %2857 = vmatprep.subr.bf16.mxu0 0
  %2858 = vmatpush1.bf16.msra.mxu0 0
  %2859 = vmatprep.subr.bf16.mxu0 0
  %2860 = vmatpush1.bf16.msra.mxu0 0
  %2861 = vmatprep.subr.bf16.mxu0 0
  %2862 = vmatpush1.bf16.msra.mxu0 0
  %2863 = vmatprep.subr.bf16.mxu0 0
  %2864 = vmatpush1.bf16.msra.mxu0 0
  %2865 = vmatprep.subr.bf16.mxu0 0
  %2866 = vmatpush1.bf16.msra.mxu0 0
  %2867 = vmatprep.mubr.bf16.mxu0 0
  %2868 = vmatmul.mubr.bf16.gmra.mrb[0].mxu0 %v2827
  %v2869 = vpop.f32.mrb[0].mxu0
  %v2870 = vadd.f32 0.0, %v2869
  %v2871 = vpop.f32.mrb[0].mxu0
  %v2872 = vpop.f32.mrb[0].mxu0
  %v2873 = vadd.f32 0.0, %v2872
  %v2874 = vpop.f32.mrb[0].mxu0
  %2875 = vmatprep.mubr.bf16.mxu0 0
  %2876 = vmatmul.mubr.bf16.gmra.mrb[0].mxu0 %v2830
  %v2877 = vpop.f32.mrb[0].mxu0
  %v2878 = vadd.f32 0.0, %v2877
  %v2879 = vpop.f32.mrb[0].mxu0
  %v2880 = vpop.f32.mrb[0].mxu0
  %v2881 = vadd.f32 0.0, %v2880
  %v2882 = vpop.f32.mrb[0].mxu0
  %2883 = vdwg.mxu0
  %v2884 = vmul.f32 %v2870, %v267
  %v2885 = vmul.f32 %v2873, %v274
  %v2886 = vadd.f32 %v2884, %v2885
  %v2887 = vmul.f32 %v2878, %v281
  %v2888 = vadd.f32 %v2886, %v2887
  %v2889 = vmul.f32 %v2881, %v288
  %v2890 = vadd.f32 %v2888, %v2889
  %v2891 = vmul.f32 %v2606, %v267
  %v2892 = vmul.f32 %v2606, %v274
  %v2893 = vmul.f32 %v2606, %v281
  %v2894 = vmul.f32 %v2606, %v288
  %2895 = vxpose.xlu0.b32.start [1/16] %v2674, 128
  %2896 = vxpose.xlu0.b32.cont [2/16] 0.0, 128
  %2897 = vxpose.xlu0.b32.cont [3/16] 0.0, 128
  %2898 = vxpose.xlu0.b32.cont [4/16] 0.0, 128
  %2899 = vxpose.xlu0.b32.cont [5/16] 0.0, 128
  %2900 = vxpose.xlu0.b32.cont [6/16] 0.0, 128
  %2901 = vxpose.xlu0.b32.cont [7/16] 0.0, 128
  %2902 = vxpose.xlu0.b32.cont [8/16] 0.0, 128
  %2903 = vxpose.xlu0.b32.cont [9/16] 0.0, 128
  %2904 = vxpose.xlu0.b32.cont [10/16] 0.0, 128
  %2905 = vxpose.xlu0.b32.cont [11/16] 0.0, 128
  %2906 = vxpose.xlu0.b32.cont [12/16] 0.0, 128
  %2907 = vxpose.xlu0.b32.cont [13/16] 0.0, 128
  %2908 = vxpose.xlu0.b32.cont [14/16] 0.0, 128
  %2909 = vxpose.xlu0.b32.cont [15/16] 0.0, 128
  %2910 = vxpose.xlu0.b32.end [16/16] 0.0, 128
  %v2911 = vpop.trf.xlu0
  %v2912 = vpop.trf.xlu0
  %v2913 = vpop.trf.xlu0
  %v2914 = vpop.trf.xlu0
  %v2915 = vpop.trf.xlu0
  %v2916 = vpop.trf.xlu0
  %v2917 = vpop.trf.xlu0
  %v2918 = vpop.trf.xlu0
  %v2919 = vpop.trf.xlu0
  %v2920 = vpop.trf.xlu0
  %v2921 = vpop.trf.xlu0
  %v2922 = vpop.trf.xlu0
  %v2923 = vpop.trf.xlu0
  %v2924 = vpop.trf.xlu0
  %v2925 = vpop.trf.xlu0
  %v2926 = vpop.trf.xlu0
  %v2927 = vpack.c.bf16 %v2892, %v2891
  %v2928 = vpack.c.bf16 %v2894, %v2893
  %v2929 = vpack.c.bf16 %v2912, %v2911
  %v2930 = vpack.c.bf16 %v2914, %v2913
  %v2932 = vsel %vm218, %v2927, 0
  %v2935 = vsel %vm218, %v2928, 0
  %2937 = vmatprep.subr.bf16.mxu0 0
  %2938 = vmatpush1.bf16.msra.mxu0 %v2929
  %2939 = vmatprep.subr.bf16.mxu0 0
  %2940 = vmatpush1.bf16.msra.mxu0 %v2930
  %2941 = vmatprep.subr.bf16.mxu0 0
  %2942 = vmatpush1.bf16.msra.mxu0 0
  %2943 = vmatprep.subr.bf16.mxu0 0
  %2944 = vmatpush1.bf16.msra.mxu0 0
  %2945 = vmatprep.subr.bf16.mxu0 0
  %2946 = vmatpush1.bf16.msra.mxu0 0
  %2947 = vmatprep.subr.bf16.mxu0 0
  %2948 = vmatpush1.bf16.msra.mxu0 0
  %2949 = vmatprep.subr.bf16.mxu0 0
  %2950 = vmatpush1.bf16.msra.mxu0 0
  %2951 = vmatprep.subr.bf16.mxu0 0
  %2952 = vmatpush1.bf16.msra.mxu0 0
  %2953 = vmatprep.subr.bf16.mxu0 0
  %2954 = vmatpush1.bf16.msra.mxu0 0
  %2955 = vmatprep.subr.bf16.mxu0 0
  %2956 = vmatpush1.bf16.msra.mxu0 0
  %2957 = vmatprep.subr.bf16.mxu0 0
  %2958 = vmatpush1.bf16.msra.mxu0 0
  %2959 = vmatprep.subr.bf16.mxu0 0
  %2960 = vmatpush1.bf16.msra.mxu0 0
  %2961 = vmatprep.subr.bf16.mxu0 0
  %2962 = vmatpush1.bf16.msra.mxu0 0
  %2963 = vmatprep.subr.bf16.mxu0 0
  %2964 = vmatpush1.bf16.msra.mxu0 0
  %2965 = vmatprep.subr.bf16.mxu0 0
  %2966 = vmatpush1.bf16.msra.mxu0 0
  %2967 = vmatprep.subr.bf16.mxu0 0
  %2968 = vmatpush1.bf16.msra.mxu0 0
  %2969 = vmatprep.mubr.bf16.mxu0 0
  %2970 = vmatmul.mubr.bf16.gmra.mrb[0].mxu0 %v2932
  %v2971 = vpop.f32.mrb[0].mxu0
  %v2972 = vadd.f32 0.0, %v2971
  %v2973 = vpop.f32.mrb[0].mxu0
  %v2974 = vpop.f32.mrb[0].mxu0
  %v2975 = vadd.f32 0.0, %v2974
  %v2976 = vpop.f32.mrb[0].mxu0
  %2977 = vmatprep.mubr.bf16.mxu0 0
  %2978 = vmatmul.mubr.bf16.gmra.mrb[0].mxu0 %v2935
  %v2979 = vpop.f32.mrb[0].mxu0
  %v2980 = vadd.f32 0.0, %v2979
  %v2981 = vpop.f32.mrb[0].mxu0
  %v2982 = vpop.f32.mrb[0].mxu0
  %v2983 = vadd.f32 0.0, %v2982
  %v2984 = vpop.f32.mrb[0].mxu0
  %2985 = vdwg.mxu0
  %v2986 = vmul.f32 %v2972, 0.35355338
  %v2987 = vmul.f32 %v2975, 0.35355338
  %v2988 = vmul.f32 %v2980, 0.35355338
  %v2989 = vmul.f32 %v2983, 0.35355338
  %v2990 = vsel %vm390, %v2986, -inf
  %2991 = vmax.xlane.f32.xlu0 %v2990
  %v2992 = vpop.xlane.xlu0 %2991
  %v2993 = vsel %vm390, %v2987, -inf
  %2994 = vmax.xlane.f32.xlu0 %v2993
  %v2995 = vpop.xlane.xlu0 %2994
  %v2996 = vsel %vm390, %v2988, -inf
  %2997 = vmax.xlane.f32.xlu0 %v2996
  %v2998 = vpop.xlane.xlu0 %2997
  %v2999 = vsel %vm390, %v2989, -inf
  %3000 = vmax.xlane.f32.xlu0 %v2999
  %v3001 = vpop.xlane.xlu0 %3000
  %v3002 = vsub.f32 %v2986, %v2992
  %v3003 = vsub.f32 %v2987, %v2995
  %v3004 = vsub.f32 %v2988, %v2998
  %v3005 = vsub.f32 %v2989, %v3001
  %v3006 = vmul.f32 %v3002, 1.442695
  %v3007 = vpow.pop %v3006
  %v3008 = vmul.f32 %v3003, 1.442695
  %v3009 = vpow.pop %v3008
  %v3010 = vmul.f32 %v3004, 1.442695
  %v3011 = vpow.pop %v3010
  %v3012 = vmul.f32 %v3005, 1.442695
  %v3013 = vpow.pop %v3012
  %v3014 = vsel %vm390, %v3007, 0.0
  %3015 = vadd.xlane.f32.xlu0 %v3014
  %v3016 = vpop.xlane.xlu0 %3015
  %v3017 = vsel %vm390, %v3009, 0.0
  %3018 = vadd.xlane.f32.xlu0 %v3017
  %v3019 = vpop.xlane.xlu0 %3018
  %v3020 = vsel %vm390, %v3011, 0.0
  %3021 = vadd.xlane.f32.xlu0 %v3020
  %v3022 = vpop.xlane.xlu0 %3021
  %v3023 = vsel %vm390, %v3013, 0.0
  %3024 = vadd.xlane.f32.xlu0 %v3023
  %v3025 = vpop.xlane.xlu0 %3024
  %v3026 = vrcp.pop %v3016
  %v3027 = vrcp.pop %v3019
  %v3028 = vrcp.pop %v3022
  %v3029 = vrcp.pop %v3025
  %v3030 = vmul.f32 %v3007, %v3026
  %v3031 = vmul.f32 %v3009, %v3027
  %v3032 = vmul.f32 %v3011, %v3028
  %v3033 = vmul.f32 %v3013, %v3029
  %v3034 = vpack.c.bf16 %v3031, %v3030
  %v3035 = vpack.c.bf16 %v3033, %v3032
  %v3036 = vpack.c.bf16 %v2674, %v2674
  %3038 = vrot.lane.b32.xlu0 %v3036, 96
  %v3039 = vpop.permute.xlu0 %3038
  %v3041 = vsel %vm390, %v3034, 0
  %v3044 = vsel %vm390, %v3035, 0
  %v3047 = vsel %vm447, %v3039, 0
  %3049 = vmatprep.subr.bf16.mxu0 0
  %3050 = vmatpush1.bf16.msra.mxu0 %v3047
  %3051 = vmatprep.subr.bf16.mxu0 0
  %3052 = vmatpush1.bf16.msra.mxu0 0
  %3053 = vmatprep.subr.bf16.mxu0 0
  %3054 = vmatpush1.bf16.msra.mxu0 0
  %3055 = vmatprep.subr.bf16.mxu0 0
  %3056 = vmatpush1.bf16.msra.mxu0 0
  %3057 = vmatprep.subr.bf16.mxu0 0
  %3058 = vmatpush1.bf16.msra.mxu0 0
  %3059 = vmatprep.subr.bf16.mxu0 0
  %3060 = vmatpush1.bf16.msra.mxu0 0
  %3061 = vmatprep.subr.bf16.mxu0 0
  %3062 = vmatpush1.bf16.msra.mxu0 0
  %3063 = vmatprep.subr.bf16.mxu0 0
  %3064 = vmatpush1.bf16.msra.mxu0 0
  %3065 = vmatprep.subr.bf16.mxu0 0
  %3066 = vmatpush1.bf16.msra.mxu0 0
  %3067 = vmatprep.subr.bf16.mxu0 0
  %3068 = vmatpush1.bf16.msra.mxu0 0
  %3069 = vmatprep.subr.bf16.mxu0 0
  %3070 = vmatpush1.bf16.msra.mxu0 0
  %3071 = vmatprep.subr.bf16.mxu0 0
  %3072 = vmatpush1.bf16.msra.mxu0 0
  %3073 = vmatprep.subr.bf16.mxu0 0
  %3074 = vmatpush1.bf16.msra.mxu0 0
  %3075 = vmatprep.subr.bf16.mxu0 0
  %3076 = vmatpush1.bf16.msra.mxu0 0
  %3077 = vmatprep.subr.bf16.mxu0 0
  %3078 = vmatpush1.bf16.msra.mxu0 0
  %3079 = vmatprep.subr.bf16.mxu0 0
  %3080 = vmatpush1.bf16.msra.mxu0 0
  %3081 = vmatprep.mubr.bf16.mxu0 0
  %3082 = vmatmul.mubr.bf16.gmra.mrb[0].mxu0 %v3041
  %v3083 = vpop.f32.mrb[0].mxu0
  %v3084 = vadd.f32 0.0, %v3083
  %v3085 = vpop.f32.mrb[0].mxu0
  %v3086 = vpop.f32.mrb[0].mxu0
  %v3087 = vadd.f32 0.0, %v3086
  %v3088 = vpop.f32.mrb[0].mxu0
  %3089 = vmatprep.mubr.bf16.mxu0 0
  %3090 = vmatmul.mubr.bf16.gmra.mrb[0].mxu0 %v3044
  %v3091 = vpop.f32.mrb[0].mxu0
  %v3092 = vadd.f32 0.0, %v3091
  %v3093 = vpop.f32.mrb[0].mxu0
  %v3094 = vpop.f32.mrb[0].mxu0
  %v3095 = vadd.f32 0.0, %v3094
  %v3096 = vpop.f32.mrb[0].mxu0
  %3097 = vdwg.mxu0
  %v3098 = vmul.f32 %v3084, %v267
  %v3099 = vmul.f32 %v3087, %v274
  %v3100 = vadd.f32 %v3098, %v3099
  %v3101 = vmul.f32 %v3092, %v281
  %v3102 = vadd.f32 %v3100, %v3101
  %v3103 = vmul.f32 %v3095, %v288
  %v3104 = vadd.f32 %v3102, %v3103
  %v3105 = vld [vmem:[%s59] sm:$0xf]
  %v3106 = vld [vmem:[%s59 + $0x4] sm:$0xf]
  %v3107 = vld [vmem:[%s59 + $0x8] sm:$0xf]
  %v3108 = vld [vmem:[%s59 + $0xc] sm:$0xf]
  %v3109 = vpack.c.bf16 %v3104, %v2890
  %v3110 = vld [vmem:[%s61] sm:$0x1]
  %v3112 = vlaneseq
  %v3113 = vshrl.u32 %v3112, 7
  %v3114 = vsub.s32 0, %v3113
  %v3115 = vrot.slane %v3110, %v3114
  %v3121 = vunpack.c.l.b16 %v3105
  %v3122 = vunpack.c.l.b16 %v3106
  %v3123 = vunpack.c.l.b16 %v3107
  %v3124 = vunpack.c.l.b16 %v3108
  %v3125 = vpack.c.b16 %v3122, %v3121
  %v3126 = vpack.c.b16 %v3124, %v3123
  %v3130 = vsel %vm218, %v3109, 0
  %3132 = vmatprep.subr.bf16.mxu0 0
  %3133 = vmatpush1.bf16.msra.mxu0 %v3125
  %3134 = vmatprep.subr.bf16.mxu0 0
  %3135 = vmatpush1.bf16.msra.mxu0 %v3126
  %3136 = vmatprep.subr.bf16.mxu0 0
  %3137 = vmatpush1.bf16.msra.mxu0 0
  %3138 = vmatprep.subr.bf16.mxu0 0
  %3139 = vmatpush1.bf16.msra.mxu0 0
  %3140 = vmatprep.subr.bf16.mxu0 0
  %3141 = vmatpush1.bf16.msra.mxu0 0
  %3142 = vmatprep.subr.bf16.mxu0 0
  %3143 = vmatpush1.bf16.msra.mxu0 0
  %3144 = vmatprep.subr.bf16.mxu0 0
  %3145 = vmatpush1.bf16.msra.mxu0 0
  %3146 = vmatprep.subr.bf16.mxu0 0
  %3147 = vmatpush1.bf16.msra.mxu0 0
  %3148 = vmatprep.subr.bf16.mxu0 0
  %3149 = vmatpush1.bf16.msra.mxu0 0
  %3150 = vmatprep.subr.bf16.mxu0 0
  %3151 = vmatpush1.bf16.msra.mxu0 0
  %3152 = vmatprep.subr.bf16.mxu0 0
  %3153 = vmatpush1.bf16.msra.mxu0 0
  %3154 = vmatprep.subr.bf16.mxu0 0
  %3155 = vmatpush1.bf16.msra.mxu0 0
  %3156 = vmatprep.subr.bf16.mxu0 0
  %3157 = vmatpush1.bf16.msra.mxu0 0
  %3158 = vmatprep.subr.bf16.mxu0 0
  %3159 = vmatpush1.bf16.msra.mxu0 0
  %3160 = vmatprep.subr.bf16.mxu0 0
  %3161 = vmatpush1.bf16.msra.mxu0 0
  %3162 = vmatprep.subr.bf16.mxu0 0
  %3163 = vmatpush1.bf16.msra.mxu0 0
  %3164 = vmatprep.mubr.bf16.mxu0 0
  %3165 = vmatmul.mubr.bf16.gmra.mrb[0].mxu0 %v3130
  %v3166 = vpop.f32.mrb[0].mxu0
  %v3167 = vadd.f32 %v3115, %v3166
  %v3168 = vpop.f32.mrb[0].mxu0
  %v3169 = vpop.f32.mrb[0].mxu0
  %v3170 = vadd.f32 %v3115, %v3169
  %v3171 = vpop.f32.mrb[0].mxu0
  %3172 = vdwg.mxu0
  %v3173 = vadd.f32 %v2539, %v3167
  %v3174 = vadd.f32 %v2540, %v3170
  %v3175 = vld [vmem:[%s63] sm:$0x1]
  %v3176 = vld [vmem:[%s65] sm:$0x1]
  %v3177 = vsel %vm218, %v3173, 0.0
  %3178 = vadd.xlane.f32.xlu0 %v3177
  %v3179 = vpop.xlane.xlu0 %3178
  %v3180 = vsel %vm218, %v3174, 0.0
  %3181 = vadd.xlane.f32.xlu0 %v3180
  %v3182 = vpop.xlane.xlu0 %3181
  %v3183 = vmul.f32 %v3179, %v803
  %v3184 = vmul.f32 %v3182, %v803
  %v3185 = vsub.f32 %v3173, %v3183
  %v3186 = vsub.f32 %v3174, %v3184
  %v3187 = vmul.f32 %v3185, %v3185
  %v3188 = vmul.f32 %v3186, %v3186
  %v3189 = vsel %vm218, %v3187, 0.0
  %3190 = vadd.xlane.f32.xlu0 %v3189
  %v3191 = vpop.xlane.xlu0 %3190
  %v3192 = vsel %vm218, %v3188, 0.0
  %3193 = vadd.xlane.f32.xlu0 %v3192
  %v3194 = vpop.xlane.xlu0 %3193
  %v3195 = vmul.f32 %v3191, %v803
  %v3196 = vmul.f32 %v3194, %v803
  %v3197 = vadd.f32 %v3195, 1e-05
  %v3198 = vadd.f32 %v3196, 1e-05
  %v3199 = vrsqrt.pop %v3197
  %v3200 = vrsqrt.pop %v3198
  %v3201 = vmul.f32 %v3185, %v3199
  %v3202 = vmul.f32 %v3186, %v3200
  %v3204 = vlaneseq
  %v3205 = vshrl.u32 %v3204, 7
  %v3206 = vsub.s32 0, %v3205
  %v3207 = vrot.slane %v3175, %v3206
  %v3209 = vmul.f32 %v3201, %v3207
  %v3210 = vmul.f32 %v3202, %v3207
  %v3212 = vlaneseq
  %v3213 = vshrl.u32 %v3212, 7
  %v3214 = vsub.s32 0, %v3213
  %v3215 = vrot.slane %v3176, %v3214
  %v3217 = vadd.f32 %v3209, %v3215
  %v3218 = vadd.f32 %v3210, %v3215
  %v3219 = vld [vmem:[%s67] sm:$0xf]
  %v3220 = vld [vmem:[%s67 + $0x4] sm:$0xf]
  %v3221 = vld [vmem:[%s67 + $0x8] sm:$0xf]
  %v3222 = vld [vmem:[%s67 + $0xc] sm:$0xf]
  %v3223 = vpack.c.bf16 %v3218, %v3217
  %v3224 = vld [vmem:[%s69] sm:$0x1]
  %v3226 = vlaneseq
  %v3227 = vshrl.u32 %v3226, 7
  %v3228 = vsub.s32 0, %v3227
  %v3229 = vrot.slane %v3224, %v3228
  %v3235 = vunpack.c.l.b16 %v3219
  %v3236 = vunpack.c.l.b16 %v3220
  %v3237 = vunpack.c.l.b16 %v3221
  %v3238 = vunpack.c.l.b16 %v3222
  %v3239 = vpack.c.b16 %v3236, %v3235
  %v3240 = vpack.c.b16 %v3238, %v3237
  %v3244 = vsel %vm218, %v3223, 0
  %3246 = vmatprep.subr.bf16.mxu0 0
  %3247 = vmatpush1.bf16.msra.mxu0 %v3239
  %3248 = vmatprep.subr.bf16.mxu0 0
  %3249 = vmatpush1.bf16.msra.mxu0 %v3240
  %3250 = vmatprep.subr.bf16.mxu0 0
  %3251 = vmatpush1.bf16.msra.mxu0 0
  %3252 = vmatprep.subr.bf16.mxu0 0
  %3253 = vmatpush1.bf16.msra.mxu0 0
  %3254 = vmatprep.subr.bf16.mxu0 0
  %3255 = vmatpush1.bf16.msra.mxu0 0
  %3256 = vmatprep.subr.bf16.mxu0 0
  %3257 = vmatpush1.bf16.msra.mxu0 0
  %3258 = vmatprep.subr.bf16.mxu0 0
  %3259 = vmatpush1.bf16.msra.mxu0 0
  %3260 = vmatprep.subr.bf16.mxu0 0
  %3261 = vmatpush1.bf16.msra.mxu0 0
  %3262 = vmatprep.subr.bf16.mxu0 0
  %3263 = vmatpush1.bf16.msra.mxu0 0
  %3264 = vmatprep.subr.bf16.mxu0 0
  %3265 = vmatpush1.bf16.msra.mxu0 0
  %3266 = vmatprep.subr.bf16.mxu0 0
  %3267 = vmatpush1.bf16.msra.mxu0 0
  %3268 = vmatprep.subr.bf16.mxu0 0
  %3269 = vmatpush1.bf16.msra.mxu0 0
  %3270 = vmatprep.subr.bf16.mxu0 0
  %3271 = vmatpush1.bf16.msra.mxu0 0
  %3272 = vmatprep.subr.bf16.mxu0 0
  %3273 = vmatpush1.bf16.msra.mxu0 0
  %3274 = vmatprep.subr.bf16.mxu0 0
  %3275 = vmatpush1.bf16.msra.mxu0 0
  %3276 = vmatprep.subr.bf16.mxu0 0
  %3277 = vmatpush1.bf16.msra.mxu0 0
  %3278 = vmatprep.mubr.bf16.mxu0 0
  %3279 = vmatmul.mubr.bf16.gmra.mrb[0].mxu0 %v3244
  %v3280 = vpop.f32.mrb[0].mxu0
  %v3281 = vadd.f32 %v3229, %v3280
  %v3282 = vpop.f32.mrb[0].mxu0
  %v3283 = vpop.f32.mrb[0].mxu0
  %v3284 = vadd.f32 %v3229, %v3283
  %v3285 = vpop.f32.mrb[0].mxu0
  %3286 = vdwg.mxu0
  %v3287 = vmax.f32 %v3281, 0.0
  %v3288 = vmax.f32 %v3284, 0.0
  %v3289 = vld [vmem:[%s71] sm:$0xf]
  %v3290 = vld [vmem:[%s71 + $0x4] sm:$0xf]
  %v3291 = vld [vmem:[%s71 + $0x8] sm:$0xf]
  %v3292 = vld [vmem:[%s71 + $0xc] sm:$0xf]
  %v3293 = vld [vmem:[%s71 + $0x10] sm:$0xf]
  %v3294 = vld [vmem:[%s71 + $0x14] sm:$0xf]
  %v3295 = vld [vmem:[%s71 + $0x18] sm:$0xf]
  %v3296 = vld [vmem:[%s71 + $0x1c] sm:$0xf]
  %v3297 = vpack.c.bf16 %v3288, %v3287
  %v3298 = vld [vmem:[%s73] sm:$0x1]
  %v3300 = vlaneseq
  %v3301 = vshrl.u32 %v3300, 7
  %v3302 = vsub.s32 0, %v3301
  %v3303 = vrot.slane %v3298, %v3302
  %v3313 = vunpack.c.l.b16 %v3289
  %v3314 = vunpack.c.l.b16 %v3290
  %v3315 = vunpack.c.l.b16 %v3291
  %v3316 = vunpack.c.l.b16 %v3292
  %v3317 = vunpack.c.l.b16 %v3293
  %v3318 = vunpack.c.l.b16 %v3294
  %v3319 = vunpack.c.l.b16 %v3295
  %v3320 = vunpack.c.l.b16 %v3296
  %v3321 = vpack.c.b16 %v3314, %v3313
  %v3322 = vpack.c.b16 %v3316, %v3315
  %v3323 = vpack.c.b16 %v3318, %v3317
  %v3324 = vpack.c.b16 %v3320, %v3319
  %v3330 = vsel %vm950, %v3297, 0
  %3332 = vmatprep.subr.bf16.mxu0 0
  %3333 = vmatpush1.bf16.msra.mxu0 %v3321
  %3334 = vmatprep.subr.bf16.mxu0 0
  %3335 = vmatpush1.bf16.msra.mxu0 %v3322
  %3336 = vmatprep.subr.bf16.mxu0 0
  %3337 = vmatpush1.bf16.msra.mxu0 %v3323
  %3338 = vmatprep.subr.bf16.mxu0 0
  %3339 = vmatpush1.bf16.msra.mxu0 %v3324
  %3340 = vmatprep.subr.bf16.mxu0 0
  %3341 = vmatpush1.bf16.msra.mxu0 0
  %3342 = vmatprep.subr.bf16.mxu0 0
  %3343 = vmatpush1.bf16.msra.mxu0 0
  %3344 = vmatprep.subr.bf16.mxu0 0
  %3345 = vmatpush1.bf16.msra.mxu0 0
  %3346 = vmatprep.subr.bf16.mxu0 0
  %3347 = vmatpush1.bf16.msra.mxu0 0
  %3348 = vmatprep.subr.bf16.mxu0 0
  %3349 = vmatpush1.bf16.msra.mxu0 0
  %3350 = vmatprep.subr.bf16.mxu0 0
  %3351 = vmatpush1.bf16.msra.mxu0 0
  %3352 = vmatprep.subr.bf16.mxu0 0
  %3353 = vmatpush1.bf16.msra.mxu0 0
  %3354 = vmatprep.subr.bf16.mxu0 0
  %3355 = vmatpush1.bf16.msra.mxu0 0
  %3356 = vmatprep.subr.bf16.mxu0 0
  %3357 = vmatpush1.bf16.msra.mxu0 0
  %3358 = vmatprep.subr.bf16.mxu0 0
  %3359 = vmatpush1.bf16.msra.mxu0 0
  %3360 = vmatprep.subr.bf16.mxu0 0
  %3361 = vmatpush1.bf16.msra.mxu0 0
  %3362 = vmatprep.subr.bf16.mxu0 0
  %3363 = vmatpush1.bf16.msra.mxu0 0
  %3364 = vmatprep.mubr.bf16.mxu0 0
  %3365 = vmatmul.mubr.bf16.gmra.mrb[0].mxu0 %v3330
  %v3366 = vpop.f32.mrb[0].mxu0
  %v3367 = vadd.f32 %v3303, %v3366
  %v3368 = vpop.f32.mrb[0].mxu0
  %v3369 = vpop.f32.mrb[0].mxu0
  %v3370 = vadd.f32 %v3303, %v3369
  %v3371 = vpop.f32.mrb[0].mxu0
  %3372 = vdwg.mxu0
  %v3373 = vadd.f32 %v3217, %v3367
  %v3374 = vadd.f32 %v3218, %v3370
  %v3375 = vld [vmem:[%s75] sm:$0x1]
  %v3376 = vld [vmem:[%s77] sm:$0x1]
  %v3377 = vsel %vm218, %v3373, 0.0
  %3378 = vadd.xlane.f32.xlu0 %v3377
  %v3379 = vpop.xlane.xlu0 %3378
  %v3380 = vsel %vm218, %v3374, 0.0
  %3381 = vadd.xlane.f32.xlu0 %v3380
  %v3382 = vpop.xlane.xlu0 %3381
  %v3383 = vmul.f32 %v3379, %v803
  %v3384 = vmul.f32 %v3382, %v803
  %v3385 = vsub.f32 %v3373, %v3383
  %v3386 = vsub.f32 %v3374, %v3384
  %v3387 = vmul.f32 %v3385, %v3385
  %v3388 = vmul.f32 %v3386, %v3386
  %v3389 = vsel %vm218, %v3387, 0.0
  %3390 = vadd.xlane.f32.xlu0 %v3389
  %v3391 = vpop.xlane.xlu0 %3390
  %v3392 = vsel %vm218, %v3388, 0.0
  %3393 = vadd.xlane.f32.xlu0 %v3392
  %v3394 = vpop.xlane.xlu0 %3393
  %v3395 = vmul.f32 %v3391, %v803
  %v3396 = vmul.f32 %v3394, %v803
  %v3397 = vadd.f32 %v3395, 1e-05
  %v3398 = vadd.f32 %v3396, 1e-05
  %v3399 = vrsqrt.pop %v3397
  %v3400 = vrsqrt.pop %v3398
  %v3401 = vmul.f32 %v3385, %v3399
  %v3402 = vmul.f32 %v3386, %v3400
  %v3404 = vlaneseq
  %v3405 = vshrl.u32 %v3404, 7
  %v3406 = vsub.s32 0, %v3405
  %v3407 = vrot.slane %v3375, %v3406
  %v3409 = vmul.f32 %v3401, %v3407
  %v3410 = vmul.f32 %v3402, %v3407
  %v3412 = vlaneseq
  %v3413 = vshrl.u32 %v3412, 7
  %v3414 = vsub.s32 0, %v3413
  %v3415 = vrot.slane %v3376, %v3414
  %v3417 = vadd.f32 %v3409, %v3415
  %v3418 = vadd.f32 %v3410, %v3415
  %s3419 = scalar_lea.vmem %s39, 16
  %v3420 = vld [vmem:[%s3419] sm:$0xf]
  %v3421 = vld [vmem:[%s3419 + $0x4] sm:$0xf]
  %v3422 = vld [vmem:[%s3419 + $0x8] sm:$0xf]
  %v3423 = vld [vmem:[%s3419 + $0xc] sm:$0xf]
  %v3424 = vpack.c.bf16 %v3418, %v3417
  %s3425 = scalar_lea.vmem %s41, 1
  %v3426 = vld [vmem:[%s3425] sm:$0x1]
  %v3428 = vlaneseq
  %v3429 = vshrl.u32 %v3428, 7
  %v3430 = vsub.s32 0, %v3429
  %v3431 = vrot.slane %v3426, %v3430
  %v3437 = vunpack.c.l.b16 %v3420
  %v3438 = vunpack.c.l.b16 %v3421
  %v3439 = vunpack.c.l.b16 %v3422
  %v3440 = vunpack.c.l.b16 %v3423
  %v3441 = vpack.c.b16 %v3438, %v3437
  %v3442 = vpack.c.b16 %v3440, %v3439
  %v3446 = vsel %vm218, %v3424, 0
  %3448 = vmatprep.subr.bf16.mxu0 0
  %3449 = vmatpush1.bf16.msra.mxu0 %v3441
  %3450 = vmatprep.subr.bf16.mxu0 0
  %3451 = vmatpush1.bf16.msra.mxu0 %v3442
  %3452 = vmatprep.subr.bf16.mxu0 0
  %3453 = vmatpush1.bf16.msra.mxu0 0
  %3454 = vmatprep.subr.bf16.mxu0 0
  %3455 = vmatpush1.bf16.msra.mxu0 0
  %3456 = vmatprep.subr.bf16.mxu0 0
  %3457 = vmatpush1.bf16.msra.mxu0 0
  %3458 = vmatprep.subr.bf16.mxu0 0
  %3459 = vmatpush1.bf16.msra.mxu0 0
  %3460 = vmatprep.subr.bf16.mxu0 0
  %3461 = vmatpush1.bf16.msra.mxu0 0
  %3462 = vmatprep.subr.bf16.mxu0 0
  %3463 = vmatpush1.bf16.msra.mxu0 0
  %3464 = vmatprep.subr.bf16.mxu0 0
  %3465 = vmatpush1.bf16.msra.mxu0 0
  %3466 = vmatprep.subr.bf16.mxu0 0
  %3467 = vmatpush1.bf16.msra.mxu0 0
  %3468 = vmatprep.subr.bf16.mxu0 0
  %3469 = vmatpush1.bf16.msra.mxu0 0
  %3470 = vmatprep.subr.bf16.mxu0 0
  %3471 = vmatpush1.bf16.msra.mxu0 0
  %3472 = vmatprep.subr.bf16.mxu0 0
  %3473 = vmatpush1.bf16.msra.mxu0 0
  %3474 = vmatprep.subr.bf16.mxu0 0
  %3475 = vmatpush1.bf16.msra.mxu0 0
  %3476 = vmatprep.subr.bf16.mxu0 0
  %3477 = vmatpush1.bf16.msra.mxu0 0
  %3478 = vmatprep.subr.bf16.mxu0 0
  %3479 = vmatpush1.bf16.msra.mxu0 0
  %3480 = vmatprep.mubr.bf16.mxu0 0
  %3481 = vmatmul.mubr.bf16.gmra.mrb[0].mxu0 %v3446
  %v3482 = vpop.f32.mrb[0].mxu0
  %v3483 = vadd.f32 %v3431, %v3482
  %v3484 = vpop.f32.mrb[0].mxu0
  %v3485 = vpop.f32.mrb[0].mxu0
  %v3486 = vadd.f32 %v3431, %v3485
  %v3487 = vpop.f32.mrb[0].mxu0
  %3488 = vdwg.mxu0
  %v3489 = vmul.f32 %v3483, %v267
  %v3490 = vmul.f32 %v3483, %v274
  %v3491 = vmul.f32 %v3483, %v281
  %v3492 = vmul.f32 %v3483, %v288
  %3494 = vrot.lane.b32.xlu0 %v3483, 96
  %v3495 = vpop.permute.xlu0 %3494
  %3497 = vxpose.xlu0.b32.start [1/16] %v3495, 128
  %3498 = vxpose.xlu0.b32.cont [2/16] 0.0, 128
  %3499 = vxpose.xlu0.b32.cont [3/16] 0.0, 128
  %3500 = vxpose.xlu0.b32.cont [4/16] 0.0, 128
  %3501 = vxpose.xlu0.b32.cont [5/16] 0.0, 128
  %3502 = vxpose.xlu0.b32.cont [6/16] 0.0, 128
  %3503 = vxpose.xlu0.b32.cont [7/16] 0.0, 128
  %3504 = vxpose.xlu0.b32.cont [8/16] 0.0, 128
  %3505 = vxpose.xlu0.b32.cont [9/16] 0.0, 128
  %3506 = vxpose.xlu0.b32.cont [10/16] 0.0, 128
  %3507 = vxpose.xlu0.b32.cont [11/16] 0.0, 128
  %3508 = vxpose.xlu0.b32.cont [12/16] 0.0, 128
  %3509 = vxpose.xlu0.b32.cont [13/16] 0.0, 128
  %3510 = vxpose.xlu0.b32.cont [14/16] 0.0, 128
  %3511 = vxpose.xlu0.b32.cont [15/16] 0.0, 128
  %3512 = vxpose.xlu0.b32.end [16/16] 0.0, 128
  %v3513 = vpop.trf.xlu0
  %v3514 = vpop.trf.xlu0
  %v3515 = vpop.trf.xlu0
  %v3516 = vpop.trf.xlu0
  %v3517 = vpop.trf.xlu0
  %v3518 = vpop.trf.xlu0
  %v3519 = vpop.trf.xlu0
  %v3520 = vpop.trf.xlu0
  %v3521 = vpop.trf.xlu0
  %v3522 = vpop.trf.xlu0
  %v3523 = vpop.trf.xlu0
  %v3524 = vpop.trf.xlu0
  %v3525 = vpop.trf.xlu0
  %v3526 = vpop.trf.xlu0
  %v3527 = vpop.trf.xlu0
  %v3528 = vpop.trf.xlu0
  %v3529 = vpack.c.bf16 %v3490, %v3489
  %v3530 = vpack.c.bf16 %v3492, %v3491
  %v3531 = vpack.c.bf16 %v3514, %v3513
  %v3532 = vpack.c.bf16 %v3516, %v3515
  %v3534 = vsel %vm218, %v3529, 0
  %v3537 = vsel %vm218, %v3530, 0
  %3539 = vmatprep.subr.bf16.mxu0 0
  %3540 = vmatpush1.bf16.msra.mxu0 %v3531
  %3541 = vmatprep.subr.bf16.mxu0 0
  %3542 = vmatpush1.bf16.msra.mxu0 %v3532
  %3543 = vmatprep.subr.bf16.mxu0 0
  %3544 = vmatpush1.bf16.msra.mxu0 0
  %3545 = vmatprep.subr.bf16.mxu0 0
  %3546 = vmatpush1.bf16.msra.mxu0 0
  %3547 = vmatprep.subr.bf16.mxu0 0
  %3548 = vmatpush1.bf16.msra.mxu0 0
  %3549 = vmatprep.subr.bf16.mxu0 0
  %3550 = vmatpush1.bf16.msra.mxu0 0
  %3551 = vmatprep.subr.bf16.mxu0 0
  %3552 = vmatpush1.bf16.msra.mxu0 0
  %3553 = vmatprep.subr.bf16.mxu0 0
  %3554 = vmatpush1.bf16.msra.mxu0 0
  %3555 = vmatprep.subr.bf16.mxu0 0
  %3556 = vmatpush1.bf16.msra.mxu0 0
  %3557 = vmatprep.subr.bf16.mxu0 0
  %3558 = vmatpush1.bf16.msra.mxu0 0
  %3559 = vmatprep.subr.bf16.mxu0 0
  %3560 = vmatpush1.bf16.msra.mxu0 0
  %3561 = vmatprep.subr.bf16.mxu0 0
  %3562 = vmatpush1.bf16.msra.mxu0 0
  %3563 = vmatprep.subr.bf16.mxu0 0
  %3564 = vmatpush1.bf16.msra.mxu0 0
  %3565 = vmatprep.subr.bf16.mxu0 0
  %3566 = vmatpush1.bf16.msra.mxu0 0
  %3567 = vmatprep.subr.bf16.mxu0 0
  %3568 = vmatpush1.bf16.msra.mxu0 0
  %3569 = vmatprep.subr.bf16.mxu0 0
  %3570 = vmatpush1.bf16.msra.mxu0 0
  %3571 = vmatprep.mubr.bf16.mxu0 0
  %3572 = vmatmul.mubr.bf16.gmra.mrb[0].mxu0 %v3534
  %v3573 = vpop.f32.mrb[0].mxu0
  %v3574 = vadd.f32 0.0, %v3573
  %v3575 = vpop.f32.mrb[0].mxu0
  %v3576 = vpop.f32.mrb[0].mxu0
  %v3577 = vadd.f32 0.0, %v3576
  %v3578 = vpop.f32.mrb[0].mxu0
  %3579 = vmatprep.mubr.bf16.mxu0 0
  %3580 = vmatmul.mubr.bf16.gmra.mrb[0].mxu0 %v3537
  %v3581 = vpop.f32.mrb[0].mxu0
  %v3582 = vadd.f32 0.0, %v3581
  %v3583 = vpop.f32.mrb[0].mxu0
  %v3584 = vpop.f32.mrb[0].mxu0
  %v3585 = vadd.f32 0.0, %v3584
  %v3586 = vpop.f32.mrb[0].mxu0
  %3587 = vdwg.mxu0
  %v3588 = vmul.f32 %v3574, 0.35355338
  %v3589 = vmul.f32 %v3577, 0.35355338
  %v3590 = vmul.f32 %v3582, 0.35355338
  %v3591 = vmul.f32 %v3585, 0.35355338
  %v3592 = vsel %vm390, %v3588, -inf
  %3593 = vmax.xlane.f32.xlu0 %v3592
  %v3594 = vpop.xlane.xlu0 %3593
  %v3595 = vsel %vm390, %v3589, -inf
  %3596 = vmax.xlane.f32.xlu0 %v3595
  %v3597 = vpop.xlane.xlu0 %3596
  %v3598 = vsel %vm390, %v3590, -inf
  %3599 = vmax.xlane.f32.xlu0 %v3598
  %v3600 = vpop.xlane.xlu0 %3599
  %v3601 = vsel %vm390, %v3591, -inf
  %3602 = vmax.xlane.f32.xlu0 %v3601
  %v3603 = vpop.xlane.xlu0 %3602
  %v3604 = vsub.f32 %v3588, %v3594
  %v3605 = vsub.f32 %v3589, %v3597
  %v3606 = vsub.f32 %v3590, %v3600
  %v3607 = vsub.f32 %v3591, %v3603
  %v3608 = vmul.f32 %v3604, 1.442695
  %v3609 = vpow.pop %v3608
  %v3610 = vmul.f32 %v3605, 1.442695
  %v3611 = vpow.pop %v3610
  %v3612 = vmul.f32 %v3606, 1.442695
  %v3613 = vpow.pop %v3612
  %v3614 = vmul.f32 %v3607, 1.442695
  %v3615 = vpow.pop %v3614
  %v3616 = vsel %vm390, %v3609, 0.0
  %3617 = vadd.xlane.f32.xlu0 %v3616
  %v3618 = vpop.xlane.xlu0 %3617
  %v3619 = vsel %vm390, %v3611, 0.0
  %3620 = vadd.xlane.f32.xlu0 %v3619
  %v3621 = vpop.xlane.xlu0 %3620
  %v3622 = vsel %vm390, %v3613, 0.0
  %3623 = vadd.xlane.f32.xlu0 %v3622
  %v3624 = vpop.xlane.xlu0 %3623
  %v3625 = vsel %vm390, %v3615, 0.0
  %3626 = vadd.xlane.f32.xlu0 %v3625
  %v3627 = vpop.xlane.xlu0 %3626
  %v3628 = vrcp.pop %v3618
  %v3629 = vrcp.pop %v3621
  %v3630 = vrcp.pop %v3624
  %v3631 = vrcp.pop %v3627
  %v3632 = vmul.f32 %v3609, %v3628
  %v3633 = vmul.f32 %v3611, %v3629
  %v3634 = vmul.f32 %v3613, %v3630
  %v3635 = vmul.f32 %v3615, %v3631
  %v3636 = vpack.c.bf16 %v3633, %v3632
  %v3637 = vpack.c.bf16 %v3635, %v3634
  %v3638 = vpack.c.bf16 %v3483, %v3483
  %3640 = vrot.lane.b32.xlu0 %v3638, 64
  %v3641 = vpop.permute.xlu0 %3640
  %v3643 = vsel %vm390, %v3636, 0
  %v3646 = vsel %vm390, %v3637, 0
  %v3649 = vsel %vm447, %v3641, 0
  %3651 = vmatprep.subr.bf16.mxu0 0
  %3652 = vmatpush1.bf16.msra.mxu0 %v3649
  %3653 = vmatprep.subr.bf16.mxu0 0
  %3654 = vmatpush1.bf16.msra.mxu0 0
  %3655 = vmatprep.subr.bf16.mxu0 0
  %3656 = vmatpush1.bf16.msra.mxu0 0
  %3657 = vmatprep.subr.bf16.mxu0 0
  %3658 = vmatpush1.bf16.msra.mxu0 0
  %3659 = vmatprep.subr.bf16.mxu0 0
  %3660 = vmatpush1.bf16.msra.mxu0 0
  %3661 = vmatprep.subr.bf16.mxu0 0
  %3662 = vmatpush1.bf16.msra.mxu0 0
  %3663 = vmatprep.subr.bf16.mxu0 0
  %3664 = vmatpush1.bf16.msra.mxu0 0
  %3665 = vmatprep.subr.bf16.mxu0 0
  %3666 = vmatpush1.bf16.msra.mxu0 0
  %3667 = vmatprep.subr.bf16.mxu0 0
  %3668 = vmatpush1.bf16.msra.mxu0 0
  %3669 = vmatprep.subr.bf16.mxu0 0
  %3670 = vmatpush1.bf16.msra.mxu0 0
  %3671 = vmatprep.subr.bf16.mxu0 0
  %3672 = vmatpush1.bf16.msra.mxu0 0
  %3673 = vmatprep.subr.bf16.mxu0 0
  %3674 = vmatpush1.bf16.msra.mxu0 0
  %3675 = vmatprep.subr.bf16.mxu0 0
  %3676 = vmatpush1.bf16.msra.mxu0 0
  %3677 = vmatprep.subr.bf16.mxu0 0
  %3678 = vmatpush1.bf16.msra.mxu0 0
  %3679 = vmatprep.subr.bf16.mxu0 0
  %3680 = vmatpush1.bf16.msra.mxu0 0
  %3681 = vmatprep.subr.bf16.mxu0 0
  %3682 = vmatpush1.bf16.msra.mxu0 0
  %3683 = vmatprep.mubr.bf16.mxu0 0
  %3684 = vmatmul.mubr.bf16.gmra.mrb[0].mxu0 %v3643
  %v3685 = vpop.f32.mrb[0].mxu0
  %v3686 = vadd.f32 0.0, %v3685
  %v3687 = vpop.f32.mrb[0].mxu0
  %v3688 = vpop.f32.mrb[0].mxu0
  %v3689 = vadd.f32 0.0, %v3688
  %v3690 = vpop.f32.mrb[0].mxu0
  %3691 = vmatprep.mubr.bf16.mxu0 0
  %3692 = vmatmul.mubr.bf16.gmra.mrb[0].mxu0 %v3646
  %v3693 = vpop.f32.mrb[0].mxu0
  %v3694 = vadd.f32 0.0, %v3693
  %v3695 = vpop.f32.mrb[0].mxu0
  %v3696 = vpop.f32.mrb[0].mxu0
  %v3697 = vadd.f32 0.0, %v3696
  %v3698 = vpop.f32.mrb[0].mxu0
  %3699 = vdwg.mxu0
  %v3700 = vmul.f32 %v3686, %v267
  %v3701 = vmul.f32 %v3689, %v274
  %v3702 = vadd.f32 %v3700, %v3701
  %v3703 = vmul.f32 %v3694, %v281
  %v3704 = vadd.f32 %v3702, %v3703
  %v3705 = vmul.f32 %v3697, %v288
  %v3706 = vadd.f32 %v3704, %v3705
  %v3707 = vmul.f32 %v3486, %v267
  %v3708 = vmul.f32 %v3486, %v274
  %v3709 = vmul.f32 %v3486, %v281
  %v3710 = vmul.f32 %v3486, %v288
  %3712 = vrot.lane.b32.xlu0 %v3486, 96
  %v3713 = vpop.permute.xlu0 %3712
  %3715 = vxpose.xlu0.b32.start [1/16] %v3713, 128
  %3716 = vxpose.xlu0.b32.cont [2/16] 0.0, 128
  %3717 = vxpose.xlu0.b32.cont [3/16] 0.0, 128
  %3718 = vxpose.xlu0.b32.cont [4/16] 0.0, 128
  %3719 = vxpose.xlu0.b32.cont [5/16] 0.0, 128
  %3720 = vxpose.xlu0.b32.cont [6/16] 0.0, 128
  %3721 = vxpose.xlu0.b32.cont [7/16] 0.0, 128
  %3722 = vxpose.xlu0.b32.cont [8/16] 0.0, 128
  %3723 = vxpose.xlu0.b32.cont [9/16] 0.0, 128
  %3724 = vxpose.xlu0.b32.cont [10/16] 0.0, 128
  %3725 = vxpose.xlu0.b32.cont [11/16] 0.0, 128
  %3726 = vxpose.xlu0.b32.cont [12/16] 0.0, 128
  %3727 = vxpose.xlu0.b32.cont [13/16] 0.0, 128
  %3728 = vxpose.xlu0.b32.cont [14/16] 0.0, 128
  %3729 = vxpose.xlu0.b32.cont [15/16] 0.0, 128
  %3730 = vxpose.xlu0.b32.end [16/16] 0.0, 128
  %v3731 = vpop.trf.xlu0
  %v3732 = vpop.trf.xlu0
  %v3733 = vpop.trf.xlu0
  %v3734 = vpop.trf.xlu0
  %v3735 = vpop.trf.xlu0
  %v3736 = vpop.trf.xlu0
  %v3737 = vpop.trf.xlu0
  %v3738 = vpop.trf.xlu0
  %v3739 = vpop.trf.xlu0
  %v3740 = vpop.trf.xlu0
  %v3741 = vpop.trf.xlu0
  %v3742 = vpop.trf.xlu0
  %v3743 = vpop.trf.xlu0
  %v3744 = vpop.trf.xlu0
  %v3745 = vpop.trf.xlu0
  %v3746 = vpop.trf.xlu0
  %v3747 = vpack.c.bf16 %v3708, %v3707
  %v3748 = vpack.c.bf16 %v3710, %v3709
  %v3749 = vpack.c.bf16 %v3732, %v3731
  %v3750 = vpack.c.bf16 %v3734, %v3733
  %v3752 = vsel %vm218, %v3747, 0
  %v3755 = vsel %vm218, %v3748, 0
  %3757 = vmatprep.subr.bf16.mxu0 0
  %3758 = vmatpush1.bf16.msra.mxu0 %v3749
  %3759 = vmatprep.subr.bf16.mxu0 0
  %3760 = vmatpush1.bf16.msra.mxu0 %v3750
  %3761 = vmatprep.subr.bf16.mxu0 0
  %3762 = vmatpush1.bf16.msra.mxu0 0
  %3763 = vmatprep.subr.bf16.mxu0 0
  %3764 = vmatpush1.bf16.msra.mxu0 0
  %3765 = vmatprep.subr.bf16.mxu0 0
  %3766 = vmatpush1.bf16.msra.mxu0 0
  %3767 = vmatprep.subr.bf16.mxu0 0
  %3768 = vmatpush1.bf16.msra.mxu0 0
  %3769 = vmatprep.subr.bf16.mxu0 0
  %3770 = vmatpush1.bf16.msra.mxu0 0
  %3771 = vmatprep.subr.bf16.mxu0 0
  %3772 = vmatpush1.bf16.msra.mxu0 0
  %3773 = vmatprep.subr.bf16.mxu0 0
  %3774 = vmatpush1.bf16.msra.mxu0 0
  %3775 = vmatprep.subr.bf16.mxu0 0
  %3776 = vmatpush1.bf16.msra.mxu0 0
  %3777 = vmatprep.subr.bf16.mxu0 0
  %3778 = vmatpush1.bf16.msra.mxu0 0
  %3779 = vmatprep.subr.bf16.mxu0 0
  %3780 = vmatpush1.bf16.msra.mxu0 0
  %3781 = vmatprep.subr.bf16.mxu0 0
  %3782 = vmatpush1.bf16.msra.mxu0 0
  %3783 = vmatprep.subr.bf16.mxu0 0
  %3784 = vmatpush1.bf16.msra.mxu0 0
  %3785 = vmatprep.subr.bf16.mxu0 0
  %3786 = vmatpush1.bf16.msra.mxu0 0
  %3787 = vmatprep.subr.bf16.mxu0 0
  %3788 = vmatpush1.bf16.msra.mxu0 0
  %3789 = vmatprep.mubr.bf16.mxu0 0
  %3790 = vmatmul.mubr.bf16.gmra.mrb[0].mxu0 %v3752
  %v3791 = vpop.f32.mrb[0].mxu0
  %v3792 = vadd.f32 0.0, %v3791
  %v3793 = vpop.f32.mrb[0].mxu0
  %v3794 = vpop.f32.mrb[0].mxu0
  %v3795 = vadd.f32 0.0, %v3794
  %v3796 = vpop.f32.mrb[0].mxu0
  %3797 = vmatprep.mubr.bf16.mxu0 0
  %3798 = vmatmul.mubr.bf16.gmra.mrb[0].mxu0 %v3755
  %v3799 = vpop.f32.mrb[0].mxu0
  %v3800 = vadd.f32 0.0, %v3799
  %v3801 = vpop.f32.mrb[0].mxu0
  %v3802 = vpop.f32.mrb[0].mxu0
  %v3803 = vadd.f32 0.0, %v3802
  %v3804 = vpop.f32.mrb[0].mxu0
  %3805 = vdwg.mxu0
  %v3806 = vmul.f32 %v3792, 0.35355338
  %v3807 = vmul.f32 %v3795, 0.35355338
  %v3808 = vmul.f32 %v3800, 0.35355338
  %v3809 = vmul.f32 %v3803, 0.35355338
  %v3810 = vsel %vm390, %v3806, -inf
  %3811 = vmax.xlane.f32.xlu0 %v3810
  %v3812 = vpop.xlane.xlu0 %3811
  %v3813 = vsel %vm390, %v3807, -inf
  %3814 = vmax.xlane.f32.xlu0 %v3813
  %v3815 = vpop.xlane.xlu0 %3814
  %v3816 = vsel %vm390, %v3808, -inf
  %3817 = vmax.xlane.f32.xlu0 %v3816
  %v3818 = vpop.xlane.xlu0 %3817
  %v3819 = vsel %vm390, %v3809, -inf
  %3820 = vmax.xlane.f32.xlu0 %v3819
  %v3821 = vpop.xlane.xlu0 %3820
  %v3822 = vsub.f32 %v3806, %v3812
  %v3823 = vsub.f32 %v3807, %v3815
  %v3824 = vsub.f32 %v3808, %v3818
  %v3825 = vsub.f32 %v3809, %v3821
  %v3826 = vmul.f32 %v3822, 1.442695
  %v3827 = vpow.pop %v3826
  %v3828 = vmul.f32 %v3823, 1.442695
  %v3829 = vpow.pop %v3828
  %v3830 = vmul.f32 %v3824, 1.442695
  %v3831 = vpow.pop %v3830
  %v3832 = vmul.f32 %v3825, 1.442695
  %v3833 = vpow.pop %v3832
  %v3834 = vsel %vm390, %v3827, 0.0
  %3835 = vadd.xlane.f32.xlu0 %v3834
  %v3836 = vpop.xlane.xlu0 %3835
  %v3837 = vsel %vm390, %v3829, 0.0
  %3838 = vadd.xlane.f32.xlu0 %v3837
  %v3839 = vpop.xlane.xlu0 %3838
  %v3840 = vsel %vm390, %v3831, 0.0
  %3841 = vadd.xlane.f32.xlu0 %v3840
  %v3842 = vpop.xlane.xlu0 %3841
  %v3843 = vsel %vm390, %v3833, 0.0
  %3844 = vadd.xlane.f32.xlu0 %v3843
  %v3845 = vpop.xlane.xlu0 %3844
  %v3846 = vrcp.pop %v3836
  %v3847 = vrcp.pop %v3839
  %v3848 = vrcp.pop %v3842
  %v3849 = vrcp.pop %v3845
  %v3850 = vmul.f32 %v3827, %v3846
  %v3851 = vmul.f32 %v3829, %v3847
  %v3852 = vmul.f32 %v3831, %v3848
  %v3853 = vmul.f32 %v3833, %v3849
  %v3854 = vpack.c.bf16 %v3851, %v3850
  %v3855 = vpack.c.bf16 %v3853, %v3852
  %v3856 = vpack.c.bf16 %v3486, %v3486
  %3858 = vrot.lane.b32.xlu0 %v3856, 64
  %v3859 = vpop.permute.xlu0 %3858
  %v3861 = vsel %vm390, %v3854, 0
  %v3864 = vsel %vm390, %v3855, 0
  %v3867 = vsel %vm447, %v3859, 0
  %3869 = vmatprep.subr.bf16.mxu0 0
  %3870 = vmatpush1.bf16.msra.mxu0 %v3867
  %3871 = vmatprep.subr.bf16.mxu0 0
  %3872 = vmatpush1.bf16.msra.mxu0 0
  %3873 = vmatprep.subr.bf16.mxu0 0
  %3874 = vmatpush1.bf16.msra.mxu0 0
  %3875 = vmatprep.subr.bf16.mxu0 0
  %3876 = vmatpush1.bf16.msra.mxu0 0
  %3877 = vmatprep.subr.bf16.mxu0 0
  %3878 = vmatpush1.bf16.msra.mxu0 0
  %3879 = vmatprep.subr.bf16.mxu0 0
  %3880 = vmatpush1.bf16.msra.mxu0 0
  %3881 = vmatprep.subr.bf16.mxu0 0
  %3882 = vmatpush1.bf16.msra.mxu0 0
  %3883 = vmatprep.subr.bf16.mxu0 0
  %3884 = vmatpush1.bf16.msra.mxu0 0
  %3885 = vmatprep.subr.bf16.mxu0 0
  %3886 = vmatpush1.bf16.msra.mxu0 0
  %3887 = vmatprep.subr.bf16.mxu0 0
  %3888 = vmatpush1.bf16.msra.mxu0 0
  %3889 = vmatprep.subr.bf16.mxu0 0
  %3890 = vmatpush1.bf16.msra.mxu0 0
  %3891 = vmatprep.subr.bf16.mxu0 0
  %3892 = vmatpush1.bf16.msra.mxu0 0
  %3893 = vmatprep.subr.bf16.mxu0 0
  %3894 = vmatpush1.bf16.msra.mxu0 0
  %3895 = vmatprep.subr.bf16.mxu0 0
  %3896 = vmatpush1.bf16.msra.mxu0 0
  %3897 = vmatprep.subr.bf16.mxu0 0
  %3898 = vmatpush1.bf16.msra.mxu0 0
  %3899 = vmatprep.subr.bf16.mxu0 0
  %3900 = vmatpush1.bf16.msra.mxu0 0
  %3901 = vmatprep.mubr.bf16.mxu0 0
  %3902 = vmatmul.mubr.bf16.gmra.mrb[0].mxu0 %v3861
  %v3903 = vpop.f32.mrb[0].mxu0
  %v3904 = vadd.f32 0.0, %v3903
  %v3905 = vpop.f32.mrb[0].mxu0
  %v3906 = vpop.f32.mrb[0].mxu0
  %v3907 = vadd.f32 0.0, %v3906
  %v3908 = vpop.f32.mrb[0].mxu0
  %3909 = vmatprep.mubr.bf16.mxu0 0
  %3910 = vmatmul.mubr.bf16.gmra.mrb[0].mxu0 %v3864
  %v3911 = vpop.f32.mrb[0].mxu0
  %v3912 = vadd.f32 0.0, %v3911
  %v3913 = vpop.f32.mrb[0].mxu0
  %v3914 = vpop.f32.mrb[0].mxu0
  %v3915 = vadd.f32 0.0, %v3914
  %v3916 = vpop.f32.mrb[0].mxu0
  %3917 = vdwg.mxu0
  %v3918 = vmul.f32 %v3904, %v267
  %v3919 = vmul.f32 %v3907, %v274
  %v3920 = vadd.f32 %v3918, %v3919
  %v3921 = vmul.f32 %v3912, %v281
  %v3922 = vadd.f32 %v3920, %v3921
  %v3923 = vmul.f32 %v3915, %v288
  %v3924 = vadd.f32 %v3922, %v3923
  %s3925 = scalar_lea.vmem %s43, 16
  %v3926 = vld [vmem:[%s3925] sm:$0xf]
  %v3927 = vld [vmem:[%s3925 + $0x4] sm:$0xf]
  %v3928 = vld [vmem:[%s3925 + $0x8] sm:$0xf]
  %v3929 = vld [vmem:[%s3925 + $0xc] sm:$0xf]
  %v3930 = vpack.c.bf16 %v3924, %v3706
  %s3931 = scalar_lea.vmem %s45, 1
  %v3932 = vld [vmem:[%s3931] sm:$0x1]
  %v3934 = vlaneseq
  %v3935 = vshrl.u32 %v3934, 7
  %v3936 = vsub.s32 0, %v3935
  %v3937 = vrot.slane %v3932, %v3936
  %v3943 = vunpack.c.l.b16 %v3926
  %v3944 = vunpack.c.l.b16 %v3927
  %v3945 = vunpack.c.l.b16 %v3928
  %v3946 = vunpack.c.l.b16 %v3929
  %v3947 = vpack.c.b16 %v3944, %v3943
  %v3948 = vpack.c.b16 %v3946, %v3945
  %v3952 = vsel %vm218, %v3930, 0
  %3954 = vmatprep.subr.bf16.mxu0 0
  %3955 = vmatpush1.bf16.msra.mxu0 %v3947
  %3956 = vmatprep.subr.bf16.mxu0 0
  %3957 = vmatpush1.bf16.msra.mxu0 %v3948
  %3958 = vmatprep.subr.bf16.mxu0 0
  %3959 = vmatpush1.bf16.msra.mxu0 0
  %3960 = vmatprep.subr.bf16.mxu0 0
  %3961 = vmatpush1.bf16.msra.mxu0 0
  %3962 = vmatprep.subr.bf16.mxu0 0
  %3963 = vmatpush1.bf16.msra.mxu0 0
  %3964 = vmatprep.subr.bf16.mxu0 0
  %3965 = vmatpush1.bf16.msra.mxu0 0
  %3966 = vmatprep.subr.bf16.mxu0 0
  %3967 = vmatpush1.bf16.msra.mxu0 0
  %3968 = vmatprep.subr.bf16.mxu0 0
  %3969 = vmatpush1.bf16.msra.mxu0 0
  %3970 = vmatprep.subr.bf16.mxu0 0
  %3971 = vmatpush1.bf16.msra.mxu0 0
  %3972 = vmatprep.subr.bf16.mxu0 0
  %3973 = vmatpush1.bf16.msra.mxu0 0
  %3974 = vmatprep.subr.bf16.mxu0 0
  %3975 = vmatpush1.bf16.msra.mxu0 0
  %3976 = vmatprep.subr.bf16.mxu0 0
  %3977 = vmatpush1.bf16.msra.mxu0 0
  %3978 = vmatprep.subr.bf16.mxu0 0
  %3979 = vmatpush1.bf16.msra.mxu0 0
  %3980 = vmatprep.subr.bf16.mxu0 0
  %3981 = vmatpush1.bf16.msra.mxu0 0
  %3982 = vmatprep.subr.bf16.mxu0 0
  %3983 = vmatpush1.bf16.msra.mxu0 0
  %3984 = vmatprep.subr.bf16.mxu0 0
  %3985 = vmatpush1.bf16.msra.mxu0 0
  %3986 = vmatprep.mubr.bf16.mxu0 0
  %3987 = vmatmul.mubr.bf16.gmra.mrb[0].mxu0 %v3952
  %v3988 = vpop.f32.mrb[0].mxu0
  %v3989 = vadd.f32 %v3937, %v3988
  %v3990 = vpop.f32.mrb[0].mxu0
  %v3991 = vpop.f32.mrb[0].mxu0
  %v3992 = vadd.f32 %v3937, %v3991
  %v3993 = vpop.f32.mrb[0].mxu0
  %3994 = vdwg.mxu0
  %v3995 = vadd.f32 %v3417, %v3989
  %v3996 = vadd.f32 %v3418, %v3992
  %s3997 = scalar_lea.vmem %s47, 1
  %v3998 = vld [vmem:[%s3997] sm:$0x1]
  %s3999 = scalar_lea.vmem %s49, 1
  %v4000 = vld [vmem:[%s3999] sm:$0x1]
  %v4001 = vsel %vm218, %v3995, 0.0
  %4002 = vadd.xlane.f32.xlu0 %v4001
  %v4003 = vpop.xlane.xlu0 %4002
  %v4004 = vsel %vm218, %v3996, 0.0
  %4005 = vadd.xlane.f32.xlu0 %v4004
  %v4006 = vpop.xlane.xlu0 %4005
  %v4007 = vmul.f32 %v4003, %v803
  %v4008 = vmul.f32 %v4006, %v803
  %v4009 = vsub.f32 %v3995, %v4007
  %v4010 = vsub.f32 %v3996, %v4008
  %v4011 = vmul.f32 %v4009, %v4009
  %v4012 = vmul.f32 %v4010, %v4010
  %v4013 = vsel %vm218, %v4011, 0.0
  %4014 = vadd.xlane.f32.xlu0 %v4013
  %v4015 = vpop.xlane.xlu0 %4014
  %v4016 = vsel %vm218, %v4012, 0.0
  %4017 = vadd.xlane.f32.xlu0 %v4016
  %v4018 = vpop.xlane.xlu0 %4017
  %v4019 = vmul.f32 %v4015, %v803
  %v4020 = vmul.f32 %v4018, %v803
  %v4021 = vadd.f32 %v4019, 1e-05
  %v4022 = vadd.f32 %v4020, 1e-05
  %v4023 = vrsqrt.pop %v4021
  %v4024 = vrsqrt.pop %v4022
  %v4025 = vmul.f32 %v4009, %v4023
  %v4026 = vmul.f32 %v4010, %v4024
  %v4028 = vlaneseq
  %v4029 = vshrl.u32 %v4028, 7
  %v4030 = vsub.s32 0, %v4029
  %v4031 = vrot.slane %v3998, %v4030
  %v4033 = vmul.f32 %v4025, %v4031
  %v4034 = vmul.f32 %v4026, %v4031
  %v4036 = vlaneseq
  %v4037 = vshrl.u32 %v4036, 7
  %v4038 = vsub.s32 0, %v4037
  %v4039 = vrot.slane %v4000, %v4038
  %v4041 = vadd.f32 %v4033, %v4039
  %v4042 = vadd.f32 %v4034, %v4039
  %s4043 = scalar_lea.vmem %s51, 16
  %v4044 = vld [vmem:[%s4043] sm:$0xf]
  %v4045 = vld [vmem:[%s4043 + $0x4] sm:$0xf]
  %v4046 = vld [vmem:[%s4043 + $0x8] sm:$0xf]
  %v4047 = vld [vmem:[%s4043 + $0xc] sm:$0xf]
  %v4048 = vpack.c.bf16 %v4042, %v4041
  %s4049 = scalar_lea.vmem %s53, 1
  %v4050 = vld [vmem:[%s4049] sm:$0x1]
  %v4052 = vlaneseq
  %v4053 = vshrl.u32 %v4052, 7
  %v4054 = vsub.s32 0, %v4053
  %v4055 = vrot.slane %v4050, %v4054
  %v4061 = vunpack.c.l.b16 %v4044
  %v4062 = vunpack.c.l.b16 %v4045
  %v4063 = vunpack.c.l.b16 %v4046
  %v4064 = vunpack.c.l.b16 %v4047
  %v4065 = vpack.c.b16 %v4062, %v4061
  %v4066 = vpack.c.b16 %v4064, %v4063
  %v4070 = vsel %vm218, %v4048, 0
  %4072 = vmatprep.subr.bf16.mxu0 0
  %4073 = vmatpush1.bf16.msra.mxu0 %v4065
  %4074 = vmatprep.subr.bf16.mxu0 0
  %4075 = vmatpush1.bf16.msra.mxu0 %v4066
  %4076 = vmatprep.subr.bf16.mxu0 0
  %4077 = vmatpush1.bf16.msra.mxu0 0
  %4078 = vmatprep.subr.bf16.mxu0 0
  %4079 = vmatpush1.bf16.msra.mxu0 0
  %4080 = vmatprep.subr.bf16.mxu0 0
  %4081 = vmatpush1.bf16.msra.mxu0 0
  %4082 = vmatprep.subr.bf16.mxu0 0
  %4083 = vmatpush1.bf16.msra.mxu0 0
  %4084 = vmatprep.subr.bf16.mxu0 0
  %4085 = vmatpush1.bf16.msra.mxu0 0
  %4086 = vmatprep.subr.bf16.mxu0 0
  %4087 = vmatpush1.bf16.msra.mxu0 0
  %4088 = vmatprep.subr.bf16.mxu0 0
  %4089 = vmatpush1.bf16.msra.mxu0 0
  %4090 = vmatprep.subr.bf16.mxu0 0
  %4091 = vmatpush1.bf16.msra.mxu0 0
  %4092 = vmatprep.subr.bf16.mxu0 0
  %4093 = vmatpush1.bf16.msra.mxu0 0
  %4094 = vmatprep.subr.bf16.mxu0 0
  %4095 = vmatpush1.bf16.msra.mxu0 0
  %4096 = vmatprep.subr.bf16.mxu0 0
  %4097 = vmatpush1.bf16.msra.mxu0 0
  %4098 = vmatprep.subr.bf16.mxu0 0
  %4099 = vmatpush1.bf16.msra.mxu0 0
  %4100 = vmatprep.subr.bf16.mxu0 0
  %4101 = vmatpush1.bf16.msra.mxu0 0
  %4102 = vmatprep.subr.bf16.mxu0 0
  %4103 = vmatpush1.bf16.msra.mxu0 0
  %4104 = vmatprep.mubr.bf16.mxu0 0
  %4105 = vmatmul.mubr.bf16.gmra.mrb[0].mxu0 %v4070
  %v4106 = vpop.f32.mrb[0].mxu0
  %v4107 = vadd.f32 %v4055, %v4106
  %v4108 = vpop.f32.mrb[0].mxu0
  %v4109 = vpop.f32.mrb[0].mxu0
  %v4110 = vadd.f32 %v4055, %v4109
  %v4111 = vpop.f32.mrb[0].mxu0
  %4112 = vdwg.mxu0
  %s4113 = scalar_lea.vmem %s55, 16
  %v4114 = vld [vmem:[%s4113] sm:$0xf]
  %v4115 = vld [vmem:[%s4113 + $0x4] sm:$0xf]
  %v4116 = vld [vmem:[%s4113 + $0x8] sm:$0xf]
  %v4117 = vld [vmem:[%s4113 + $0xc] sm:$0xf]
  %s4118 = scalar_lea.vmem %s57, 1
  %v4119 = vld [vmem:[%s4118] sm:$0x1]
  %v4121 = vlaneseq
  %v4122 = vshrl.u32 %v4121, 7
  %v4123 = vsub.s32 0, %v4122
  %v4124 = vrot.slane %v4119, %v4123
  %v4130 = vunpack.c.l.b16 %v4114
  %v4131 = vunpack.c.l.b16 %v4115
  %v4132 = vunpack.c.l.b16 %v4116
  %v4133 = vunpack.c.l.b16 %v4117
  %v4134 = vpack.c.b16 %v4131, %v4130
  %v4135 = vpack.c.b16 %v4133, %v4132
  %4138 = vmatprep.subr.bf16.mxu0 0
  %4139 = vmatpush1.bf16.msra.mxu0 %v4134
  %4140 = vmatprep.subr.bf16.mxu0 0
  %4141 = vmatpush1.bf16.msra.mxu0 %v4135
  %4142 = vmatprep.subr.bf16.mxu0 0
  %4143 = vmatpush1.bf16.msra.mxu0 0
  %4144 = vmatprep.subr.bf16.mxu0 0
  %4145 = vmatpush1.bf16.msra.mxu0 0
  %4146 = vmatprep.subr.bf16.mxu0 0
  %4147 = vmatpush1.bf16.msra.mxu0 0
  %4148 = vmatprep.subr.bf16.mxu0 0
  %4149 = vmatpush1.bf16.msra.mxu0 0
  %4150 = vmatprep.subr.bf16.mxu0 0
  %4151 = vmatpush1.bf16.msra.mxu0 0
  %4152 = vmatprep.subr.bf16.mxu0 0
  %4153 = vmatpush1.bf16.msra.mxu0 0
  %4154 = vmatprep.subr.bf16.mxu0 0
  %4155 = vmatpush1.bf16.msra.mxu0 0
  %4156 = vmatprep.subr.bf16.mxu0 0
  %4157 = vmatpush1.bf16.msra.mxu0 0
  %4158 = vmatprep.subr.bf16.mxu0 0
  %4159 = vmatpush1.bf16.msra.mxu0 0
  %4160 = vmatprep.subr.bf16.mxu0 0
  %4161 = vmatpush1.bf16.msra.mxu0 0
  %4162 = vmatprep.subr.bf16.mxu0 0
  %4163 = vmatpush1.bf16.msra.mxu0 0
  %4164 = vmatprep.subr.bf16.mxu0 0
  %4165 = vmatpush1.bf16.msra.mxu0 0
  %4166 = vmatprep.subr.bf16.mxu0 0
  %4167 = vmatpush1.bf16.msra.mxu0 0
  %4168 = vmatprep.subr.bf16.mxu0 0
  %4169 = vmatpush1.bf16.msra.mxu0 0
  %4170 = vmatprep.mubr.bf16.mxu0 0
  %4171 = vmatmul.mubr.bf16.gmra.mrb[0].mxu0 %v2634
  %v4172 = vpop.f32.mrb[0].mxu0
  %v4173 = vadd.f32 %v4124, %v4172
  %v4174 = vpop.f32.mrb[0].mxu0
  %v4175 = vpop.f32.mrb[0].mxu0
  %v4176 = vadd.f32 %v4124, %v4175
  %v4177 = vpop.f32.mrb[0].mxu0
  %4178 = vdwg.mxu0
  %v4179 = vmul.f32 %v4107, %v267
  %v4180 = vmul.f32 %v4107, %v274
  %v4181 = vmul.f32 %v4107, %v281
  %v4182 = vmul.f32 %v4107, %v288
  %4183 = vxpose.xlu0.b32.start [1/16] %v4173, 128
  %4184 = vxpose.xlu0.b32.cont [2/16] 0.0, 128
  %4185 = vxpose.xlu0.b32.cont [3/16] 0.0, 128
  %4186 = vxpose.xlu0.b32.cont [4/16] 0.0, 128
  %4187 = vxpose.xlu0.b32.cont [5/16] 0.0, 128
  %4188 = vxpose.xlu0.b32.cont [6/16] 0.0, 128
  %4189 = vxpose.xlu0.b32.cont [7/16] 0.0, 128
  %4190 = vxpose.xlu0.b32.cont [8/16] 0.0, 128
  %4191 = vxpose.xlu0.b32.cont [9/16] 0.0, 128
  %4192 = vxpose.xlu0.b32.cont [10/16] 0.0, 128
  %4193 = vxpose.xlu0.b32.cont [11/16] 0.0, 128
  %4194 = vxpose.xlu0.b32.cont [12/16] 0.0, 128
  %4195 = vxpose.xlu0.b32.cont [13/16] 0.0, 128
  %4196 = vxpose.xlu0.b32.cont [14/16] 0.0, 128
  %4197 = vxpose.xlu0.b32.cont [15/16] 0.0, 128
  %4198 = vxpose.xlu0.b32.end [16/16] 0.0, 128
  %v4199 = vpop.trf.xlu0
  %v4200 = vpop.trf.xlu0
  %v4201 = vpop.trf.xlu0
  %v4202 = vpop.trf.xlu0
  %v4203 = vpop.trf.xlu0
  %v4204 = vpop.trf.xlu0
  %v4205 = vpop.trf.xlu0
  %v4206 = vpop.trf.xlu0
  %v4207 = vpop.trf.xlu0
  %v4208 = vpop.trf.xlu0
  %v4209 = vpop.trf.xlu0
  %v4210 = vpop.trf.xlu0
  %v4211 = vpop.trf.xlu0
  %v4212 = vpop.trf.xlu0
  %v4213 = vpop.trf.xlu0
  %v4214 = vpop.trf.xlu0
  %v4215 = vpack.c.bf16 %v4180, %v4179
  %v4216 = vpack.c.bf16 %v4182, %v4181
  %v4217 = vpack.c.bf16 %v4200, %v4199
  %v4218 = vpack.c.bf16 %v4202, %v4201
  %v4220 = vsel %vm218, %v4215, 0
  %v4223 = vsel %vm218, %v4216, 0
  %4225 = vmatprep.subr.bf16.mxu0 0
  %4226 = vmatpush1.bf16.msra.mxu0 %v4217
  %4227 = vmatprep.subr.bf16.mxu0 0
  %4228 = vmatpush1.bf16.msra.mxu0 %v4218
  %4229 = vmatprep.subr.bf16.mxu0 0
  %4230 = vmatpush1.bf16.msra.mxu0 0
  %4231 = vmatprep.subr.bf16.mxu0 0
  %4232 = vmatpush1.bf16.msra.mxu0 0
  %4233 = vmatprep.subr.bf16.mxu0 0
  %4234 = vmatpush1.bf16.msra.mxu0 0
  %4235 = vmatprep.subr.bf16.mxu0 0
  %4236 = vmatpush1.bf16.msra.mxu0 0
  %4237 = vmatprep.subr.bf16.mxu0 0
  %4238 = vmatpush1.bf16.msra.mxu0 0
  %4239 = vmatprep.subr.bf16.mxu0 0
  %4240 = vmatpush1.bf16.msra.mxu0 0
  %4241 = vmatprep.subr.bf16.mxu0 0
  %4242 = vmatpush1.bf16.msra.mxu0 0
  %4243 = vmatprep.subr.bf16.mxu0 0
  %4244 = vmatpush1.bf16.msra.mxu0 0
  %4245 = vmatprep.subr.bf16.mxu0 0
  %4246 = vmatpush1.bf16.msra.mxu0 0
  %4247 = vmatprep.subr.bf16.mxu0 0
  %4248 = vmatpush1.bf16.msra.mxu0 0
  %4249 = vmatprep.subr.bf16.mxu0 0
  %4250 = vmatpush1.bf16.msra.mxu0 0
  %4251 = vmatprep.subr.bf16.mxu0 0
  %4252 = vmatpush1.bf16.msra.mxu0 0
  %4253 = vmatprep.subr.bf16.mxu0 0
  %4254 = vmatpush1.bf16.msra.mxu0 0
  %4255 = vmatprep.subr.bf16.mxu0 0
  %4256 = vmatpush1.bf16.msra.mxu0 0
  %4257 = vmatprep.mubr.bf16.mxu0 0
  %4258 = vmatmul.mubr.bf16.gmra.mrb[0].mxu0 %v4220
  %v4259 = vpop.f32.mrb[0].mxu0
  %v4260 = vadd.f32 0.0, %v4259
  %v4261 = vpop.f32.mrb[0].mxu0
  %v4262 = vpop.f32.mrb[0].mxu0
  %v4263 = vadd.f32 0.0, %v4262
  %v4264 = vpop.f32.mrb[0].mxu0
  %4265 = vmatprep.mubr.bf16.mxu0 0
  %4266 = vmatmul.mubr.bf16.gmra.mrb[0].mxu0 %v4223
  %v4267 = vpop.f32.mrb[0].mxu0
  %v4268 = vadd.f32 0.0, %v4267
  %v4269 = vpop.f32.mrb[0].mxu0
  %v4270 = vpop.f32.mrb[0].mxu0
  %v4271 = vadd.f32 0.0, %v4270
  %v4272 = vpop.f32.mrb[0].mxu0
  %4273 = vdwg.mxu0
  %v4274 = vmul.f32 %v4260, 0.35355338
  %v4275 = vmul.f32 %v4263, 0.35355338
  %v4276 = vmul.f32 %v4268, 0.35355338
  %v4277 = vmul.f32 %v4271, 0.35355338
  %v4278 = vsel %vm390, %v4274, -inf
  %4279 = vmax.xlane.f32.xlu0 %v4278
  %v4280 = vpop.xlane.xlu0 %4279
  %v4281 = vsel %vm390, %v4275, -inf
  %4282 = vmax.xlane.f32.xlu0 %v4281
  %v4283 = vpop.xlane.xlu0 %4282
  %v4284 = vsel %vm390, %v4276, -inf
  %4285 = vmax.xlane.f32.xlu0 %v4284
  %v4286 = vpop.xlane.xlu0 %4285
  %v4287 = vsel %vm390, %v4277, -inf
  %4288 = vmax.xlane.f32.xlu0 %v4287
  %v4289 = vpop.xlane.xlu0 %4288
  %v4290 = vsub.f32 %v4274, %v4280
  %v4291 = vsub.f32 %v4275, %v4283
  %v4292 = vsub.f32 %v4276, %v4286
  %v4293 = vsub.f32 %v4277, %v4289
  %v4294 = vmul.f32 %v4290, 1.442695
  %v4295 = vpow.pop %v4294
  %v4296 = vmul.f32 %v4291, 1.442695
  %v4297 = vpow.pop %v4296
  %v4298 = vmul.f32 %v4292, 1.442695
  %v4299 = vpow.pop %v4298
  %v4300 = vmul.f32 %v4293, 1.442695
  %v4301 = vpow.pop %v4300
  %v4302 = vsel %vm390, %v4295, 0.0
  %4303 = vadd.xlane.f32.xlu0 %v4302
  %v4304 = vpop.xlane.xlu0 %4303
  %v4305 = vsel %vm390, %v4297, 0.0
  %4306 = vadd.xlane.f32.xlu0 %v4305
  %v4307 = vpop.xlane.xlu0 %4306
  %v4308 = vsel %vm390, %v4299, 0.0
  %4309 = vadd.xlane.f32.xlu0 %v4308
  %v4310 = vpop.xlane.xlu0 %4309
  %v4311 = vsel %vm390, %v4301, 0.0
  %4312 = vadd.xlane.f32.xlu0 %v4311
  %v4313 = vpop.xlane.xlu0 %4312
  %v4314 = vrcp.pop %v4304
  %v4315 = vrcp.pop %v4307
  %v4316 = vrcp.pop %v4310
  %v4317 = vrcp.pop %v4313
  %v4318 = vmul.f32 %v4295, %v4314
  %v4319 = vmul.f32 %v4297, %v4315
  %v4320 = vmul.f32 %v4299, %v4316
  %v4321 = vmul.f32 %v4301, %v4317
  %v4322 = vpack.c.bf16 %v4319, %v4318
  %v4323 = vpack.c.bf16 %v4321, %v4320
  %v4324 = vpack.c.bf16 %v4173, %v4173
  %4326 = vrot.lane.b32.xlu0 %v4324, 96
  %v4327 = vpop.permute.xlu0 %4326
  %v4329 = vsel %vm390, %v4322, 0
  %v4332 = vsel %vm390, %v4323, 0
  %v4335 = vsel %vm447, %v4327, 0
  %4337 = vmatprep.subr.bf16.mxu0 0
  %4338 = vmatpush1.bf16.msra.mxu0 %v4335
  %4339 = vmatprep.subr.bf16.mxu0 0
  %4340 = vmatpush1.bf16.msra.mxu0 0
  %4341 = vmatprep.subr.bf16.mxu0 0
  %4342 = vmatpush1.bf16.msra.mxu0 0
  %4343 = vmatprep.subr.bf16.mxu0 0
  %4344 = vmatpush1.bf16.msra.mxu0 0
  %4345 = vmatprep.subr.bf16.mxu0 0
  %4346 = vmatpush1.bf16.msra.mxu0 0
  %4347 = vmatprep.subr.bf16.mxu0 0
  %4348 = vmatpush1.bf16.msra.mxu0 0
  %4349 = vmatprep.subr.bf16.mxu0 0
  %4350 = vmatpush1.bf16.msra.mxu0 0
  %4351 = vmatprep.subr.bf16.mxu0 0
  %4352 = vmatpush1.bf16.msra.mxu0 0
  %4353 = vmatprep.subr.bf16.mxu0 0
  %4354 = vmatpush1.bf16.msra.mxu0 0
  %4355 = vmatprep.subr.bf16.mxu0 0
  %4356 = vmatpush1.bf16.msra.mxu0 0
  %4357 = vmatprep.subr.bf16.mxu0 0
  %4358 = vmatpush1.bf16.msra.mxu0 0
  %4359 = vmatprep.subr.bf16.mxu0 0
  %4360 = vmatpush1.bf16.msra.mxu0 0
  %4361 = vmatprep.subr.bf16.mxu0 0
  %4362 = vmatpush1.bf16.msra.mxu0 0
  %4363 = vmatprep.subr.bf16.mxu0 0
  %4364 = vmatpush1.bf16.msra.mxu0 0
  %4365 = vmatprep.subr.bf16.mxu0 0
  %4366 = vmatpush1.bf16.msra.mxu0 0
  %4367 = vmatprep.subr.bf16.mxu0 0
  %4368 = vmatpush1.bf16.msra.mxu0 0
  %4369 = vmatprep.mubr.bf16.mxu0 0
  %4370 = vmatmul.mubr.bf16.gmra.mrb[0].mxu0 %v4329
  %v4371 = vpop.f32.mrb[0].mxu0
  %v4372 = vadd.f32 0.0, %v4371
  %v4373 = vpop.f32.mrb[0].mxu0
  %v4374 = vpop.f32.mrb[0].mxu0
  %v4375 = vadd.f32 0.0, %v4374
  %v4376 = vpop.f32.mrb[0].mxu0
  %4377 = vmatprep.mubr.bf16.mxu0 0
  %4378 = vmatmul.mubr.bf16.gmra.mrb[0].mxu0 %v4332
  %v4379 = vpop.f32.mrb[0].mxu0
  %v4380 = vadd.f32 0.0, %v4379
  %v4381 = vpop.f32.mrb[0].mxu0
  %v4382 = vpop.f32.mrb[0].mxu0
  %v4383 = vadd.f32 0.0, %v4382
  %v4384 = vpop.f32.mrb[0].mxu0
  %4385 = vdwg.mxu0
  %v4386 = vmul.f32 %v4372, %v267
  %v4387 = vmul.f32 %v4375, %v274
  %v4388 = vadd.f32 %v4386, %v4387
  %v4389 = vmul.f32 %v4380, %v281
  %v4390 = vadd.f32 %v4388, %v4389
  %v4391 = vmul.f32 %v4383, %v288
  %v4392 = vadd.f32 %v4390, %v4391
  %v4393 = vmul.f32 %v4110, %v267
  %v4394 = vmul.f32 %v4110, %v274
  %v4395 = vmul.f32 %v4110, %v281
  %v4396 = vmul.f32 %v4110, %v288
  %4397 = vxpose.xlu0.b32.start [1/16] %v4176, 128
  %4398 = vxpose.xlu0.b32.cont [2/16] 0.0, 128
  %4399 = vxpose.xlu0.b32.cont [3/16] 0.0, 128
  %4400 = vxpose.xlu0.b32.cont [4/16] 0.0, 128
  %4401 = vxpose.xlu0.b32.cont [5/16] 0.0, 128
  %4402 = vxpose.xlu0.b32.cont [6/16] 0.0, 128
  %4403 = vxpose.xlu0.b32.cont [7/16] 0.0, 128
  %4404 = vxpose.xlu0.b32.cont [8/16] 0.0, 128
  %4405 = vxpose.xlu0.b32.cont [9/16] 0.0, 128
  %4406 = vxpose.xlu0.b32.cont [10/16] 0.0, 128
  %4407 = vxpose.xlu0.b32.cont [11/16] 0.0, 128
  %4408 = vxpose.xlu0.b32.cont [12/16] 0.0, 128
  %4409 = vxpose.xlu0.b32.cont [13/16] 0.0, 128
  %4410 = vxpose.xlu0.b32.cont [14/16] 0.0, 128
  %4411 = vxpose.xlu0.b32.cont [15/16] 0.0, 128
  %4412 = vxpose.xlu0.b32.end [16/16] 0.0, 128
  %v4413 = vpop.trf.xlu0
  %v4414 = vpop.trf.xlu0
  %v4415 = vpop.trf.xlu0
  %v4416 = vpop.trf.xlu0
  %v4417 = vpop.trf.xlu0
  %v4418 = vpop.trf.xlu0
  %v4419 = vpop.trf.xlu0
  %v4420 = vpop.trf.xlu0
  %v4421 = vpop.trf.xlu0
  %v4422 = vpop.trf.xlu0
  %v4423 = vpop.trf.xlu0
  %v4424 = vpop.trf.xlu0
  %v4425 = vpop.trf.xlu0
  %v4426 = vpop.trf.xlu0
  %v4427 = vpop.trf.xlu0
  %v4428 = vpop.trf.xlu0
  %v4429 = vpack.c.bf16 %v4394, %v4393
  %v4430 = vpack.c.bf16 %v4396, %v4395
  %v4431 = vpack.c.bf16 %v4414, %v4413
  %v4432 = vpack.c.bf16 %v4416, %v4415
  %v4434 = vsel %vm218, %v4429, 0
  %v4437 = vsel %vm218, %v4430, 0
  %4439 = vmatprep.subr.bf16.mxu0 0
  %4440 = vmatpush1.bf16.msra.mxu0 %v4431
  %4441 = vmatprep.subr.bf16.mxu0 0
  %4442 = vmatpush1.bf16.msra.mxu0 %v4432
  %4443 = vmatprep.subr.bf16.mxu0 0
  %4444 = vmatpush1.bf16.msra.mxu0 0
  %4445 = vmatprep.subr.bf16.mxu0 0
  %4446 = vmatpush1.bf16.msra.mxu0 0
  %4447 = vmatprep.subr.bf16.mxu0 0
  %4448 = vmatpush1.bf16.msra.mxu0 0
  %4449 = vmatprep.subr.bf16.mxu0 0
  %4450 = vmatpush1.bf16.msra.mxu0 0
  %4451 = vmatprep.subr.bf16.mxu0 0
  %4452 = vmatpush1.bf16.msra.mxu0 0
  %4453 = vmatprep.subr.bf16.mxu0 0
  %4454 = vmatpush1.bf16.msra.mxu0 0
  %4455 = vmatprep.subr.bf16.mxu0 0
  %4456 = vmatpush1.bf16.msra.mxu0 0
  %4457 = vmatprep.subr.bf16.mxu0 0
  %4458 = vmatpush1.bf16.msra.mxu0 0
  %4459 = vmatprep.subr.bf16.mxu0 0
  %4460 = vmatpush1.bf16.msra.mxu0 0
  %4461 = vmatprep.subr.bf16.mxu0 0
  %4462 = vmatpush1.bf16.msra.mxu0 0
  %4463 = vmatprep.subr.bf16.mxu0 0
  %4464 = vmatpush1.bf16.msra.mxu0 0
  %4465 = vmatprep.subr.bf16.mxu0 0
  %4466 = vmatpush1.bf16.msra.mxu0 0
  %4467 = vmatprep.subr.bf16.mxu0 0
  %4468 = vmatpush1.bf16.msra.mxu0 0
  %4469 = vmatprep.subr.bf16.mxu0 0
  %4470 = vmatpush1.bf16.msra.mxu0 0
  %4471 = vmatprep.mubr.bf16.mxu0 0
  %4472 = vmatmul.mubr.bf16.gmra.mrb[0].mxu0 %v4434
  %v4473 = vpop.f32.mrb[0].mxu0
  %v4474 = vadd.f32 0.0, %v4473
  %v4475 = vpop.f32.mrb[0].mxu0
  %v4476 = vpop.f32.mrb[0].mxu0
  %v4477 = vadd.f32 0.0, %v4476
  %v4478 = vpop.f32.mrb[0].mxu0
  %4479 = vmatprep.mubr.bf16.mxu0 0
  %4480 = vmatmul.mubr.bf16.gmra.mrb[0].mxu0 %v4437
  %v4481 = vpop.f32.mrb[0].mxu0
  %v4482 = vadd.f32 0.0, %v4481
  %v4483 = vpop.f32.mrb[0].mxu0
  %v4484 = vpop.f32.mrb[0].mxu0
  %v4485 = vadd.f32 0.0, %v4484
  %v4486 = vpop.f32.mrb[0].mxu0
  %4487 = vdwg.mxu0
  %v4488 = vmul.f32 %v4474, 0.35355338
  %v4489 = vmul.f32 %v4477, 0.35355338
  %v4490 = vmul.f32 %v4482, 0.35355338
  %v4491 = vmul.f32 %v4485, 0.35355338
  %v4492 = vsel %vm390, %v4488, -inf
  %4493 = vmax.xlane.f32.xlu0 %v4492
  %v4494 = vpop.xlane.xlu0 %4493
  %v4495 = vsel %vm390, %v4489, -inf
  %4496 = vmax.xlane.f32.xlu0 %v4495
  %v4497 = vpop.xlane.xlu0 %4496
  %v4498 = vsel %vm390, %v4490, -inf
  %4499 = vmax.xlane.f32.xlu0 %v4498
  %v4500 = vpop.xlane.xlu0 %4499
  %v4501 = vsel %vm390, %v4491, -inf
  %4502 = vmax.xlane.f32.xlu0 %v4501
  %v4503 = vpop.xlane.xlu0 %4502
  %v4504 = vsub.f32 %v4488, %v4494
  %v4505 = vsub.f32 %v4489, %v4497
  %v4506 = vsub.f32 %v4490, %v4500
  %v4507 = vsub.f32 %v4491, %v4503
  %v4508 = vmul.f32 %v4504, 1.442695
  %v4509 = vpow.pop %v4508
  %v4510 = vmul.f32 %v4505, 1.442695
  %v4511 = vpow.pop %v4510
  %v4512 = vmul.f32 %v4506, 1.442695
  %v4513 = vpow.pop %v4512
  %v4514 = vmul.f32 %v4507, 1.442695
  %v4515 = vpow.pop %v4514
  %v4516 = vsel %vm390, %v4509, 0.0
  %4517 = vadd.xlane.f32.xlu0 %v4516
  %v4518 = vpop.xlane.xlu0 %4517
  %v4519 = vsel %vm390, %v4511, 0.0
  %4520 = vadd.xlane.f32.xlu0 %v4519
  %v4521 = vpop.xlane.xlu0 %4520
  %v4522 = vsel %vm390, %v4513, 0.0
  %4523 = vadd.xlane.f32.xlu0 %v4522
  %v4524 = vpop.xlane.xlu0 %4523
  %v4525 = vsel %vm390, %v4515, 0.0
  %4526 = vadd.xlane.f32.xlu0 %v4525
  %v4527 = vpop.xlane.xlu0 %4526
  %v4528 = vrcp.pop %v4518
  %v4529 = vrcp.pop %v4521
  %v4530 = vrcp.pop %v4524
  %v4531 = vrcp.pop %v4527
  %v4532 = vmul.f32 %v4509, %v4528
  %v4533 = vmul.f32 %v4511, %v4529
  %v4534 = vmul.f32 %v4513, %v4530
  %v4535 = vmul.f32 %v4515, %v4531
  %v4536 = vpack.c.bf16 %v4533, %v4532
  %v4537 = vpack.c.bf16 %v4535, %v4534
  %v4538 = vpack.c.bf16 %v4176, %v4176
  %4540 = vrot.lane.b32.xlu0 %v4538, 96
  %v4541 = vpop.permute.xlu0 %4540
  %v4543 = vsel %vm390, %v4536, 0
  %v4546 = vsel %vm390, %v4537, 0
  %v4549 = vsel %vm447, %v4541, 0
  %4551 = vmatprep.subr.bf16.mxu0 0
  %4552 = vmatpush1.bf16.msra.mxu0 %v4549
  %4553 = vmatprep.subr.bf16.mxu0 0
  %4554 = vmatpush1.bf16.msra.mxu0 0
  %4555 = vmatprep.subr.bf16.mxu0 0
  %4556 = vmatpush1.bf16.msra.mxu0 0
  %4557 = vmatprep.subr.bf16.mxu0 0
  %4558 = vmatpush1.bf16.msra.mxu0 0
  %4559 = vmatprep.subr.bf16.mxu0 0
  %4560 = vmatpush1.bf16.msra.mxu0 0
  %4561 = vmatprep.subr.bf16.mxu0 0
  %4562 = vmatpush1.bf16.msra.mxu0 0
  %4563 = vmatprep.subr.bf16.mxu0 0
  %4564 = vmatpush1.bf16.msra.mxu0 0
  %4565 = vmatprep.subr.bf16.mxu0 0
  %4566 = vmatpush1.bf16.msra.mxu0 0
  %4567 = vmatprep.subr.bf16.mxu0 0
  %4568 = vmatpush1.bf16.msra.mxu0 0
  %4569 = vmatprep.subr.bf16.mxu0 0
  %4570 = vmatpush1.bf16.msra.mxu0 0
  %4571 = vmatprep.subr.bf16.mxu0 0
  %4572 = vmatpush1.bf16.msra.mxu0 0
  %4573 = vmatprep.subr.bf16.mxu0 0
  %4574 = vmatpush1.bf16.msra.mxu0 0
  %4575 = vmatprep.subr.bf16.mxu0 0
  %4576 = vmatpush1.bf16.msra.mxu0 0
  %4577 = vmatprep.subr.bf16.mxu0 0
  %4578 = vmatpush1.bf16.msra.mxu0 0
  %4579 = vmatprep.subr.bf16.mxu0 0
  %4580 = vmatpush1.bf16.msra.mxu0 0
  %4581 = vmatprep.subr.bf16.mxu0 0
  %4582 = vmatpush1.bf16.msra.mxu0 0
  %4583 = vmatprep.mubr.bf16.mxu0 0
  %4584 = vmatmul.mubr.bf16.gmra.mrb[0].mxu0 %v4543
  %v4585 = vpop.f32.mrb[0].mxu0
  %v4586 = vadd.f32 0.0, %v4585
  %v4587 = vpop.f32.mrb[0].mxu0
  %v4588 = vpop.f32.mrb[0].mxu0
  %v4589 = vadd.f32 0.0, %v4588
  %v4590 = vpop.f32.mrb[0].mxu0
  %4591 = vmatprep.mubr.bf16.mxu0 0
  %4592 = vmatmul.mubr.bf16.gmra.mrb[0].mxu0 %v4546
  %v4593 = vpop.f32.mrb[0].mxu0
  %v4594 = vadd.f32 0.0, %v4593
  %v4595 = vpop.f32.mrb[0].mxu0
  %v4596 = vpop.f32.mrb[0].mxu0
  %v4597 = vadd.f32 0.0, %v4596
  %v4598 = vpop.f32.mrb[0].mxu0
  %4599 = vdwg.mxu0
  %v4600 = vmul.f32 %v4586, %v267
  %v4601 = vmul.f32 %v4589, %v274
  %v4602 = vadd.f32 %v4600, %v4601
  %v4603 = vmul.f32 %v4594, %v281
  %v4604 = vadd.f32 %v4602, %v4603
  %v4605 = vmul.f32 %v4597, %v288
  %v4606 = vadd.f32 %v4604, %v4605
  %s4607 = scalar_lea.vmem %s59, 16
  %v4608 = vld [vmem:[%s4607] sm:$0xf]
  %v4609 = vld [vmem:[%s4607 + $0x4] sm:$0xf]
  %v4610 = vld [vmem:[%s4607 + $0x8] sm:$0xf]
  %v4611 = vld [vmem:[%s4607 + $0xc] sm:$0xf]
  %v4612 = vpack.c.bf16 %v4606, %v4392
  %s4613 = scalar_lea.vmem %s61, 1
  %v4614 = vld [vmem:[%s4613] sm:$0x1]
  %v4616 = vlaneseq
  %v4617 = vshrl.u32 %v4616, 7
  %v4618 = vsub.s32 0, %v4617
  %v4619 = vrot.slane %v4614, %v4618
  %v4625 = vunpack.c.l.b16 %v4608
  %v4626 = vunpack.c.l.b16 %v4609
  %v4627 = vunpack.c.l.b16 %v4610
  %v4628 = vunpack.c.l.b16 %v4611
  %v4629 = vpack.c.b16 %v4626, %v4625
  %v4630 = vpack.c.b16 %v4628, %v4627
  %v4634 = vsel %vm218, %v4612, 0
  %4636 = vmatprep.subr.bf16.mxu0 0
  %4637 = vmatpush1.bf16.msra.mxu0 %v4629
  %4638 = vmatprep.subr.bf16.mxu0 0
  %4639 = vmatpush1.bf16.msra.mxu0 %v4630
  %4640 = vmatprep.subr.bf16.mxu0 0
  %4641 = vmatpush1.bf16.msra.mxu0 0
  %4642 = vmatprep.subr.bf16.mxu0 0
  %4643 = vmatpush1.bf16.msra.mxu0 0
  %4644 = vmatprep.subr.bf16.mxu0 0
  %4645 = vmatpush1.bf16.msra.mxu0 0
  %4646 = vmatprep.subr.bf16.mxu0 0
  %4647 = vmatpush1.bf16.msra.mxu0 0
  %4648 = vmatprep.subr.bf16.mxu0 0
  %4649 = vmatpush1.bf16.msra.mxu0 0
  %4650 = vmatprep.subr.bf16.mxu0 0
  %4651 = vmatpush1.bf16.msra.mxu0 0
  %4652 = vmatprep.subr.bf16.mxu0 0
  %4653 = vmatpush1.bf16.msra.mxu0 0
  %4654 = vmatprep.subr.bf16.mxu0 0
  %4655 = vmatpush1.bf16.msra.mxu0 0
  %4656 = vmatprep.subr.bf16.mxu0 0
  %4657 = vmatpush1.bf16.msra.mxu0 0
  %4658 = vmatprep.subr.bf16.mxu0 0
  %4659 = vmatpush1.bf16.msra.mxu0 0
  %4660 = vmatprep.subr.bf16.mxu0 0
  %4661 = vmatpush1.bf16.msra.mxu0 0
  %4662 = vmatprep.subr.bf16.mxu0 0
  %4663 = vmatpush1.bf16.msra.mxu0 0
  %4664 = vmatprep.subr.bf16.mxu0 0
  %4665 = vmatpush1.bf16.msra.mxu0 0
  %4666 = vmatprep.subr.bf16.mxu0 0
  %4667 = vmatpush1.bf16.msra.mxu0 0
  %4668 = vmatprep.mubr.bf16.mxu0 0
  %4669 = vmatmul.mubr.bf16.gmra.mrb[0].mxu0 %v4634
  %v4670 = vpop.f32.mrb[0].mxu0
  %v4671 = vadd.f32 %v4619, %v4670
  %v4672 = vpop.f32.mrb[0].mxu0
  %v4673 = vpop.f32.mrb[0].mxu0
  %v4674 = vadd.f32 %v4619, %v4673
  %v4675 = vpop.f32.mrb[0].mxu0
  %4676 = vdwg.mxu0
  %v4677 = vadd.f32 %v4041, %v4671
  %v4678 = vadd.f32 %v4042, %v4674
  %s4679 = scalar_lea.vmem %s63, 1
  %v4680 = vld [vmem:[%s4679] sm:$0x1]
  %s4681 = scalar_lea.vmem %s65, 1
  %v4682 = vld [vmem:[%s4681] sm:$0x1]
  %v4683 = vsel %vm218, %v4677, 0.0
  %4684 = vadd.xlane.f32.xlu0 %v4683
  %v4685 = vpop.xlane.xlu0 %4684
  %v4686 = vsel %vm218, %v4678, 0.0
  %4687 = vadd.xlane.f32.xlu0 %v4686
  %v4688 = vpop.xlane.xlu0 %4687
  %v4689 = vmul.f32 %v4685, %v803
  %v4690 = vmul.f32 %v4688, %v803
  %v4691 = vsub.f32 %v4677, %v4689
  %v4692 = vsub.f32 %v4678, %v4690
  %v4693 = vmul.f32 %v4691, %v4691
  %v4694 = vmul.f32 %v4692, %v4692
  %v4695 = vsel %vm218, %v4693, 0.0
  %4696 = vadd.xlane.f32.xlu0 %v4695
  %v4697 = vpop.xlane.xlu0 %4696
  %v4698 = vsel %vm218, %v4694, 0.0
  %4699 = vadd.xlane.f32.xlu0 %v4698
  %v4700 = vpop.xlane.xlu0 %4699
  %v4701 = vmul.f32 %v4697, %v803
  %v4702 = vmul.f32 %v4700, %v803
  %v4703 = vadd.f32 %v4701, 1e-05
  %v4704 = vadd.f32 %v4702, 1e-05
  %v4705 = vrsqrt.pop %v4703
  %v4706 = vrsqrt.pop %v4704
  %v4707 = vmul.f32 %v4691, %v4705
  %v4708 = vmul.f32 %v4692, %v4706
  %v4710 = vlaneseq
  %v4711 = vshrl.u32 %v4710, 7
  %v4712 = vsub.s32 0, %v4711
  %v4713 = vrot.slane %v4680, %v4712
  %v4715 = vmul.f32 %v4707, %v4713
  %v4716 = vmul.f32 %v4708, %v4713
  %v4718 = vlaneseq
  %v4719 = vshrl.u32 %v4718, 7
  %v4720 = vsub.s32 0, %v4719
  %v4721 = vrot.slane %v4682, %v4720
  %v4723 = vadd.f32 %v4715, %v4721
  %v4724 = vadd.f32 %v4716, %v4721
  %s4725 = scalar_lea.vmem %s67, 16
  %v4726 = vld [vmem:[%s4725] sm:$0xf]
  %v4727 = vld [vmem:[%s4725 + $0x4] sm:$0xf]
  %v4728 = vld [vmem:[%s4725 + $0x8] sm:$0xf]
  %v4729 = vld [vmem:[%s4725 + $0xc] sm:$0xf]
  %v4730 = vpack.c.bf16 %v4724, %v4723
  %s4731 = scalar_lea.vmem %s69, 1
  %v4732 = vld [vmem:[%s4731] sm:$0x1]
  %v4734 = vlaneseq
  %v4735 = vshrl.u32 %v4734, 7
  %v4736 = vsub.s32 0, %v4735
  %v4737 = vrot.slane %v4732, %v4736
  %v4743 = vunpack.c.l.b16 %v4726
  %v4744 = vunpack.c.l.b16 %v4727
  %v4745 = vunpack.c.l.b16 %v4728
  %v4746 = vunpack.c.l.b16 %v4729
  %v4747 = vpack.c.b16 %v4744, %v4743
  %v4748 = vpack.c.b16 %v4746, %v4745
  %v4752 = vsel %vm218, %v4730, 0
  %4754 = vmatprep.subr.bf16.mxu0 0
  %4755 = vmatpush1.bf16.msra.mxu0 %v4747
  %4756 = vmatprep.subr.bf16.mxu0 0
  %4757 = vmatpush1.bf16.msra.mxu0 %v4748
  %4758 = vmatprep.subr.bf16.mxu0 0
  %4759 = vmatpush1.bf16.msra.mxu0 0
  %4760 = vmatprep.subr.bf16.mxu0 0
  %4761 = vmatpush1.bf16.msra.mxu0 0
  %4762 = vmatprep.subr.bf16.mxu0 0
  %4763 = vmatpush1.bf16.msra.mxu0 0
  %4764 = vmatprep.subr.bf16.mxu0 0
  %4765 = vmatpush1.bf16.msra.mxu0 0
  %4766 = vmatprep.subr.bf16.mxu0 0
  %4767 = vmatpush1.bf16.msra.mxu0 0
  %4768 = vmatprep.subr.bf16.mxu0 0
  %4769 = vmatpush1.bf16.msra.mxu0 0
  %4770 = vmatprep.subr.bf16.mxu0 0
  %4771 = vmatpush1.bf16.msra.mxu0 0
  %4772 = vmatprep.subr.bf16.mxu0 0
  %4773 = vmatpush1.bf16.msra.mxu0 0
  %4774 = vmatprep.subr.bf16.mxu0 0
  %4775 = vmatpush1.bf16.msra.mxu0 0
  %4776 = vmatprep.subr.bf16.mxu0 0
  %4777 = vmatpush1.bf16.msra.mxu0 0
  %4778 = vmatprep.subr.bf16.mxu0 0
  %4779 = vmatpush1.bf16.msra.mxu0 0
  %4780 = vmatprep.subr.bf16.mxu0 0
  %4781 = vmatpush1.bf16.msra.mxu0 0
  %4782 = vmatprep.subr.bf16.mxu0 0
  %4783 = vmatpush1.bf16.msra.mxu0 0
  %4784 = vmatprep.subr.bf16.mxu0 0
  %4785 = vmatpush1.bf16.msra.mxu0 0
  %4786 = vmatprep.mubr.bf16.mxu0 0
  %4787 = vmatmul.mubr.bf16.gmra.mrb[0].mxu0 %v4752
  %v4788 = vpop.f32.mrb[0].mxu0
  %v4789 = vadd.f32 %v4737, %v4788
  %v4790 = vpop.f32.mrb[0].mxu0
  %v4791 = vpop.f32.mrb[0].mxu0
  %v4792 = vadd.f32 %v4737, %v4791
  %v4793 = vpop.f32.mrb[0].mxu0
  %4794 = vdwg.mxu0
  %v4795 = vmax.f32 %v4789, 0.0
  %v4796 = vmax.f32 %v4792, 0.0
  %s4797 = scalar_lea.vmem %s71, 32
  %v4798 = vld [vmem:[%s4797] sm:$0xf]
  %v4799 = vld [vmem:[%s4797 + $0x4] sm:$0xf]
  %v4800 = vld [vmem:[%s4797 + $0x8] sm:$0xf]
  %v4801 = vld [vmem:[%s4797 + $0xc] sm:$0xf]
  %v4802 = vld [vmem:[%s4797 + $0x10] sm:$0xf]
  %v4803 = vld [vmem:[%s4797 + $0x14] sm:$0xf]
  %v4804 = vld [vmem:[%s4797 + $0x18] sm:$0xf]
  %v4805 = vld [vmem:[%s4797 + $0x1c] sm:$0xf]
  %v4806 = vpack.c.bf16 %v4796, %v4795
  %s4807 = scalar_lea.vmem %s73, 1
  %v4808 = vld [vmem:[%s4807] sm:$0x1]
  %v4810 = vlaneseq
  %v4811 = vshrl.u32 %v4810, 7
  %v4812 = vsub.s32 0, %v4811
  %v4813 = vrot.slane %v4808, %v4812
  %v4823 = vunpack.c.l.b16 %v4798
  %v4824 = vunpack.c.l.b16 %v4799
  %v4825 = vunpack.c.l.b16 %v4800
  %v4826 = vunpack.c.l.b16 %v4801
  %v4827 = vunpack.c.l.b16 %v4802
  %v4828 = vunpack.c.l.b16 %v4803
  %v4829 = vunpack.c.l.b16 %v4804
  %v4830 = vunpack.c.l.b16 %v4805
  %v4831 = vpack.c.b16 %v4824, %v4823
  %v4832 = vpack.c.b16 %v4826, %v4825
  %v4833 = vpack.c.b16 %v4828, %v4827
  %v4834 = vpack.c.b16 %v4830, %v4829
  %v4840 = vsel %vm950, %v4806, 0
  %4842 = vmatprep.subr.bf16.mxu0 0
  %4843 = vmatpush1.bf16.msra.mxu0 %v4831
  %4844 = vmatprep.subr.bf16.mxu0 0
  %4845 = vmatpush1.bf16.msra.mxu0 %v4832
  %4846 = vmatprep.subr.bf16.mxu0 0
  %4847 = vmatpush1.bf16.msra.mxu0 %v4833
  %4848 = vmatprep.subr.bf16.mxu0 0
  %4849 = vmatpush1.bf16.msra.mxu0 %v4834
  %4850 = vmatprep.subr.bf16.mxu0 0
  %4851 = vmatpush1.bf16.msra.mxu0 0
  %4852 = vmatprep.subr.bf16.mxu0 0
  %4853 = vmatpush1.bf16.msra.mxu0 0
  %4854 = vmatprep.subr.bf16.mxu0 0
  %4855 = vmatpush1.bf16.msra.mxu0 0
  %4856 = vmatprep.subr.bf16.mxu0 0
  %4857 = vmatpush1.bf16.msra.mxu0 0
  %4858 = vmatprep.subr.bf16.mxu0 0
  %4859 = vmatpush1.bf16.msra.mxu0 0
  %4860 = vmatprep.subr.bf16.mxu0 0
  %4861 = vmatpush1.bf16.msra.mxu0 0
  %4862 = vmatprep.subr.bf16.mxu0 0
  %4863 = vmatpush1.bf16.msra.mxu0 0
  %4864 = vmatprep.subr.bf16.mxu0 0
  %4865 = vmatpush1.bf16.msra.mxu0 0
  %4866 = vmatprep.subr.bf16.mxu0 0
  %4867 = vmatpush1.bf16.msra.mxu0 0
  %4868 = vmatprep.subr.bf16.mxu0 0
  %4869 = vmatpush1.bf16.msra.mxu0 0
  %4870 = vmatprep.subr.bf16.mxu0 0
  %4871 = vmatpush1.bf16.msra.mxu0 0
  %4872 = vmatprep.subr.bf16.mxu0 0
  %4873 = vmatpush1.bf16.msra.mxu0 0
  %4874 = vmatprep.mubr.bf16.mxu0 0
  %4875 = vmatmul.mubr.bf16.gmra.mrb[0].mxu0 %v4840
  %v4876 = vpop.f32.mrb[0].mxu0
  %v4877 = vadd.f32 %v4813, %v4876
  %v4878 = vpop.f32.mrb[0].mxu0
  %v4879 = vpop.f32.mrb[0].mxu0
  %v4880 = vadd.f32 %v4813, %v4879
  %v4881 = vpop.f32.mrb[0].mxu0
  %4882 = vdwg.mxu0
  %v4883 = vadd.f32 %v4723, %v4877
  %v4884 = vadd.f32 %v4724, %v4880
  %s4885 = scalar_lea.vmem %s75, 1
  %v4886 = vld [vmem:[%s4885] sm:$0x1]
  %s4887 = scalar_lea.vmem %s77, 1
  %v4888 = vld [vmem:[%s4887] sm:$0x1]
  %v4889 = vsel %vm218, %v4883, 0.0
  %4890 = vadd.xlane.f32.xlu0 %v4889
  %v4891 = vpop.xlane.xlu0 %4890
  %v4892 = vsel %vm218, %v4884, 0.0
  %4893 = vadd.xlane.f32.xlu0 %v4892
  %v4894 = vpop.xlane.xlu0 %4893
  %v4895 = vmul.f32 %v4891, %v803
  %v4896 = vmul.f32 %v4894, %v803
  %v4897 = vsub.f32 %v4883, %v4895
  %v4898 = vsub.f32 %v4884, %v4896
  %v4899 = vmul.f32 %v4897, %v4897
  %v4900 = vmul.f32 %v4898, %v4898
  %v4901 = vsel %vm218, %v4899, 0.0
  %4902 = vadd.xlane.f32.xlu0 %v4901
  %v4903 = vpop.xlane.xlu0 %4902
  %v4904 = vsel %vm218, %v4900, 0.0
  %4905 = vadd.xlane.f32.xlu0 %v4904
  %v4906 = vpop.xlane.xlu0 %4905
  %v4907 = vmul.f32 %v4903, %v803
  %v4908 = vmul.f32 %v4906, %v803
  %v4909 = vadd.f32 %v4907, 1e-05
  %v4910 = vadd.f32 %v4908, 1e-05
  %v4911 = vrsqrt.pop %v4909
  %v4912 = vrsqrt.pop %v4910
  %v4913 = vmul.f32 %v4897, %v4911
  %v4914 = vmul.f32 %v4898, %v4912
  %v4916 = vlaneseq
  %v4917 = vshrl.u32 %v4916, 7
  %v4918 = vsub.s32 0, %v4917
  %v4919 = vrot.slane %v4886, %v4918
  %v4921 = vmul.f32 %v4913, %v4919
  %v4922 = vmul.f32 %v4914, %v4919
  %v4924 = vlaneseq
  %v4925 = vshrl.u32 %v4924, 7
  %v4926 = vsub.s32 0, %v4925
  %v4927 = vrot.slane %v4888, %v4926
  %v4929 = vadd.f32 %v4921, %v4927
  %v4930 = vadd.f32 %v4922, %v4927
  %v4931 = vld [vmem:[%s79] sm:$0x1]
  %v4932 = vld [vmem:[%s81] sm:$0x1]
  %v4933 = vsel %vm218, %v4929, 0.0
  %4934 = vadd.xlane.f32.xlu0 %v4933
  %v4935 = vpop.xlane.xlu0 %4934
  %v4936 = vsel %vm218, %v4930, 0.0
  %4937 = vadd.xlane.f32.xlu0 %v4936
  %v4938 = vpop.xlane.xlu0 %4937
  %v4939 = vmul.f32 %v4935, %v803
  %v4940 = vmul.f32 %v4938, %v803
  %v4941 = vsub.f32 %v4929, %v4939
  %v4942 = vsub.f32 %v4930, %v4940
  %v4943 = vmul.f32 %v4941, %v4941
  %v4944 = vmul.f32 %v4942, %v4942
  %v4945 = vsel %vm218, %v4943, 0.0
  %4946 = vadd.xlane.f32.xlu0 %v4945
  %v4947 = vpop.xlane.xlu0 %4946
  %v4948 = vsel %vm218, %v4944, 0.0
  %4949 = vadd.xlane.f32.xlu0 %v4948
  %v4950 = vpop.xlane.xlu0 %4949
  %v4951 = vmul.f32 %v4947, %v803
  %v4952 = vmul.f32 %v4950, %v803
  %v4953 = vadd.f32 %v4951, 1e-05
  %v4954 = vadd.f32 %v4952, 1e-05
  %v4955 = vrsqrt.pop %v4953
  %v4956 = vrsqrt.pop %v4954
  %v4957 = vmul.f32 %v4941, %v4955
  %v4958 = vmul.f32 %v4942, %v4956
  %v4960 = vlaneseq
  %v4961 = vshrl.u32 %v4960, 7
  %v4962 = vsub.s32 0, %v4961
  %v4963 = vrot.slane %v4931, %v4962
  %v4965 = vmul.f32 %v4957, %v4963
  %v4966 = vmul.f32 %v4958, %v4963
  %v4968 = vlaneseq
  %v4969 = vshrl.u32 %v4968, 7
  %v4970 = vsub.s32 0, %v4969
  %v4971 = vrot.slane %v4932, %v4970
  %v4973 = vadd.f32 %v4965, %v4971
  %v4974 = vadd.f32 %v4966, %v4971
  %v4975 = vld [vmem:[%s83] sm:$0xf]
  %v4976 = vld [vmem:[%s83 + $0x4] sm:$0xf]
  %v4977 = vld [vmem:[%s83 + $0x8] sm:$0xf]
  %v4978 = vld [vmem:[%s83 + $0xc] sm:$0xf]
  %v4979 = vpack.c.bf16 %v4974, %v4973
  %v4980 = vld [vmem:[%s85] sm:$0x1]
  %v4982 = vlaneseq
  %v4983 = vshrl.u32 %v4982, 7
  %v4984 = vsub.s32 0, %v4983
  %v4985 = vrot.slane %v4980, %v4984
  %v4991 = vunpack.c.l.b16 %v4975
  %v4992 = vunpack.c.l.b16 %v4976
  %v4993 = vunpack.c.l.b16 %v4977
  %v4994 = vunpack.c.l.b16 %v4978
  %v4995 = vpack.c.b16 %v4992, %v4991
  %v4996 = vpack.c.b16 %v4994, %v4993
  %v5000 = vsel %vm218, %v4979, 0
  %5002 = vmatprep.subr.bf16.mxu0 0
  %5003 = vmatpush1.bf16.msra.mxu0 %v4995
  %5004 = vmatprep.subr.bf16.mxu0 0
  %5005 = vmatpush1.bf16.msra.mxu0 %v4996
  %5006 = vmatprep.subr.bf16.mxu0 0
  %5007 = vmatpush1.bf16.msra.mxu0 0
  %5008 = vmatprep.subr.bf16.mxu0 0
  %5009 = vmatpush1.bf16.msra.mxu0 0
  %5010 = vmatprep.subr.bf16.mxu0 0
  %5011 = vmatpush1.bf16.msra.mxu0 0
  %5012 = vmatprep.subr.bf16.mxu0 0
  %5013 = vmatpush1.bf16.msra.mxu0 0
  %5014 = vmatprep.subr.bf16.mxu0 0
  %5015 = vmatpush1.bf16.msra.mxu0 0
  %5016 = vmatprep.subr.bf16.mxu0 0
  %5017 = vmatpush1.bf16.msra.mxu0 0
  %5018 = vmatprep.subr.bf16.mxu0 0
  %5019 = vmatpush1.bf16.msra.mxu0 0
  %5020 = vmatprep.subr.bf16.mxu0 0
  %5021 = vmatpush1.bf16.msra.mxu0 0
  %5022 = vmatprep.subr.bf16.mxu0 0
  %5023 = vmatpush1.bf16.msra.mxu0 0
  %5024 = vmatprep.subr.bf16.mxu0 0
  %5025 = vmatpush1.bf16.msra.mxu0 0
  %5026 = vmatprep.subr.bf16.mxu0 0
  %5027 = vmatpush1.bf16.msra.mxu0 0
  %5028 = vmatprep.subr.bf16.mxu0 0
  %5029 = vmatpush1.bf16.msra.mxu0 0
  %5030 = vmatprep.subr.bf16.mxu0 0
  %5031 = vmatpush1.bf16.msra.mxu0 0
  %5032 = vmatprep.subr.bf16.mxu0 0
  %5033 = vmatpush1.bf16.msra.mxu0 0
  %5034 = vmatprep.mubr.bf16.mxu0 0
  %5035 = vmatmul.mubr.bf16.gmra.mrb[0].mxu0 %v5000
  %v5036 = vpop.f32.mrb[0].mxu0
  %v5037 = vadd.f32 %v4985, %v5036
  %v5038 = vpop.f32.mrb[0].mxu0
  %v5039 = vpop.f32.mrb[0].mxu0
  %v5040 = vadd.f32 %v4985, %v5039
  %v5041 = vpop.f32.mrb[0].mxu0
  %5042 = vdwg.mxu0
  %5043 = vst [vmem:[%s87] sm:$0xff] %v5037
  %5044 = vst [vmem:[%s87 + $0x8] sm:$0xff] %v5040
  // Predicated region
  $region174: #{transformer_forward.1} parent=0 // pred_check
    _
  $region175: #{transformer_forward.1} parent=0 // pred_check_branch
    %5046 = sbr.rel (0) target = $region177
  $region176: #{transformer_forward.1} parent=0 // pred_region
    _
  $region177: #{transformer_forward.1} parent=0 // pred_fallthru
    _
  // Predicated region
  $region178: #{transformer_forward.1} parent=0 // pred_check
    _
  $region179: #{transformer_forward.1} parent=0 // pred_check_branch
    %5048 = sbr.rel (0) target = $region181
  $region180: #{transformer_forward.1} parent=0 // pred_region
    _
  $region181: #{transformer_forward.1} parent=0 // pred_fallthru
    _

</llo_original>
